<compile_context>
chip_gen: v5e
topology: v5e:2x2
jax: 0.10.0
libtpu: 0.0.40
codegen_flags: <defaults>
</compile_context>

<pallas_src>
import functools

import jax
import jax.numpy as jnp
from jax.experimental import pallas as pl
from jax.experimental.pallas import tpu as pltpu

EPS = 1e-5


def _fill_reflect_pad(pad_ref, img, H, W):
    """Write reflection-pad-1 of img (H, W, C) into pad_ref (H+2, W+2, C)."""
    pad_ref[1:H + 1, 1:W + 1, :] = img
    pad_ref[0:1, 1:W + 1, :] = img[1:2]                    # top row    <- row 1
    pad_ref[H + 1:H + 2, 1:W + 1, :] = img[H - 2:H - 1]    # bottom row <- row H-2
    # Full columns (including corners) copied from already-written columns.
    pad_ref[:, 0:1, :] = pad_ref[:, 2:3, :]                # left col   <- col 2
    pad_ref[:, W + 1:W + 2, :] = pad_ref[:, W - 1:W, :]    # right col  <- col W-1


def _conv3x3(pad_ref, w_ref, H, W, C):
    """3x3 valid conv as 9 accumulated K=C MXU dots.

    pad_ref: (H+2, W+2, C) bf16 padded image; w_ref: (9, C, C) bf16 with row
    index t = ky*3 + kx.  Returns the raw (HW, C) f32 conv output (no bias).
    """
    acc = None
    for t in range(9):
        dy, dx = divmod(t, 3)
        tap = pad_ref[dy:dy + H, dx:dx + W, :].reshape(H * W, C)
        part = jnp.dot(tap, w_ref[t], preferred_element_type=jnp.float32)
        acc = part if acc is None else acc + part
    return acc


def _ada_iln_affine(y0, b_conv, rho, gamma, beta, n_hw, n_ch):
    """Return (a, c) with  adaILN(y0 + b_conv; rho, gamma, beta) == y0 * a + c.

    y0: (HW, C) f32 raw conv output (bias NOT added); b_conv/rho/gamma/beta: (1, C).
    Matches torch (unbiased variances, eps inside the sqrt).
    """
    inv_hw = 1.0 / n_hw
    s1 = jnp.sum(y0, axis=0, keepdims=True)               # (1, C)
    mu0 = s1 * inv_hw                                     # per-channel mean of y0
    d = y0 - mu0
    ss = jnp.sum(d * d, axis=0, keepdims=True)            # centred SS (bias-invariant)
    in_mean = mu0 + b_conv                                # per-channel mean of y0 + b
    in_var = ss * (1.0 / (n_hw - 1))                      # unbiased (torch.var)

    # Layer-norm stats derived exactly from the per-channel partials:
    #   sum (y - ln_mean)^2 = sum_c ss_c + HW * sum_c (in_mean_c - ln_mean)^2
    ln_mean = jnp.sum(in_mean, keepdims=True) * (1.0 / n_ch)          # (1, 1)
    dm = in_mean - ln_mean
    ln_ss = jnp.sum(ss, keepdims=True) + n_hw * jnp.sum(dm * dm, keepdims=True)
    ln_var = ln_ss * (1.0 / (n_hw * n_ch - 1))            # (1, 1), unbiased

    inv_in = jax.lax.rsqrt(in_var + EPS)                  # (1, C)  (EUP)
    inv_ln = jax.lax.rsqrt(ln_var + EPS)                  # (1, 1)  (EUP)

    one_m_rho = 1.0 - rho
    a = gamma * (rho * inv_in + one_m_rho * inv_ln)
    c = (beta - gamma * (rho * in_mean * inv_in + one_m_rho * ln_mean * inv_ln)
         + a * b_conv)                                    # conv bias folded in
    return a, c


def _resnet_adailn_kernel(x_ref, gamma_ref, beta_ref,
                          w1_ref, b1_ref, rho1_ref,
                          w2_ref, b2_ref, rho2_ref,
                          o_ref, pad_ref, *, H, W, C):
    n_hw = H * W
    x_img = x_ref[0]                 # (H, W, C) f32 — residual stays f32
    gamma = gamma_ref[0]             # (1, C) per-batch block, no dynamic index
    beta = beta_ref[0]               # (1, C)
    b1 = b1_ref[...]                 # (1, C)
    b2 = b2_ref[...]
    rho1 = rho1_ref[...]
    rho2 = rho2_ref[...]

    # --- reflect pad (scratch) -> conv1 -> adaILN -> relu ---
    _fill_reflect_pad(pad_ref, x_img.astype(pad_ref.dtype), H, W)
    y0 = _conv3x3(pad_ref, w1_ref, H, W, C)                      # (HW, C) f32
    a1, c1 = _ada_iln_affine(y0, b1, rho1, gamma, beta, n_hw, C)
    y = jnp.maximum(y0 * a1 + c1, 0.0)

    # --- reflect pad (same scratch, overwritten) -> conv2 -> adaILN ---
    _fill_reflect_pad(pad_ref, y.reshape(H, W, C).astype(pad_ref.dtype), H, W)
    z0 = _conv3x3(pad_ref, w2_ref, H, W, C)                      # (HW, C) f32
    a2, c2 = _ada_iln_affine(z0, b2, rho2, gamma, beta, n_hw, C)

    # --- residual add, channels-last store ---
    o_ref[0] = (z0 * a2 + c2 + x_img.reshape(n_hw, C)).astype(o_ref.dtype)


def resnet_adailn_block_nhwc(x_nhwc, gamma, beta, w1, b1, rho1, w2, b2, rho2):
    """Channels-last entry point.

    x_nhwc: (N,H,W,C) f32; gamma/beta: (N,C); w*: (Cout,Cin,3,3) OIHW; b*,rho*: (C,).
    Returns (N,H,W,C) f32.
    """
    N, H, W, C = x_nhwc.shape
    HW = H * W

    x = x_nhwc.astype(jnp.float32)
    # OIHW -> (ky, kx, Cin, Cout) -> (9, Cin, Cout); bf16 once for the MXU.
    wm1 = jnp.transpose(w1, (2, 3, 1, 0)).reshape(9, C, C).astype(jnp.bfloat16)
    wm2 = jnp.transpose(w2, (2, 3, 1, 0)).reshape(9, C, C).astype(jnp.bfloat16)
    gam = gamma.reshape(N, 1, C).astype(jnp.float32)
    bet = beta.reshape(N, 1, C).astype(jnp.float32)
    b1r = b1.reshape(1, C).astype(jnp.float32)
    b2r = b2.reshape(1, C).astype(jnp.float32)
    r1r = rho1.reshape(1, C).astype(jnp.float32)
    r2r = rho2.reshape(1, C).astype(jnp.float32)

    kernel = functools.partial(_resnet_adailn_kernel, H=H, W=W, C=C)

    out = pl.pallas_call(
        kernel,
        out_shape=jax.ShapeDtypeStruct((N, HW, C), jnp.float32),
        grid_spec=pltpu.PrefetchScalarGridSpec(
            num_scalar_prefetch=0,
            grid=(N,),
            in_specs=[
                pl.BlockSpec((1, H, W, C), lambda n: (n, 0, 0, 0)),   # x
                pl.BlockSpec((1, 1, C), lambda n: (n, 0, 0)),         # gamma
                pl.BlockSpec((1, 1, C), lambda n: (n, 0, 0)),         # beta
                pl.BlockSpec((9, C, C), lambda n: (0, 0, 0)),         # w1 (bf16)
                pl.BlockSpec((1, C), lambda n: (0, 0)),               # b1
                pl.BlockSpec((1, C), lambda n: (0, 0)),               # rho1
                pl.BlockSpec((9, C, C), lambda n: (0, 0, 0)),         # w2 (bf16)
                pl.BlockSpec((1, C), lambda n: (0, 0)),               # b2
                pl.BlockSpec((1, C), lambda n: (0, 0)),               # rho2
            ],
            out_specs=pl.BlockSpec((1, HW, C), lambda n: (n, 0, 0)),
            scratch_shapes=[pltpu.VMEM((H + 2, W + 2, C), jnp.bfloat16)],
        ),
        compiler_params=pltpu.CompilerParams(
            dimension_semantics=("parallel",),
            vmem_limit_bytes=48 * 1024 * 1024),
    )(x, gam, bet, wm1, b1r, r1r, wm2, b2r, r2r)

    return out.reshape(N, H, W, C)


def resnet_adailn_block(x_nchw, gamma, beta, w1, b1, rho1, w2, b2, rho2):
    """NCHW adapter matching the PyTorch interface.  When stacking several
    ResnetAdaILNBlocks, call resnet_adailn_block_nhwc directly to avoid the
    two HBM layout transposes per block."""
    x_nhwc = jnp.transpose(x_nchw, (0, 2, 3, 1))
    out = resnet_adailn_block_nhwc(x_nhwc, gamma, beta, w1, b1, rho1, w2, b2, rho2)
    return jnp.transpose(out, (0, 3, 1, 2))


# ----------------------- pure-JAX reference (for verification) -----------------------
def _ref_adailn(x, rho, gamma, beta):
    # x: NCHW
    C, H, W = x.shape[1], x.shape[2], x.shape[3]
    in_mean = jnp.mean(x, axis=(2, 3), keepdims=True)
    in_var = jnp.sum((x - in_mean) ** 2, axis=(2, 3), keepdims=True) / (H * W - 1)
    out_in = (x - in_mean) / jnp.sqrt(in_var + EPS)
    ln_mean = jnp.mean(x, axis=(1, 2, 3), keepdims=True)
    ln_var = jnp.sum((x - ln_mean) ** 2, axis=(1, 2, 3), keepdims=True) / (C * H * W - 1)
    out_ln = (x - ln_mean) / jnp.sqrt(ln_var + EPS)
    r = rho.reshape(1, -1, 1, 1)
    out = r * out_in + (1.0 - r) * out_ln
    return out * gamma[:, :, None, None] + beta[:, :, None, None]


def _ref_conv3x3_reflect(x, w_oihw, b):
    xp = jnp.pad(x, ((0, 0), (0, 0), (1, 1), (1, 1)), mode="reflect")
    y = jax.lax.conv_general_dilated(
        xp, w_oihw, window_strides=(1, 1), padding="VALID",
        dimension_numbers=("NCHW", "OIHW", "NCHW"))
    return y + b.reshape(1, -1, 1, 1)


def _ref_block(x, gamma, beta, w1, b1, rho1, w2, b2, rho2):
    out = _ref_conv3x3_reflect(x, w1, b1)
    out = _ref_adailn(out, rho1, gamma, beta)
    out = jnp.maximum(out, 0.0)
    out = _ref_conv3x3_reflect(out, w2, b2)
    out = _ref_adailn(out, rho2, gamma, beta)
    return out + x


if __name__ == "__main__":
    N, C, H, W = 2, 4, 16, 16   # dim = 4, use_bias = True
    key = jax.random.PRNGKey(0)
    k = jax.random.split(key, 7)

    x = jax.random.normal(k[0], (N, C, H, W), jnp.float32)
    gamma = jax.random.normal(k[1], (N, C), jnp.float32) * 0.5 + 1.0
    beta = jax.random.normal(k[2], (N, C), jnp.float32) * 0.5

    # Deterministic synthetic parameters (PyTorch-convention OIHW conv weights).
    w1 = jax.random.normal(k[3], (C, C, 3, 3), jnp.float32) * 0.1
    b1 = jax.random.normal(k[4], (C,), jnp.float32) * 0.1
    w2 = jax.random.normal(k[5], (C, C, 3, 3), jnp.float32) * 0.1
    b2 = jax.random.normal(k[6], (C,), jnp.float32) * 0.1
    rho1 = jnp.full((C,), 0.9, jnp.float32)   # adaILN rho init
    rho2 = jnp.full((C,), 0.9, jnp.float32)

    out = resnet_adailn_block(x, gamma, beta, w1, b1, rho1, w2, b2, rho2)
    out = jax.block_until_ready(out)

    ref = _ref_block(x, gamma, beta, w1, b1, rho1, w2, b2, rho2)
    assert out.shape == (N, C, H, W)
    # bf16 matmul operands -> loosened tolerance (stats/accumulation stay f32).
    assert jnp.allclose(out, ref, rtol=6e-2, atol=6e-2), (
        float(jnp.max(jnp.abs(out - ref))))

    print("KERNEL_OK")
</pallas_src>

<mosaic_0001>
module attributes {stable_mosaic.version = 11 : i64} {
  func.func @_resnet_adailn_kernel(%arg0: i32, %arg1: memref<1x16x16x4xf32, #tpu.memory_space<vmem>>, %arg2: memref<1x1x4xf32, #tpu.memory_space<vmem>>, %arg3: memref<1x1x4xf32, #tpu.memory_space<vmem>>, %arg4: memref<9x4x4xbf16, #tpu.memory_space<vmem>>, %arg5: memref<1x4xf32, #tpu.memory_space<vmem>>, %arg6: memref<1x4xf32, #tpu.memory_space<vmem>>, %arg7: memref<9x4x4xbf16, #tpu.memory_space<vmem>>, %arg8: memref<1x4xf32, #tpu.memory_space<vmem>>, %arg9: memref<1x4xf32, #tpu.memory_space<vmem>>, %arg10: memref<1x256x4xf32, #tpu.memory_space<vmem>>, %arg11: memref<18x18x4xbf16, #tpu.memory_space<vmem>>) attributes {dimension_semantics = [#tpu.dimension_semantics<parallel>], iteration_bounds = array<i64: 2>, scalar_prefetch = 0 : i64, scratch_operands = 1 : i64, tpu.core_type = #tpu.core_type<tc>, window_params = [{transform_indices = @transform_0, window_bounds = array<i64: 1, 16, 16, 4>}, {transform_indices = @transform_1, window_bounds = array<i64: 1, 1, 4>}, {transform_indices = @transform_2, window_bounds = array<i64: 1, 1, 4>}, {pipeline_mode = #tpu.pipeline_mode<synchronous>, transform_indices = @transform_3, window_bounds = array<i64: 9, 4, 4>}, {pipeline_mode = #tpu.pipeline_mode<synchronous>, transform_indices = @transform_4, window_bounds = array<i64: 1, 4>}, {pipeline_mode = #tpu.pipeline_mode<synchronous>, transform_indices = @transform_5, window_bounds = array<i64: 1, 4>}, {pipeline_mode = #tpu.pipeline_mode<synchronous>, transform_indices = @transform_6, window_bounds = array<i64: 9, 4, 4>}, {pipeline_mode = #tpu.pipeline_mode<synchronous>, transform_indices = @transform_7, window_bounds = array<i64: 1, 4>}, {pipeline_mode = #tpu.pipeline_mode<synchronous>, transform_indices = @transform_8, window_bounds = array<i64: 1, 4>}, {transform_indices = @transform_9, window_bounds = array<i64: 1, 256, 4>}]} {
    %c0 = arith.constant 0 : index
    %c0_0 = arith.constant 0 : index
    %c0_1 = arith.constant 0 : index
    %c0_2 = arith.constant 0 : index
    %0 = vector.load %arg1[%c0, %c0_0, %c0_1, %c0_2] : memref<1x16x16x4xf32, #tpu.memory_space<vmem>>, vector<1x16x16x4xf32>
    %1 = vector.shape_cast %0 : vector<1x16x16x4xf32> to vector<16x16x4xf32>
    %c0_3 = arith.constant 0 : index
    %c0_4 = arith.constant 0 : index
    %c0_5 = arith.constant 0 : index
    %2 = vector.load %arg2[%c0_3, %c0_4, %c0_5] : memref<1x1x4xf32, #tpu.memory_space<vmem>>, vector<1x1x4xf32>
    %3 = vector.shape_cast %2 : vector<1x1x4xf32> to vector<1x4xf32>
    %c0_6 = arith.constant 0 : index
    %c0_7 = arith.constant 0 : index
    %c0_8 = arith.constant 0 : index
    %4 = vector.load %arg3[%c0_6, %c0_7, %c0_8] : memref<1x1x4xf32, #tpu.memory_space<vmem>>, vector<1x1x4xf32>
    %5 = vector.shape_cast %4 : vector<1x1x4xf32> to vector<1x4xf32>
    %c0_9 = arith.constant 0 : index
    %c0_10 = arith.constant 0 : index
    %6 = vector.load %arg5[%c0_9, %c0_10] : memref<1x4xf32, #tpu.memory_space<vmem>>, vector<1x4xf32>
    %c0_11 = arith.constant 0 : index
    %c0_12 = arith.constant 0 : index
    %7 = vector.load %arg8[%c0_11, %c0_12] : memref<1x4xf32, #tpu.memory_space<vmem>>, vector<1x4xf32>
    %c0_13 = arith.constant 0 : index
    %c0_14 = arith.constant 0 : index
    %8 = vector.load %arg6[%c0_13, %c0_14] : memref<1x4xf32, #tpu.memory_space<vmem>>, vector<1x4xf32>
    %c0_15 = arith.constant 0 : index
    %c0_16 = arith.constant 0 : index
    %9 = vector.load %arg9[%c0_15, %c0_16] : memref<1x4xf32, #tpu.memory_space<vmem>>, vector<1x4xf32>
    %10 = arith.truncf %1 : vector<16x16x4xf32> to vector<16x16x4xbf16>
    %c1 = arith.constant 1 : index
    %c1_17 = arith.constant 1 : index
    %c0_18 = arith.constant 0 : index
    %11 = vector.load %arg11[%c1, %c1_17, %c0_18] : memref<18x18x4xbf16, #tpu.memory_space<vmem>>, vector<16x16x4xbf16>
    tpu.vector_store %arg11[%c1, %c1_17, %c0_18], %10 {strides = array<i32>} : memref<18x18x4xbf16, #tpu.memory_space<vmem>>, vector<16x16x4xbf16>,
    %12 = vector.extract_strided_slice %10 {offsets = [1, 0, 0], sizes = [1, 16, 4], strides = [1, 1, 1]} : vector<16x16x4xbf16> to vector<1x16x4xbf16>
    %c0_19 = arith.constant 0 : index
    %c1_20 = arith.constant 1 : index
    %c0_21 = arith.constant 0 : index
    %13 = vector.load %arg11[%c0_19, %c1_20, %c0_21] : memref<18x18x4xbf16, #tpu.memory_space<vmem>>, vector<1x16x4xbf16>
    tpu.vector_store %arg11[%c0_19, %c1_20, %c0_21], %12 {strides = array<i32>} : memref<18x18x4xbf16, #tpu.memory_space<vmem>>, vector<1x16x4xbf16>,
    %14 = vector.extract_strided_slice %10 {offsets = [14, 0, 0], sizes = [1, 16, 4], strides = [1, 1, 1]} : vector<16x16x4xbf16> to vector<1x16x4xbf16>
    %c17 = arith.constant 17 : index
    %c1_22 = arith.constant 1 : index
    %c0_23 = arith.constant 0 : index
    %15 = vector.load %arg11[%c17, %c1_22, %c0_23] : memref<18x18x4xbf16, #tpu.memory_space<vmem>>, vector<1x16x4xbf16>
    tpu.vector_store %arg11[%c17, %c1_22, %c0_23], %14 {strides = array<i32>} : memref<18x18x4xbf16, #tpu.memory_space<vmem>>, vector<1x16x4xbf16>,
    %c0_24 = arith.constant 0 : index
    %c2 = arith.constant 2 : index
    %c0_25 = arith.constant 0 : index
    %16 = vector.load %arg11[%c0_24, %c2, %c0_25] : memref<18x18x4xbf16, #tpu.memory_space<vmem>>, vector<18x1x4xbf16>
    %c0_26 = arith.constant 0 : index
    %c0_27 = arith.constant 0 : index
    %c0_28 = arith.constant 0 : index
    %17 = vector.load %arg11[%c0_26, %c0_27, %c0_28] : memref<18x18x4xbf16, #tpu.memory_space<vmem>>, vector<18x1x4xbf16>
    tpu.vector_store %arg11[%c0_26, %c0_27, %c0_28], %16 {strides = array<i32>} : memref<18x18x4xbf16, #tpu.memory_space<vmem>>, vector<18x1x4xbf16>,
    %c0_29 = arith.constant 0 : index
    %c15 = arith.constant 15 : index
    %c0_30 = arith.constant 0 : index
    %18 = vector.load %arg11[%c0_29, %c15, %c0_30] : memref<18x18x4xbf16, #tpu.memory_space<vmem>>, vector<18x1x4xbf16>
    %c0_31 = arith.constant 0 : index
    %c17_32 = arith.constant 17 : index
    %c0_33 = arith.constant 0 : index
    %19 = vector.load %arg11[%c0_31, %c17_32, %c0_33] : memref<18x18x4xbf16, #tpu.memory_space<vmem>>, vector<18x1x4xbf16>
    tpu.vector_store %arg11[%c0_31, %c17_32, %c0_33], %18 {strides = array<i32>} : memref<18x18x4xbf16, #tpu.memory_space<vmem>>, vector<18x1x4xbf16>,
    %c0_34 = arith.constant 0 : index
    %c0_35 = arith.constant 0 : index
    %c0_36 = arith.constant 0 : index
    %20 = vector.load %arg11[%c0_34, %c0_35, %c0_36] : memref<18x18x4xbf16, #tpu.memory_space<vmem>>, vector<16x16x4xbf16>
    %21 = vector.shape_cast %20 : vector<16x16x4xbf16> to vector<256x4xbf16>
    %c0_37 = arith.constant 0 : index
    %c0_38 = arith.constant 0 : index
    %c0_39 = arith.constant 0 : index
    %22 = vector.load %arg4[%c0_37, %c0_38, %c0_39] : memref<9x4x4xbf16, #tpu.memory_space<vmem>>, vector<1x4x4xbf16>
    %23 = vector.shape_cast %22 : vector<1x4x4xbf16> to vector<4x4xbf16>
    %cst = arith.constant dense<0.000000e+00> : vector<256x4xf32>
    %24 = tpu.matmul %21, %23, %cst {dimension_numbers = #tpu.dot_dimension_numbers<[1], [0], [0], [1], [0, 0, 1, 1], [], []>} : vector<256x4xbf16>, vector<4x4xbf16>, vector<256x4xf32> -> vector<256x4xf32>
    %c0_40 = arith.constant 0 : index
    %c1_41 = arith.constant 1 : index
    %c0_42 = arith.constant 0 : index
    %25 = vector.load %arg11[%c0_40, %c1_41, %c0_42] : memref<18x18x4xbf16, #tpu.memory_space<vmem>>, vector<16x16x4xbf16>
    %26 = vector.shape_cast %25 : vector<16x16x4xbf16> to vector<256x4xbf16>
    %c1_43 = arith.constant 1 : index
    %c0_44 = arith.constant 0 : index
    %c0_45 = arith.constant 0 : index
    %27 = vector.load %arg4[%c1_43, %c0_44, %c0_45] : memref<9x4x4xbf16, #tpu.memory_space<vmem>>, vector<1x4x4xbf16>
    %28 = vector.shape_cast %27 : vector<1x4x4xbf16> to vector<4x4xbf16>
    %cst_46 = arith.constant dense<0.000000e+00> : vector<256x4xf32>
    %29 = tpu.matmul %26, %28, %cst_46 {dimension_numbers = #tpu.dot_dimension_numbers<[1], [0], [0], [1], [0, 0, 1, 1], [], []>} : vector<256x4xbf16>, vector<4x4xbf16>, vector<256x4xf32> -> vector<256x4xf32>
    %30 = arith.addf %24, %29 : vector<256x4xf32>
    %c0_47 = arith.constant 0 : index
    %c2_48 = arith.constant 2 : index
    %c0_49 = arith.constant 0 : index
    %31 = vector.load %arg11[%c0_47, %c2_48, %c0_49] : memref<18x18x4xbf16, #tpu.memory_space<vmem>>, vector<16x16x4xbf16>
    %32 = vector.shape_cast %31 : vector<16x16x4xbf16> to vector<256x4xbf16>
    %c2_50 = arith.constant 2 : index
    %c0_51 = arith.constant 0 : index
    %c0_52 = arith.constant 0 : index
    %33 = vector.load %arg4[%c2_50, %c0_51, %c0_52] : memref<9x4x4xbf16, #tpu.memory_space<vmem>>, vector<1x4x4xbf16>
    %34 = vector.shape_cast %33 : vector<1x4x4xbf16> to vector<4x4xbf16>
    %cst_53 = arith.constant dense<0.000000e+00> : vector<256x4xf32>
    %35 = tpu.matmul %32, %34, %cst_53 {dimension_numbers = #tpu.dot_dimension_numbers<[1], [0], [0], [1], [0, 0, 1, 1], [], []>} : vector<256x4xbf16>, vector<4x4xbf16>, vector<256x4xf32> -> vector<256x4xf32>
    %36 = arith.addf %30, %35 : vector<256x4xf32>
    %c1_54 = arith.constant 1 : index
    %c0_55 = arith.constant 0 : index
    %c0_56 = arith.constant 0 : index
    %37 = vector.load %arg11[%c1_54, %c0_55, %c0_56] : memref<18x18x4xbf16, #tpu.memory_space<vmem>>, vector<16x16x4xbf16>
    %38 = vector.shape_cast %37 : vector<16x16x4xbf16> to vector<256x4xbf16>
    %c3 = arith.constant 3 : index
    %c0_57 = arith.constant 0 : index
    %c0_58 = arith.constant 0 : index
    %39 = vector.load %arg4[%c3, %c0_57, %c0_58] : memref<9x4x4xbf16, #tpu.memory_space<vmem>>, vector<1x4x4xbf16>
    %40 = vector.shape_cast %39 : vector<1x4x4xbf16> to vector<4x4xbf16>
    %cst_59 = arith.constant dense<0.000000e+00> : vector<256x4xf32>
    %41 = tpu.matmul %38, %40, %cst_59 {dimension_numbers = #tpu.dot_dimension_numbers<[1], [0], [0], [1], [0, 0, 1, 1], [], []>} : vector<256x4xbf16>, vector<4x4xbf16>, vector<256x4xf32> -> vector<256x4xf32>
    %42 = arith.addf %36, %41 : vector<256x4xf32>
    %c1_60 = arith.constant 1 : index
    %c1_61 = arith.constant 1 : index
    %c0_62 = arith.constant 0 : index
    %43 = vector.load %arg11[%c1_60, %c1_61, %c0_62] : memref<18x18x4xbf16, #tpu.memory_space<vmem>>, vector<16x16x4xbf16>
    %44 = vector.shape_cast %43 : vector<16x16x4xbf16> to vector<256x4xbf16>
    %c4 = arith.constant 4 : index
    %c0_63 = arith.constant 0 : index
    %c0_64 = arith.constant 0 : index
    %45 = vector.load %arg4[%c4, %c0_63, %c0_64] : memref<9x4x4xbf16, #tpu.memory_space<vmem>>, vector<1x4x4xbf16>
    %46 = vector.shape_cast %45 : vector<1x4x4xbf16> to vector<4x4xbf16>
    %cst_65 = arith.constant dense<0.000000e+00> : vector<256x4xf32>
    %47 = tpu.matmul %44, %46, %cst_65 {dimension_numbers = #tpu.dot_dimension_numbers<[1], [0], [0], [1], [0, 0, 1, 1], [], []>} : vector<256x4xbf16>, vector<4x4xbf16>, vector<256x4xf32> -> vector<256x4xf32>
    %48 = arith.addf %42, %47 : vector<256x4xf32>
    %c1_66 = arith.constant 1 : index
    %c2_67 = arith.constant 2 : index
    %c0_68 = arith.constant 0 : index
    %49 = vector.load %arg11[%c1_66, %c2_67, %c0_68] : memref<18x18x4xbf16, #tpu.memory_space<vmem>>, vector<16x16x4xbf16>
    %50 = vector.shape_cast %49 : vector<16x16x4xbf16> to vector<256x4xbf16>
    %c5 = arith.constant 5 : index
    %c0_69 = arith.constant 0 : index
    %c0_70 = arith.constant 0 : index
    %51 = vector.load %arg4[%c5, %c0_69, %c0_70] : memref<9x4x4xbf16, #tpu.memory_space<vmem>>, vector<1x4x4xbf16>
    %52 = vector.shape_cast %51 : vector<1x4x4xbf16> to vector<4x4xbf16>
    %cst_71 = arith.constant dense<0.000000e+00> : vector<256x4xf32>
    %53 = tpu.matmul %50, %52, %cst_71 {dimension_numbers = #tpu.dot_dimension_numbers<[1], [0], [0], [1], [0, 0, 1, 1], [], []>} : vector<256x4xbf16>, vector<4x4xbf16>, vector<256x4xf32> -> vector<256x4xf32>
    %54 = arith.addf %48, %53 : vector<256x4xf32>
    %c2_72 = arith.constant 2 : index
    %c0_73 = arith.constant 0 : index
    %c0_74 = arith.constant 0 : index
    %55 = vector.load %arg11[%c2_72, %c0_73, %c0_74] : memref<18x18x4xbf16, #tpu.memory_space<vmem>>, vector<16x16x4xbf16>
    %56 = vector.shape_cast %55 : vector<16x16x4xbf16> to vector<256x4xbf16>
    %c6 = arith.constant 6 : index
    %c0_75 = arith.constant 0 : index
    %c0_76 = arith.constant 0 : index
    %57 = vector.load %arg4[%c6, %c0_75, %c0_76] : memref<9x4x4xbf16, #tpu.memory_space<vmem>>, vector<1x4x4xbf16>
    %58 = vector.shape_cast %57 : vector<1x4x4xbf16> to vector<4x4xbf16>
    %cst_77 = arith.constant dense<0.000000e+00> : vector<256x4xf32>
    %59 = tpu.matmul %56, %58, %cst_77 {dimension_numbers = #tpu.dot_dimension_numbers<[1], [0], [0], [1], [0, 0, 1, 1], [], []>} : vector<256x4xbf16>, vector<4x4xbf16>, vector<256x4xf32> -> vector<256x4xf32>
    %60 = arith.addf %54, %59 : vector<256x4xf32>
    %c2_78 = arith.constant 2 : index
    %c1_79 = arith.constant 1 : index
    %c0_80 = arith.constant 0 : index
    %61 = vector.load %arg11[%c2_78, %c1_79, %c0_80] : memref<18x18x4xbf16, #tpu.memory_space<vmem>>, vector<16x16x4xbf16>
    %62 = vector.shape_cast %61 : vector<16x16x4xbf16> to vector<256x4xbf16>
    %c7 = arith.constant 7 : index
    %c0_81 = arith.constant 0 : index
    %c0_82 = arith.constant 0 : index
    %63 = vector.load %arg4[%c7, %c0_81, %c0_82] : memref<9x4x4xbf16, #tpu.memory_space<vmem>>, vector<1x4x4xbf16>
    %64 = vector.shape_cast %63 : vector<1x4x4xbf16> to vector<4x4xbf16>
    %cst_83 = arith.constant dense<0.000000e+00> : vector<256x4xf32>
    %65 = tpu.matmul %62, %64, %cst_83 {dimension_numbers = #tpu.dot_dimension_numbers<[1], [0], [0], [1], [0, 0, 1, 1], [], []>} : vector<256x4xbf16>, vector<4x4xbf16>, vector<256x4xf32> -> vector<256x4xf32>
    %66 = arith.addf %60, %65 : vector<256x4xf32>
    %c2_84 = arith.constant 2 : index
    %c2_85 = arith.constant 2 : index
    %c0_86 = arith.constant 0 : index
    %67 = vector.load %arg11[%c2_84, %c2_85, %c0_86] : memref<18x18x4xbf16, #tpu.memory_space<vmem>>, vector<16x16x4xbf16>
    %68 = vector.shape_cast %67 : vector<16x16x4xbf16> to vector<256x4xbf16>
    %c8 = arith.constant 8 : index
    %c0_87 = arith.constant 0 : index
    %c0_88 = arith.constant 0 : index
    %69 = vector.load %arg4[%c8, %c0_87, %c0_88] : memref<9x4x4xbf16, #tpu.memory_space<vmem>>, vector<1x4x4xbf16>
    %70 = vector.shape_cast %69 : vector<1x4x4xbf16> to vector<4x4xbf16>
    %cst_89 = arith.constant dense<0.000000e+00> : vector<256x4xf32>
    %71 = tpu.matmul %68, %70, %cst_89 {dimension_numbers = #tpu.dot_dimension_numbers<[1], [0], [0], [1], [0, 0, 1, 1], [], []>} : vector<256x4xbf16>, vector<4x4xbf16>, vector<256x4xf32> -> vector<256x4xf32>
    %72 = arith.addf %66, %71 : vector<256x4xf32>
    %cst_90 = arith.constant dense<0.000000e+00> : vector<4xf32>
    %73 = vector.multi_reduction <add>, %72, %cst_90 [0] : vector<256x4xf32> to vector<4xf32>
    %74 = vector.shape_cast %73 : vector<4xf32> to vector<1x4xf32>
    %cst_91 = arith.constant 3.906250e-03 : f32
    %75 = vector.broadcast %cst_91 : f32 to vector<1x4xf32>
    %76 = arith.mulf %74, %75 : vector<1x4xf32>
    %77 = vector.broadcast %76 : vector<1x4xf32> to vector<256x4xf32>
    %78 = arith.subf %72, %77 : vector<256x4xf32>
    %79 = arith.mulf %78, %78 : vector<256x4xf32>
    %cst_92 = arith.constant dense<0.000000e+00> : vector<4xf32>
    %80 = vector.multi_reduction <add>, %79, %cst_92 [0] : vector<256x4xf32> to vector<4xf32>
    %81 = vector.shape_cast %80 : vector<4xf32> to vector<1x4xf32>
    %82 = arith.addf %76, %6 : vector<1x4xf32>
    %cst_93 = arith.constant 0.00392156886 : f32
    %83 = vector.broadcast %cst_93 : f32 to vector<1x4xf32>
    %84 = arith.mulf %81, %83 : vector<1x4xf32>
    %85 = vector.shape_cast %82 : vector<1x4xf32> to vector<1x1x4xf32>
    %cst_94 = arith.constant dense<0.000000e+00> : vector<1xf32>
    %86 = vector.multi_reduction <add>, %85, %cst_94 [1, 2] : vector<1x1x4xf32> to vector<1xf32>
    %87 = vector.shape_cast %86 : vector<1xf32> to vector<1x1x1xf32>
    %88 = vector.extract %87[0, 0, 0] : f32 from vector<1x1x1xf32>
    %89 = vector.broadcast %88 : f32 to vector<1x1xf32>
    %cst_95 = arith.constant 2.500000e-01 : f32
    %90 = vector.broadcast %cst_95 : f32 to vector<1x1xf32>
    %91 = arith.mulf %89, %90 : vector<1x1xf32>
    %92 = vector.broadcast %91 : vector<1x1xf32> to vector<1x4xf32>
    %93 = arith.subf %82, %92 : vector<1x4xf32>
    %94 = vector.shape_cast %81 : vector<1x4xf32> to vector<1x1x4xf32>
    %cst_96 = arith.constant dense<0.000000e+00> : vector<1xf32>
    %95 = vector.multi_reduction <add>, %94, %cst_96 [1, 2] : vector<1x1x4xf32> to vector<1xf32>
    %96 = vector.shape_cast %95 : vector<1xf32> to vector<1x1x1xf32>
    %97 = vector.extract %96[0, 0, 0] : f32 from vector<1x1x1xf32>
    %98 = vector.broadcast %97 : f32 to vector<1x1xf32>
    %99 = arith.mulf %93, %93 : vector<1x4xf32>
    %100 = vector.shape_cast %99 : vector<1x4xf32> to vector<1x1x4xf32>
    %cst_97 = arith.constant dense<0.000000e+00> : vector<1xf32>
    %101 = vector.multi_reduction <add>, %100, %cst_97 [1, 2] : vector<1x1x4xf32> to vector<1xf32>
    %102 = vector.shape_cast %101 : vector<1xf32> to vector<1x1x1xf32>
    %103 = vector.extract %102[0, 0, 0] : f32 from vector<1x1x1xf32>
    %104 = vector.broadcast %103 : f32 to vector<1x1xf32>
    %cst_98 = arith.constant 2.560000e+02 : f32
    %105 = vector.broadcast %cst_98 : f32 to vector<1x1xf32>
    %106 = arith.mulf %105, %104 : vector<1x1xf32>
    %107 = arith.addf %98, %106 : vector<1x1xf32>
    %cst_99 = arith.constant 9.77517105E-4 : f32
    %108 = vector.broadcast %cst_99 : f32 to vector<1x1xf32>
    %109 = arith.mulf %107, %108 : vector<1x1xf32>
    %cst_100 = arith.constant 9.99999974E-6 : f32
    %110 = vector.broadcast %cst_100 : f32 to vector<1x4xf32>
    %111 = arith.addf %84, %110 : vector<1x4xf32>
    %112 = math.rsqrt %111 : vector<1x4xf32>
    %cst_101 = arith.constant 9.99999974E-6 : f32
    %113 = vector.broadcast %cst_101 : f32 to vector<1x1xf32>
    %114 = arith.addf %109, %113 : vector<1x1xf32>
    %115 = math.rsqrt %114 : vector<1x1xf32>
    %cst_102 = arith.constant 1.000000e+00 : f32
    %116 = vector.broadcast %cst_102 : f32 to vector<1x4xf32>
    %117 = arith.subf %116, %8 : vector<1x4xf32>
    %118 = arith.mulf %8, %112 : vector<1x4xf32>
    %119 = vector.broadcast %115 : vector<1x1xf32> to vector<1x4xf32>
    %120 = arith.mulf %117, %119 : vector<1x4xf32>
    %121 = arith.addf %118, %120 : vector<1x4xf32>
    %122 = arith.mulf %3, %121 : vector<1x4xf32>
    %123 = arith.mulf %8, %82 : vector<1x4xf32>
    %124 = arith.mulf %123, %112 : vector<1x4xf32>
    %125 = vector.broadcast %91 : vector<1x1xf32> to vector<1x4xf32>
    %126 = arith.mulf %117, %125 : vector<1x4xf32>
    %127 = vector.broadcast %115 : vector<1x1xf32> to vector<1x4xf32>
    %128 = arith.mulf %126, %127 : vector<1x4xf32>
    %129 = arith.addf %124, %128 : vector<1x4xf32>
    %130 = arith.mulf %3, %129 : vector<1x4xf32>
    %131 = arith.subf %5, %130 : vector<1x4xf32>
    %132 = arith.mulf %122, %6 : vector<1x4xf32>
    %133 = arith.addf %131, %132 : vector<1x4xf32>
    %134 = vector.broadcast %122 : vector<1x4xf32> to vector<256x4xf32>
    %135 = arith.mulf %72, %134 : vector<256x4xf32>
    %136 = vector.broadcast %133 : vector<1x4xf32> to vector<256x4xf32>
    %137 = arith.addf %135, %136 : vector<256x4xf32>
    %cst_103 = arith.constant 0.000000e+00 : f32
    %138 = vector.broadcast %cst_103 : f32 to vector<256x4xf32>
    %139 = arith.maximumf %137, %138 : vector<256x4xf32>
    %140 = vector.shape_cast %139 : vector<256x4xf32> to vector<16x16x4xf32>
    %141 = arith.truncf %140 : vector<16x16x4xf32> to vector<16x16x4xbf16>
    %c1_104 = arith.constant 1 : index
    %c1_105 = arith.constant 1 : index
    %c0_106 = arith.constant 0 : index
    %142 = vector.load %arg11[%c1_104, %c1_105, %c0_106] : memref<18x18x4xbf16, #tpu.memory_space<vmem>>, vector<16x16x4xbf16>
    tpu.vector_store %arg11[%c1_104, %c1_105, %c0_106], %141 {strides = array<i32>} : memref<18x18x4xbf16, #tpu.memory_space<vmem>>, vector<16x16x4xbf16>,
    %143 = vector.extract_strided_slice %141 {offsets = [1, 0, 0], sizes = [1, 16, 4], strides = [1, 1, 1]} : vector<16x16x4xbf16> to vector<1x16x4xbf16>
    %c0_107 = arith.constant 0 : index
    %c1_108 = arith.constant 1 : index
    %c0_109 = arith.constant 0 : index
    %144 = vector.load %arg11[%c0_107, %c1_108, %c0_109] : memref<18x18x4xbf16, #tpu.memory_space<vmem>>, vector<1x16x4xbf16>
    tpu.vector_store %arg11[%c0_107, %c1_108, %c0_109], %143 {strides = array<i32>} : memref<18x18x4xbf16, #tpu.memory_space<vmem>>, vector<1x16x4xbf16>,
    %145 = vector.extract_strided_slice %141 {offsets = [14, 0, 0], sizes = [1, 16, 4], strides = [1, 1, 1]} : vector<16x16x4xbf16> to vector<1x16x4xbf16>
    %c17_110 = arith.constant 17 : index
    %c1_111 = arith.constant 1 : index
    %c0_112 = arith.constant 0 : index
    %146 = vector.load %arg11[%c17_110, %c1_111, %c0_112] : memref<18x18x4xbf16, #tpu.memory_space<vmem>>, vector<1x16x4xbf16>
    tpu.vector_store %arg11[%c17_110, %c1_111, %c0_112], %145 {strides = array<i32>} : memref<18x18x4xbf16, #tpu.memory_space<vmem>>, vector<1x16x4xbf16>,
    %c0_113 = arith.constant 0 : index
    %c2_114 = arith.constant 2 : index
    %c0_115 = arith.constant 0 : index
    %147 = vector.load %arg11[%c0_113, %c2_114, %c0_115] : memref<18x18x4xbf16, #tpu.memory_space<vmem>>, vector<18x1x4xbf16>
    %c0_116 = arith.constant 0 : index
    %c0_117 = arith.constant 0 : index
    %c0_118 = arith.constant 0 : index
    %148 = vector.load %arg11[%c0_116, %c0_117, %c0_118] : memref<18x18x4xbf16, #tpu.memory_space<vmem>>, vector<18x1x4xbf16>
    tpu.vector_store %arg11[%c0_116, %c0_117, %c0_118], %147 {strides = array<i32>} : memref<18x18x4xbf16, #tpu.memory_space<vmem>>, vector<18x1x4xbf16>,
    %c0_119 = arith.constant 0 : index
    %c15_120 = arith.constant 15 : index
    %c0_121 = arith.constant 0 : index
    %149 = vector.load %arg11[%c0_119, %c15_120, %c0_121] : memref<18x18x4xbf16, #tpu.memory_space<vmem>>, vector<18x1x4xbf16>
    %c0_122 = arith.constant 0 : index
    %c17_123 = arith.constant 17 : index
    %c0_124 = arith.constant 0 : index
    %150 = vector.load %arg11[%c0_122, %c17_123, %c0_124] : memref<18x18x4xbf16, #tpu.memory_space<vmem>>, vector<18x1x4xbf16>
    tpu.vector_store %arg11[%c0_122, %c17_123, %c0_124], %149 {strides = array<i32>} : memref<18x18x4xbf16, #tpu.memory_space<vmem>>, vector<18x1x4xbf16>,
    %c0_125 = arith.constant 0 : index
    %c0_126 = arith.constant 0 : index
    %c0_127 = arith.constant 0 : index
    %151 = vector.load %arg11[%c0_125, %c0_126, %c0_127] : memref<18x18x4xbf16, #tpu.memory_space<vmem>>, vector<16x16x4xbf16>
    %152 = vector.shape_cast %151 : vector<16x16x4xbf16> to vector<256x4xbf16>
    %c0_128 = arith.constant 0 : index
    %c0_129 = arith.constant 0 : index
    %c0_130 = arith.constant 0 : index
    %153 = vector.load %arg7[%c0_128, %c0_129, %c0_130] : memref<9x4x4xbf16, #tpu.memory_space<vmem>>, vector<1x4x4xbf16>
    %154 = vector.shape_cast %153 : vector<1x4x4xbf16> to vector<4x4xbf16>
    %cst_131 = arith.constant dense<0.000000e+00> : vector<256x4xf32>
    %155 = tpu.matmul %152, %154, %cst_131 {dimension_numbers = #tpu.dot_dimension_numbers<[1], [0], [0], [1], [0, 0, 1, 1], [], []>} : vector<256x4xbf16>, vector<4x4xbf16>, vector<256x4xf32> -> vector<256x4xf32>
    %c0_132 = arith.constant 0 : index
    %c1_133 = arith.constant 1 : index
    %c0_134 = arith.constant 0 : index
    %156 = vector.load %arg11[%c0_132, %c1_133, %c0_134] : memref<18x18x4xbf16, #tpu.memory_space<vmem>>, vector<16x16x4xbf16>
    %157 = vector.shape_cast %156 : vector<16x16x4xbf16> to vector<256x4xbf16>
    %c1_135 = arith.constant 1 : index
    %c0_136 = arith.constant 0 : index
    %c0_137 = arith.constant 0 : index
    %158 = vector.load %arg7[%c1_135, %c0_136, %c0_137] : memref<9x4x4xbf16, #tpu.memory_space<vmem>>, vector<1x4x4xbf16>
    %159 = vector.shape_cast %158 : vector<1x4x4xbf16> to vector<4x4xbf16>
    %cst_138 = arith.constant dense<0.000000e+00> : vector<256x4xf32>
    %160 = tpu.matmul %157, %159, %cst_138 {dimension_numbers = #tpu.dot_dimension_numbers<[1], [0], [0], [1], [0, 0, 1, 1], [], []>} : vector<256x4xbf16>, vector<4x4xbf16>, vector<256x4xf32> -> vector<256x4xf32>
    %161 = arith.addf %155, %160 : vector<256x4xf32>
    %c0_139 = arith.constant 0 : index
    %c2_140 = arith.constant 2 : index
    %c0_141 = arith.constant 0 : index
    %162 = vector.load %arg11[%c0_139, %c2_140, %c0_141] : memref<18x18x4xbf16, #tpu.memory_space<vmem>>, vector<16x16x4xbf16>
    %163 = vector.shape_cast %162 : vector<16x16x4xbf16> to vector<256x4xbf16>
    %c2_142 = arith.constant 2 : index
    %c0_143 = arith.constant 0 : index
    %c0_144 = arith.constant 0 : index
    %164 = vector.load %arg7[%c2_142, %c0_143, %c0_144] : memref<9x4x4xbf16, #tpu.memory_space<vmem>>, vector<1x4x4xbf16>
    %165 = vector.shape_cast %164 : vector<1x4x4xbf16> to vector<4x4xbf16>
    %cst_145 = arith.constant dense<0.000000e+00> : vector<256x4xf32>
    %166 = tpu.matmul %163, %165, %cst_145 {dimension_numbers = #tpu.dot_dimension_numbers<[1], [0], [0], [1], [0, 0, 1, 1], [], []>} : vector<256x4xbf16>, vector<4x4xbf16>, vector<256x4xf32> -> vector<256x4xf32>
    %167 = arith.addf %161, %166 : vector<256x4xf32>
    %c1_146 = arith.constant 1 : index
    %c0_147 = arith.constant 0 : index
    %c0_148 = arith.constant 0 : index
    %168 = vector.load %arg11[%c1_146, %c0_147, %c0_148] : memref<18x18x4xbf16, #tpu.memory_space<vmem>>, vector<16x16x4xbf16>
    %169 = vector.shape_cast %168 : vector<16x16x4xbf16> to vector<256x4xbf16>
    %c3_149 = arith.constant 3 : index
    %c0_150 = arith.constant 0 : index
    %c0_151 = arith.constant 0 : index
    %170 = vector.load %arg7[%c3_149, %c0_150, %c0_151] : memref<9x4x4xbf16, #tpu.memory_space<vmem>>, vector<1x4x4xbf16>
    %171 = vector.shape_cast %170 : vector<1x4x4xbf16> to vector<4x4xbf16>
    %cst_152 = arith.constant dense<0.000000e+00> : vector<256x4xf32>
    %172 = tpu.matmul %169, %171, %cst_152 {dimension_numbers = #tpu.dot_dimension_numbers<[1], [0], [0], [1], [0, 0, 1, 1], [], []>} : vector<256x4xbf16>, vector<4x4xbf16>, vector<256x4xf32> -> vector<256x4xf32>
    %173 = arith.addf %167, %172 : vector<256x4xf32>
    %c1_153 = arith.constant 1 : index
    %c1_154 = arith.constant 1 : index
    %c0_155 = arith.constant 0 : index
    %174 = vector.load %arg11[%c1_153, %c1_154, %c0_155] : memref<18x18x4xbf16, #tpu.memory_space<vmem>>, vector<16x16x4xbf16>
    %175 = vector.shape_cast %174 : vector<16x16x4xbf16> to vector<256x4xbf16>
    %c4_156 = arith.constant 4 : index
    %c0_157 = arith.constant 0 : index
    %c0_158 = arith.constant 0 : index
    %176 = vector.load %arg7[%c4_156, %c0_157, %c0_158] : memref<9x4x4xbf16, #tpu.memory_space<vmem>>, vector<1x4x4xbf16>
    %177 = vector.shape_cast %176 : vector<1x4x4xbf16> to vector<4x4xbf16>
    %cst_159 = arith.constant dense<0.000000e+00> : vector<256x4xf32>
    %178 = tpu.matmul %175, %177, %cst_159 {dimension_numbers = #tpu.dot_dimension_numbers<[1], [0], [0], [1], [0, 0, 1, 1], [], []>} : vector<256x4xbf16>, vector<4x4xbf16>, vector<256x4xf32> -> vector<256x4xf32>
    %179 = arith.addf %173, %178 : vector<256x4xf32>
    %c1_160 = arith.constant 1 : index
    %c2_161 = arith.constant 2 : index
    %c0_162 = arith.constant 0 : index
    %180 = vector.load %arg11[%c1_160, %c2_161, %c0_162] : memref<18x18x4xbf16, #tpu.memory_space<vmem>>, vector<16x16x4xbf16>
    %181 = vector.shape_cast %180 : vector<16x16x4xbf16> to vector<256x4xbf16>
    %c5_163 = arith.constant 5 : index
    %c0_164 = arith.constant 0 : index
    %c0_165 = arith.constant 0 : index
    %182 = vector.load %arg7[%c5_163, %c0_164, %c0_165] : memref<9x4x4xbf16, #tpu.memory_space<vmem>>, vector<1x4x4xbf16>
    %183 = vector.shape_cast %182 : vector<1x4x4xbf16> to vector<4x4xbf16>
    %cst_166 = arith.constant dense<0.000000e+00> : vector<256x4xf32>
    %184 = tpu.matmul %181, %183, %cst_166 {dimension_numbers = #tpu.dot_dimension_numbers<[1], [0], [0], [1], [0, 0, 1, 1], [], []>} : vector<256x4xbf16>, vector<4x4xbf16>, vector<256x4xf32> -> vector<256x4xf32>
    %185 = arith.addf %179, %184 : vector<256x4xf32>
    %c2_167 = arith.constant 2 : index
    %c0_168 = arith.constant 0 : index
    %c0_169 = arith.constant 0 : index
    %186 = vector.load %arg11[%c2_167, %c0_168, %c0_169] : memref<18x18x4xbf16, #tpu.memory_space<vmem>>, vector<16x16x4xbf16>
    %187 = vector.shape_cast %186 : vector<16x16x4xbf16> to vector<256x4xbf16>
    %c6_170 = arith.constant 6 : index
    %c0_171 = arith.constant 0 : index
    %c0_172 = arith.constant 0 : index
    %188 = vector.load %arg7[%c6_170, %c0_171, %c0_172] : memref<9x4x4xbf16, #tpu.memory_space<vmem>>, vector<1x4x4xbf16>
    %189 = vector.shape_cast %188 : vector<1x4x4xbf16> to vector<4x4xbf16>
    %cst_173 = arith.constant dense<0.000000e+00> : vector<256x4xf32>
    %190 = tpu.matmul %187, %189, %cst_173 {dimension_numbers = #tpu.dot_dimension_numbers<[1], [0], [0], [1], [0, 0, 1, 1], [], []>} : vector<256x4xbf16>, vector<4x4xbf16>, vector<256x4xf32> -> vector<256x4xf32>
    %191 = arith.addf %185, %190 : vector<256x4xf32>
    %c2_174 = arith.constant 2 : index
    %c1_175 = arith.constant 1 : index
    %c0_176 = arith.constant 0 : index
    %192 = vector.load %arg11[%c2_174, %c1_175, %c0_176] : memref<18x18x4xbf16, #tpu.memory_space<vmem>>, vector<16x16x4xbf16>
    %193 = vector.shape_cast %192 : vector<16x16x4xbf16> to vector<256x4xbf16>
    %c7_177 = arith.constant 7 : index
    %c0_178 = arith.constant 0 : index
    %c0_179 = arith.constant 0 : index
    %194 = vector.load %arg7[%c7_177, %c0_178, %c0_179] : memref<9x4x4xbf16, #tpu.memory_space<vmem>>, vector<1x4x4xbf16>
    %195 = vector.shape_cast %194 : vector<1x4x4xbf16> to vector<4x4xbf16>
    %cst_180 = arith.constant dense<0.000000e+00> : vector<256x4xf32>
    %196 = tpu.matmul %193, %195, %cst_180 {dimension_numbers = #tpu.dot_dimension_numbers<[1], [0], [0], [1], [0, 0, 1, 1], [], []>} : vector<256x4xbf16>, vector<4x4xbf16>, vector<256x4xf32> -> vector<256x4xf32>
    %197 = arith.addf %191, %196 : vector<256x4xf32>
    %c2_181 = arith.constant 2 : index
    %c2_182 = arith.constant 2 : index
    %c0_183 = arith.constant 0 : index
    %198 = vector.load %arg11[%c2_181, %c2_182, %c0_183] : memref<18x18x4xbf16, #tpu.memory_space<vmem>>, vector<16x16x4xbf16>
    %199 = vector.shape_cast %198 : vector<16x16x4xbf16> to vector<256x4xbf16>
    %c8_184 = arith.constant 8 : index
    %c0_185 = arith.constant 0 : index
    %c0_186 = arith.constant 0 : index
    %200 = vector.load %arg7[%c8_184, %c0_185, %c0_186] : memref<9x4x4xbf16, #tpu.memory_space<vmem>>, vector<1x4x4xbf16>
    %201 = vector.shape_cast %200 : vector<1x4x4xbf16> to vector<4x4xbf16>
    %cst_187 = arith.constant dense<0.000000e+00> : vector<256x4xf32>
    %202 = tpu.matmul %199, %201, %cst_187 {dimension_numbers = #tpu.dot_dimension_numbers<[1], [0], [0], [1], [0, 0, 1, 1], [], []>} : vector<256x4xbf16>, vector<4x4xbf16>, vector<256x4xf32> -> vector<256x4xf32>
    %203 = arith.addf %197, %202 : vector<256x4xf32>
    %cst_188 = arith.constant dense<0.000000e+00> : vector<4xf32>
    %204 = vector.multi_reduction <add>, %203, %cst_188 [0] : vector<256x4xf32> to vector<4xf32>
    %205 = vector.shape_cast %204 : vector<4xf32> to vector<1x4xf32>
    %cst_189 = arith.constant 3.906250e-03 : f32
    %206 = vector.broadcast %cst_189 : f32 to vector<1x4xf32>
    %207 = arith.mulf %205, %206 : vector<1x4xf32>
    %208 = vector.broadcast %207 : vector<1x4xf32> to vector<256x4xf32>
    %209 = arith.subf %203, %208 : vector<256x4xf32>
    %210 = arith.mulf %209, %209 : vector<256x4xf32>
    %cst_190 = arith.constant dense<0.000000e+00> : vector<4xf32>
    %211 = vector.multi_reduction <add>, %210, %cst_190 [0] : vector<256x4xf32> to vector<4xf32>
    %212 = vector.shape_cast %211 : vector<4xf32> to vector<1x4xf32>
    %213 = arith.addf %207, %7 : vector<1x4xf32>
    %cst_191 = arith.constant 0.00392156886 : f32
    %214 = vector.broadcast %cst_191 : f32 to vector<1x4xf32>
    %215 = arith.mulf %212, %214 : vector<1x4xf32>
    %216 = vector.shape_cast %213 : vector<1x4xf32> to vector<1x1x4xf32>
    %cst_192 = arith.constant dense<0.000000e+00> : vector<1xf32>
    %217 = vector.multi_reduction <add>, %216, %cst_192 [1, 2] : vector<1x1x4xf32> to vector<1xf32>
    %218 = vector.shape_cast %217 : vector<1xf32> to vector<1x1x1xf32>
    %219 = vector.extract %218[0, 0, 0] : f32 from vector<1x1x1xf32>
    %220 = vector.broadcast %219 : f32 to vector<1x1xf32>
    %cst_193 = arith.constant 2.500000e-01 : f32
    %221 = vector.broadcast %cst_193 : f32 to vector<1x1xf32>
    %222 = arith.mulf %220, %221 : vector<1x1xf32>
    %223 = vector.broadcast %222 : vector<1x1xf32> to vector<1x4xf32>
    %224 = arith.subf %213, %223 : vector<1x4xf32>
    %225 = vector.shape_cast %212 : vector<1x4xf32> to vector<1x1x4xf32>
    %cst_194 = arith.constant dense<0.000000e+00> : vector<1xf32>
    %226 = vector.multi_reduction <add>, %225, %cst_194 [1, 2] : vector<1x1x4xf32> to vector<1xf32>
    %227 = vector.shape_cast %226 : vector<1xf32> to vector<1x1x1xf32>
    %228 = vector.extract %227[0, 0, 0] : f32 from vector<1x1x1xf32>
    %229 = vector.broadcast %228 : f32 to vector<1x1xf32>
    %230 = arith.mulf %224, %224 : vector<1x4xf32>
    %231 = vector.shape_cast %230 : vector<1x4xf32> to vector<1x1x4xf32>
    %cst_195 = arith.constant dense<0.000000e+00> : vector<1xf32>
    %232 = vector.multi_reduction <add>, %231, %cst_195 [1, 2] : vector<1x1x4xf32> to vector<1xf32>
    %233 = vector.shape_cast %232 : vector<1xf32> to vector<1x1x1xf32>
    %234 = vector.extract %233[0, 0, 0] : f32 from vector<1x1x1xf32>
    %235 = vector.broadcast %234 : f32 to vector<1x1xf32>
    %cst_196 = arith.constant 2.560000e+02 : f32
    %236 = vector.broadcast %cst_196 : f32 to vector<1x1xf32>
    %237 = arith.mulf %236, %235 : vector<1x1xf32>
    %238 = arith.addf %229, %237 : vector<1x1xf32>
    %cst_197 = arith.constant 9.77517105E-4 : f32
    %239 = vector.broadcast %cst_197 : f32 to vector<1x1xf32>
    %240 = arith.mulf %238, %239 : vector<1x1xf32>
    %cst_198 = arith.constant 9.99999974E-6 : f32
    %241 = vector.broadcast %cst_198 : f32 to vector<1x4xf32>
    %242 = arith.addf %215, %241 : vector<1x4xf32>
    %243 = math.rsqrt %242 : vector<1x4xf32>
    %cst_199 = arith.constant 9.99999974E-6 : f32
    %244 = vector.broadcast %cst_199 : f32 to vector<1x1xf32>
    %245 = arith.addf %240, %244 : vector<1x1xf32>
    %246 = math.rsqrt %245 : vector<1x1xf32>
    %cst_200 = arith.constant 1.000000e+00 : f32
    %247 = vector.broadcast %cst_200 : f32 to vector<1x4xf32>
    %248 = arith.subf %247, %9 : vector<1x4xf32>
    %249 = arith.mulf %9, %243 : vector<1x4xf32>
    %250 = vector.broadcast %246 : vector<1x1xf32> to vector<1x4xf32>
    %251 = arith.mulf %248, %250 : vector<1x4xf32>
    %252 = arith.addf %249, %251 : vector<1x4xf32>
    %253 = arith.mulf %3, %252 : vector<1x4xf32>
    %254 = arith.mulf %9, %213 : vector<1x4xf32>
    %255 = arith.mulf %254, %243 : vector<1x4xf32>
    %256 = vector.broadcast %222 : vector<1x1xf32> to vector<1x4xf32>
    %257 = arith.mulf %248, %256 : vector<1x4xf32>
    %258 = vector.broadcast %246 : vector<1x1xf32> to vector<1x4xf32>
    %259 = arith.mulf %257, %258 : vector<1x4xf32>
    %260 = arith.addf %255, %259 : vector<1x4xf32>
    %261 = arith.mulf %3, %260 : vector<1x4xf32>
    %262 = arith.subf %5, %261 : vector<1x4xf32>
    %263 = arith.mulf %253, %7 : vector<1x4xf32>
    %264 = arith.addf %262, %263 : vector<1x4xf32>
    %265 = vector.broadcast %253 : vector<1x4xf32> to vector<256x4xf32>
    %266 = arith.mulf %203, %265 : vector<256x4xf32>
    %267 = vector.broadcast %264 : vector<1x4xf32> to vector<256x4xf32>
    %268 = arith.addf %266, %267 : vector<256x4xf32>
    %269 = vector.shape_cast %1 : vector<16x16x4xf32> to vector<256x4xf32>
    %270 = arith.addf %268, %269 : vector<256x4xf32>
    %c0_201 = arith.constant 0 : index
    %c0_202 = arith.constant 0 : index
    %c0_203 = arith.constant 0 : index
    %271 = vector.load %arg10[%c0_201, %c0_202, %c0_203] : memref<1x256x4xf32, #tpu.memory_space<vmem>>, vector<1x256x4xf32>
    %272 = vector.shape_cast %271 : vector<1x256x4xf32> to vector<256x4xf32>
    %273 = vector.shape_cast %270 : vector<256x4xf32> to vector<1x256x4xf32>
    tpu.vector_store %arg10[%c0_201, %c0_202, %c0_203], %273 {strides = array<i32>} : memref<1x256x4xf32, #tpu.memory_space<vmem>>, vector<1x256x4xf32>,
    return
  }
  func.func @transform_0(%arg0: i32) -> (i32, i32, i32, i32) {
    %c0_i32 = arith.constant 0 : i32
    %c0_i32_0 = arith.constant 0 : i32
    %c0_i32_1 = arith.constant 0 : i32
    %c0_i32_2 = arith.constant 0 : i32
    return %arg0, %c0_i32, %c0_i32_0, %c0_i32_1 : i32, i32, i32, i32
  }
  func.func @transform_1(%arg0: i32) -> (i32, i32, i32) {
    %c0_i32 = arith.constant 0 : i32
    %c0_i32_0 = arith.constant 0 : i32
    %c0_i32_1 = arith.constant 0 : i32
    return %arg0, %c0_i32, %c0_i32_0 : i32, i32, i32
  }
  func.func @transform_2(%arg0: i32) -> (i32, i32, i32) {
    %c0_i32 = arith.constant 0 : i32
    %c0_i32_0 = arith.constant 0 : i32
    %c0_i32_1 = arith.constant 0 : i32
    return %arg0, %c0_i32, %c0_i32_0 : i32, i32, i32
  }
  func.func @transform_3(%arg0: i32) -> (i32, i32, i32) {
    %c0_i32 = arith.constant 0 : i32
    %c0_i32_0 = arith.constant 0 : i32
    %c0_i32_1 = arith.constant 0 : i32
    %c0_i32_2 = arith.constant 0 : i32
    return %c0_i32, %c0_i32_0, %c0_i32_1 : i32, i32, i32
  }
  func.func @transform_4(%arg0: i32) -> (i32, i32) {
    %c0_i32 = arith.constant 0 : i32
    %c0_i32_0 = arith.constant 0 : i32
    %c0_i32_1 = arith.constant 0 : i32
    return %c0_i32, %c0_i32_0 : i32, i32
  }
  func.func @transform_5(%arg0: i32) -> (i32, i32) {
    %c0_i32 = arith.constant 0 : i32
    %c0_i32_0 = arith.constant 0 : i32
    %c0_i32_1 = arith.constant 0 : i32
    return %c0_i32, %c0_i32_0 : i32, i32
  }
  func.func @transform_6(%arg0: i32) -> (i32, i32, i32) {
    %c0_i32 = arith.constant 0 : i32
    %c0_i32_0 = arith.constant 0 : i32
    %c0_i32_1 = arith.constant 0 : i32
    %c0_i32_2 = arith.constant 0 : i32
    return %c0_i32, %c0_i32_0, %c0_i32_1 : i32, i32, i32
  }
  func.func @transform_7(%arg0: i32) -> (i32, i32) {
    %c0_i32 = arith.constant 0 : i32
    %c0_i32_0 = arith.constant 0 : i32
    %c0_i32_1 = arith.constant 0 : i32
    return %c0_i32, %c0_i32_0 : i32, i32
  }
  func.func @transform_8(%arg0: i32) -> (i32, i32) {
    %c0_i32 = arith.constant 0 : i32
    %c0_i32_0 = arith.constant 0 : i32
    %c0_i32_1 = arith.constant 0 : i32
    return %c0_i32, %c0_i32_0 : i32, i32
  }
  func.func @transform_9(%arg0: i32) -> (i32, i32, i32) {
    %c0_i32 = arith.constant 0 : i32
    %c0_i32_0 = arith.constant 0 : i32
    %c0_i32_1 = arith.constant 0 : i32
    return %arg0, %c0_i32, %c0_i32_0 : i32, i32, i32
  }
}

</mosaic_0001>

<llo_original>
// kernel: tpu_custom_call.1
$region0: #{tpu_custom_call.1}
  #allocation0 [shape = 'u32[]', space=smem, size = 0x4, offset = 0x4, fixed_abs, tag = 'smem constant byte address 0x4 - core index']
  #allocation1 [shape = 'u32[72,128]{1,0:T(1,128)}', space=vmem, size = 0x9000, scoped, tag = 'internal scratch']
  #allocation2 [shape = 'bf16[18,18,4]{2,1,0:T(8,128)(2,1)}', space=vmem, size = 0x1b000, scoped, tag = 'scratch operand']
  %s0 = inlined_call_operand.vmem [shape: f32[2,16,16,4], index: 0, kind: input, shape index: {}]
  %s1 = inlined_call_operand.vmem [shape: f32[2,1,4], index: 1, kind: input, shape index: {}]
  %s2 = inlined_call_operand.vmem [shape: f32[2,1,4], index: 2, kind: input, shape index: {}]
  %s3 = inlined_call_operand.vmem [shape: bf16[9,4,4], index: 3, kind: input, shape index: {}]
  %s4 = inlined_call_operand.vmem [shape: f32[1,4], index: 4, kind: input, shape index: {}]
  %s5 = inlined_call_operand.vmem [shape: f32[1,4], index: 5, kind: input, shape index: {}]
  %s6 = inlined_call_operand.vmem [shape: bf16[9,4,4], index: 6, kind: input, shape index: {}]
  %s7 = inlined_call_operand.vmem [shape: f32[1,4], index: 7, kind: input, shape index: {}]
  %s8 = inlined_call_operand.vmem [shape: f32[1,4], index: 8, kind: input, shape index: {}]
  %s9 = inlined_call_operand.vmem [shape: f32[2,256,4], index: 9, kind: output, shape index: {}]
  %s10 = sld [smem:[#allocation0]]
  $region69: #{tpu_custom_call.1} parent=0
    _
  %s12 = ssub.s32 1, %s10
  %s13 = scalar_select 0, %s12, %s10
  loop: start=0, step=1, limit=4
  $region2: #{tpu_custom_call.1} parent=0 // loop_pre_header
    _
  $region3: #{tpu_custom_call.1} parent=0 // loop_header
    %s15 = sphi 0, %s19
    %p16 = scmp.ge.s32.totalorder %s15, 4
    %s25 = sphi 0, %s27
    %s28 = sphi 0, %s25
    %s29 = sphi 0, %s28
    %s45 = sphi 0, %s29
    %s51 = sphi 0, %s53
    %s54 = sphi 0, %s51
    %s55 = sphi 0, %s54
    %s71 = sphi 0, %s55
    %s77 = sphi 0, %s79
    %s80 = sphi 0, %s77
    %s81 = sphi 0, %s80
    %s97 = sphi 0, %s81
    %s101 = sphi 0, %s101
    %s103 = sphi 0, %s101
    %s104 = sphi 0, %s103
    %s118 = sphi 0, %s104
    %s122 = sphi 0, %s122
    %s124 = sphi 0, %s122
    %s125 = sphi 0, %s124
    %s139 = sphi 0, %s125
    %s143 = sphi 0, %s143
    %s145 = sphi 0, %s143
    %s146 = sphi 0, %s145
    %s160 = sphi 0, %s146
    %s164 = sphi 0, %s164
    %s166 = sphi 0, %s164
    %s167 = sphi 0, %s166
    %s181 = sphi 0, %s167
    %s185 = sphi 0, %s185
    %s187 = sphi 0, %s185
    %s188 = sphi 0, %s187
    %s202 = sphi 0, %s188
    %s206 = sphi 0, %s206
    %s208 = sphi 0, %s206
    %s209 = sphi 0, %s208
    %s223 = sphi 0, %s209
    %s229 = sphi 0, %s231
    %s232 = sphi 0, %s229
    %s233 = sphi 0, %s232
    %s249 = sphi 0, %s233
  $region4: #{tpu_custom_call.1} parent=0 // loop_header_branch
    %18 = sbr.rel (%p16) target = $region8
  $region5: #{tpu_custom_call.1} parent=0 // loop_body
    %s20 = ssub.s32 %s15, 1
    %s21 = ssub.s32 %s15, 2
    %s22 = sadd.s32 %s15, 1
    %s23 = ssub.s32 %s15, %s22
    %p24 = scmp.eq.s32.totalorder %s23, 0
    %s26 = sadd.s32 %s25, 1
    %s27 = scalar_select %p24, %s25, %s26
    %p30 = pneg %p24
    %p31 = scmp.eq.s32.totalorder %s15, 1
    %p32 = por %p30, %p31
    %p33 = scmp.ne.s32.totalorder %s25, %s28
    %p34 = scmp.eq.s32.totalorder %s15, 0
    %p35 = por %p33, %p34
    %p36 = scmp.ne.s32.totalorder %s25, %s28
    %p37 = scmp.eq.s32.totalorder %s20, 1
    %p38 = por %p36, %p37
    %p39 = scmp.ne.s32.totalorder %s28, %s29
    %p40 = scmp.eq.s32.totalorder %s20, 0
    %p41 = por %p39, %p40
    %p42 = scmp.ne.s32.totalorder %s28, %s29
    %p43 = scmp.eq.s32.totalorder %s21, 1
    %p44 = por %p42, %p43
    %p46 = scmp.ne.s32.totalorder %s29, %s45
    %p47 = scmp.eq.s32.totalorder %s21, 0
    %p48 = por %p46, %p47
    %s49 = ssub.s32 %s15, %s22
    %p50 = scmp.eq.s32.totalorder %s49, 0
    %s52 = sadd.s32 %s51, 1
    %s53 = scalar_select %p50, %s51, %s52
    %p56 = pneg %p50
    %p57 = scmp.eq.s32.totalorder %s15, 1
    %p58 = por %p56, %p57
    %p59 = scmp.ne.s32.totalorder %s51, %s54
    %p60 = scmp.eq.s32.totalorder %s15, 0
    %p61 = por %p59, %p60
    %p62 = scmp.ne.s32.totalorder %s51, %s54
    %p63 = scmp.eq.s32.totalorder %s20, 1
    %p64 = por %p62, %p63
    %p65 = scmp.ne.s32.totalorder %s54, %s55
    %p66 = scmp.eq.s32.totalorder %s20, 0
    %p67 = por %p65, %p66
    %p68 = scmp.ne.s32.totalorder %s54, %s55
    %p69 = scmp.eq.s32.totalorder %s21, 1
    %p70 = por %p68, %p69
    %p72 = scmp.ne.s32.totalorder %s55, %s71
    %p73 = scmp.eq.s32.totalorder %s21, 0
    %p74 = por %p72, %p73
    %s75 = ssub.s32 %s15, %s22
    %p76 = scmp.eq.s32.totalorder %s75, 0
    %s78 = sadd.s32 %s77, 1
    %s79 = scalar_select %p76, %s77, %s78
    %p82 = pneg %p76
    %p83 = scmp.eq.s32.totalorder %s15, 1
    %p84 = por %p82, %p83
    %p85 = scmp.ne.s32.totalorder %s77, %s80
    %p86 = scmp.eq.s32.totalorder %s15, 0
    %p87 = por %p85, %p86
    %p88 = scmp.ne.s32.totalorder %s77, %s80
    %p89 = scmp.eq.s32.totalorder %s20, 1
    %p90 = por %p88, %p89
    %p91 = scmp.ne.s32.totalorder %s80, %s81
    %p92 = scmp.eq.s32.totalorder %s20, 0
    %p93 = por %p91, %p92
    %p94 = scmp.ne.s32.totalorder %s80, %s81
    %p95 = scmp.eq.s32.totalorder %s21, 1
    %p96 = por %p94, %p95
    %p98 = scmp.ne.s32.totalorder %s81, %s97
    %p99 = scmp.eq.s32.totalorder %s21, 0
    %p100 = por %p98, %p99
    %s102 = sadd.s32 %s101, 1
    %p105 = scmp.eq.s32.totalorder %s15, 1
    %p106 = scmp.ne.s32.totalorder %s101, %s103
    %p107 = scmp.eq.s32.totalorder %s15, 0
    %p108 = por %p106, %p107
    %p109 = scmp.ne.s32.totalorder %s101, %s103
    %p110 = scmp.eq.s32.totalorder %s20, 1
    %p111 = por %p109, %p110
    %p112 = scmp.ne.s32.totalorder %s103, %s104
    %p113 = scmp.eq.s32.totalorder %s20, 0
    %p114 = por %p112, %p113
    %p115 = scmp.ne.s32.totalorder %s103, %s104
    %p116 = scmp.eq.s32.totalorder %s21, 1
    %p117 = por %p115, %p116
    %p119 = scmp.ne.s32.totalorder %s104, %s118
    %p120 = scmp.eq.s32.totalorder %s21, 0
    %p121 = por %p119, %p120
    %s123 = sadd.s32 %s122, 1
    %p126 = scmp.eq.s32.totalorder %s15, 1
    %p127 = scmp.ne.s32.totalorder %s122, %s124
    %p128 = scmp.eq.s32.totalorder %s15, 0
    %p129 = por %p127, %p128
    %p130 = scmp.ne.s32.totalorder %s122, %s124
    %p131 = scmp.eq.s32.totalorder %s20, 1
    %p132 = por %p130, %p131
    %p133 = scmp.ne.s32.totalorder %s124, %s125
    %p134 = scmp.eq.s32.totalorder %s20, 0
    %p135 = por %p133, %p134
    %p136 = scmp.ne.s32.totalorder %s124, %s125
    %p137 = scmp.eq.s32.totalorder %s21, 1
    %p138 = por %p136, %p137
    %p140 = scmp.ne.s32.totalorder %s125, %s139
    %p141 = scmp.eq.s32.totalorder %s21, 0
    %p142 = por %p140, %p141
    %s144 = sadd.s32 %s143, 1
    %p147 = scmp.eq.s32.totalorder %s15, 1
    %p148 = scmp.ne.s32.totalorder %s143, %s145
    %p149 = scmp.eq.s32.totalorder %s15, 0
    %p150 = por %p148, %p149
    %p151 = scmp.ne.s32.totalorder %s143, %s145
    %p152 = scmp.eq.s32.totalorder %s20, 1
    %p153 = por %p151, %p152
    %p154 = scmp.ne.s32.totalorder %s145, %s146
    %p155 = scmp.eq.s32.totalorder %s20, 0
    %p156 = por %p154, %p155
    %p157 = scmp.ne.s32.totalorder %s145, %s146
    %p158 = scmp.eq.s32.totalorder %s21, 1
    %p159 = por %p157, %p158
    %p161 = scmp.ne.s32.totalorder %s146, %s160
    %p162 = scmp.eq.s32.totalorder %s21, 0
    %p163 = por %p161, %p162
    %s165 = sadd.s32 %s164, 1
    %p168 = scmp.eq.s32.totalorder %s15, 1
    %p169 = scmp.ne.s32.totalorder %s164, %s166
    %p170 = scmp.eq.s32.totalorder %s15, 0
    %p171 = por %p169, %p170
    %p172 = scmp.ne.s32.totalorder %s164, %s166
    %p173 = scmp.eq.s32.totalorder %s20, 1
    %p174 = por %p172, %p173
    %p175 = scmp.ne.s32.totalorder %s166, %s167
    %p176 = scmp.eq.s32.totalorder %s20, 0
    %p177 = por %p175, %p176
    %p178 = scmp.ne.s32.totalorder %s166, %s167
    %p179 = scmp.eq.s32.totalorder %s21, 1
    %p180 = por %p178, %p179
    %p182 = scmp.ne.s32.totalorder %s167, %s181
    %p183 = scmp.eq.s32.totalorder %s21, 0
    %p184 = por %p182, %p183
    %s186 = sadd.s32 %s185, 1
    %p189 = scmp.eq.s32.totalorder %s15, 1
    %p190 = scmp.ne.s32.totalorder %s185, %s187
    %p191 = scmp.eq.s32.totalorder %s15, 0
    %p192 = por %p190, %p191
    %p193 = scmp.ne.s32.totalorder %s185, %s187
    %p194 = scmp.eq.s32.totalorder %s20, 1
    %p195 = por %p193, %p194
    %p196 = scmp.ne.s32.totalorder %s187, %s188
    %p197 = scmp.eq.s32.totalorder %s20, 0
    %p198 = por %p196, %p197
    %p199 = scmp.ne.s32.totalorder %s187, %s188
    %p200 = scmp.eq.s32.totalorder %s21, 1
    %p201 = por %p199, %p200
    %p203 = scmp.ne.s32.totalorder %s188, %s202
    %p204 = scmp.eq.s32.totalorder %s21, 0
    %p205 = por %p203, %p204
    %s207 = sadd.s32 %s206, 1
    %p210 = scmp.eq.s32.totalorder %s15, 1
    %p211 = scmp.ne.s32.totalorder %s206, %s208
    %p212 = scmp.eq.s32.totalorder %s15, 0
    %p213 = por %p211, %p212
    %p214 = scmp.ne.s32.totalorder %s206, %s208
    %p215 = scmp.eq.s32.totalorder %s20, 1
    %p216 = por %p214, %p215
    %p217 = scmp.ne.s32.totalorder %s208, %s209
    %p218 = scmp.eq.s32.totalorder %s20, 0
    %p219 = por %p217, %p218
    %p220 = scmp.ne.s32.totalorder %s208, %s209
    %p221 = scmp.eq.s32.totalorder %s21, 1
    %p222 = por %p220, %p221
    %p224 = scmp.ne.s32.totalorder %s209, %s223
    %p225 = scmp.eq.s32.totalorder %s21, 0
    %p226 = por %p224, %p225
    %s227 = ssub.s32 %s15, %s22
    %p228 = scmp.eq.s32.totalorder %s227, 0
    %s230 = sadd.s32 %s229, 1
    %s231 = scalar_select %p228, %s229, %s230
    %p234 = pneg %p228
    %p235 = scmp.eq.s32.totalorder %s15, 1
    %p236 = por %p234, %p235
    %p237 = scmp.ne.s32.totalorder %s229, %s232
    %p238 = scmp.eq.s32.totalorder %s15, 0
    %p239 = por %p237, %p238
    %p240 = scmp.ne.s32.totalorder %s229, %s232
    %p241 = scmp.eq.s32.totalorder %s20, 1
    %p242 = por %p240, %p241
    %p243 = scmp.ne.s32.totalorder %s232, %s233
    %p244 = scmp.eq.s32.totalorder %s20, 0
    %p245 = por %p243, %p244
    %p246 = scmp.ne.s32.totalorder %s232, %s233
    %p247 = scmp.eq.s32.totalorder %s21, 1
    %p248 = por %p246, %p247
    %p250 = scmp.ne.s32.totalorder %s233, %s249
    %p251 = scmp.eq.s32.totalorder %s21, 0
    %p252 = por %p250, %p251
    %p253 = scmp.le.s32.totalorder 1, %s15
    %p254 = scmp.lt.s32.totalorder %s15, 3
    %p255 = pnand %p253, %p254
    %p256 = pneg %p255
    // Predicated region
    $region9: #{tpu_custom_call.1} parent=5 // pred_check
      _
    $region10: #{tpu_custom_call.1} parent=5 // pred_check_branch
      %258 = sbr.rel (%p255) target = $region12
    $region11: #{tpu_custom_call.1} parent=5 // pred_region
      %s259 = ssub.s32 %s15, 1
      // Predicated region
      $region13: #{tpu_custom_call.1} parent=11 // pred_check
        %p260 = pneg %p114
      $region14: #{tpu_custom_call.1} parent=11 // pred_check_branch
        %262 = sbr.rel (%p260) target = $region16
      $region15: #{tpu_custom_call.1} parent=11 // pred_region
        _
      $region16: #{tpu_custom_call.1} parent=11 // pred_fallthru
        _
      // Predicated region
      $region17: #{tpu_custom_call.1} parent=11 // pred_check
        %p263 = pneg %p135
      $region18: #{tpu_custom_call.1} parent=11 // pred_check_branch
        %265 = sbr.rel (%p263) target = $region20
      $region19: #{tpu_custom_call.1} parent=11 // pred_region
        _
      $region20: #{tpu_custom_call.1} parent=11 // pred_fallthru
        _
      // Predicated region
      $region21: #{tpu_custom_call.1} parent=11 // pred_check
        %p266 = pneg %p156
      $region22: #{tpu_custom_call.1} parent=11 // pred_check_branch
        %268 = sbr.rel (%p266) target = $region24
      $region23: #{tpu_custom_call.1} parent=11 // pred_region
        _
      $region24: #{tpu_custom_call.1} parent=11 // pred_fallthru
        _
      // Predicated region
      $region25: #{tpu_custom_call.1} parent=11 // pred_check
        %p269 = pneg %p177
      $region26: #{tpu_custom_call.1} parent=11 // pred_check_branch
        %271 = sbr.rel (%p269) target = $region28
      $region27: #{tpu_custom_call.1} parent=11 // pred_region
        _
      $region28: #{tpu_custom_call.1} parent=11 // pred_fallthru
        _
      // Predicated region
      $region29: #{tpu_custom_call.1} parent=11 // pred_check
        %p272 = pneg %p198
      $region30: #{tpu_custom_call.1} parent=11 // pred_check_branch
        %274 = sbr.rel (%p272) target = $region32
      $region31: #{tpu_custom_call.1} parent=11 // pred_region
        _
      $region32: #{tpu_custom_call.1} parent=11 // pred_fallthru
        _
      // Predicated region
      $region33: #{tpu_custom_call.1} parent=11 // pred_check
        %p275 = pneg %p219
      $region34: #{tpu_custom_call.1} parent=11 // pred_check_branch
        %277 = sbr.rel (%p275) target = $region36
      $region35: #{tpu_custom_call.1} parent=11 // pred_region
        _
      $region36: #{tpu_custom_call.1} parent=11 // pred_fallthru
        _
    $region12: #{tpu_custom_call.1} parent=5 // pred_fallthru
      _
    %p278 = scmp.lt.s32.totalorder %s15, 2
    // Predicated region
    $region37: #{tpu_custom_call.1} parent=5 // pred_check
      %p279 = pneg %p278
    $region38: #{tpu_custom_call.1} parent=5 // pred_check_branch
      %281 = sbr.rel (%p279) target = $region40
    $region39: #{tpu_custom_call.1} parent=5 // pred_region
      // Predicated region
      $region41: #{tpu_custom_call.1} parent=39 // pred_check
        %p282 = pneg %p35
      $region42: #{tpu_custom_call.1} parent=39 // pred_check_branch
        %284 = sbr.rel (%p282) target = $region44
      $region43: #{tpu_custom_call.1} parent=39 // pred_region
        %p285 = scmp.lt.s32.totalorder %s15, 1
        %s286 = scalar_select %p285, %s15, 1
        %s287 = smul.addr %s286, 32
        %s288 = smul.addr %s287, 8
        %s289 = scalar_lea.vmem %s0, %s288
      $region44: #{tpu_custom_call.1} parent=39 // pred_fallthru
        _
      // Predicated region
      $region45: #{tpu_custom_call.1} parent=39 // pred_check
        %p290 = pneg %p61
      $region46: #{tpu_custom_call.1} parent=39 // pred_check_branch
        %292 = sbr.rel (%p290) target = $region48
      $region47: #{tpu_custom_call.1} parent=39 // pred_region
        %p293 = scmp.lt.s32.totalorder %s15, 1
        %s294 = scalar_select %p293, %s15, 1
        %s295 = scalar_lea.vmem %s1, %s294
      $region48: #{tpu_custom_call.1} parent=39 // pred_fallthru
        _
      // Predicated region
      $region49: #{tpu_custom_call.1} parent=39 // pred_check
        %p296 = pneg %p87
      $region50: #{tpu_custom_call.1} parent=39 // pred_check_branch
        %298 = sbr.rel (%p296) target = $region52
      $region51: #{tpu_custom_call.1} parent=39 // pred_region
        %p299 = scmp.lt.s32.totalorder %s15, 1
        %s300 = scalar_select %p299, %s15, 1
        %s301 = scalar_lea.vmem %s2, %s300
      $region52: #{tpu_custom_call.1} parent=39 // pred_fallthru
        _
    $region40: #{tpu_custom_call.1} parent=5 // pred_fallthru
      _
    %p302 = scmp.le.s32.totalorder 1, %s15
    %p303 = scmp.lt.s32.totalorder %s15, 3
    %p304 = pnand %p302, %p303
    %p305 = pneg %p304
    // Predicated region
    $region53: #{tpu_custom_call.1} parent=5 // pred_check
      _
    $region54: #{tpu_custom_call.1} parent=5 // pred_check_branch
      %307 = sbr.rel (%p304) target = $region56
    $region55: #{tpu_custom_call.1} parent=5 // pred_region
      %s308 = ssub.s32 %s15, 1
      %p309 = scmp.lt.s32.totalorder %s20, 1
      %s310 = scalar_select %p309, %s20, 1
      %s311 = smul.addr %s310, 32
      %s312 = smul.addr %s311, 8
      %s313 = scalar_lea.vmem %s0, %s312
      %p314 = pneg %p41
      %p315 = pneg %p38
      %p316 = scmp.lt.s32.totalorder %s20, 1
      %s317 = scalar_select %p316, %s20, 1
      %s318 = scalar_lea.vmem %s1, %s317
      %p319 = pneg %p67
      %p320 = pneg %p64
      %p321 = scmp.lt.s32.totalorder %s20, 1
      %s322 = scalar_select %p321, %s20, 1
      %s323 = scalar_lea.vmem %s2, %s322
      %p324 = pneg %p93
      %p325 = pneg %p90
      %p326 = pneg %p114
      %p327 = pneg %p111
      %p328 = pneg %p135
      %p329 = pneg %p132
      %p330 = pneg %p156
      %p331 = pneg %p153
      %p332 = pneg %p177
      %p333 = pneg %p174
      %p334 = pneg %p198
      %p335 = pneg %p195
      %p336 = pneg %p219
      %p337 = pneg %p216
      %p338 = pneg %p245
      %p339 = pneg %p242
      %p340 = scmp.lt.s32.totalorder %s20, 1
      %s341 = scalar_select %p340, %s20, 1
      %s342 = smul.addr %s341, 32
      %s343 = smul.addr %s342, 8
      %s344 = scalar_lea.vmem %s9, %s343
      %p345 = scmp.lt.s32.totalorder %s20, 1
      %s346 = scalar_select %p345, %s20, 1
      %s347 = smul.addr %s346, 32
      %s348 = smul.addr %s347, 8
      %s349 = scalar_lea.vmem %s0, %s348
      %p350 = scmp.lt.s32.totalorder %s20, 1
      %s351 = scalar_select %p350, %s20, 1
      %s352 = scalar_lea.vmem %s1, %s351
      %p353 = scmp.lt.s32.totalorder %s20, 1
      %s354 = scalar_select %p353, %s20, 1
      %s355 = scalar_lea.vmem %s2, %s354
      %p356 = scmp.lt.s32.totalorder %s20, 1
      %s357 = scalar_select %p356, %s20, 1
      %s358 = smul.addr %s357, 32
      %s359 = smul.addr %s358, 8
      %s360 = scalar_lea.vmem %s9, %s359
      %v362 = vld [vmem:[%s349] sm:$0xff]
      %v363 = vld [vmem:[%s349 + $0x8] sm:$0xff]
      %v364 = vld [vmem:[%s349 + $0x10] sm:$0xff]
      %v365 = vld [vmem:[%s349 + $0x18] sm:$0xff]
      %v366 = vld [vmem:[%s349 + $0x20] sm:$0xff]
      %v367 = vld [vmem:[%s349 + $0x28] sm:$0xff]
      %v368 = vld [vmem:[%s349 + $0x30] sm:$0xff]
      %v369 = vld [vmem:[%s349 + $0x38] sm:$0xff]
      %v370 = vld [vmem:[%s349 + $0x40] sm:$0xff]
      %v371 = vld [vmem:[%s349 + $0x48] sm:$0xff]
      %v372 = vld [vmem:[%s349 + $0x50] sm:$0xff]
      %v373 = vld [vmem:[%s349 + $0x58] sm:$0xff]
      %v374 = vld [vmem:[%s349 + $0x60] sm:$0xff]
      %v375 = vld [vmem:[%s349 + $0x68] sm:$0xff]
      %v376 = vld [vmem:[%s349 + $0x70] sm:$0xff]
      %v377 = vld [vmem:[%s349 + $0x78] sm:$0xff]
      %v378 = vld [vmem:[%s349 + $0x80] sm:$0xff]
      %v379 = vld [vmem:[%s349 + $0x88] sm:$0xff]
      %v380 = vld [vmem:[%s349 + $0x90] sm:$0xff]
      %v381 = vld [vmem:[%s349 + $0x98] sm:$0xff]
      %v382 = vld [vmem:[%s349 + $0xa0] sm:$0xff]
      %v383 = vld [vmem:[%s349 + $0xa8] sm:$0xff]
      %v384 = vld [vmem:[%s349 + $0xb0] sm:$0xff]
      %v385 = vld [vmem:[%s349 + $0xb8] sm:$0xff]
      %v386 = vld [vmem:[%s349 + $0xc0] sm:$0xff]
      %v387 = vld [vmem:[%s349 + $0xc8] sm:$0xff]
      %v388 = vld [vmem:[%s349 + $0xd0] sm:$0xff]
      %v389 = vld [vmem:[%s349 + $0xd8] sm:$0xff]
      %v390 = vld [vmem:[%s349 + $0xe0] sm:$0xff]
      %v391 = vld [vmem:[%s349 + $0xe8] sm:$0xff]
      %v392 = vld [vmem:[%s349 + $0xf0] sm:$0xff]
      %v393 = vld [vmem:[%s349 + $0xf8] sm:$0xff]
      %v394 = vld [vmem:[%s352] sm:$0x1]
      %v395 = vld [vmem:[%s355] sm:$0x1]
      %v396 = vld [vmem:[%s4] sm:$0x1]
      %v397 = vld [vmem:[%s7] sm:$0x1]
      %v398 = vld [vmem:[%s5] sm:$0x1]
      %v399 = vld [vmem:[%s8] sm:$0x1]
      %v400 = vpack.c.bf16 %v362, %v362
      %v401 = vpack.c.bf16 %v363, %v363
      %v402 = vpack.c.bf16 %v364, %v364
      %v403 = vpack.c.bf16 %v365, %v365
      %v404 = vpack.c.bf16 %v366, %v366
      %v405 = vpack.c.bf16 %v367, %v367
      %v406 = vpack.c.bf16 %v368, %v368
      %v407 = vpack.c.bf16 %v369, %v369
      %v408 = vpack.c.bf16 %v370, %v370
      %v409 = vpack.c.bf16 %v371, %v371
      %v410 = vpack.c.bf16 %v372, %v372
      %v411 = vpack.c.bf16 %v373, %v373
      %v412 = vpack.c.bf16 %v374, %v374
      %v413 = vpack.c.bf16 %v375, %v375
      %v414 = vpack.c.bf16 %v376, %v376
      %v415 = vpack.c.bf16 %v377, %v377
      %v416 = vpack.c.bf16 %v378, %v378
      %v417 = vpack.c.bf16 %v379, %v379
      %v418 = vpack.c.bf16 %v380, %v380
      %v419 = vpack.c.bf16 %v381, %v381
      %v420 = vpack.c.bf16 %v382, %v382
      %v421 = vpack.c.bf16 %v383, %v383
      %v422 = vpack.c.bf16 %v384, %v384
      %v423 = vpack.c.bf16 %v385, %v385
      %v424 = vpack.c.bf16 %v386, %v386
      %v425 = vpack.c.bf16 %v387, %v387
      %v426 = vpack.c.bf16 %v388, %v388
      %v427 = vpack.c.bf16 %v389, %v389
      %v428 = vpack.c.bf16 %v390, %v390
      %v429 = vpack.c.bf16 %v391, %v391
      %v430 = vpack.c.bf16 %v392, %v392
      %v431 = vpack.c.bf16 %v393, %v393
      %vm432 = vsmask.f32 256
      %vm433 = vsmask.f32 4368
      %vm434 = vmor %vm432, %vm433
      %v436 = vshrl.u32 %v400, 16
      %v438 = vrot.slane %v436, 7
      %v439 = vshll.u32 %v400, 16
      %v441 = vor.u32 %v438, %v439
      %v442 = vrot.slane %v438, 4
      %v444 = vshrl.u32 %v401, 16
      %v446 = vrot.slane %v444, 7
      %v447 = vshll.u32 %v401, 16
      %v449 = vor.u32 %v446, %v447
      %v450 = vsel %vm434, %v442, %v449
      %v451 = vrot.slane %v446, 4
      %v453 = vshrl.u32 %v402, 16
      %v455 = vrot.slane %v453, 7
      %v456 = vshll.u32 %v402, 16
      %v458 = vor.u32 %v455, %v456
      %v459 = vrot.slane %v455, 4
      %v461 = vshrl.u32 %v403, 16
      %v463 = vrot.slane %v461, 7
      %v464 = vshll.u32 %v403, 16
      %v466 = vor.u32 %v463, %v464
      %v467 = vsel %vm434, %v459, %v466
      %v468 = vrot.slane %v463, 4
      %v470 = vshrl.u32 %v404, 16
      %v472 = vrot.slane %v470, 7
      %v473 = vshll.u32 %v404, 16
      %v475 = vor.u32 %v472, %v473
      %v476 = vrot.slane %v472, 4
      %v478 = vshrl.u32 %v405, 16
      %v480 = vrot.slane %v478, 7
      %v481 = vshll.u32 %v405, 16
      %v483 = vor.u32 %v480, %v481
      %v484 = vsel %vm434, %v476, %v483
      %v485 = vrot.slane %v480, 4
      %v487 = vshrl.u32 %v406, 16
      %v489 = vrot.slane %v487, 7
      %v490 = vshll.u32 %v406, 16
      %v492 = vor.u32 %v489, %v490
      %v493 = vrot.slane %v489, 4
      %v495 = vshrl.u32 %v407, 16
      %v497 = vrot.slane %v495, 7
      %v498 = vshll.u32 %v407, 16
      %v500 = vor.u32 %v497, %v498
      %v501 = vsel %vm434, %v493, %v500
      %v502 = vrot.slane %v497, 4
      %v504 = vshrl.u32 %v408, 16
      %v506 = vrot.slane %v504, 7
      %v507 = vshll.u32 %v408, 16
      %v509 = vor.u32 %v506, %v507
      %v510 = vrot.slane %v506, 4
      %v512 = vshrl.u32 %v409, 16
      %v514 = vrot.slane %v512, 7
      %v515 = vshll.u32 %v409, 16
      %v517 = vor.u32 %v514, %v515
      %v518 = vsel %vm434, %v510, %v517
      %v519 = vrot.slane %v514, 4
      %v521 = vshrl.u32 %v410, 16
      %v523 = vrot.slane %v521, 7
      %v524 = vshll.u32 %v410, 16
      %v526 = vor.u32 %v523, %v524
      %v527 = vrot.slane %v523, 4
      %v529 = vshrl.u32 %v411, 16
      %v531 = vrot.slane %v529, 7
      %v532 = vshll.u32 %v411, 16
      %v534 = vor.u32 %v531, %v532
      %v535 = vsel %vm434, %v527, %v534
      %v536 = vrot.slane %v531, 4
      %v538 = vshrl.u32 %v412, 16
      %v540 = vrot.slane %v538, 7
      %v541 = vshll.u32 %v412, 16
      %v543 = vor.u32 %v540, %v541
      %v544 = vrot.slane %v540, 4
      %v546 = vshrl.u32 %v413, 16
      %v548 = vrot.slane %v546, 7
      %v549 = vshll.u32 %v413, 16
      %v551 = vor.u32 %v548, %v549
      %v552 = vsel %vm434, %v544, %v551
      %v553 = vrot.slane %v548, 4
      %v555 = vshrl.u32 %v414, 16
      %v557 = vrot.slane %v555, 7
      %v558 = vshll.u32 %v414, 16
      %v560 = vor.u32 %v557, %v558
      %v561 = vrot.slane %v557, 4
      %v563 = vshrl.u32 %v415, 16
      %v565 = vrot.slane %v563, 7
      %v566 = vshll.u32 %v415, 16
      %v568 = vor.u32 %v565, %v566
      %v569 = vsel %vm434, %v561, %v568
      %v570 = vrot.slane %v565, 4
      %v572 = vshrl.u32 %v416, 16
      %v574 = vrot.slane %v572, 7
      %v575 = vshll.u32 %v416, 16
      %v577 = vor.u32 %v574, %v575
      %v578 = vrot.slane %v574, 4
      %v580 = vshrl.u32 %v417, 16
      %v582 = vrot.slane %v580, 7
      %v583 = vshll.u32 %v417, 16
      %v585 = vor.u32 %v582, %v583
      %v586 = vsel %vm434, %v578, %v585
      %v587 = vrot.slane %v582, 4
      %v589 = vshrl.u32 %v418, 16
      %v591 = vrot.slane %v589, 7
      %v592 = vshll.u32 %v418, 16
      %v594 = vor.u32 %v591, %v592
      %v595 = vrot.slane %v591, 4
      %v597 = vshrl.u32 %v419, 16
      %v599 = vrot.slane %v597, 7
      %v600 = vshll.u32 %v419, 16
      %v602 = vor.u32 %v599, %v600
      %v603 = vsel %vm434, %v595, %v602
      %v604 = vrot.slane %v599, 4
      %v606 = vshrl.u32 %v420, 16
      %v608 = vrot.slane %v606, 7
      %v609 = vshll.u32 %v420, 16
      %v611 = vor.u32 %v608, %v609
      %v612 = vrot.slane %v608, 4
      %v614 = vshrl.u32 %v421, 16
      %v616 = vrot.slane %v614, 7
      %v617 = vshll.u32 %v421, 16
      %v619 = vor.u32 %v616, %v617
      %v620 = vsel %vm434, %v612, %v619
      %v621 = vrot.slane %v616, 4
      %v623 = vshrl.u32 %v422, 16
      %v625 = vrot.slane %v623, 7
      %v626 = vshll.u32 %v422, 16
      %v628 = vor.u32 %v625, %v626
      %v629 = vrot.slane %v625, 4
      %v631 = vshrl.u32 %v423, 16
      %v633 = vrot.slane %v631, 7
      %v634 = vshll.u32 %v423, 16
      %v636 = vor.u32 %v633, %v634
      %v637 = vsel %vm434, %v629, %v636
      %v638 = vrot.slane %v633, 4
      %v640 = vshrl.u32 %v424, 16
      %v642 = vrot.slane %v640, 7
      %v643 = vshll.u32 %v424, 16
      %v645 = vor.u32 %v642, %v643
      %v646 = vrot.slane %v642, 4
      %v648 = vshrl.u32 %v425, 16
      %v650 = vrot.slane %v648, 7
      %v651 = vshll.u32 %v425, 16
      %v653 = vor.u32 %v650, %v651
      %v654 = vsel %vm434, %v646, %v653
      %v655 = vrot.slane %v650, 4
      %v657 = vshrl.u32 %v426, 16
      %v659 = vrot.slane %v657, 7
      %v660 = vshll.u32 %v426, 16
      %v662 = vor.u32 %v659, %v660
      %v663 = vrot.slane %v659, 4
      %v665 = vshrl.u32 %v427, 16
      %v667 = vrot.slane %v665, 7
      %v668 = vshll.u32 %v427, 16
      %v670 = vor.u32 %v667, %v668
      %v671 = vsel %vm434, %v663, %v670
      %v672 = vrot.slane %v667, 4
      %v674 = vshrl.u32 %v428, 16
      %v676 = vrot.slane %v674, 7
      %v677 = vshll.u32 %v428, 16
      %v679 = vor.u32 %v676, %v677
      %v680 = vrot.slane %v676, 4
      %v682 = vshrl.u32 %v429, 16
      %v684 = vrot.slane %v682, 7
      %v685 = vshll.u32 %v429, 16
      %v687 = vor.u32 %v684, %v685
      %v688 = vsel %vm434, %v680, %v687
      %v689 = vrot.slane %v684, 4
      %v691 = vshrl.u32 %v430, 16
      %v693 = vrot.slane %v691, 7
      %v694 = vshll.u32 %v430, 16
      %v696 = vor.u32 %v693, %v694
      %v697 = vrot.slane %v693, 4
      %v699 = vshrl.u32 %v431, 16
      %v701 = vrot.slane %v699, 7
      %v702 = vshll.u32 %v431, 16
      %v704 = vor.u32 %v701, %v702
      %v705 = vsel %vm434, %v697, %v704
      %v706 = vrot.slane %v701, 4
      %s755 = scalar_lea.vmem [#allocation2], 12
      %vm756 = vcmask 27648
      %vm757 = vsmask.f32 7938
      %vm758 = vmand %vm756, %vm757
      %v759 = vld [vmem:[%s755] sm:$0xf]
      %v760 = vsel %vm758, %v441, %v759
      %761 = vst [vmem:[%s755] sm:$0xf] %v760
      %vm762 = vcmask 27648
      %763 = vst.msk [vmem:[%s755 + $0x4] sm:$0xf] %vm762, %v450
      %vm764 = vcmask 24576
      %vm765 = vmand %vm764, %vm432
      %v766 = vld [vmem:[%s755 + $0x8] sm:$0x1]
      %v767 = vsel %vm765, %v451, %v766
      %768 = vst [vmem:[%s755 + $0x8] sm:$0x1] %v767
      %v769 = vld [vmem:[%s755 + $0xc] sm:$0xf]
      %v770 = vsel %vm758, %v458, %v769
      %771 = vst [vmem:[%s755 + $0xc] sm:$0xf] %v770
      %772 = vst.msk [vmem:[%s755 + $0x10] sm:$0xf] %vm762, %v467
      %v773 = vld [vmem:[%s755 + $0x14] sm:$0x1]
      %v774 = vsel %vm765, %v468, %v773
      %775 = vst [vmem:[%s755 + $0x14] sm:$0x1] %v774
      %v776 = vld [vmem:[%s755 + $0x18] sm:$0xf]
      %v777 = vsel %vm758, %v475, %v776
      %778 = vst [vmem:[%s755 + $0x18] sm:$0xf] %v777
      %779 = vst.msk [vmem:[%s755 + $0x1c] sm:$0xf] %vm762, %v484
      %v780 = vld [vmem:[%s755 + $0x20] sm:$0x1]
      %v781 = vsel %vm765, %v485, %v780
      %782 = vst [vmem:[%s755 + $0x20] sm:$0x1] %v781
      %v783 = vld [vmem:[%s755 + $0x24] sm:$0xf]
      %v784 = vsel %vm758, %v492, %v783
      %785 = vst [vmem:[%s755 + $0x24] sm:$0xf] %v784
      %786 = vst.msk [vmem:[%s755 + $0x28] sm:$0xf] %vm762, %v501
      %v787 = vld [vmem:[%s755 + $0x2c] sm:$0x1]
      %v788 = vsel %vm765, %v502, %v787
      %789 = vst [vmem:[%s755 + $0x2c] sm:$0x1] %v788
      %v790 = vld [vmem:[%s755 + $0x30] sm:$0xf]
      %v791 = vsel %vm758, %v509, %v790
      %792 = vst [vmem:[%s755 + $0x30] sm:$0xf] %v791
      %793 = vst.msk [vmem:[%s755 + $0x34] sm:$0xf] %vm762, %v518
      %v794 = vld [vmem:[%s755 + $0x38] sm:$0x1]
      %v795 = vsel %vm765, %v519, %v794
      %796 = vst [vmem:[%s755 + $0x38] sm:$0x1] %v795
      %v797 = vld [vmem:[%s755 + $0x3c] sm:$0xf]
      %v798 = vsel %vm758, %v526, %v797
      %799 = vst [vmem:[%s755 + $0x3c] sm:$0xf] %v798
      %800 = vst.msk [vmem:[%s755 + $0x40] sm:$0xf] %vm762, %v535
      %v801 = vld [vmem:[%s755 + $0x44] sm:$0x1]
      %v802 = vsel %vm765, %v536, %v801
      %803 = vst [vmem:[%s755 + $0x44] sm:$0x1] %v802
      %v804 = vld [vmem:[%s755 + $0x48] sm:$0xf]
      %v805 = vsel %vm758, %v543, %v804
      %806 = vst [vmem:[%s755 + $0x48] sm:$0xf] %v805
      %807 = vst.msk [vmem:[%s755 + $0x4c] sm:$0xf] %vm762, %v552
      %v808 = vld [vmem:[%s755 + $0x50] sm:$0x1]
      %v809 = vsel %vm765, %v553, %v808
      %810 = vst [vmem:[%s755 + $0x50] sm:$0x1] %v809
      %v811 = vld [vmem:[%s755 + $0x54] sm:$0xf]
      %v812 = vsel %vm758, %v560, %v811
      %813 = vst [vmem:[%s755 + $0x54] sm:$0xf] %v812
      %814 = vst.msk [vmem:[%s755 + $0x58] sm:$0xf] %vm762, %v569
      %v815 = vld [vmem:[%s755 + $0x5c] sm:$0x1]
      %v816 = vsel %vm765, %v570, %v815
      %817 = vst [vmem:[%s755 + $0x5c] sm:$0x1] %v816
      %v818 = vld [vmem:[%s755 + $0x60] sm:$0xf]
      %v819 = vsel %vm758, %v577, %v818
      %820 = vst [vmem:[%s755 + $0x60] sm:$0xf] %v819
      %821 = vst.msk [vmem:[%s755 + $0x64] sm:$0xf] %vm762, %v586
      %v822 = vld [vmem:[%s755 + $0x68] sm:$0x1]
      %v823 = vsel %vm765, %v587, %v822
      %824 = vst [vmem:[%s755 + $0x68] sm:$0x1] %v823
      %v825 = vld [vmem:[%s755 + $0x6c] sm:$0xf]
      %v826 = vsel %vm758, %v594, %v825
      %827 = vst [vmem:[%s755 + $0x6c] sm:$0xf] %v826
      %828 = vst.msk [vmem:[%s755 + $0x70] sm:$0xf] %vm762, %v603
      %v829 = vld [vmem:[%s755 + $0x74] sm:$0x1]
      %v830 = vsel %vm765, %v604, %v829
      %831 = vst [vmem:[%s755 + $0x74] sm:$0x1] %v830
      %v832 = vld [vmem:[%s755 + $0x78] sm:$0xf]
      %v833 = vsel %vm758, %v611, %v832
      %834 = vst [vmem:[%s755 + $0x78] sm:$0xf] %v833
      %835 = vst.msk [vmem:[%s755 + $0x7c] sm:$0xf] %vm762, %v620
      %v836 = vld [vmem:[%s755 + $0x80] sm:$0x1]
      %v837 = vsel %vm765, %v621, %v836
      %838 = vst [vmem:[%s755 + $0x80] sm:$0x1] %v837
      %v839 = vld [vmem:[%s755 + $0x84] sm:$0xf]
      %v840 = vsel %vm758, %v628, %v839
      %841 = vst [vmem:[%s755 + $0x84] sm:$0xf] %v840
      %842 = vst.msk [vmem:[%s755 + $0x88] sm:$0xf] %vm762, %v637
      %v843 = vld [vmem:[%s755 + $0x8c] sm:$0x1]
      %v844 = vsel %vm765, %v638, %v843
      %845 = vst [vmem:[%s755 + $0x8c] sm:$0x1] %v844
      %v846 = vld [vmem:[%s755 + $0x90] sm:$0xf]
      %v847 = vsel %vm758, %v645, %v846
      %848 = vst [vmem:[%s755 + $0x90] sm:$0xf] %v847
      %849 = vst.msk [vmem:[%s755 + $0x94] sm:$0xf] %vm762, %v654
      %v850 = vld [vmem:[%s755 + $0x98] sm:$0x1]
      %v851 = vsel %vm765, %v655, %v850
      %852 = vst [vmem:[%s755 + $0x98] sm:$0x1] %v851
      %v853 = vld [vmem:[%s755 + $0x9c] sm:$0xf]
      %v854 = vsel %vm758, %v662, %v853
      %855 = vst [vmem:[%s755 + $0x9c] sm:$0xf] %v854
      %856 = vst.msk [vmem:[%s755 + $0xa0] sm:$0xf] %vm762, %v671
      %v857 = vld [vmem:[%s755 + $0xa4] sm:$0x1]
      %v858 = vsel %vm765, %v672, %v857
      %859 = vst [vmem:[%s755 + $0xa4] sm:$0x1] %v858
      %v860 = vld [vmem:[%s755 + $0xa8] sm:$0xf]
      %v861 = vsel %vm758, %v679, %v860
      %862 = vst [vmem:[%s755 + $0xa8] sm:$0xf] %v861
      %863 = vst.msk [vmem:[%s755 + $0xac] sm:$0xf] %vm762, %v688
      %v864 = vld [vmem:[%s755 + $0xb0] sm:$0x1]
      %v865 = vsel %vm765, %v689, %v864
      %866 = vst [vmem:[%s755 + $0xb0] sm:$0x1] %v865
      %v867 = vld [vmem:[%s755 + $0xb4] sm:$0xf]
      %v868 = vsel %vm758, %v696, %v867
      %869 = vst [vmem:[%s755 + $0xb4] sm:$0xf] %v868
      %870 = vst.msk [vmem:[%s755 + $0xb8] sm:$0xf] %vm762, %v705
      %v871 = vld [vmem:[%s755 + $0xbc] sm:$0x1]
      %v872 = vsel %vm765, %v706, %v871
      %873 = vst [vmem:[%s755 + $0xbc] sm:$0x1] %v872
      %v874 = vld [vmem:[#allocation2] sm:$0xf]
      %v875 = vsel %vm758, %v458, %v874
      %876 = vst [vmem:[#allocation2] sm:$0xf] %v875
      %877 = vst.msk [vmem:[#allocation2 + $0x4] sm:$0xf] %vm762, %v467
      %v878 = vld [vmem:[#allocation2 + $0x8] sm:$0x1]
      %v879 = vsel %vm765, %v468, %v878
      %880 = vst [vmem:[#allocation2 + $0x8] sm:$0x1] %v879
      %s881 = scalar_lea.vmem [#allocation2], 204
      %v882 = vld [vmem:[%s881] sm:$0xf]
      %v883 = vsel %vm758, %v679, %v882
      %884 = vst [vmem:[%s881] sm:$0xf] %v883
      %885 = vst.msk [vmem:[%s881 + $0x4] sm:$0xf] %vm762, %v688
      %v886 = vld [vmem:[%s881 + $0x8] sm:$0x1]
      %v887 = vsel %vm765, %v689, %v886
      %888 = vst [vmem:[%s881 + $0x8] sm:$0x1] %v887
      %v889 = vld [vmem:[#allocation2] sm:$0x2]
      %v890 = vld [vmem:[#allocation2 + $0xc] sm:$0x2]
      %v891 = vld [vmem:[#allocation2 + $0x18] sm:$0x2]
      %v892 = vld [vmem:[#allocation2 + $0x24] sm:$0x2]
      %v893 = vld [vmem:[#allocation2 + $0x30] sm:$0x2]
      %v894 = vld [vmem:[#allocation2 + $0x3c] sm:$0x2]
      %v895 = vld [vmem:[#allocation2 + $0x48] sm:$0x2]
      %v896 = vld [vmem:[#allocation2 + $0x54] sm:$0x2]
      %v897 = vld [vmem:[#allocation2 + $0x60] sm:$0x2]
      %v898 = vld [vmem:[#allocation2 + $0x6c] sm:$0x2]
      %v899 = vld [vmem:[#allocation2 + $0x78] sm:$0x2]
      %v900 = vld [vmem:[#allocation2 + $0x84] sm:$0x2]
      %v901 = vld [vmem:[#allocation2 + $0x90] sm:$0x2]
      %v902 = vld [vmem:[#allocation2 + $0x9c] sm:$0x2]
      %v903 = vld [vmem:[#allocation2 + $0xa8] sm:$0x2]
      %v904 = vld [vmem:[#allocation2 + $0xb4] sm:$0x2]
      %v905 = vld [vmem:[#allocation2 + $0xc0] sm:$0x2]
      %v906 = vld [vmem:[#allocation2 + $0xcc] sm:$0x2]
      %v925 = vrot.slane %v889, 5
      %v926 = vrot.slane %v925, 4
      %v927 = vrot.slane %v890, 5
      %v928 = vrot.slane %v927, 4
      %v929 = vrot.slane %v891, 5
      %v930 = vrot.slane %v929, 4
      %v931 = vrot.slane %v892, 5
      %v932 = vrot.slane %v931, 4
      %v933 = vrot.slane %v893, 5
      %v934 = vrot.slane %v933, 4
      %v935 = vrot.slane %v894, 5
      %v936 = vrot.slane %v935, 4
      %v937 = vrot.slane %v895, 5
      %v938 = vrot.slane %v937, 4
      %v939 = vrot.slane %v896, 5
      %v940 = vrot.slane %v939, 4
      %v941 = vrot.slane %v897, 5
      %v942 = vrot.slane %v941, 4
      %v943 = vrot.slane %v898, 5
      %v944 = vrot.slane %v943, 4
      %v945 = vrot.slane %v899, 5
      %v946 = vrot.slane %v945, 4
      %v947 = vrot.slane %v900, 5
      %v948 = vrot.slane %v947, 4
      %v949 = vrot.slane %v901, 5
      %v950 = vrot.slane %v949, 4
      %v951 = vrot.slane %v902, 5
      %v952 = vrot.slane %v951, 4
      %v953 = vrot.slane %v903, 5
      %v954 = vrot.slane %v953, 4
      %v955 = vrot.slane %v904, 5
      %v956 = vrot.slane %v955, 4
      %v957 = vrot.slane %v905, 5
      %v958 = vrot.slane %v957, 4
      %v959 = vrot.slane %v906, 5
      %v960 = vrot.slane %v959, 4
      %v979 = vld [vmem:[#allocation2] sm:$0x1]
      %v980 = vsel %vm765, %v926, %v979
      %981 = vst [vmem:[#allocation2] sm:$0x1] %v980
      %v982 = vld [vmem:[#allocation2 + $0xc] sm:$0x1]
      %v983 = vsel %vm765, %v928, %v982
      %984 = vst [vmem:[#allocation2 + $0xc] sm:$0x1] %v983
      %v985 = vld [vmem:[#allocation2 + $0x18] sm:$0x1]
      %v986 = vsel %vm765, %v930, %v985
      %987 = vst [vmem:[#allocation2 + $0x18] sm:$0x1] %v986
      %v988 = vld [vmem:[#allocation2 + $0x24] sm:$0x1]
      %v989 = vsel %vm765, %v932, %v988
      %990 = vst [vmem:[#allocation2 + $0x24] sm:$0x1] %v989
      %v991 = vld [vmem:[#allocation2 + $0x30] sm:$0x1]
      %v992 = vsel %vm765, %v934, %v991
      %993 = vst [vmem:[#allocation2 + $0x30] sm:$0x1] %v992
      %v994 = vld [vmem:[#allocation2 + $0x3c] sm:$0x1]
      %v995 = vsel %vm765, %v936, %v994
      %996 = vst [vmem:[#allocation2 + $0x3c] sm:$0x1] %v995
      %v997 = vld [vmem:[#allocation2 + $0x48] sm:$0x1]
      %v998 = vsel %vm765, %v938, %v997
      %999 = vst [vmem:[#allocation2 + $0x48] sm:$0x1] %v998
      %v1000 = vld [vmem:[#allocation2 + $0x54] sm:$0x1]
      %v1001 = vsel %vm765, %v940, %v1000
      %1002 = vst [vmem:[#allocation2 + $0x54] sm:$0x1] %v1001
      %v1003 = vld [vmem:[#allocation2 + $0x60] sm:$0x1]
      %v1004 = vsel %vm765, %v942, %v1003
      %1005 = vst [vmem:[#allocation2 + $0x60] sm:$0x1] %v1004
      %v1006 = vld [vmem:[#allocation2 + $0x6c] sm:$0x1]
      %v1007 = vsel %vm765, %v944, %v1006
      %1008 = vst [vmem:[#allocation2 + $0x6c] sm:$0x1] %v1007
      %v1009 = vld [vmem:[#allocation2 + $0x78] sm:$0x1]
      %v1010 = vsel %vm765, %v946, %v1009
      %1011 = vst [vmem:[#allocation2 + $0x78] sm:$0x1] %v1010
      %v1012 = vld [vmem:[#allocation2 + $0x84] sm:$0x1]
      %v1013 = vsel %vm765, %v948, %v1012
      %1014 = vst [vmem:[#allocation2 + $0x84] sm:$0x1] %v1013
      %v1015 = vld [vmem:[#allocation2 + $0x90] sm:$0x1]
      %v1016 = vsel %vm765, %v950, %v1015
      %1017 = vst [vmem:[#allocation2 + $0x90] sm:$0x1] %v1016
      %v1018 = vld [vmem:[#allocation2 + $0x9c] sm:$0x1]
      %v1019 = vsel %vm765, %v952, %v1018
      %1020 = vst [vmem:[#allocation2 + $0x9c] sm:$0x1] %v1019
      %v1021 = vld [vmem:[#allocation2 + $0xa8] sm:$0x1]
      %v1022 = vsel %vm765, %v954, %v1021
      %1023 = vst [vmem:[#allocation2 + $0xa8] sm:$0x1] %v1022
      %v1024 = vld [vmem:[#allocation2 + $0xb4] sm:$0x1]
      %v1025 = vsel %vm765, %v956, %v1024
      %1026 = vst [vmem:[#allocation2 + $0xb4] sm:$0x1] %v1025
      %v1027 = vld [vmem:[#allocation2 + $0xc0] sm:$0x1]
      %v1028 = vsel %vm765, %v958, %v1027
      %1029 = vst [vmem:[#allocation2 + $0xc0] sm:$0x1] %v1028
      %v1030 = vld [vmem:[#allocation2 + $0xcc] sm:$0x1]
      %v1031 = vsel %vm765, %v960, %v1030
      %1032 = vst [vmem:[#allocation2 + $0xcc] sm:$0x1] %v1031
      %v1033 = vld [vmem:[#allocation2 + $0x4] sm:$0x8]
      %v1034 = vld [vmem:[#allocation2 + $0x10] sm:$0x8]
      %v1035 = vld [vmem:[#allocation2 + $0x1c] sm:$0x8]
      %v1036 = vld [vmem:[#allocation2 + $0x28] sm:$0x8]
      %v1037 = vld [vmem:[#allocation2 + $0x34] sm:$0x8]
      %v1038 = vld [vmem:[#allocation2 + $0x40] sm:$0x8]
      %v1039 = vld [vmem:[#allocation2 + $0x4c] sm:$0x8]
      %v1040 = vld [vmem:[#allocation2 + $0x58] sm:$0x8]
      %v1041 = vld [vmem:[#allocation2 + $0x64] sm:$0x8]
      %v1042 = vld [vmem:[#allocation2 + $0x70] sm:$0x8]
      %v1043 = vld [vmem:[#allocation2 + $0x7c] sm:$0x8]
      %v1044 = vld [vmem:[#allocation2 + $0x88] sm:$0x8]
      %v1045 = vld [vmem:[#allocation2 + $0x94] sm:$0x8]
      %v1046 = vld [vmem:[#allocation2 + $0xa0] sm:$0x8]
      %v1047 = vld [vmem:[#allocation2 + $0xac] sm:$0x8]
      %v1048 = vld [vmem:[#allocation2 + $0xb8] sm:$0x8]
      %v1049 = vld [vmem:[#allocation2 + $0xc4] sm:$0x8]
      %v1050 = vld [vmem:[#allocation2 + $0xd0] sm:$0x8]
      %v1069 = vrot.slane %v1033, 7
      %v1070 = vrot.slane %v1069, 4
      %v1071 = vrot.slane %v1034, 7
      %v1072 = vrot.slane %v1071, 4
      %v1073 = vrot.slane %v1035, 7
      %v1074 = vrot.slane %v1073, 4
      %v1075 = vrot.slane %v1036, 7
      %v1076 = vrot.slane %v1075, 4
      %v1077 = vrot.slane %v1037, 7
      %v1078 = vrot.slane %v1077, 4
      %v1079 = vrot.slane %v1038, 7
      %v1080 = vrot.slane %v1079, 4
      %v1081 = vrot.slane %v1039, 7
      %v1082 = vrot.slane %v1081, 4
      %v1083 = vrot.slane %v1040, 7
      %v1084 = vrot.slane %v1083, 4
      %v1085 = vrot.slane %v1041, 7
      %v1086 = vrot.slane %v1085, 4
      %v1087 = vrot.slane %v1042, 7
      %v1088 = vrot.slane %v1087, 4
      %v1089 = vrot.slane %v1043, 7
      %v1090 = vrot.slane %v1089, 4
      %v1091 = vrot.slane %v1044, 7
      %v1092 = vrot.slane %v1091, 4
      %v1093 = vrot.slane %v1045, 7
      %v1094 = vrot.slane %v1093, 4
      %v1095 = vrot.slane %v1046, 7
      %v1096 = vrot.slane %v1095, 4
      %v1097 = vrot.slane %v1047, 7
      %v1098 = vrot.slane %v1097, 4
      %v1099 = vrot.slane %v1048, 7
      %v1100 = vrot.slane %v1099, 4
      %v1101 = vrot.slane %v1049, 7
      %v1102 = vrot.slane %v1101, 4
      %v1103 = vrot.slane %v1050, 7
      %v1104 = vrot.slane %v1103, 4
      %vm1123 = vmand %vm764, %vm757
      %v1124 = vld [vmem:[#allocation2 + $0x8] sm:$0x1]
      %v1125 = vsel %vm1123, %v1070, %v1124
      %1126 = vst [vmem:[#allocation2 + $0x8] sm:$0x1] %v1125
      %v1127 = vld [vmem:[#allocation2 + $0x14] sm:$0x1]
      %v1128 = vsel %vm1123, %v1072, %v1127
      %1129 = vst [vmem:[#allocation2 + $0x14] sm:$0x1] %v1128
      %v1130 = vld [vmem:[#allocation2 + $0x20] sm:$0x1]
      %v1131 = vsel %vm1123, %v1074, %v1130
      %1132 = vst [vmem:[#allocation2 + $0x20] sm:$0x1] %v1131
      %v1133 = vld [vmem:[#allocation2 + $0x2c] sm:$0x1]
      %v1134 = vsel %vm1123, %v1076, %v1133
      %1135 = vst [vmem:[#allocation2 + $0x2c] sm:$0x1] %v1134
      %v1136 = vld [vmem:[#allocation2 + $0x38] sm:$0x1]
      %v1137 = vsel %vm1123, %v1078, %v1136
      %1138 = vst [vmem:[#allocation2 + $0x38] sm:$0x1] %v1137
      %v1139 = vld [vmem:[#allocation2 + $0x44] sm:$0x1]
      %v1140 = vsel %vm1123, %v1080, %v1139
      %1141 = vst [vmem:[#allocation2 + $0x44] sm:$0x1] %v1140
      %v1142 = vld [vmem:[#allocation2 + $0x50] sm:$0x1]
      %v1143 = vsel %vm1123, %v1082, %v1142
      %1144 = vst [vmem:[#allocation2 + $0x50] sm:$0x1] %v1143
      %v1145 = vld [vmem:[#allocation2 + $0x5c] sm:$0x1]
      %v1146 = vsel %vm1123, %v1084, %v1145
      %1147 = vst [vmem:[#allocation2 + $0x5c] sm:$0x1] %v1146
      %v1148 = vld [vmem:[#allocation2 + $0x68] sm:$0x1]
      %v1149 = vsel %vm1123, %v1086, %v1148
      %1150 = vst [vmem:[#allocation2 + $0x68] sm:$0x1] %v1149
      %v1151 = vld [vmem:[#allocation2 + $0x74] sm:$0x1]
      %v1152 = vsel %vm1123, %v1088, %v1151
      %1153 = vst [vmem:[#allocation2 + $0x74] sm:$0x1] %v1152
      %v1154 = vld [vmem:[#allocation2 + $0x80] sm:$0x1]
      %v1155 = vsel %vm1123, %v1090, %v1154
      %1156 = vst [vmem:[#allocation2 + $0x80] sm:$0x1] %v1155
      %v1157 = vld [vmem:[#allocation2 + $0x8c] sm:$0x1]
      %v1158 = vsel %vm1123, %v1092, %v1157
      %1159 = vst [vmem:[#allocation2 + $0x8c] sm:$0x1] %v1158
      %v1160 = vld [vmem:[#allocation2 + $0x98] sm:$0x1]
      %v1161 = vsel %vm1123, %v1094, %v1160
      %1162 = vst [vmem:[#allocation2 + $0x98] sm:$0x1] %v1161
      %v1163 = vld [vmem:[#allocation2 + $0xa4] sm:$0x1]
      %v1164 = vsel %vm1123, %v1096, %v1163
      %1165 = vst [vmem:[#allocation2 + $0xa4] sm:$0x1] %v1164
      %v1166 = vld [vmem:[#allocation2 + $0xb0] sm:$0x1]
      %v1167 = vsel %vm1123, %v1098, %v1166
      %1168 = vst [vmem:[#allocation2 + $0xb0] sm:$0x1] %v1167
      %v1169 = vld [vmem:[#allocation2 + $0xbc] sm:$0x1]
      %v1170 = vsel %vm1123, %v1100, %v1169
      %1171 = vst [vmem:[#allocation2 + $0xbc] sm:$0x1] %v1170
      %v1172 = vld [vmem:[#allocation2 + $0xc8] sm:$0x1]
      %v1173 = vsel %vm1123, %v1102, %v1172
      %1174 = vst [vmem:[#allocation2 + $0xc8] sm:$0x1] %v1173
      %v1175 = vld [vmem:[#allocation2 + $0xd4] sm:$0x1]
      %v1176 = vsel %vm1123, %v1104, %v1175
      %1177 = vst [vmem:[#allocation2 + $0xd4] sm:$0x1] %v1176
      %v1178 = vld [vmem:[#allocation2] sm:$0xf]
      %v1179 = vld [vmem:[#allocation2 + $0x4] sm:$0xf]
      %v1180 = vld [vmem:[#allocation2 + $0xc] sm:$0xf]
      %v1181 = vld [vmem:[#allocation2 + $0x10] sm:$0xf]
      %v1182 = vld [vmem:[#allocation2 + $0x18] sm:$0xf]
      %v1183 = vld [vmem:[#allocation2 + $0x1c] sm:$0xf]
      %v1184 = vld [vmem:[#allocation2 + $0x24] sm:$0xf]
      %v1185 = vld [vmem:[#allocation2 + $0x28] sm:$0xf]
      %v1186 = vld [vmem:[#allocation2 + $0x30] sm:$0xf]
      %v1187 = vld [vmem:[#allocation2 + $0x34] sm:$0xf]
      %v1188 = vld [vmem:[#allocation2 + $0x3c] sm:$0xf]
      %v1189 = vld [vmem:[#allocation2 + $0x40] sm:$0xf]
      %v1190 = vld [vmem:[#allocation2 + $0x48] sm:$0xf]
      %v1191 = vld [vmem:[#allocation2 + $0x4c] sm:$0xf]
      %v1192 = vld [vmem:[#allocation2 + $0x54] sm:$0xf]
      %v1193 = vld [vmem:[#allocation2 + $0x58] sm:$0xf]
      %v1194 = vld [vmem:[#allocation2 + $0x60] sm:$0xf]
      %v1195 = vld [vmem:[#allocation2 + $0x64] sm:$0xf]
      %v1196 = vld [vmem:[#allocation2 + $0x6c] sm:$0xf]
      %v1197 = vld [vmem:[#allocation2 + $0x70] sm:$0xf]
      %v1198 = vld [vmem:[#allocation2 + $0x78] sm:$0xf]
      %v1199 = vld [vmem:[#allocation2 + $0x7c] sm:$0xf]
      %v1200 = vld [vmem:[#allocation2 + $0x84] sm:$0xf]
      %v1201 = vld [vmem:[#allocation2 + $0x88] sm:$0xf]
      %v1202 = vld [vmem:[#allocation2 + $0x90] sm:$0xf]
      %v1203 = vld [vmem:[#allocation2 + $0x94] sm:$0xf]
      %v1204 = vld [vmem:[#allocation2 + $0x9c] sm:$0xf]
      %v1205 = vld [vmem:[#allocation2 + $0xa0] sm:$0xf]
      %v1206 = vld [vmem:[#allocation2 + $0xa8] sm:$0xf]
      %v1207 = vld [vmem:[#allocation2 + $0xac] sm:$0xf]
      %v1208 = vld [vmem:[#allocation2 + $0xb4] sm:$0xf]
      %v1209 = vld [vmem:[#allocation2 + $0xb8] sm:$0xf]
      %v1210 = vld [vmem:[%s3] sm:$0x3]
      %v1211 = vld [vmem:[#allocation2 + $0x8] sm:$0x1]
      %v1212 = vld [vmem:[#allocation2 + $0x14] sm:$0x1]
      %v1213 = vld [vmem:[#allocation2 + $0x20] sm:$0x1]
      %v1214 = vld [vmem:[#allocation2 + $0x2c] sm:$0x1]
      %v1215 = vld [vmem:[#allocation2 + $0x38] sm:$0x1]
      %v1216 = vld [vmem:[#allocation2 + $0x44] sm:$0x1]
      %v1217 = vld [vmem:[#allocation2 + $0x50] sm:$0x1]
      %v1218 = vld [vmem:[#allocation2 + $0x5c] sm:$0x1]
      %v1219 = vld [vmem:[#allocation2 + $0x68] sm:$0x1]
      %v1220 = vld [vmem:[#allocation2 + $0x74] sm:$0x1]
      %v1221 = vld [vmem:[#allocation2 + $0x80] sm:$0x1]
      %v1222 = vld [vmem:[#allocation2 + $0x8c] sm:$0x1]
      %v1223 = vld [vmem:[#allocation2 + $0x98] sm:$0x1]
      %v1224 = vld [vmem:[#allocation2 + $0xa4] sm:$0x1]
      %v1225 = vld [vmem:[#allocation2 + $0xb0] sm:$0x1]
      %v1226 = vld [vmem:[#allocation2 + $0xbc] sm:$0x1]
      %vm1227 = vsmask.f32 3328
      %vm1228 = vsmask.f32 7440
      %vm1229 = vmor %vm1227, %vm1228
      %v1231 = vshrl.u32 %v1178, 16
      %v1233 = vrot.slane %v1231, 4
      %v1234 = vshll.u32 %v1178, 16
      %v1236 = vrot.slane %v1234, 5
      %v1237 = vor.u32 %v1233, %v1236
      %v1238 = vrot.slane %v1237, 4
      %v1240 = vshll.u32 %v1179, 16
      %v1242 = vrot.slane %v1240, 5
      %v1243 = vsel %vm1229, %v1238, %v1242
      %v1244 = vshrl.u32 %v1179, 16
      %v1246 = vrot.slane %v1244, 4
      %v1247 = vor.u32 %v1246, %v1242
      %v1248 = vrot.slane %v1247, 4
      %v1250 = vshll.u32 %v1211, 16
      %v1252 = vrot.slane %v1250, 5
      %v1253 = vsel %vm1229, %v1248, %v1252
      %v1255 = vshrl.u32 %v1180, 16
      %v1257 = vrot.slane %v1255, 4
      %v1258 = vshll.u32 %v1180, 16
      %v1260 = vrot.slane %v1258, 5
      %v1261 = vor.u32 %v1257, %v1260
      %v1262 = vrot.slane %v1261, 4
      %v1264 = vshll.u32 %v1181, 16
      %v1266 = vrot.slane %v1264, 5
      %v1267 = vsel %vm1229, %v1262, %v1266
      %v1268 = vshrl.u32 %v1181, 16
      %v1270 = vrot.slane %v1268, 4
      %v1271 = vor.u32 %v1270, %v1266
      %v1272 = vrot.slane %v1271, 4
      %v1274 = vshll.u32 %v1212, 16
      %v1276 = vrot.slane %v1274, 5
      %v1277 = vsel %vm1229, %v1272, %v1276
      %v1279 = vshrl.u32 %v1182, 16
      %v1281 = vrot.slane %v1279, 4
      %v1282 = vshll.u32 %v1182, 16
      %v1284 = vrot.slane %v1282, 5
      %v1285 = vor.u32 %v1281, %v1284
      %v1286 = vrot.slane %v1285, 4
      %v1288 = vshll.u32 %v1183, 16
      %v1290 = vrot.slane %v1288, 5
      %v1291 = vsel %vm1229, %v1286, %v1290
      %v1292 = vshrl.u32 %v1183, 16
      %v1294 = vrot.slane %v1292, 4
      %v1295 = vor.u32 %v1294, %v1290
      %v1296 = vrot.slane %v1295, 4
      %v1298 = vshll.u32 %v1213, 16
      %v1300 = vrot.slane %v1298, 5
      %v1301 = vsel %vm1229, %v1296, %v1300
      %v1303 = vshrl.u32 %v1184, 16
      %v1305 = vrot.slane %v1303, 4
      %v1306 = vshll.u32 %v1184, 16
      %v1308 = vrot.slane %v1306, 5
      %v1309 = vor.u32 %v1305, %v1308
      %v1310 = vrot.slane %v1309, 4
      %v1312 = vshll.u32 %v1185, 16
      %v1314 = vrot.slane %v1312, 5
      %v1315 = vsel %vm1229, %v1310, %v1314
      %v1316 = vshrl.u32 %v1185, 16
      %v1318 = vrot.slane %v1316, 4
      %v1319 = vor.u32 %v1318, %v1314
      %v1320 = vrot.slane %v1319, 4
      %v1322 = vshll.u32 %v1214, 16
      %v1324 = vrot.slane %v1322, 5
      %v1325 = vsel %vm1229, %v1320, %v1324
      %v1327 = vshrl.u32 %v1186, 16
      %v1329 = vrot.slane %v1327, 4
      %v1330 = vshll.u32 %v1186, 16
      %v1332 = vrot.slane %v1330, 5
      %v1333 = vor.u32 %v1329, %v1332
      %v1334 = vrot.slane %v1333, 4
      %v1336 = vshll.u32 %v1187, 16
      %v1338 = vrot.slane %v1336, 5
      %v1339 = vsel %vm1229, %v1334, %v1338
      %v1340 = vshrl.u32 %v1187, 16
      %v1342 = vrot.slane %v1340, 4
      %v1343 = vor.u32 %v1342, %v1338
      %v1344 = vrot.slane %v1343, 4
      %v1346 = vshll.u32 %v1215, 16
      %v1348 = vrot.slane %v1346, 5
      %v1349 = vsel %vm1229, %v1344, %v1348
      %v1351 = vshrl.u32 %v1188, 16
      %v1353 = vrot.slane %v1351, 4
      %v1354 = vshll.u32 %v1188, 16
      %v1356 = vrot.slane %v1354, 5
      %v1357 = vor.u32 %v1353, %v1356
      %v1358 = vrot.slane %v1357, 4
      %v1360 = vshll.u32 %v1189, 16
      %v1362 = vrot.slane %v1360, 5
      %v1363 = vsel %vm1229, %v1358, %v1362
      %v1364 = vshrl.u32 %v1189, 16
      %v1366 = vrot.slane %v1364, 4
      %v1367 = vor.u32 %v1366, %v1362
      %v1368 = vrot.slane %v1367, 4
      %v1370 = vshll.u32 %v1216, 16
      %v1372 = vrot.slane %v1370, 5
      %v1373 = vsel %vm1229, %v1368, %v1372
      %v1375 = vshrl.u32 %v1190, 16
      %v1377 = vrot.slane %v1375, 4
      %v1378 = vshll.u32 %v1190, 16
      %v1380 = vrot.slane %v1378, 5
      %v1381 = vor.u32 %v1377, %v1380
      %v1382 = vrot.slane %v1381, 4
      %v1384 = vshll.u32 %v1191, 16
      %v1386 = vrot.slane %v1384, 5
      %v1387 = vsel %vm1229, %v1382, %v1386
      %v1388 = vshrl.u32 %v1191, 16
      %v1390 = vrot.slane %v1388, 4
      %v1391 = vor.u32 %v1390, %v1386
      %v1392 = vrot.slane %v1391, 4
      %v1394 = vshll.u32 %v1217, 16
      %v1396 = vrot.slane %v1394, 5
      %v1397 = vsel %vm1229, %v1392, %v1396
      %v1399 = vshrl.u32 %v1192, 16
      %v1401 = vrot.slane %v1399, 4
      %v1402 = vshll.u32 %v1192, 16
      %v1404 = vrot.slane %v1402, 5
      %v1405 = vor.u32 %v1401, %v1404
      %v1406 = vrot.slane %v1405, 4
      %v1408 = vshll.u32 %v1193, 16
      %v1410 = vrot.slane %v1408, 5
      %v1411 = vsel %vm1229, %v1406, %v1410
      %v1412 = vshrl.u32 %v1193, 16
      %v1414 = vrot.slane %v1412, 4
      %v1415 = vor.u32 %v1414, %v1410
      %v1416 = vrot.slane %v1415, 4
      %v1418 = vshll.u32 %v1218, 16
      %v1420 = vrot.slane %v1418, 5
      %v1421 = vsel %vm1229, %v1416, %v1420
      %v1423 = vshrl.u32 %v1194, 16
      %v1425 = vrot.slane %v1423, 4
      %v1426 = vshll.u32 %v1194, 16
      %v1428 = vrot.slane %v1426, 5
      %v1429 = vor.u32 %v1425, %v1428
      %v1430 = vrot.slane %v1429, 4
      %v1432 = vshll.u32 %v1195, 16
      %v1434 = vrot.slane %v1432, 5
      %v1435 = vsel %vm1229, %v1430, %v1434
      %v1436 = vshrl.u32 %v1195, 16
      %v1438 = vrot.slane %v1436, 4
      %v1439 = vor.u32 %v1438, %v1434
      %v1440 = vrot.slane %v1439, 4
      %v1442 = vshll.u32 %v1219, 16
      %v1444 = vrot.slane %v1442, 5
      %v1445 = vsel %vm1229, %v1440, %v1444
      %v1447 = vshrl.u32 %v1196, 16
      %v1449 = vrot.slane %v1447, 4
      %v1450 = vshll.u32 %v1196, 16
      %v1452 = vrot.slane %v1450, 5
      %v1453 = vor.u32 %v1449, %v1452
      %v1454 = vrot.slane %v1453, 4
      %v1456 = vshll.u32 %v1197, 16
      %v1458 = vrot.slane %v1456, 5
      %v1459 = vsel %vm1229, %v1454, %v1458
      %v1460 = vshrl.u32 %v1197, 16
      %v1462 = vrot.slane %v1460, 4
      %v1463 = vor.u32 %v1462, %v1458
      %v1464 = vrot.slane %v1463, 4
      %v1466 = vshll.u32 %v1220, 16
      %v1468 = vrot.slane %v1466, 5
      %v1469 = vsel %vm1229, %v1464, %v1468
      %v1471 = vshrl.u32 %v1198, 16
      %v1473 = vrot.slane %v1471, 4
      %v1474 = vshll.u32 %v1198, 16
      %v1476 = vrot.slane %v1474, 5
      %v1477 = vor.u32 %v1473, %v1476
      %v1478 = vrot.slane %v1477, 4
      %v1480 = vshll.u32 %v1199, 16
      %v1482 = vrot.slane %v1480, 5
      %v1483 = vsel %vm1229, %v1478, %v1482
      %v1484 = vshrl.u32 %v1199, 16
      %v1486 = vrot.slane %v1484, 4
      %v1487 = vor.u32 %v1486, %v1482
      %v1488 = vrot.slane %v1487, 4
      %v1490 = vshll.u32 %v1221, 16
      %v1492 = vrot.slane %v1490, 5
      %v1493 = vsel %vm1229, %v1488, %v1492
      %v1495 = vshrl.u32 %v1200, 16
      %v1497 = vrot.slane %v1495, 4
      %v1498 = vshll.u32 %v1200, 16
      %v1500 = vrot.slane %v1498, 5
      %v1501 = vor.u32 %v1497, %v1500
      %v1502 = vrot.slane %v1501, 4
      %v1504 = vshll.u32 %v1201, 16
      %v1506 = vrot.slane %v1504, 5
      %v1507 = vsel %vm1229, %v1502, %v1506
      %v1508 = vshrl.u32 %v1201, 16
      %v1510 = vrot.slane %v1508, 4
      %v1511 = vor.u32 %v1510, %v1506
      %v1512 = vrot.slane %v1511, 4
      %v1514 = vshll.u32 %v1222, 16
      %v1516 = vrot.slane %v1514, 5
      %v1517 = vsel %vm1229, %v1512, %v1516
      %v1519 = vshrl.u32 %v1202, 16
      %v1521 = vrot.slane %v1519, 4
      %v1522 = vshll.u32 %v1202, 16
      %v1524 = vrot.slane %v1522, 5
      %v1525 = vor.u32 %v1521, %v1524
      %v1526 = vrot.slane %v1525, 4
      %v1528 = vshll.u32 %v1203, 16
      %v1530 = vrot.slane %v1528, 5
      %v1531 = vsel %vm1229, %v1526, %v1530
      %v1532 = vshrl.u32 %v1203, 16
      %v1534 = vrot.slane %v1532, 4
      %v1535 = vor.u32 %v1534, %v1530
      %v1536 = vrot.slane %v1535, 4
      %v1538 = vshll.u32 %v1223, 16
      %v1540 = vrot.slane %v1538, 5
      %v1541 = vsel %vm1229, %v1536, %v1540
      %v1543 = vshrl.u32 %v1204, 16
      %v1545 = vrot.slane %v1543, 4
      %v1546 = vshll.u32 %v1204, 16
      %v1548 = vrot.slane %v1546, 5
      %v1549 = vor.u32 %v1545, %v1548
      %v1550 = vrot.slane %v1549, 4
      %v1552 = vshll.u32 %v1205, 16
      %v1554 = vrot.slane %v1552, 5
      %v1555 = vsel %vm1229, %v1550, %v1554
      %v1556 = vshrl.u32 %v1205, 16
      %v1558 = vrot.slane %v1556, 4
      %v1559 = vor.u32 %v1558, %v1554
      %v1560 = vrot.slane %v1559, 4
      %v1562 = vshll.u32 %v1224, 16
      %v1564 = vrot.slane %v1562, 5
      %v1565 = vsel %vm1229, %v1560, %v1564
      %v1567 = vshrl.u32 %v1206, 16
      %v1569 = vrot.slane %v1567, 4
      %v1570 = vshll.u32 %v1206, 16
      %v1572 = vrot.slane %v1570, 5
      %v1573 = vor.u32 %v1569, %v1572
      %v1574 = vrot.slane %v1573, 4
      %v1576 = vshll.u32 %v1207, 16
      %v1578 = vrot.slane %v1576, 5
      %v1579 = vsel %vm1229, %v1574, %v1578
      %v1580 = vshrl.u32 %v1207, 16
      %v1582 = vrot.slane %v1580, 4
      %v1583 = vor.u32 %v1582, %v1578
      %v1584 = vrot.slane %v1583, 4
      %v1586 = vshll.u32 %v1225, 16
      %v1588 = vrot.slane %v1586, 5
      %v1589 = vsel %vm1229, %v1584, %v1588
      %v1591 = vshrl.u32 %v1208, 16
      %v1593 = vrot.slane %v1591, 4
      %v1594 = vshll.u32 %v1208, 16
      %v1596 = vrot.slane %v1594, 5
      %v1597 = vor.u32 %v1593, %v1596
      %v1598 = vrot.slane %v1597, 4
      %v1600 = vshll.u32 %v1209, 16
      %v1602 = vrot.slane %v1600, 5
      %v1603 = vsel %vm1229, %v1598, %v1602
      %v1604 = vshrl.u32 %v1209, 16
      %v1606 = vrot.slane %v1604, 4
      %v1607 = vor.u32 %v1606, %v1602
      %v1608 = vrot.slane %v1607, 4
      %v1610 = vshll.u32 %v1226, 16
      %v1612 = vrot.slane %v1610, 5
      %v1613 = vsel %vm1229, %v1608, %v1612
      %s1614 = scalar_lea.vmem %s3, 2
      %v1615 = vld [vmem:[%s1614] sm:$0x3]
      %v1616 = vunpack.c.l.b16 %v1243
      %v1617 = vunpack.c.l.b16 %v1253
      %v1618 = vunpack.c.l.b16 %v1267
      %v1619 = vunpack.c.l.b16 %v1277
      %v1620 = vunpack.c.l.b16 %v1291
      %v1621 = vunpack.c.l.b16 %v1301
      %v1622 = vunpack.c.l.b16 %v1315
      %v1623 = vunpack.c.l.b16 %v1325
      %v1624 = vunpack.c.l.b16 %v1339
      %v1625 = vunpack.c.l.b16 %v1349
      %v1626 = vunpack.c.l.b16 %v1363
      %v1627 = vunpack.c.l.b16 %v1373
      %v1628 = vunpack.c.l.b16 %v1387
      %v1629 = vunpack.c.l.b16 %v1397
      %v1630 = vunpack.c.l.b16 %v1411
      %v1631 = vunpack.c.l.b16 %v1421
      %v1632 = vunpack.c.l.b16 %v1435
      %v1633 = vunpack.c.l.b16 %v1445
      %v1634 = vunpack.c.l.b16 %v1459
      %v1635 = vunpack.c.l.b16 %v1469
      %v1636 = vunpack.c.l.b16 %v1483
      %v1637 = vunpack.c.l.b16 %v1493
      %v1638 = vunpack.c.l.b16 %v1507
      %v1639 = vunpack.c.l.b16 %v1517
      %v1640 = vunpack.c.l.b16 %v1531
      %v1641 = vunpack.c.l.b16 %v1541
      %v1642 = vunpack.c.l.b16 %v1555
      %v1643 = vunpack.c.l.b16 %v1565
      %v1644 = vunpack.c.l.b16 %v1579
      %v1645 = vunpack.c.l.b16 %v1589
      %v1646 = vunpack.c.l.b16 %v1603
      %v1647 = vunpack.c.l.b16 %v1613
      %v1648 = vpack.c.b16 %v1617, %v1616
      %v1649 = vpack.c.b16 %v1619, %v1618
      %v1650 = vpack.c.b16 %v1621, %v1620
      %v1651 = vpack.c.b16 %v1623, %v1622
      %v1652 = vpack.c.b16 %v1625, %v1624
      %v1653 = vpack.c.b16 %v1627, %v1626
      %v1654 = vpack.c.b16 %v1629, %v1628
      %v1655 = vpack.c.b16 %v1631, %v1630
      %v1656 = vpack.c.b16 %v1633, %v1632
      %v1657 = vpack.c.b16 %v1635, %v1634
      %v1658 = vpack.c.b16 %v1637, %v1636
      %v1659 = vpack.c.b16 %v1639, %v1638
      %v1660 = vpack.c.b16 %v1641, %v1640
      %v1661 = vpack.c.b16 %v1643, %v1642
      %v1662 = vpack.c.b16 %v1645, %v1644
      %v1663 = vpack.c.b16 %v1647, %v1646
      %vm1664 = vcmask 31744
      %v1666 = vsel %vm1664, %v1648, 0
      %v1669 = vsel %vm1664, %v1649, 0
      %v1672 = vsel %vm1664, %v1650, 0
      %v1675 = vsel %vm1664, %v1651, 0
      %v1678 = vsel %vm1664, %v1652, 0
      %v1681 = vsel %vm1664, %v1653, 0
      %v1684 = vsel %vm1664, %v1654, 0
      %v1687 = vsel %vm1664, %v1655, 0
      %v1690 = vsel %vm1664, %v1656, 0
      %v1693 = vsel %vm1664, %v1657, 0
      %v1696 = vsel %vm1664, %v1658, 0
      %v1699 = vsel %vm1664, %v1659, 0
      %v1702 = vsel %vm1664, %v1660, 0
      %v1705 = vsel %vm1664, %v1661, 0
      %v1708 = vsel %vm1664, %v1662, 0
      %v1711 = vsel %vm1664, %v1663, 0
      %vm1713 = vcmask 1041408
      %v1715 = vsel %vm1713, %v1615, 0
      %1717 = vmatpush.bf16.msra.mxu0 0
      %1718 = vmatpush.bf16.msra.mxu0 0
      %1719 = vmatpush.bf16.msra.mxu0 0
      %1720 = vmatpush.bf16.msra.mxu0 0
      %1721 = vmatpush.bf16.msra.mxu0 0
      %1722 = vmatpush.bf16.msra.mxu0 0
      %1723 = vmatpush.bf16.msra.mxu0 0
      %1724 = vmatpush.bf16.msra.mxu0 %v1715
      %1725 = vmatmul.bf16.gmra.mxu0 %v1666
      %v1726 = vpop.f32.mrf.mxu0
      %v1727 = vadd.f32 0.0, %v1726
      %v1728 = vpop.f32.mrf.mxu0
      %v1729 = vadd.f32 0.0, %v1728
      %1730 = vmatmul.bf16.gmra.mxu0 %v1669
      %v1731 = vpop.f32.mrf.mxu0
      %v1732 = vadd.f32 0.0, %v1731
      %v1733 = vpop.f32.mrf.mxu0
      %v1734 = vadd.f32 0.0, %v1733
      %1735 = vmatmul.bf16.gmra.mxu0 %v1672
      %v1736 = vpop.f32.mrf.mxu0
      %v1737 = vadd.f32 0.0, %v1736
      %v1738 = vpop.f32.mrf.mxu0
      %v1739 = vadd.f32 0.0, %v1738
      %1740 = vmatmul.bf16.gmra.mxu0 %v1675
      %v1741 = vpop.f32.mrf.mxu0
      %v1742 = vadd.f32 0.0, %v1741
      %v1743 = vpop.f32.mrf.mxu0
      %v1744 = vadd.f32 0.0, %v1743
      %1745 = vmatmul.bf16.gmra.mxu0 %v1678
      %v1746 = vpop.f32.mrf.mxu0
      %v1747 = vadd.f32 0.0, %v1746
      %v1748 = vpop.f32.mrf.mxu0
      %v1749 = vadd.f32 0.0, %v1748
      %1750 = vmatmul.bf16.gmra.mxu0 %v1681
      %v1751 = vpop.f32.mrf.mxu0
      %v1752 = vadd.f32 0.0, %v1751
      %v1753 = vpop.f32.mrf.mxu0
      %v1754 = vadd.f32 0.0, %v1753
      %1755 = vmatmul.bf16.gmra.mxu0 %v1684
      %v1756 = vpop.f32.mrf.mxu0
      %v1757 = vadd.f32 0.0, %v1756
      %v1758 = vpop.f32.mrf.mxu0
      %v1759 = vadd.f32 0.0, %v1758
      %1760 = vmatmul.bf16.gmra.mxu0 %v1687
      %v1761 = vpop.f32.mrf.mxu0
      %v1762 = vadd.f32 0.0, %v1761
      %v1763 = vpop.f32.mrf.mxu0
      %v1764 = vadd.f32 0.0, %v1763
      %1765 = vmatmul.bf16.gmra.mxu0 %v1690
      %v1766 = vpop.f32.mrf.mxu0
      %v1767 = vadd.f32 0.0, %v1766
      %v1768 = vpop.f32.mrf.mxu0
      %v1769 = vadd.f32 0.0, %v1768
      %1770 = vmatmul.bf16.gmra.mxu0 %v1693
      %v1771 = vpop.f32.mrf.mxu0
      %v1772 = vadd.f32 0.0, %v1771
      %v1773 = vpop.f32.mrf.mxu0
      %v1774 = vadd.f32 0.0, %v1773
      %1775 = vmatmul.bf16.gmra.mxu0 %v1696
      %v1776 = vpop.f32.mrf.mxu0
      %v1777 = vadd.f32 0.0, %v1776
      %v1778 = vpop.f32.mrf.mxu0
      %v1779 = vadd.f32 0.0, %v1778
      %1780 = vmatmul.bf16.gmra.mxu0 %v1699
      %v1781 = vpop.f32.mrf.mxu0
      %v1782 = vadd.f32 0.0, %v1781
      %v1783 = vpop.f32.mrf.mxu0
      %v1784 = vadd.f32 0.0, %v1783
      %1785 = vmatmul.bf16.gmra.mxu0 %v1702
      %v1786 = vpop.f32.mrf.mxu0
      %v1787 = vadd.f32 0.0, %v1786
      %v1788 = vpop.f32.mrf.mxu0
      %v1789 = vadd.f32 0.0, %v1788
      %1790 = vmatmul.bf16.gmra.mxu0 %v1705
      %v1791 = vpop.f32.mrf.mxu0
      %v1792 = vadd.f32 0.0, %v1791
      %v1793 = vpop.f32.mrf.mxu0
      %v1794 = vadd.f32 0.0, %v1793
      %1795 = vmatmul.bf16.gmra.mxu0 %v1708
      %v1796 = vpop.f32.mrf.mxu0
      %v1797 = vadd.f32 0.0, %v1796
      %v1798 = vpop.f32.mrf.mxu0
      %v1799 = vadd.f32 0.0, %v1798
      %1800 = vmatmul.bf16.gmra.mxu0 %v1711
      %v1801 = vpop.f32.mrf.mxu0
      %v1802 = vadd.f32 0.0, %v1801
      %v1803 = vpop.f32.mrf.mxu0
      %v1804 = vadd.f32 0.0, %v1803
      %1805 = vdwg.mxu0
      %v1838 = vunpack.c.l.b16 %v1178
      %v1839 = vunpack.c.l.b16 %v1179
      %v1840 = vunpack.c.l.b16 %v1180
      %v1841 = vunpack.c.l.b16 %v1181
      %v1842 = vunpack.c.l.b16 %v1182
      %v1843 = vunpack.c.l.b16 %v1183
      %v1844 = vunpack.c.l.b16 %v1184
      %v1845 = vunpack.c.l.b16 %v1185
      %v1846 = vunpack.c.l.b16 %v1186
      %v1847 = vunpack.c.l.b16 %v1187
      %v1848 = vunpack.c.l.b16 %v1188
      %v1849 = vunpack.c.l.b16 %v1189
      %v1850 = vunpack.c.l.b16 %v1190
      %v1851 = vunpack.c.l.b16 %v1191
      %v1852 = vunpack.c.l.b16 %v1192
      %v1853 = vunpack.c.l.b16 %v1193
      %v1854 = vunpack.c.l.b16 %v1194
      %v1855 = vunpack.c.l.b16 %v1195
      %v1856 = vunpack.c.l.b16 %v1196
      %v1857 = vunpack.c.l.b16 %v1197
      %v1858 = vunpack.c.l.b16 %v1198
      %v1859 = vunpack.c.l.b16 %v1199
      %v1860 = vunpack.c.l.b16 %v1200
      %v1861 = vunpack.c.l.b16 %v1201
      %v1862 = vunpack.c.l.b16 %v1202
      %v1863 = vunpack.c.l.b16 %v1203
      %v1864 = vunpack.c.l.b16 %v1204
      %v1865 = vunpack.c.l.b16 %v1205
      %v1866 = vunpack.c.l.b16 %v1206
      %v1867 = vunpack.c.l.b16 %v1207
      %v1868 = vunpack.c.l.b16 %v1208
      %v1869 = vunpack.c.l.b16 %v1209
      %v1870 = vpack.c.b16 %v1839, %v1838
      %v1871 = vpack.c.b16 %v1841, %v1840
      %v1872 = vpack.c.b16 %v1843, %v1842
      %v1873 = vpack.c.b16 %v1845, %v1844
      %v1874 = vpack.c.b16 %v1847, %v1846
      %v1875 = vpack.c.b16 %v1849, %v1848
      %v1876 = vpack.c.b16 %v1851, %v1850
      %v1877 = vpack.c.b16 %v1853, %v1852
      %v1878 = vpack.c.b16 %v1855, %v1854
      %v1879 = vpack.c.b16 %v1857, %v1856
      %v1880 = vpack.c.b16 %v1859, %v1858
      %v1881 = vpack.c.b16 %v1861, %v1860
      %v1882 = vpack.c.b16 %v1863, %v1862
      %v1883 = vpack.c.b16 %v1865, %v1864
      %v1884 = vpack.c.b16 %v1867, %v1866
      %v1885 = vpack.c.b16 %v1869, %v1868
      %v1887 = vsel %vm1664, %v1870, 0
      %v1890 = vsel %vm1664, %v1871, 0
      %v1893 = vsel %vm1664, %v1872, 0
      %v1896 = vsel %vm1664, %v1873, 0
      %v1899 = vsel %vm1664, %v1874, 0
      %v1902 = vsel %vm1664, %v1875, 0
      %v1905 = vsel %vm1664, %v1876, 0
      %v1908 = vsel %vm1664, %v1877, 0
      %v1911 = vsel %vm1664, %v1878, 0
      %v1914 = vsel %vm1664, %v1879, 0
      %v1917 = vsel %vm1664, %v1880, 0
      %v1920 = vsel %vm1664, %v1881, 0
      %v1923 = vsel %vm1664, %v1882, 0
      %v1926 = vsel %vm1664, %v1883, 0
      %v1929 = vsel %vm1664, %v1884, 0
      %v1932 = vsel %vm1664, %v1885, 0
      %v1935 = vsel %vm1713, %v1210, 0
      %1937 = vmatpush.bf16.msra.mxu0 0
      %1938 = vmatpush.bf16.msra.mxu0 0
      %1939 = vmatpush.bf16.msra.mxu0 0
      %1940 = vmatpush.bf16.msra.mxu0 0
      %1941 = vmatpush.bf16.msra.mxu0 0
      %1942 = vmatpush.bf16.msra.mxu0 0
      %1943 = vmatpush.bf16.msra.mxu0 0
      %1944 = vmatpush.bf16.msra.mxu0 %v1935
      %1945 = vmatmul.bf16.gmra.mxu0 %v1887
      %v1946 = vpop.f32.mrf.mxu0
      %v1947 = vadd.f32 %v1727, %v1946
      %v1948 = vpop.f32.mrf.mxu0
      %v1949 = vadd.f32 %v1729, %v1948
      %1950 = vmatmul.bf16.gmra.mxu0 %v1890
      %v1951 = vpop.f32.mrf.mxu0
      %v1952 = vadd.f32 %v1732, %v1951
      %v1953 = vpop.f32.mrf.mxu0
      %v1954 = vadd.f32 %v1734, %v1953
      %1955 = vmatmul.bf16.gmra.mxu0 %v1893
      %v1956 = vpop.f32.mrf.mxu0
      %v1957 = vadd.f32 %v1737, %v1956
      %v1958 = vpop.f32.mrf.mxu0
      %v1959 = vadd.f32 %v1739, %v1958
      %1960 = vmatmul.bf16.gmra.mxu0 %v1896
      %v1961 = vpop.f32.mrf.mxu0
      %v1962 = vadd.f32 %v1742, %v1961
      %v1963 = vpop.f32.mrf.mxu0
      %v1964 = vadd.f32 %v1744, %v1963
      %1965 = vmatmul.bf16.gmra.mxu0 %v1899
      %v1966 = vpop.f32.mrf.mxu0
      %v1967 = vadd.f32 %v1747, %v1966
      %v1968 = vpop.f32.mrf.mxu0
      %v1969 = vadd.f32 %v1749, %v1968
      %1970 = vmatmul.bf16.gmra.mxu0 %v1902
      %v1971 = vpop.f32.mrf.mxu0
      %v1972 = vadd.f32 %v1752, %v1971
      %v1973 = vpop.f32.mrf.mxu0
      %v1974 = vadd.f32 %v1754, %v1973
      %1975 = vmatmul.bf16.gmra.mxu0 %v1905
      %v1976 = vpop.f32.mrf.mxu0
      %v1977 = vadd.f32 %v1757, %v1976
      %v1978 = vpop.f32.mrf.mxu0
      %v1979 = vadd.f32 %v1759, %v1978
      %1980 = vmatmul.bf16.gmra.mxu0 %v1908
      %v1981 = vpop.f32.mrf.mxu0
      %v1982 = vadd.f32 %v1762, %v1981
      %v1983 = vpop.f32.mrf.mxu0
      %v1984 = vadd.f32 %v1764, %v1983
      %1985 = vmatmul.bf16.gmra.mxu0 %v1911
      %v1986 = vpop.f32.mrf.mxu0
      %v1987 = vadd.f32 %v1767, %v1986
      %v1988 = vpop.f32.mrf.mxu0
      %v1989 = vadd.f32 %v1769, %v1988
      %1990 = vmatmul.bf16.gmra.mxu0 %v1914
      %v1991 = vpop.f32.mrf.mxu0
      %v1992 = vadd.f32 %v1772, %v1991
      %v1993 = vpop.f32.mrf.mxu0
      %v1994 = vadd.f32 %v1774, %v1993
      %1995 = vmatmul.bf16.gmra.mxu0 %v1917
      %v1996 = vpop.f32.mrf.mxu0
      %v1997 = vadd.f32 %v1777, %v1996
      %v1998 = vpop.f32.mrf.mxu0
      %v1999 = vadd.f32 %v1779, %v1998
      %2000 = vmatmul.bf16.gmra.mxu0 %v1920
      %v2001 = vpop.f32.mrf.mxu0
      %v2002 = vadd.f32 %v1782, %v2001
      %v2003 = vpop.f32.mrf.mxu0
      %v2004 = vadd.f32 %v1784, %v2003
      %2005 = vmatmul.bf16.gmra.mxu0 %v1923
      %v2006 = vpop.f32.mrf.mxu0
      %v2007 = vadd.f32 %v1787, %v2006
      %v2008 = vpop.f32.mrf.mxu0
      %v2009 = vadd.f32 %v1789, %v2008
      %2010 = vmatmul.bf16.gmra.mxu0 %v1926
      %v2011 = vpop.f32.mrf.mxu0
      %v2012 = vadd.f32 %v1792, %v2011
      %v2013 = vpop.f32.mrf.mxu0
      %v2014 = vadd.f32 %v1794, %v2013
      %2015 = vmatmul.bf16.gmra.mxu0 %v1929
      %v2016 = vpop.f32.mrf.mxu0
      %v2017 = vadd.f32 %v1797, %v2016
      %v2018 = vpop.f32.mrf.mxu0
      %v2019 = vadd.f32 %v1799, %v2018
      %2020 = vmatmul.bf16.gmra.mxu0 %v1932
      %v2021 = vpop.f32.mrf.mxu0
      %v2022 = vadd.f32 %v1802, %v2021
      %v2023 = vpop.f32.mrf.mxu0
      %v2024 = vadd.f32 %v1804, %v2023
      %2025 = vdwg.mxu0
      %v2026 = vld [vmem:[#allocation2] sm:$0xe]
      %v2027 = vld [vmem:[#allocation2 + $0xc] sm:$0xe]
      %v2028 = vld [vmem:[#allocation2 + $0x18] sm:$0xe]
      %v2029 = vld [vmem:[#allocation2 + $0x24] sm:$0xe]
      %v2030 = vld [vmem:[#allocation2 + $0x30] sm:$0xe]
      %v2031 = vld [vmem:[#allocation2 + $0x3c] sm:$0xe]
      %v2032 = vld [vmem:[#allocation2 + $0x48] sm:$0xe]
      %v2033 = vld [vmem:[#allocation2 + $0x54] sm:$0xe]
      %v2034 = vld [vmem:[#allocation2 + $0x60] sm:$0xe]
      %v2035 = vld [vmem:[#allocation2 + $0x6c] sm:$0xe]
      %v2036 = vld [vmem:[#allocation2 + $0x78] sm:$0xe]
      %v2037 = vld [vmem:[#allocation2 + $0x84] sm:$0xe]
      %v2038 = vld [vmem:[#allocation2 + $0x90] sm:$0xe]
      %v2039 = vld [vmem:[#allocation2 + $0x9c] sm:$0xe]
      %v2040 = vld [vmem:[#allocation2 + $0xa8] sm:$0xe]
      %v2041 = vld [vmem:[#allocation2 + $0xb4] sm:$0xe]
      %vm2074 = vcmask 1042432
      %vm2075 = vcmask 1046532
      %vm2076 = vmor %vm2074, %vm2075
      %v2077 = vrot.slane %v2026, 5
      %v2078 = vrot.slane %v2077, 4
      %v2079 = vrot.slane %v1179, 5
      %v2080 = vsel %vm2076, %v2078, %v2079
      %v2081 = vrot.slane %v2079, 4
      %v2082 = vrot.slane %v1211, 5
      %v2083 = vsel %vm2076, %v2081, %v2082
      %v2084 = vrot.slane %v2027, 5
      %v2085 = vrot.slane %v2084, 4
      %v2086 = vrot.slane %v1181, 5
      %v2087 = vsel %vm2076, %v2085, %v2086
      %v2088 = vrot.slane %v2086, 4
      %v2089 = vrot.slane %v1212, 5
      %v2090 = vsel %vm2076, %v2088, %v2089
      %v2091 = vrot.slane %v2028, 5
      %v2092 = vrot.slane %v2091, 4
      %v2093 = vrot.slane %v1183, 5
      %v2094 = vsel %vm2076, %v2092, %v2093
      %v2095 = vrot.slane %v2093, 4
      %v2096 = vrot.slane %v1213, 5
      %v2097 = vsel %vm2076, %v2095, %v2096
      %v2098 = vrot.slane %v2029, 5
      %v2099 = vrot.slane %v2098, 4
      %v2100 = vrot.slane %v1185, 5
      %v2101 = vsel %vm2076, %v2099, %v2100
      %v2102 = vrot.slane %v2100, 4
      %v2103 = vrot.slane %v1214, 5
      %v2104 = vsel %vm2076, %v2102, %v2103
      %v2105 = vrot.slane %v2030, 5
      %v2106 = vrot.slane %v2105, 4
      %v2107 = vrot.slane %v1187, 5
      %v2108 = vsel %vm2076, %v2106, %v2107
      %v2109 = vrot.slane %v2107, 4
      %v2110 = vrot.slane %v1215, 5
      %v2111 = vsel %vm2076, %v2109, %v2110
      %v2112 = vrot.slane %v2031, 5
      %v2113 = vrot.slane %v2112, 4
      %v2114 = vrot.slane %v1189, 5
      %v2115 = vsel %vm2076, %v2113, %v2114
      %v2116 = vrot.slane %v2114, 4
      %v2117 = vrot.slane %v1216, 5
      %v2118 = vsel %vm2076, %v2116, %v2117
      %v2119 = vrot.slane %v2032, 5
      %v2120 = vrot.slane %v2119, 4
      %v2121 = vrot.slane %v1191, 5
      %v2122 = vsel %vm2076, %v2120, %v2121
      %v2123 = vrot.slane %v2121, 4
      %v2124 = vrot.slane %v1217, 5
      %v2125 = vsel %vm2076, %v2123, %v2124
      %v2126 = vrot.slane %v2033, 5
      %v2127 = vrot.slane %v2126, 4
      %v2128 = vrot.slane %v1193, 5
      %v2129 = vsel %vm2076, %v2127, %v2128
      %v2130 = vrot.slane %v2128, 4
      %v2131 = vrot.slane %v1218, 5
      %v2132 = vsel %vm2076, %v2130, %v2131
      %v2133 = vrot.slane %v2034, 5
      %v2134 = vrot.slane %v2133, 4
      %v2135 = vrot.slane %v1195, 5
      %v2136 = vsel %vm2076, %v2134, %v2135
      %v2137 = vrot.slane %v2135, 4
      %v2138 = vrot.slane %v1219, 5
      %v2139 = vsel %vm2076, %v2137, %v2138
      %v2140 = vrot.slane %v2035, 5
      %v2141 = vrot.slane %v2140, 4
      %v2142 = vrot.slane %v1197, 5
      %v2143 = vsel %vm2076, %v2141, %v2142
      %v2144 = vrot.slane %v2142, 4
      %v2145 = vrot.slane %v1220, 5
      %v2146 = vsel %vm2076, %v2144, %v2145
      %v2147 = vrot.slane %v2036, 5
      %v2148 = vrot.slane %v2147, 4
      %v2149 = vrot.slane %v1199, 5
      %v2150 = vsel %vm2076, %v2148, %v2149
      %v2151 = vrot.slane %v2149, 4
      %v2152 = vrot.slane %v1221, 5
      %v2153 = vsel %vm2076, %v2151, %v2152
      %v2154 = vrot.slane %v2037, 5
      %v2155 = vrot.slane %v2154, 4
      %v2156 = vrot.slane %v1201, 5
      %v2157 = vsel %vm2076, %v2155, %v2156
      %v2158 = vrot.slane %v2156, 4
      %v2159 = vrot.slane %v1222, 5
      %v2160 = vsel %vm2076, %v2158, %v2159
      %v2161 = vrot.slane %v2038, 5
      %v2162 = vrot.slane %v2161, 4
      %v2163 = vrot.slane %v1203, 5
      %v2164 = vsel %vm2076, %v2162, %v2163
      %v2165 = vrot.slane %v2163, 4
      %v2166 = vrot.slane %v1223, 5
      %v2167 = vsel %vm2076, %v2165, %v2166
      %v2168 = vrot.slane %v2039, 5
      %v2169 = vrot.slane %v2168, 4
      %v2170 = vrot.slane %v1205, 5
      %v2171 = vsel %vm2076, %v2169, %v2170
      %v2172 = vrot.slane %v2170, 4
      %v2173 = vrot.slane %v1224, 5
      %v2174 = vsel %vm2076, %v2172, %v2173
      %v2175 = vrot.slane %v2040, 5
      %v2176 = vrot.slane %v2175, 4
      %v2177 = vrot.slane %v1207, 5
      %v2178 = vsel %vm2076, %v2176, %v2177
      %v2179 = vrot.slane %v2177, 4
      %v2180 = vrot.slane %v1225, 5
      %v2181 = vsel %vm2076, %v2179, %v2180
      %v2182 = vrot.slane %v2041, 5
      %v2183 = vrot.slane %v2182, 4
      %v2184 = vrot.slane %v1209, 5
      %v2185 = vsel %vm2076, %v2183, %v2184
      %v2186 = vrot.slane %v2184, 4
      %v2187 = vrot.slane %v1226, 5
      %v2188 = vsel %vm2076, %v2186, %v2187
      %s2189 = scalar_lea.vmem %s3, 4
      %v2190 = vld [vmem:[%s2189] sm:$0x3]
      %v2191 = vunpack.c.l.b16 %v2080
      %v2192 = vunpack.c.l.b16 %v2083
      %v2193 = vunpack.c.l.b16 %v2087
      %v2194 = vunpack.c.l.b16 %v2090
      %v2195 = vunpack.c.l.b16 %v2094
      %v2196 = vunpack.c.l.b16 %v2097
      %v2197 = vunpack.c.l.b16 %v2101
      %v2198 = vunpack.c.l.b16 %v2104
      %v2199 = vunpack.c.l.b16 %v2108
      %v2200 = vunpack.c.l.b16 %v2111
      %v2201 = vunpack.c.l.b16 %v2115
      %v2202 = vunpack.c.l.b16 %v2118
      %v2203 = vunpack.c.l.b16 %v2122
      %v2204 = vunpack.c.l.b16 %v2125
      %v2205 = vunpack.c.l.b16 %v2129
      %v2206 = vunpack.c.l.b16 %v2132
      %v2207 = vunpack.c.l.b16 %v2136
      %v2208 = vunpack.c.l.b16 %v2139
      %v2209 = vunpack.c.l.b16 %v2143
      %v2210 = vunpack.c.l.b16 %v2146
      %v2211 = vunpack.c.l.b16 %v2150
      %v2212 = vunpack.c.l.b16 %v2153
      %v2213 = vunpack.c.l.b16 %v2157
      %v2214 = vunpack.c.l.b16 %v2160
      %v2215 = vunpack.c.l.b16 %v2164
      %v2216 = vunpack.c.l.b16 %v2167
      %v2217 = vunpack.c.l.b16 %v2171
      %v2218 = vunpack.c.l.b16 %v2174
      %v2219 = vunpack.c.l.b16 %v2178
      %v2220 = vunpack.c.l.b16 %v2181
      %v2221 = vunpack.c.l.b16 %v2185
      %v2222 = vunpack.c.l.b16 %v2188
      %v2223 = vpack.c.b16 %v2192, %v2191
      %v2224 = vpack.c.b16 %v2194, %v2193
      %v2225 = vpack.c.b16 %v2196, %v2195
      %v2226 = vpack.c.b16 %v2198, %v2197
      %v2227 = vpack.c.b16 %v2200, %v2199
      %v2228 = vpack.c.b16 %v2202, %v2201
      %v2229 = vpack.c.b16 %v2204, %v2203
      %v2230 = vpack.c.b16 %v2206, %v2205
      %v2231 = vpack.c.b16 %v2208, %v2207
      %v2232 = vpack.c.b16 %v2210, %v2209
      %v2233 = vpack.c.b16 %v2212, %v2211
      %v2234 = vpack.c.b16 %v2214, %v2213
      %v2235 = vpack.c.b16 %v2216, %v2215
      %v2236 = vpack.c.b16 %v2218, %v2217
      %v2237 = vpack.c.b16 %v2220, %v2219
      %v2238 = vpack.c.b16 %v2222, %v2221
      %v2240 = vsel %vm1664, %v2223, 0
      %v2243 = vsel %vm1664, %v2224, 0
      %v2246 = vsel %vm1664, %v2225, 0
      %v2249 = vsel %vm1664, %v2226, 0
      %v2252 = vsel %vm1664, %v2227, 0
      %v2255 = vsel %vm1664, %v2228, 0
      %v2258 = vsel %vm1664, %v2229, 0
      %v2261 = vsel %vm1664, %v2230, 0
      %v2264 = vsel %vm1664, %v2231, 0
      %v2267 = vsel %vm1664, %v2232, 0
      %v2270 = vsel %vm1664, %v2233, 0
      %v2273 = vsel %vm1664, %v2234, 0
      %v2276 = vsel %vm1664, %v2235, 0
      %v2279 = vsel %vm1664, %v2236, 0
      %v2282 = vsel %vm1664, %v2237, 0
      %v2285 = vsel %vm1664, %v2238, 0
      %v2288 = vsel %vm1713, %v2190, 0
      %2290 = vmatpush.bf16.msra.mxu0 0
      %2291 = vmatpush.bf16.msra.mxu0 0
      %2292 = vmatpush.bf16.msra.mxu0 0
      %2293 = vmatpush.bf16.msra.mxu0 0
      %2294 = vmatpush.bf16.msra.mxu0 0
      %2295 = vmatpush.bf16.msra.mxu0 0
      %2296 = vmatpush.bf16.msra.mxu0 0
      %2297 = vmatpush.bf16.msra.mxu0 %v2288
      %2298 = vmatmul.bf16.gmra.mxu0 %v2240
      %v2299 = vpop.f32.mrf.mxu0
      %v2300 = vadd.f32 0.0, %v2299
      %v2301 = vpop.f32.mrf.mxu0
      %v2302 = vadd.f32 0.0, %v2301
      %2303 = vmatmul.bf16.gmra.mxu0 %v2243
      %v2304 = vpop.f32.mrf.mxu0
      %v2305 = vadd.f32 0.0, %v2304
      %v2306 = vpop.f32.mrf.mxu0
      %v2307 = vadd.f32 0.0, %v2306
      %2308 = vmatmul.bf16.gmra.mxu0 %v2246
      %v2309 = vpop.f32.mrf.mxu0
      %v2310 = vadd.f32 0.0, %v2309
      %v2311 = vpop.f32.mrf.mxu0
      %v2312 = vadd.f32 0.0, %v2311
      %2313 = vmatmul.bf16.gmra.mxu0 %v2249
      %v2314 = vpop.f32.mrf.mxu0
      %v2315 = vadd.f32 0.0, %v2314
      %v2316 = vpop.f32.mrf.mxu0
      %v2317 = vadd.f32 0.0, %v2316
      %2318 = vmatmul.bf16.gmra.mxu0 %v2252
      %v2319 = vpop.f32.mrf.mxu0
      %v2320 = vadd.f32 0.0, %v2319
      %v2321 = vpop.f32.mrf.mxu0
      %v2322 = vadd.f32 0.0, %v2321
      %2323 = vmatmul.bf16.gmra.mxu0 %v2255
      %v2324 = vpop.f32.mrf.mxu0
      %v2325 = vadd.f32 0.0, %v2324
      %v2326 = vpop.f32.mrf.mxu0
      %v2327 = vadd.f32 0.0, %v2326
      %2328 = vmatmul.bf16.gmra.mxu0 %v2258
      %v2329 = vpop.f32.mrf.mxu0
      %v2330 = vadd.f32 0.0, %v2329
      %v2331 = vpop.f32.mrf.mxu0
      %v2332 = vadd.f32 0.0, %v2331
      %2333 = vmatmul.bf16.gmra.mxu0 %v2261
      %v2334 = vpop.f32.mrf.mxu0
      %v2335 = vadd.f32 0.0, %v2334
      %v2336 = vpop.f32.mrf.mxu0
      %v2337 = vadd.f32 0.0, %v2336
      %2338 = vmatmul.bf16.gmra.mxu0 %v2264
      %v2339 = vpop.f32.mrf.mxu0
      %v2340 = vadd.f32 0.0, %v2339
      %v2341 = vpop.f32.mrf.mxu0
      %v2342 = vadd.f32 0.0, %v2341
      %2343 = vmatmul.bf16.gmra.mxu0 %v2267
      %v2344 = vpop.f32.mrf.mxu0
      %v2345 = vadd.f32 0.0, %v2344
      %v2346 = vpop.f32.mrf.mxu0
      %v2347 = vadd.f32 0.0, %v2346
      %2348 = vmatmul.bf16.gmra.mxu0 %v2270
      %v2349 = vpop.f32.mrf.mxu0
      %v2350 = vadd.f32 0.0, %v2349
      %v2351 = vpop.f32.mrf.mxu0
      %v2352 = vadd.f32 0.0, %v2351
      %2353 = vmatmul.bf16.gmra.mxu0 %v2273
      %v2354 = vpop.f32.mrf.mxu0
      %v2355 = vadd.f32 0.0, %v2354
      %v2356 = vpop.f32.mrf.mxu0
      %v2357 = vadd.f32 0.0, %v2356
      %2358 = vmatmul.bf16.gmra.mxu0 %v2276
      %v2359 = vpop.f32.mrf.mxu0
      %v2360 = vadd.f32 0.0, %v2359
      %v2361 = vpop.f32.mrf.mxu0
      %v2362 = vadd.f32 0.0, %v2361
      %2363 = vmatmul.bf16.gmra.mxu0 %v2279
      %v2364 = vpop.f32.mrf.mxu0
      %v2365 = vadd.f32 0.0, %v2364
      %v2366 = vpop.f32.mrf.mxu0
      %v2367 = vadd.f32 0.0, %v2366
      %2368 = vmatmul.bf16.gmra.mxu0 %v2282
      %v2369 = vpop.f32.mrf.mxu0
      %v2370 = vadd.f32 0.0, %v2369
      %v2371 = vpop.f32.mrf.mxu0
      %v2372 = vadd.f32 0.0, %v2371
      %2373 = vmatmul.bf16.gmra.mxu0 %v2285
      %v2374 = vpop.f32.mrf.mxu0
      %v2375 = vadd.f32 0.0, %v2374
      %v2376 = vpop.f32.mrf.mxu0
      %v2377 = vadd.f32 0.0, %v2376
      %2378 = vdwg.mxu0
      %v2379 = vadd.f32 %v1947, %v2300
      %v2380 = vadd.f32 %v1949, %v2302
      %v2381 = vadd.f32 %v1952, %v2305
      %v2382 = vadd.f32 %v1954, %v2307
      %v2383 = vadd.f32 %v1957, %v2310
      %v2384 = vadd.f32 %v1959, %v2312
      %v2385 = vadd.f32 %v1962, %v2315
      %v2386 = vadd.f32 %v1964, %v2317
      %v2387 = vadd.f32 %v1967, %v2320
      %v2388 = vadd.f32 %v1969, %v2322
      %v2389 = vadd.f32 %v1972, %v2325
      %v2390 = vadd.f32 %v1974, %v2327
      %v2391 = vadd.f32 %v1977, %v2330
      %v2392 = vadd.f32 %v1979, %v2332
      %v2393 = vadd.f32 %v1982, %v2335
      %v2394 = vadd.f32 %v1984, %v2337
      %v2395 = vadd.f32 %v1987, %v2340
      %v2396 = vadd.f32 %v1989, %v2342
      %v2397 = vadd.f32 %v1992, %v2345
      %v2398 = vadd.f32 %v1994, %v2347
      %v2399 = vadd.f32 %v1997, %v2350
      %v2400 = vadd.f32 %v1999, %v2352
      %v2401 = vadd.f32 %v2002, %v2355
      %v2402 = vadd.f32 %v2004, %v2357
      %v2403 = vadd.f32 %v2007, %v2360
      %v2404 = vadd.f32 %v2009, %v2362
      %v2405 = vadd.f32 %v2012, %v2365
      %v2406 = vadd.f32 %v2014, %v2367
      %v2407 = vadd.f32 %v2017, %v2370
      %v2408 = vadd.f32 %v2019, %v2372
      %v2409 = vadd.f32 %v2022, %v2375
      %v2410 = vadd.f32 %v2024, %v2377
      %v2411 = vld [vmem:[%s755] sm:$0xf]
      %v2412 = vld [vmem:[%s755 + $0x4] sm:$0xf]
      %v2413 = vld [vmem:[%s755 + $0xc] sm:$0xf]
      %v2414 = vld [vmem:[%s755 + $0x10] sm:$0xf]
      %v2415 = vld [vmem:[%s755 + $0x18] sm:$0xf]
      %v2416 = vld [vmem:[%s755 + $0x1c] sm:$0xf]
      %v2417 = vld [vmem:[%s755 + $0x24] sm:$0xf]
      %v2418 = vld [vmem:[%s755 + $0x28] sm:$0xf]
      %v2419 = vld [vmem:[%s755 + $0x30] sm:$0xf]
      %v2420 = vld [vmem:[%s755 + $0x34] sm:$0xf]
      %v2421 = vld [vmem:[%s755 + $0x3c] sm:$0xf]
      %v2422 = vld [vmem:[%s755 + $0x40] sm:$0xf]
      %v2423 = vld [vmem:[%s755 + $0x48] sm:$0xf]
      %v2424 = vld [vmem:[%s755 + $0x4c] sm:$0xf]
      %v2425 = vld [vmem:[%s755 + $0x54] sm:$0xf]
      %v2426 = vld [vmem:[%s755 + $0x58] sm:$0xf]
      %v2427 = vld [vmem:[%s755 + $0x60] sm:$0xf]
      %v2428 = vld [vmem:[%s755 + $0x64] sm:$0xf]
      %v2429 = vld [vmem:[%s755 + $0x6c] sm:$0xf]
      %v2430 = vld [vmem:[%s755 + $0x70] sm:$0xf]
      %v2431 = vld [vmem:[%s755 + $0x78] sm:$0xf]
      %v2432 = vld [vmem:[%s755 + $0x7c] sm:$0xf]
      %v2433 = vld [vmem:[%s755 + $0x84] sm:$0xf]
      %v2434 = vld [vmem:[%s755 + $0x88] sm:$0xf]
      %v2435 = vld [vmem:[%s755 + $0x90] sm:$0xf]
      %v2436 = vld [vmem:[%s755 + $0x94] sm:$0xf]
      %v2437 = vld [vmem:[%s755 + $0x9c] sm:$0xf]
      %v2438 = vld [vmem:[%s755 + $0xa0] sm:$0xf]
      %v2439 = vld [vmem:[%s755 + $0xa8] sm:$0xf]
      %v2440 = vld [vmem:[%s755 + $0xac] sm:$0xf]
      %v2441 = vld [vmem:[%s755 + $0xb4] sm:$0xf]
      %v2442 = vld [vmem:[%s755 + $0xb8] sm:$0xf]
      %s2443 = scalar_lea.vmem %s3, 6
      %v2444 = vld [vmem:[%s2443] sm:$0x3]
      %v2477 = vunpack.c.l.b16 %v2411
      %v2478 = vunpack.c.l.b16 %v2412
      %v2479 = vunpack.c.l.b16 %v2413
      %v2480 = vunpack.c.l.b16 %v2414
      %v2481 = vunpack.c.l.b16 %v2415
      %v2482 = vunpack.c.l.b16 %v2416
      %v2483 = vunpack.c.l.b16 %v2417
      %v2484 = vunpack.c.l.b16 %v2418
      %v2485 = vunpack.c.l.b16 %v2419
      %v2486 = vunpack.c.l.b16 %v2420
      %v2487 = vunpack.c.l.b16 %v2421
      %v2488 = vunpack.c.l.b16 %v2422
      %v2489 = vunpack.c.l.b16 %v2423
      %v2490 = vunpack.c.l.b16 %v2424
      %v2491 = vunpack.c.l.b16 %v2425
      %v2492 = vunpack.c.l.b16 %v2426
      %v2493 = vunpack.c.l.b16 %v2427
      %v2494 = vunpack.c.l.b16 %v2428
      %v2495 = vunpack.c.l.b16 %v2429
      %v2496 = vunpack.c.l.b16 %v2430
      %v2497 = vunpack.c.l.b16 %v2431
      %v2498 = vunpack.c.l.b16 %v2432
      %v2499 = vunpack.c.l.b16 %v2433
      %v2500 = vunpack.c.l.b16 %v2434
      %v2501 = vunpack.c.l.b16 %v2435
      %v2502 = vunpack.c.l.b16 %v2436
      %v2503 = vunpack.c.l.b16 %v2437
      %v2504 = vunpack.c.l.b16 %v2438
      %v2505 = vunpack.c.l.b16 %v2439
      %v2506 = vunpack.c.l.b16 %v2440
      %v2507 = vunpack.c.l.b16 %v2441
      %v2508 = vunpack.c.l.b16 %v2442
      %v2509 = vpack.c.b16 %v2478, %v2477
      %v2510 = vpack.c.b16 %v2480, %v2479
      %v2511 = vpack.c.b16 %v2482, %v2481
      %v2512 = vpack.c.b16 %v2484, %v2483
      %v2513 = vpack.c.b16 %v2486, %v2485
      %v2514 = vpack.c.b16 %v2488, %v2487
      %v2515 = vpack.c.b16 %v2490, %v2489
      %v2516 = vpack.c.b16 %v2492, %v2491
      %v2517 = vpack.c.b16 %v2494, %v2493
      %v2518 = vpack.c.b16 %v2496, %v2495
      %v2519 = vpack.c.b16 %v2498, %v2497
      %v2520 = vpack.c.b16 %v2500, %v2499
      %v2521 = vpack.c.b16 %v2502, %v2501
      %v2522 = vpack.c.b16 %v2504, %v2503
      %v2523 = vpack.c.b16 %v2506, %v2505
      %v2524 = vpack.c.b16 %v2508, %v2507
      %v2526 = vsel %vm1664, %v2509, 0
      %v2529 = vsel %vm1664, %v2510, 0
      %v2532 = vsel %vm1664, %v2511, 0
      %v2535 = vsel %vm1664, %v2512, 0
      %v2538 = vsel %vm1664, %v2513, 0
      %v2541 = vsel %vm1664, %v2514, 0
      %v2544 = vsel %vm1664, %v2515, 0
      %v2547 = vsel %vm1664, %v2516, 0
      %v2550 = vsel %vm1664, %v2517, 0
      %v2553 = vsel %vm1664, %v2518, 0
      %v2556 = vsel %vm1664, %v2519, 0
      %v2559 = vsel %vm1664, %v2520, 0
      %v2562 = vsel %vm1664, %v2521, 0
      %v2565 = vsel %vm1664, %v2522, 0
      %v2568 = vsel %vm1664, %v2523, 0
      %v2571 = vsel %vm1664, %v2524, 0
      %v2574 = vsel %vm1713, %v2444, 0
      %2576 = vmatpush.bf16.msra.mxu0 0
      %2577 = vmatpush.bf16.msra.mxu0 0
      %2578 = vmatpush.bf16.msra.mxu0 0
      %2579 = vmatpush.bf16.msra.mxu0 0
      %2580 = vmatpush.bf16.msra.mxu0 0
      %2581 = vmatpush.bf16.msra.mxu0 0
      %2582 = vmatpush.bf16.msra.mxu0 0
      %2583 = vmatpush.bf16.msra.mxu0 %v2574
      %2584 = vmatmul.bf16.gmra.mxu0 %v2526
      %v2585 = vpop.f32.mrf.mxu0
      %v2586 = vadd.f32 0.0, %v2585
      %v2587 = vpop.f32.mrf.mxu0
      %v2588 = vadd.f32 0.0, %v2587
      %2589 = vmatmul.bf16.gmra.mxu0 %v2529
      %v2590 = vpop.f32.mrf.mxu0
      %v2591 = vadd.f32 0.0, %v2590
      %v2592 = vpop.f32.mrf.mxu0
      %v2593 = vadd.f32 0.0, %v2592
      %2594 = vmatmul.bf16.gmra.mxu0 %v2532
      %v2595 = vpop.f32.mrf.mxu0
      %v2596 = vadd.f32 0.0, %v2595
      %v2597 = vpop.f32.mrf.mxu0
      %v2598 = vadd.f32 0.0, %v2597
      %2599 = vmatmul.bf16.gmra.mxu0 %v2535
      %v2600 = vpop.f32.mrf.mxu0
      %v2601 = vadd.f32 0.0, %v2600
      %v2602 = vpop.f32.mrf.mxu0
      %v2603 = vadd.f32 0.0, %v2602
      %2604 = vmatmul.bf16.gmra.mxu0 %v2538
      %v2605 = vpop.f32.mrf.mxu0
      %v2606 = vadd.f32 0.0, %v2605
      %v2607 = vpop.f32.mrf.mxu0
      %v2608 = vadd.f32 0.0, %v2607
      %2609 = vmatmul.bf16.gmra.mxu0 %v2541
      %v2610 = vpop.f32.mrf.mxu0
      %v2611 = vadd.f32 0.0, %v2610
      %v2612 = vpop.f32.mrf.mxu0
      %v2613 = vadd.f32 0.0, %v2612
      %2614 = vmatmul.bf16.gmra.mxu0 %v2544
      %v2615 = vpop.f32.mrf.mxu0
      %v2616 = vadd.f32 0.0, %v2615
      %v2617 = vpop.f32.mrf.mxu0
      %v2618 = vadd.f32 0.0, %v2617
      %2619 = vmatmul.bf16.gmra.mxu0 %v2547
      %v2620 = vpop.f32.mrf.mxu0
      %v2621 = vadd.f32 0.0, %v2620
      %v2622 = vpop.f32.mrf.mxu0
      %v2623 = vadd.f32 0.0, %v2622
      %2624 = vmatmul.bf16.gmra.mxu0 %v2550
      %v2625 = vpop.f32.mrf.mxu0
      %v2626 = vadd.f32 0.0, %v2625
      %v2627 = vpop.f32.mrf.mxu0
      %v2628 = vadd.f32 0.0, %v2627
      %2629 = vmatmul.bf16.gmra.mxu0 %v2553
      %v2630 = vpop.f32.mrf.mxu0
      %v2631 = vadd.f32 0.0, %v2630
      %v2632 = vpop.f32.mrf.mxu0
      %v2633 = vadd.f32 0.0, %v2632
      %2634 = vmatmul.bf16.gmra.mxu0 %v2556
      %v2635 = vpop.f32.mrf.mxu0
      %v2636 = vadd.f32 0.0, %v2635
      %v2637 = vpop.f32.mrf.mxu0
      %v2638 = vadd.f32 0.0, %v2637
      %2639 = vmatmul.bf16.gmra.mxu0 %v2559
      %v2640 = vpop.f32.mrf.mxu0
      %v2641 = vadd.f32 0.0, %v2640
      %v2642 = vpop.f32.mrf.mxu0
      %v2643 = vadd.f32 0.0, %v2642
      %2644 = vmatmul.bf16.gmra.mxu0 %v2562
      %v2645 = vpop.f32.mrf.mxu0
      %v2646 = vadd.f32 0.0, %v2645
      %v2647 = vpop.f32.mrf.mxu0
      %v2648 = vadd.f32 0.0, %v2647
      %2649 = vmatmul.bf16.gmra.mxu0 %v2565
      %v2650 = vpop.f32.mrf.mxu0
      %v2651 = vadd.f32 0.0, %v2650
      %v2652 = vpop.f32.mrf.mxu0
      %v2653 = vadd.f32 0.0, %v2652
      %2654 = vmatmul.bf16.gmra.mxu0 %v2568
      %v2655 = vpop.f32.mrf.mxu0
      %v2656 = vadd.f32 0.0, %v2655
      %v2657 = vpop.f32.mrf.mxu0
      %v2658 = vadd.f32 0.0, %v2657
      %2659 = vmatmul.bf16.gmra.mxu0 %v2571
      %v2660 = vpop.f32.mrf.mxu0
      %v2661 = vadd.f32 0.0, %v2660
      %v2662 = vpop.f32.mrf.mxu0
      %v2663 = vadd.f32 0.0, %v2662
      %2664 = vdwg.mxu0
      %v2665 = vadd.f32 %v2379, %v2586
      %v2666 = vadd.f32 %v2380, %v2588
      %v2667 = vadd.f32 %v2381, %v2591
      %v2668 = vadd.f32 %v2382, %v2593
      %v2669 = vadd.f32 %v2383, %v2596
      %v2670 = vadd.f32 %v2384, %v2598
      %v2671 = vadd.f32 %v2385, %v2601
      %v2672 = vadd.f32 %v2386, %v2603
      %v2673 = vadd.f32 %v2387, %v2606
      %v2674 = vadd.f32 %v2388, %v2608
      %v2675 = vadd.f32 %v2389, %v2611
      %v2676 = vadd.f32 %v2390, %v2613
      %v2677 = vadd.f32 %v2391, %v2616
      %v2678 = vadd.f32 %v2392, %v2618
      %v2679 = vadd.f32 %v2393, %v2621
      %v2680 = vadd.f32 %v2394, %v2623
      %v2681 = vadd.f32 %v2395, %v2626
      %v2682 = vadd.f32 %v2396, %v2628
      %v2683 = vadd.f32 %v2397, %v2631
      %v2684 = vadd.f32 %v2398, %v2633
      %v2685 = vadd.f32 %v2399, %v2636
      %v2686 = vadd.f32 %v2400, %v2638
      %v2687 = vadd.f32 %v2401, %v2641
      %v2688 = vadd.f32 %v2402, %v2643
      %v2689 = vadd.f32 %v2403, %v2646
      %v2690 = vadd.f32 %v2404, %v2648
      %v2691 = vadd.f32 %v2405, %v2651
      %v2692 = vadd.f32 %v2406, %v2653
      %v2693 = vadd.f32 %v2407, %v2656
      %v2694 = vadd.f32 %v2408, %v2658
      %v2695 = vadd.f32 %v2409, %v2661
      %v2696 = vadd.f32 %v2410, %v2663
      %v2697 = vld [vmem:[%s755] sm:$0xf]
      %v2698 = vld [vmem:[%s755 + $0x4] sm:$0xf]
      %v2699 = vld [vmem:[%s755 + $0x8] sm:$0x1]
      %v2700 = vld [vmem:[%s755 + $0xc] sm:$0xf]
      %v2701 = vld [vmem:[%s755 + $0x10] sm:$0xf]
      %v2702 = vld [vmem:[%s755 + $0x14] sm:$0x1]
      %v2703 = vld [vmem:[%s755 + $0x18] sm:$0xf]
      %v2704 = vld [vmem:[%s755 + $0x1c] sm:$0xf]
      %v2705 = vld [vmem:[%s755 + $0x20] sm:$0x1]
      %v2706 = vld [vmem:[%s755 + $0x24] sm:$0xf]
      %v2707 = vld [vmem:[%s755 + $0x28] sm:$0xf]
      %v2708 = vld [vmem:[%s755 + $0x2c] sm:$0x1]
      %v2709 = vld [vmem:[%s755 + $0x30] sm:$0xf]
      %v2710 = vld [vmem:[%s755 + $0x34] sm:$0xf]
      %v2711 = vld [vmem:[%s755 + $0x38] sm:$0x1]
      %v2712 = vld [vmem:[%s755 + $0x3c] sm:$0xf]
      %v2713 = vld [vmem:[%s755 + $0x40] sm:$0xf]
      %v2714 = vld [vmem:[%s755 + $0x44] sm:$0x1]
      %v2715 = vld [vmem:[%s755 + $0x48] sm:$0xf]
      %v2716 = vld [vmem:[%s755 + $0x4c] sm:$0xf]
      %v2717 = vld [vmem:[%s755 + $0x50] sm:$0x1]
      %v2718 = vld [vmem:[%s755 + $0x54] sm:$0xf]
      %v2719 = vld [vmem:[%s755 + $0x58] sm:$0xf]
      %v2720 = vld [vmem:[%s755 + $0x5c] sm:$0x1]
      %v2721 = vld [vmem:[%s755 + $0x60] sm:$0xf]
      %v2722 = vld [vmem:[%s755 + $0x64] sm:$0xf]
      %v2723 = vld [vmem:[%s755 + $0x68] sm:$0x1]
      %v2724 = vld [vmem:[%s755 + $0x6c] sm:$0xf]
      %v2725 = vld [vmem:[%s755 + $0x70] sm:$0xf]
      %v2726 = vld [vmem:[%s755 + $0x74] sm:$0x1]
      %v2727 = vld [vmem:[%s755 + $0x78] sm:$0xf]
      %v2728 = vld [vmem:[%s755 + $0x7c] sm:$0xf]
      %v2729 = vld [vmem:[%s755 + $0x80] sm:$0x1]
      %v2730 = vld [vmem:[%s755 + $0x84] sm:$0xf]
      %v2731 = vld [vmem:[%s755 + $0x88] sm:$0xf]
      %v2732 = vld [vmem:[%s755 + $0x8c] sm:$0x1]
      %v2733 = vld [vmem:[%s755 + $0x90] sm:$0xf]
      %v2734 = vld [vmem:[%s755 + $0x94] sm:$0xf]
      %v2735 = vld [vmem:[%s755 + $0x98] sm:$0x1]
      %v2736 = vld [vmem:[%s755 + $0x9c] sm:$0xf]
      %v2737 = vld [vmem:[%s755 + $0xa0] sm:$0xf]
      %v2738 = vld [vmem:[%s755 + $0xa4] sm:$0x1]
      %v2739 = vld [vmem:[%s755 + $0xa8] sm:$0xf]
      %v2740 = vld [vmem:[%s755 + $0xac] sm:$0xf]
      %v2741 = vld [vmem:[%s755 + $0xb0] sm:$0x1]
      %v2742 = vld [vmem:[%s755 + $0xb4] sm:$0xf]
      %v2743 = vld [vmem:[%s755 + $0xb8] sm:$0xf]
      %v2744 = vld [vmem:[%s755 + $0xbc] sm:$0x1]
      %v2746 = vshrl.u32 %v2697, 16
      %v2748 = vrot.slane %v2746, 4
      %v2749 = vshll.u32 %v2697, 16
      %v2751 = vrot.slane %v2749, 5
      %v2752 = vor.u32 %v2748, %v2751
      %v2753 = vrot.slane %v2752, 4
      %v2755 = vshll.u32 %v2698, 16
      %v2757 = vrot.slane %v2755, 5
      %v2758 = vsel %vm1229, %v2753, %v2757
      %v2759 = vshrl.u32 %v2698, 16
      %v2761 = vrot.slane %v2759, 4
      %v2762 = vor.u32 %v2761, %v2757
      %v2763 = vrot.slane %v2762, 4
      %v2765 = vshll.u32 %v2699, 16
      %v2767 = vrot.slane %v2765, 5
      %v2768 = vsel %vm1229, %v2763, %v2767
      %v2770 = vshrl.u32 %v2700, 16
      %v2772 = vrot.slane %v2770, 4
      %v2773 = vshll.u32 %v2700, 16
      %v2775 = vrot.slane %v2773, 5
      %v2776 = vor.u32 %v2772, %v2775
      %v2777 = vrot.slane %v2776, 4
      %v2779 = vshll.u32 %v2701, 16
      %v2781 = vrot.slane %v2779, 5
      %v2782 = vsel %vm1229, %v2777, %v2781
      %v2783 = vshrl.u32 %v2701, 16
      %v2785 = vrot.slane %v2783, 4
      %v2786 = vor.u32 %v2785, %v2781
      %v2787 = vrot.slane %v2786, 4
      %v2789 = vshll.u32 %v2702, 16
      %v2791 = vrot.slane %v2789, 5
      %v2792 = vsel %vm1229, %v2787, %v2791
      %v2794 = vshrl.u32 %v2703, 16
      %v2796 = vrot.slane %v2794, 4
      %v2797 = vshll.u32 %v2703, 16
      %v2799 = vrot.slane %v2797, 5
      %v2800 = vor.u32 %v2796, %v2799
      %v2801 = vrot.slane %v2800, 4
      %v2803 = vshll.u32 %v2704, 16
      %v2805 = vrot.slane %v2803, 5
      %v2806 = vsel %vm1229, %v2801, %v2805
      %v2807 = vshrl.u32 %v2704, 16
      %v2809 = vrot.slane %v2807, 4
      %v2810 = vor.u32 %v2809, %v2805
      %v2811 = vrot.slane %v2810, 4
      %v2813 = vshll.u32 %v2705, 16
      %v2815 = vrot.slane %v2813, 5
      %v2816 = vsel %vm1229, %v2811, %v2815
      %v2818 = vshrl.u32 %v2706, 16
      %v2820 = vrot.slane %v2818, 4
      %v2821 = vshll.u32 %v2706, 16
      %v2823 = vrot.slane %v2821, 5
      %v2824 = vor.u32 %v2820, %v2823
      %v2825 = vrot.slane %v2824, 4
      %v2827 = vshll.u32 %v2707, 16
      %v2829 = vrot.slane %v2827, 5
      %v2830 = vsel %vm1229, %v2825, %v2829
      %v2831 = vshrl.u32 %v2707, 16
      %v2833 = vrot.slane %v2831, 4
      %v2834 = vor.u32 %v2833, %v2829
      %v2835 = vrot.slane %v2834, 4
      %v2837 = vshll.u32 %v2708, 16
      %v2839 = vrot.slane %v2837, 5
      %v2840 = vsel %vm1229, %v2835, %v2839
      %v2842 = vshrl.u32 %v2709, 16
      %v2844 = vrot.slane %v2842, 4
      %v2845 = vshll.u32 %v2709, 16
      %v2847 = vrot.slane %v2845, 5
      %v2848 = vor.u32 %v2844, %v2847
      %v2849 = vrot.slane %v2848, 4
      %v2851 = vshll.u32 %v2710, 16
      %v2853 = vrot.slane %v2851, 5
      %v2854 = vsel %vm1229, %v2849, %v2853
      %v2855 = vshrl.u32 %v2710, 16
      %v2857 = vrot.slane %v2855, 4
      %v2858 = vor.u32 %v2857, %v2853
      %v2859 = vrot.slane %v2858, 4
      %v2861 = vshll.u32 %v2711, 16
      %v2863 = vrot.slane %v2861, 5
      %v2864 = vsel %vm1229, %v2859, %v2863
      %v2866 = vshrl.u32 %v2712, 16
      %v2868 = vrot.slane %v2866, 4
      %v2869 = vshll.u32 %v2712, 16
      %v2871 = vrot.slane %v2869, 5
      %v2872 = vor.u32 %v2868, %v2871
      %v2873 = vrot.slane %v2872, 4
      %v2875 = vshll.u32 %v2713, 16
      %v2877 = vrot.slane %v2875, 5
      %v2878 = vsel %vm1229, %v2873, %v2877
      %v2879 = vshrl.u32 %v2713, 16
      %v2881 = vrot.slane %v2879, 4
      %v2882 = vor.u32 %v2881, %v2877
      %v2883 = vrot.slane %v2882, 4
      %v2885 = vshll.u32 %v2714, 16
      %v2887 = vrot.slane %v2885, 5
      %v2888 = vsel %vm1229, %v2883, %v2887
      %v2890 = vshrl.u32 %v2715, 16
      %v2892 = vrot.slane %v2890, 4
      %v2893 = vshll.u32 %v2715, 16
      %v2895 = vrot.slane %v2893, 5
      %v2896 = vor.u32 %v2892, %v2895
      %v2897 = vrot.slane %v2896, 4
      %v2899 = vshll.u32 %v2716, 16
      %v2901 = vrot.slane %v2899, 5
      %v2902 = vsel %vm1229, %v2897, %v2901
      %v2903 = vshrl.u32 %v2716, 16
      %v2905 = vrot.slane %v2903, 4
      %v2906 = vor.u32 %v2905, %v2901
      %v2907 = vrot.slane %v2906, 4
      %v2909 = vshll.u32 %v2717, 16
      %v2911 = vrot.slane %v2909, 5
      %v2912 = vsel %vm1229, %v2907, %v2911
      %v2914 = vshrl.u32 %v2718, 16
      %v2916 = vrot.slane %v2914, 4
      %v2917 = vshll.u32 %v2718, 16
      %v2919 = vrot.slane %v2917, 5
      %v2920 = vor.u32 %v2916, %v2919
      %v2921 = vrot.slane %v2920, 4
      %v2923 = vshll.u32 %v2719, 16
      %v2925 = vrot.slane %v2923, 5
      %v2926 = vsel %vm1229, %v2921, %v2925
      %v2927 = vshrl.u32 %v2719, 16
      %v2929 = vrot.slane %v2927, 4
      %v2930 = vor.u32 %v2929, %v2925
      %v2931 = vrot.slane %v2930, 4
      %v2933 = vshll.u32 %v2720, 16
      %v2935 = vrot.slane %v2933, 5
      %v2936 = vsel %vm1229, %v2931, %v2935
      %v2938 = vshrl.u32 %v2721, 16
      %v2940 = vrot.slane %v2938, 4
      %v2941 = vshll.u32 %v2721, 16
      %v2943 = vrot.slane %v2941, 5
      %v2944 = vor.u32 %v2940, %v2943
      %v2945 = vrot.slane %v2944, 4
      %v2947 = vshll.u32 %v2722, 16
      %v2949 = vrot.slane %v2947, 5
      %v2950 = vsel %vm1229, %v2945, %v2949
      %v2951 = vshrl.u32 %v2722, 16
      %v2953 = vrot.slane %v2951, 4
      %v2954 = vor.u32 %v2953, %v2949
      %v2955 = vrot.slane %v2954, 4
      %v2957 = vshll.u32 %v2723, 16
      %v2959 = vrot.slane %v2957, 5
      %v2960 = vsel %vm1229, %v2955, %v2959
      %v2962 = vshrl.u32 %v2724, 16
      %v2964 = vrot.slane %v2962, 4
      %v2965 = vshll.u32 %v2724, 16
      %v2967 = vrot.slane %v2965, 5
      %v2968 = vor.u32 %v2964, %v2967
      %v2969 = vrot.slane %v2968, 4
      %v2971 = vshll.u32 %v2725, 16
      %v2973 = vrot.slane %v2971, 5
      %v2974 = vsel %vm1229, %v2969, %v2973
      %v2975 = vshrl.u32 %v2725, 16
      %v2977 = vrot.slane %v2975, 4
      %v2978 = vor.u32 %v2977, %v2973
      %v2979 = vrot.slane %v2978, 4
      %v2981 = vshll.u32 %v2726, 16
      %v2983 = vrot.slane %v2981, 5
      %v2984 = vsel %vm1229, %v2979, %v2983
      %v2986 = vshrl.u32 %v2727, 16
      %v2988 = vrot.slane %v2986, 4
      %v2989 = vshll.u32 %v2727, 16
      %v2991 = vrot.slane %v2989, 5
      %v2992 = vor.u32 %v2988, %v2991
      %v2993 = vrot.slane %v2992, 4
      %v2995 = vshll.u32 %v2728, 16
      %v2997 = vrot.slane %v2995, 5
      %v2998 = vsel %vm1229, %v2993, %v2997
      %v2999 = vshrl.u32 %v2728, 16
      %v3001 = vrot.slane %v2999, 4
      %v3002 = vor.u32 %v3001, %v2997
      %v3003 = vrot.slane %v3002, 4
      %v3005 = vshll.u32 %v2729, 16
      %v3007 = vrot.slane %v3005, 5
      %v3008 = vsel %vm1229, %v3003, %v3007
      %v3010 = vshrl.u32 %v2730, 16
      %v3012 = vrot.slane %v3010, 4
      %v3013 = vshll.u32 %v2730, 16
      %v3015 = vrot.slane %v3013, 5
      %v3016 = vor.u32 %v3012, %v3015
      %v3017 = vrot.slane %v3016, 4
      %v3019 = vshll.u32 %v2731, 16
      %v3021 = vrot.slane %v3019, 5
      %v3022 = vsel %vm1229, %v3017, %v3021
      %v3023 = vshrl.u32 %v2731, 16
      %v3025 = vrot.slane %v3023, 4
      %v3026 = vor.u32 %v3025, %v3021
      %v3027 = vrot.slane %v3026, 4
      %v3029 = vshll.u32 %v2732, 16
      %v3031 = vrot.slane %v3029, 5
      %v3032 = vsel %vm1229, %v3027, %v3031
      %v3034 = vshrl.u32 %v2733, 16
      %v3036 = vrot.slane %v3034, 4
      %v3037 = vshll.u32 %v2733, 16
      %v3039 = vrot.slane %v3037, 5
      %v3040 = vor.u32 %v3036, %v3039
      %v3041 = vrot.slane %v3040, 4
      %v3043 = vshll.u32 %v2734, 16
      %v3045 = vrot.slane %v3043, 5
      %v3046 = vsel %vm1229, %v3041, %v3045
      %v3047 = vshrl.u32 %v2734, 16
      %v3049 = vrot.slane %v3047, 4
      %v3050 = vor.u32 %v3049, %v3045
      %v3051 = vrot.slane %v3050, 4
      %v3053 = vshll.u32 %v2735, 16
      %v3055 = vrot.slane %v3053, 5
      %v3056 = vsel %vm1229, %v3051, %v3055
      %v3058 = vshrl.u32 %v2736, 16
      %v3060 = vrot.slane %v3058, 4
      %v3061 = vshll.u32 %v2736, 16
      %v3063 = vrot.slane %v3061, 5
      %v3064 = vor.u32 %v3060, %v3063
      %v3065 = vrot.slane %v3064, 4
      %v3067 = vshll.u32 %v2737, 16
      %v3069 = vrot.slane %v3067, 5
      %v3070 = vsel %vm1229, %v3065, %v3069
      %v3071 = vshrl.u32 %v2737, 16
      %v3073 = vrot.slane %v3071, 4
      %v3074 = vor.u32 %v3073, %v3069
      %v3075 = vrot.slane %v3074, 4
      %v3077 = vshll.u32 %v2738, 16
      %v3079 = vrot.slane %v3077, 5
      %v3080 = vsel %vm1229, %v3075, %v3079
      %v3082 = vshrl.u32 %v2739, 16
      %v3084 = vrot.slane %v3082, 4
      %v3085 = vshll.u32 %v2739, 16
      %v3087 = vrot.slane %v3085, 5
      %v3088 = vor.u32 %v3084, %v3087
      %v3089 = vrot.slane %v3088, 4
      %v3091 = vshll.u32 %v2740, 16
      %v3093 = vrot.slane %v3091, 5
      %v3094 = vsel %vm1229, %v3089, %v3093
      %v3095 = vshrl.u32 %v2740, 16
      %v3097 = vrot.slane %v3095, 4
      %v3098 = vor.u32 %v3097, %v3093
      %v3099 = vrot.slane %v3098, 4
      %v3101 = vshll.u32 %v2741, 16
      %v3103 = vrot.slane %v3101, 5
      %v3104 = vsel %vm1229, %v3099, %v3103
      %v3106 = vshrl.u32 %v2742, 16
      %v3108 = vrot.slane %v3106, 4
      %v3109 = vshll.u32 %v2742, 16
      %v3111 = vrot.slane %v3109, 5
      %v3112 = vor.u32 %v3108, %v3111
      %v3113 = vrot.slane %v3112, 4
      %v3115 = vshll.u32 %v2743, 16
      %v3117 = vrot.slane %v3115, 5
      %v3118 = vsel %vm1229, %v3113, %v3117
      %v3119 = vshrl.u32 %v2743, 16
      %v3121 = vrot.slane %v3119, 4
      %v3122 = vor.u32 %v3121, %v3117
      %v3123 = vrot.slane %v3122, 4
      %v3125 = vshll.u32 %v2744, 16
      %v3127 = vrot.slane %v3125, 5
      %v3128 = vsel %vm1229, %v3123, %v3127
      %s3129 = scalar_lea.vmem %s3, 8
      %v3130 = vld [vmem:[%s3129] sm:$0x3]
      %v3131 = vunpack.c.l.b16 %v2758
      %v3132 = vunpack.c.l.b16 %v2768
      %v3133 = vunpack.c.l.b16 %v2782
      %v3134 = vunpack.c.l.b16 %v2792
      %v3135 = vunpack.c.l.b16 %v2806
      %v3136 = vunpack.c.l.b16 %v2816
      %v3137 = vunpack.c.l.b16 %v2830
      %v3138 = vunpack.c.l.b16 %v2840
      %v3139 = vunpack.c.l.b16 %v2854
      %v3140 = vunpack.c.l.b16 %v2864
      %v3141 = vunpack.c.l.b16 %v2878
      %v3142 = vunpack.c.l.b16 %v2888
      %v3143 = vunpack.c.l.b16 %v2902
      %v3144 = vunpack.c.l.b16 %v2912
      %v3145 = vunpack.c.l.b16 %v2926
      %v3146 = vunpack.c.l.b16 %v2936
      %v3147 = vunpack.c.l.b16 %v2950
      %v3148 = vunpack.c.l.b16 %v2960
      %v3149 = vunpack.c.l.b16 %v2974
      %v3150 = vunpack.c.l.b16 %v2984
      %v3151 = vunpack.c.l.b16 %v2998
      %v3152 = vunpack.c.l.b16 %v3008
      %v3153 = vunpack.c.l.b16 %v3022
      %v3154 = vunpack.c.l.b16 %v3032
      %v3155 = vunpack.c.l.b16 %v3046
      %v3156 = vunpack.c.l.b16 %v3056
      %v3157 = vunpack.c.l.b16 %v3070
      %v3158 = vunpack.c.l.b16 %v3080
      %v3159 = vunpack.c.l.b16 %v3094
      %v3160 = vunpack.c.l.b16 %v3104
      %v3161 = vunpack.c.l.b16 %v3118
      %v3162 = vunpack.c.l.b16 %v3128
      %v3163 = vpack.c.b16 %v3132, %v3131
      %v3164 = vpack.c.b16 %v3134, %v3133
      %v3165 = vpack.c.b16 %v3136, %v3135
      %v3166 = vpack.c.b16 %v3138, %v3137
      %v3167 = vpack.c.b16 %v3140, %v3139
      %v3168 = vpack.c.b16 %v3142, %v3141
      %v3169 = vpack.c.b16 %v3144, %v3143
      %v3170 = vpack.c.b16 %v3146, %v3145
      %v3171 = vpack.c.b16 %v3148, %v3147
      %v3172 = vpack.c.b16 %v3150, %v3149
      %v3173 = vpack.c.b16 %v3152, %v3151
      %v3174 = vpack.c.b16 %v3154, %v3153
      %v3175 = vpack.c.b16 %v3156, %v3155
      %v3176 = vpack.c.b16 %v3158, %v3157
      %v3177 = vpack.c.b16 %v3160, %v3159
      %v3178 = vpack.c.b16 %v3162, %v3161
      %v3180 = vsel %vm1664, %v3163, 0
      %v3183 = vsel %vm1664, %v3164, 0
      %v3186 = vsel %vm1664, %v3165, 0
      %v3189 = vsel %vm1664, %v3166, 0
      %v3192 = vsel %vm1664, %v3167, 0
      %v3195 = vsel %vm1664, %v3168, 0
      %v3198 = vsel %vm1664, %v3169, 0
      %v3201 = vsel %vm1664, %v3170, 0
      %v3204 = vsel %vm1664, %v3171, 0
      %v3207 = vsel %vm1664, %v3172, 0
      %v3210 = vsel %vm1664, %v3173, 0
      %v3213 = vsel %vm1664, %v3174, 0
      %v3216 = vsel %vm1664, %v3175, 0
      %v3219 = vsel %vm1664, %v3176, 0
      %v3222 = vsel %vm1664, %v3177, 0
      %v3225 = vsel %vm1664, %v3178, 0
      %v3228 = vsel %vm1713, %v3130, 0
      %3230 = vmatpush.bf16.msra.mxu0 0
      %3231 = vmatpush.bf16.msra.mxu0 0
      %3232 = vmatpush.bf16.msra.mxu0 0
      %3233 = vmatpush.bf16.msra.mxu0 0
      %3234 = vmatpush.bf16.msra.mxu0 0
      %3235 = vmatpush.bf16.msra.mxu0 0
      %3236 = vmatpush.bf16.msra.mxu0 0
      %3237 = vmatpush.bf16.msra.mxu0 %v3228
      %3238 = vmatmul.bf16.gmra.mxu0 %v3180
      %v3239 = vpop.f32.mrf.mxu0
      %v3240 = vadd.f32 0.0, %v3239
      %v3241 = vpop.f32.mrf.mxu0
      %v3242 = vadd.f32 0.0, %v3241
      %3243 = vmatmul.bf16.gmra.mxu0 %v3183
      %v3244 = vpop.f32.mrf.mxu0
      %v3245 = vadd.f32 0.0, %v3244
      %v3246 = vpop.f32.mrf.mxu0
      %v3247 = vadd.f32 0.0, %v3246
      %3248 = vmatmul.bf16.gmra.mxu0 %v3186
      %v3249 = vpop.f32.mrf.mxu0
      %v3250 = vadd.f32 0.0, %v3249
      %v3251 = vpop.f32.mrf.mxu0
      %v3252 = vadd.f32 0.0, %v3251
      %3253 = vmatmul.bf16.gmra.mxu0 %v3189
      %v3254 = vpop.f32.mrf.mxu0
      %v3255 = vadd.f32 0.0, %v3254
      %v3256 = vpop.f32.mrf.mxu0
      %v3257 = vadd.f32 0.0, %v3256
      %3258 = vmatmul.bf16.gmra.mxu0 %v3192
      %v3259 = vpop.f32.mrf.mxu0
      %v3260 = vadd.f32 0.0, %v3259
      %v3261 = vpop.f32.mrf.mxu0
      %v3262 = vadd.f32 0.0, %v3261
      %3263 = vmatmul.bf16.gmra.mxu0 %v3195
      %v3264 = vpop.f32.mrf.mxu0
      %v3265 = vadd.f32 0.0, %v3264
      %v3266 = vpop.f32.mrf.mxu0
      %v3267 = vadd.f32 0.0, %v3266
      %3268 = vmatmul.bf16.gmra.mxu0 %v3198
      %v3269 = vpop.f32.mrf.mxu0
      %v3270 = vadd.f32 0.0, %v3269
      %v3271 = vpop.f32.mrf.mxu0
      %v3272 = vadd.f32 0.0, %v3271
      %3273 = vmatmul.bf16.gmra.mxu0 %v3201
      %v3274 = vpop.f32.mrf.mxu0
      %v3275 = vadd.f32 0.0, %v3274
      %v3276 = vpop.f32.mrf.mxu0
      %v3277 = vadd.f32 0.0, %v3276
      %3278 = vmatmul.bf16.gmra.mxu0 %v3204
      %v3279 = vpop.f32.mrf.mxu0
      %v3280 = vadd.f32 0.0, %v3279
      %v3281 = vpop.f32.mrf.mxu0
      %v3282 = vadd.f32 0.0, %v3281
      %3283 = vmatmul.bf16.gmra.mxu0 %v3207
      %v3284 = vpop.f32.mrf.mxu0
      %v3285 = vadd.f32 0.0, %v3284
      %v3286 = vpop.f32.mrf.mxu0
      %v3287 = vadd.f32 0.0, %v3286
      %3288 = vmatmul.bf16.gmra.mxu0 %v3210
      %v3289 = vpop.f32.mrf.mxu0
      %v3290 = vadd.f32 0.0, %v3289
      %v3291 = vpop.f32.mrf.mxu0
      %v3292 = vadd.f32 0.0, %v3291
      %3293 = vmatmul.bf16.gmra.mxu0 %v3213
      %v3294 = vpop.f32.mrf.mxu0
      %v3295 = vadd.f32 0.0, %v3294
      %v3296 = vpop.f32.mrf.mxu0
      %v3297 = vadd.f32 0.0, %v3296
      %3298 = vmatmul.bf16.gmra.mxu0 %v3216
      %v3299 = vpop.f32.mrf.mxu0
      %v3300 = vadd.f32 0.0, %v3299
      %v3301 = vpop.f32.mrf.mxu0
      %v3302 = vadd.f32 0.0, %v3301
      %3303 = vmatmul.bf16.gmra.mxu0 %v3219
      %v3304 = vpop.f32.mrf.mxu0
      %v3305 = vadd.f32 0.0, %v3304
      %v3306 = vpop.f32.mrf.mxu0
      %v3307 = vadd.f32 0.0, %v3306
      %3308 = vmatmul.bf16.gmra.mxu0 %v3222
      %v3309 = vpop.f32.mrf.mxu0
      %v3310 = vadd.f32 0.0, %v3309
      %v3311 = vpop.f32.mrf.mxu0
      %v3312 = vadd.f32 0.0, %v3311
      %3313 = vmatmul.bf16.gmra.mxu0 %v3225
      %v3314 = vpop.f32.mrf.mxu0
      %v3315 = vadd.f32 0.0, %v3314
      %v3316 = vpop.f32.mrf.mxu0
      %v3317 = vadd.f32 0.0, %v3316
      %3318 = vdwg.mxu0
      %v3319 = vadd.f32 %v2665, %v3240
      %v3320 = vadd.f32 %v2666, %v3242
      %v3321 = vadd.f32 %v2667, %v3245
      %v3322 = vadd.f32 %v2668, %v3247
      %v3323 = vadd.f32 %v2669, %v3250
      %v3324 = vadd.f32 %v2670, %v3252
      %v3325 = vadd.f32 %v2671, %v3255
      %v3326 = vadd.f32 %v2672, %v3257
      %v3327 = vadd.f32 %v2673, %v3260
      %v3328 = vadd.f32 %v2674, %v3262
      %v3329 = vadd.f32 %v2675, %v3265
      %v3330 = vadd.f32 %v2676, %v3267
      %v3331 = vadd.f32 %v2677, %v3270
      %v3332 = vadd.f32 %v2678, %v3272
      %v3333 = vadd.f32 %v2679, %v3275
      %v3334 = vadd.f32 %v2680, %v3277
      %v3335 = vadd.f32 %v2681, %v3280
      %v3336 = vadd.f32 %v2682, %v3282
      %v3337 = vadd.f32 %v2683, %v3285
      %v3338 = vadd.f32 %v2684, %v3287
      %v3339 = vadd.f32 %v2685, %v3290
      %v3340 = vadd.f32 %v2686, %v3292
      %v3341 = vadd.f32 %v2687, %v3295
      %v3342 = vadd.f32 %v2688, %v3297
      %v3343 = vadd.f32 %v2689, %v3300
      %v3344 = vadd.f32 %v2690, %v3302
      %v3345 = vadd.f32 %v2691, %v3305
      %v3346 = vadd.f32 %v2692, %v3307
      %v3347 = vadd.f32 %v2693, %v3310
      %v3348 = vadd.f32 %v2694, %v3312
      %v3349 = vadd.f32 %v2695, %v3315
      %v3350 = vadd.f32 %v2696, %v3317
      %v3351 = vld [vmem:[%s755] sm:$0xe]
      %v3352 = vld [vmem:[%s755 + $0xc] sm:$0xe]
      %v3353 = vld [vmem:[%s755 + $0x18] sm:$0xe]
      %v3354 = vld [vmem:[%s755 + $0x24] sm:$0xe]
      %v3355 = vld [vmem:[%s755 + $0x30] sm:$0xe]
      %v3356 = vld [vmem:[%s755 + $0x3c] sm:$0xe]
      %v3357 = vld [vmem:[%s755 + $0x48] sm:$0xe]
      %v3358 = vld [vmem:[%s755 + $0x54] sm:$0xe]
      %v3359 = vld [vmem:[%s755 + $0x60] sm:$0xe]
      %v3360 = vld [vmem:[%s755 + $0x6c] sm:$0xe]
      %v3361 = vld [vmem:[%s755 + $0x78] sm:$0xe]
      %v3362 = vld [vmem:[%s755 + $0x84] sm:$0xe]
      %v3363 = vld [vmem:[%s755 + $0x90] sm:$0xe]
      %v3364 = vld [vmem:[%s755 + $0x9c] sm:$0xe]
      %v3365 = vld [vmem:[%s755 + $0xa8] sm:$0xe]
      %v3366 = vld [vmem:[%s755 + $0xb4] sm:$0xe]
      %v3415 = vrot.slane %v3351, 5
      %v3416 = vrot.slane %v3415, 4
      %v3417 = vrot.slane %v2698, 5
      %v3418 = vsel %vm2076, %v3416, %v3417
      %v3419 = vrot.slane %v3417, 4
      %v3420 = vrot.slane %v2699, 5
      %v3421 = vsel %vm2076, %v3419, %v3420
      %v3422 = vrot.slane %v3352, 5
      %v3423 = vrot.slane %v3422, 4
      %v3424 = vrot.slane %v2701, 5
      %v3425 = vsel %vm2076, %v3423, %v3424
      %v3426 = vrot.slane %v3424, 4
      %v3427 = vrot.slane %v2702, 5
      %v3428 = vsel %vm2076, %v3426, %v3427
      %v3429 = vrot.slane %v3353, 5
      %v3430 = vrot.slane %v3429, 4
      %v3431 = vrot.slane %v2704, 5
      %v3432 = vsel %vm2076, %v3430, %v3431
      %v3433 = vrot.slane %v3431, 4
      %v3434 = vrot.slane %v2705, 5
      %v3435 = vsel %vm2076, %v3433, %v3434
      %v3436 = vrot.slane %v3354, 5
      %v3437 = vrot.slane %v3436, 4
      %v3438 = vrot.slane %v2707, 5
      %v3439 = vsel %vm2076, %v3437, %v3438
      %v3440 = vrot.slane %v3438, 4
      %v3441 = vrot.slane %v2708, 5
      %v3442 = vsel %vm2076, %v3440, %v3441
      %v3443 = vrot.slane %v3355, 5
      %v3444 = vrot.slane %v3443, 4
      %v3445 = vrot.slane %v2710, 5
      %v3446 = vsel %vm2076, %v3444, %v3445
      %v3447 = vrot.slane %v3445, 4
      %v3448 = vrot.slane %v2711, 5
      %v3449 = vsel %vm2076, %v3447, %v3448
      %v3450 = vrot.slane %v3356, 5
      %v3451 = vrot.slane %v3450, 4
      %v3452 = vrot.slane %v2713, 5
      %v3453 = vsel %vm2076, %v3451, %v3452
      %v3454 = vrot.slane %v3452, 4
      %v3455 = vrot.slane %v2714, 5
      %v3456 = vsel %vm2076, %v3454, %v3455
      %v3457 = vrot.slane %v3357, 5
      %v3458 = vrot.slane %v3457, 4
      %v3459 = vrot.slane %v2716, 5
      %v3460 = vsel %vm2076, %v3458, %v3459
      %v3461 = vrot.slane %v3459, 4
      %v3462 = vrot.slane %v2717, 5
      %v3463 = vsel %vm2076, %v3461, %v3462
      %v3464 = vrot.slane %v3358, 5
      %v3465 = vrot.slane %v3464, 4
      %v3466 = vrot.slane %v2719, 5
      %v3467 = vsel %vm2076, %v3465, %v3466
      %v3468 = vrot.slane %v3466, 4
      %v3469 = vrot.slane %v2720, 5
      %v3470 = vsel %vm2076, %v3468, %v3469
      %v3471 = vrot.slane %v3359, 5
      %v3472 = vrot.slane %v3471, 4
      %v3473 = vrot.slane %v2722, 5
      %v3474 = vsel %vm2076, %v3472, %v3473
      %v3475 = vrot.slane %v3473, 4
      %v3476 = vrot.slane %v2723, 5
      %v3477 = vsel %vm2076, %v3475, %v3476
      %v3478 = vrot.slane %v3360, 5
      %v3479 = vrot.slane %v3478, 4
      %v3480 = vrot.slane %v2725, 5
      %v3481 = vsel %vm2076, %v3479, %v3480
      %v3482 = vrot.slane %v3480, 4
      %v3483 = vrot.slane %v2726, 5
      %v3484 = vsel %vm2076, %v3482, %v3483
      %v3485 = vrot.slane %v3361, 5
      %v3486 = vrot.slane %v3485, 4
      %v3487 = vrot.slane %v2728, 5
      %v3488 = vsel %vm2076, %v3486, %v3487
      %v3489 = vrot.slane %v3487, 4
      %v3490 = vrot.slane %v2729, 5
      %v3491 = vsel %vm2076, %v3489, %v3490
      %v3492 = vrot.slane %v3362, 5
      %v3493 = vrot.slane %v3492, 4
      %v3494 = vrot.slane %v2731, 5
      %v3495 = vsel %vm2076, %v3493, %v3494
      %v3496 = vrot.slane %v3494, 4
      %v3497 = vrot.slane %v2732, 5
      %v3498 = vsel %vm2076, %v3496, %v3497
      %v3499 = vrot.slane %v3363, 5
      %v3500 = vrot.slane %v3499, 4
      %v3501 = vrot.slane %v2734, 5
      %v3502 = vsel %vm2076, %v3500, %v3501
      %v3503 = vrot.slane %v3501, 4
      %v3504 = vrot.slane %v2735, 5
      %v3505 = vsel %vm2076, %v3503, %v3504
      %v3506 = vrot.slane %v3364, 5
      %v3507 = vrot.slane %v3506, 4
      %v3508 = vrot.slane %v2737, 5
      %v3509 = vsel %vm2076, %v3507, %v3508
      %v3510 = vrot.slane %v3508, 4
      %v3511 = vrot.slane %v2738, 5
      %v3512 = vsel %vm2076, %v3510, %v3511
      %v3513 = vrot.slane %v3365, 5
      %v3514 = vrot.slane %v3513, 4
      %v3515 = vrot.slane %v2740, 5
      %v3516 = vsel %vm2076, %v3514, %v3515
      %v3517 = vrot.slane %v3515, 4
      %v3518 = vrot.slane %v2741, 5
      %v3519 = vsel %vm2076, %v3517, %v3518
      %v3520 = vrot.slane %v3366, 5
      %v3521 = vrot.slane %v3520, 4
      %v3522 = vrot.slane %v2743, 5
      %v3523 = vsel %vm2076, %v3521, %v3522
      %v3524 = vrot.slane %v3522, 4
      %v3525 = vrot.slane %v2744, 5
      %v3526 = vsel %vm2076, %v3524, %v3525
      %s3527 = scalar_lea.vmem %s3, 10
      %v3528 = vld [vmem:[%s3527] sm:$0x3]
      %v3529 = vunpack.c.l.b16 %v3418
      %v3530 = vunpack.c.l.b16 %v3421
      %v3531 = vunpack.c.l.b16 %v3425
      %v3532 = vunpack.c.l.b16 %v3428
      %v3533 = vunpack.c.l.b16 %v3432
      %v3534 = vunpack.c.l.b16 %v3435
      %v3535 = vunpack.c.l.b16 %v3439
      %v3536 = vunpack.c.l.b16 %v3442
      %v3537 = vunpack.c.l.b16 %v3446
      %v3538 = vunpack.c.l.b16 %v3449
      %v3539 = vunpack.c.l.b16 %v3453
      %v3540 = vunpack.c.l.b16 %v3456
      %v3541 = vunpack.c.l.b16 %v3460
      %v3542 = vunpack.c.l.b16 %v3463
      %v3543 = vunpack.c.l.b16 %v3467
      %v3544 = vunpack.c.l.b16 %v3470
      %v3545 = vunpack.c.l.b16 %v3474
      %v3546 = vunpack.c.l.b16 %v3477
      %v3547 = vunpack.c.l.b16 %v3481
      %v3548 = vunpack.c.l.b16 %v3484
      %v3549 = vunpack.c.l.b16 %v3488
      %v3550 = vunpack.c.l.b16 %v3491
      %v3551 = vunpack.c.l.b16 %v3495
      %v3552 = vunpack.c.l.b16 %v3498
      %v3553 = vunpack.c.l.b16 %v3502
      %v3554 = vunpack.c.l.b16 %v3505
      %v3555 = vunpack.c.l.b16 %v3509
      %v3556 = vunpack.c.l.b16 %v3512
      %v3557 = vunpack.c.l.b16 %v3516
      %v3558 = vunpack.c.l.b16 %v3519
      %v3559 = vunpack.c.l.b16 %v3523
      %v3560 = vunpack.c.l.b16 %v3526
      %v3561 = vpack.c.b16 %v3530, %v3529
      %v3562 = vpack.c.b16 %v3532, %v3531
      %v3563 = vpack.c.b16 %v3534, %v3533
      %v3564 = vpack.c.b16 %v3536, %v3535
      %v3565 = vpack.c.b16 %v3538, %v3537
      %v3566 = vpack.c.b16 %v3540, %v3539
      %v3567 = vpack.c.b16 %v3542, %v3541
      %v3568 = vpack.c.b16 %v3544, %v3543
      %v3569 = vpack.c.b16 %v3546, %v3545
      %v3570 = vpack.c.b16 %v3548, %v3547
      %v3571 = vpack.c.b16 %v3550, %v3549
      %v3572 = vpack.c.b16 %v3552, %v3551
      %v3573 = vpack.c.b16 %v3554, %v3553
      %v3574 = vpack.c.b16 %v3556, %v3555
      %v3575 = vpack.c.b16 %v3558, %v3557
      %v3576 = vpack.c.b16 %v3560, %v3559
      %v3578 = vsel %vm1664, %v3561, 0
      %v3581 = vsel %vm1664, %v3562, 0
      %v3584 = vsel %vm1664, %v3563, 0
      %v3587 = vsel %vm1664, %v3564, 0
      %v3590 = vsel %vm1664, %v3565, 0
      %v3593 = vsel %vm1664, %v3566, 0
      %v3596 = vsel %vm1664, %v3567, 0
      %v3599 = vsel %vm1664, %v3568, 0
      %v3602 = vsel %vm1664, %v3569, 0
      %v3605 = vsel %vm1664, %v3570, 0
      %v3608 = vsel %vm1664, %v3571, 0
      %v3611 = vsel %vm1664, %v3572, 0
      %v3614 = vsel %vm1664, %v3573, 0
      %v3617 = vsel %vm1664, %v3574, 0
      %v3620 = vsel %vm1664, %v3575, 0
      %v3623 = vsel %vm1664, %v3576, 0
      %v3626 = vsel %vm1713, %v3528, 0
      %3628 = vmatpush.bf16.msra.mxu0 0
      %3629 = vmatpush.bf16.msra.mxu0 0
      %3630 = vmatpush.bf16.msra.mxu0 0
      %3631 = vmatpush.bf16.msra.mxu0 0
      %3632 = vmatpush.bf16.msra.mxu0 0
      %3633 = vmatpush.bf16.msra.mxu0 0
      %3634 = vmatpush.bf16.msra.mxu0 0
      %3635 = vmatpush.bf16.msra.mxu0 %v3626
      %3636 = vmatmul.bf16.gmra.mxu0 %v3578
      %v3637 = vpop.f32.mrf.mxu0
      %v3638 = vadd.f32 0.0, %v3637
      %v3639 = vpop.f32.mrf.mxu0
      %v3640 = vadd.f32 0.0, %v3639
      %3641 = vmatmul.bf16.gmra.mxu0 %v3581
      %v3642 = vpop.f32.mrf.mxu0
      %v3643 = vadd.f32 0.0, %v3642
      %v3644 = vpop.f32.mrf.mxu0
      %v3645 = vadd.f32 0.0, %v3644
      %3646 = vmatmul.bf16.gmra.mxu0 %v3584
      %v3647 = vpop.f32.mrf.mxu0
      %v3648 = vadd.f32 0.0, %v3647
      %v3649 = vpop.f32.mrf.mxu0
      %v3650 = vadd.f32 0.0, %v3649
      %3651 = vmatmul.bf16.gmra.mxu0 %v3587
      %v3652 = vpop.f32.mrf.mxu0
      %v3653 = vadd.f32 0.0, %v3652
      %v3654 = vpop.f32.mrf.mxu0
      %v3655 = vadd.f32 0.0, %v3654
      %3656 = vmatmul.bf16.gmra.mxu0 %v3590
      %v3657 = vpop.f32.mrf.mxu0
      %v3658 = vadd.f32 0.0, %v3657
      %v3659 = vpop.f32.mrf.mxu0
      %v3660 = vadd.f32 0.0, %v3659
      %3661 = vmatmul.bf16.gmra.mxu0 %v3593
      %v3662 = vpop.f32.mrf.mxu0
      %v3663 = vadd.f32 0.0, %v3662
      %v3664 = vpop.f32.mrf.mxu0
      %v3665 = vadd.f32 0.0, %v3664
      %3666 = vmatmul.bf16.gmra.mxu0 %v3596
      %v3667 = vpop.f32.mrf.mxu0
      %v3668 = vadd.f32 0.0, %v3667
      %v3669 = vpop.f32.mrf.mxu0
      %v3670 = vadd.f32 0.0, %v3669
      %3671 = vmatmul.bf16.gmra.mxu0 %v3599
      %v3672 = vpop.f32.mrf.mxu0
      %v3673 = vadd.f32 0.0, %v3672
      %v3674 = vpop.f32.mrf.mxu0
      %v3675 = vadd.f32 0.0, %v3674
      %3676 = vmatmul.bf16.gmra.mxu0 %v3602
      %v3677 = vpop.f32.mrf.mxu0
      %v3678 = vadd.f32 0.0, %v3677
      %v3679 = vpop.f32.mrf.mxu0
      %v3680 = vadd.f32 0.0, %v3679
      %3681 = vmatmul.bf16.gmra.mxu0 %v3605
      %v3682 = vpop.f32.mrf.mxu0
      %v3683 = vadd.f32 0.0, %v3682
      %v3684 = vpop.f32.mrf.mxu0
      %v3685 = vadd.f32 0.0, %v3684
      %3686 = vmatmul.bf16.gmra.mxu0 %v3608
      %v3687 = vpop.f32.mrf.mxu0
      %v3688 = vadd.f32 0.0, %v3687
      %v3689 = vpop.f32.mrf.mxu0
      %v3690 = vadd.f32 0.0, %v3689
      %3691 = vmatmul.bf16.gmra.mxu0 %v3611
      %v3692 = vpop.f32.mrf.mxu0
      %v3693 = vadd.f32 0.0, %v3692
      %v3694 = vpop.f32.mrf.mxu0
      %v3695 = vadd.f32 0.0, %v3694
      %3696 = vmatmul.bf16.gmra.mxu0 %v3614
      %v3697 = vpop.f32.mrf.mxu0
      %v3698 = vadd.f32 0.0, %v3697
      %v3699 = vpop.f32.mrf.mxu0
      %v3700 = vadd.f32 0.0, %v3699
      %3701 = vmatmul.bf16.gmra.mxu0 %v3617
      %v3702 = vpop.f32.mrf.mxu0
      %v3703 = vadd.f32 0.0, %v3702
      %v3704 = vpop.f32.mrf.mxu0
      %v3705 = vadd.f32 0.0, %v3704
      %3706 = vmatmul.bf16.gmra.mxu0 %v3620
      %v3707 = vpop.f32.mrf.mxu0
      %v3708 = vadd.f32 0.0, %v3707
      %v3709 = vpop.f32.mrf.mxu0
      %v3710 = vadd.f32 0.0, %v3709
      %3711 = vmatmul.bf16.gmra.mxu0 %v3623
      %v3712 = vpop.f32.mrf.mxu0
      %v3713 = vadd.f32 0.0, %v3712
      %v3714 = vpop.f32.mrf.mxu0
      %v3715 = vadd.f32 0.0, %v3714
      %3716 = vdwg.mxu0
      %v3717 = vadd.f32 %v3319, %v3638
      %v3718 = vadd.f32 %v3320, %v3640
      %v3719 = vadd.f32 %v3321, %v3643
      %v3720 = vadd.f32 %v3322, %v3645
      %v3721 = vadd.f32 %v3323, %v3648
      %v3722 = vadd.f32 %v3324, %v3650
      %v3723 = vadd.f32 %v3325, %v3653
      %v3724 = vadd.f32 %v3326, %v3655
      %v3725 = vadd.f32 %v3327, %v3658
      %v3726 = vadd.f32 %v3328, %v3660
      %v3727 = vadd.f32 %v3329, %v3663
      %v3728 = vadd.f32 %v3330, %v3665
      %v3729 = vadd.f32 %v3331, %v3668
      %v3730 = vadd.f32 %v3332, %v3670
      %v3731 = vadd.f32 %v3333, %v3673
      %v3732 = vadd.f32 %v3334, %v3675
      %v3733 = vadd.f32 %v3335, %v3678
      %v3734 = vadd.f32 %v3336, %v3680
      %v3735 = vadd.f32 %v3337, %v3683
      %v3736 = vadd.f32 %v3338, %v3685
      %v3737 = vadd.f32 %v3339, %v3688
      %v3738 = vadd.f32 %v3340, %v3690
      %v3739 = vadd.f32 %v3341, %v3693
      %v3740 = vadd.f32 %v3342, %v3695
      %v3741 = vadd.f32 %v3343, %v3698
      %v3742 = vadd.f32 %v3344, %v3700
      %v3743 = vadd.f32 %v3345, %v3703
      %v3744 = vadd.f32 %v3346, %v3705
      %v3745 = vadd.f32 %v3347, %v3708
      %v3746 = vadd.f32 %v3348, %v3710
      %v3747 = vadd.f32 %v3349, %v3713
      %v3748 = vadd.f32 %v3350, %v3715
      %s3749 = scalar_lea.vmem [#allocation2], 24
      %v3750 = vld [vmem:[%s3749] sm:$0xf]
      %v3751 = vld [vmem:[%s3749 + $0x4] sm:$0xf]
      %v3752 = vld [vmem:[%s3749 + $0xc] sm:$0xf]
      %v3753 = vld [vmem:[%s3749 + $0x10] sm:$0xf]
      %v3754 = vld [vmem:[%s3749 + $0x18] sm:$0xf]
      %v3755 = vld [vmem:[%s3749 + $0x1c] sm:$0xf]
      %v3756 = vld [vmem:[%s3749 + $0x24] sm:$0xf]
      %v3757 = vld [vmem:[%s3749 + $0x28] sm:$0xf]
      %v3758 = vld [vmem:[%s3749 + $0x30] sm:$0xf]
      %v3759 = vld [vmem:[%s3749 + $0x34] sm:$0xf]
      %v3760 = vld [vmem:[%s3749 + $0x3c] sm:$0xf]
      %v3761 = vld [vmem:[%s3749 + $0x40] sm:$0xf]
      %v3762 = vld [vmem:[%s3749 + $0x48] sm:$0xf]
      %v3763 = vld [vmem:[%s3749 + $0x4c] sm:$0xf]
      %v3764 = vld [vmem:[%s3749 + $0x54] sm:$0xf]
      %v3765 = vld [vmem:[%s3749 + $0x58] sm:$0xf]
      %v3766 = vld [vmem:[%s3749 + $0x60] sm:$0xf]
      %v3767 = vld [vmem:[%s3749 + $0x64] sm:$0xf]
      %v3768 = vld [vmem:[%s3749 + $0x6c] sm:$0xf]
      %v3769 = vld [vmem:[%s3749 + $0x70] sm:$0xf]
      %v3770 = vld [vmem:[%s3749 + $0x78] sm:$0xf]
      %v3771 = vld [vmem:[%s3749 + $0x7c] sm:$0xf]
      %v3772 = vld [vmem:[%s3749 + $0x84] sm:$0xf]
      %v3773 = vld [vmem:[%s3749 + $0x88] sm:$0xf]
      %v3774 = vld [vmem:[%s3749 + $0x90] sm:$0xf]
      %v3775 = vld [vmem:[%s3749 + $0x94] sm:$0xf]
      %v3776 = vld [vmem:[%s3749 + $0x9c] sm:$0xf]
      %v3777 = vld [vmem:[%s3749 + $0xa0] sm:$0xf]
      %v3778 = vld [vmem:[%s3749 + $0xa8] sm:$0xf]
      %v3779 = vld [vmem:[%s3749 + $0xac] sm:$0xf]
      %v3780 = vld [vmem:[%s3749 + $0xb4] sm:$0xf]
      %v3781 = vld [vmem:[%s3749 + $0xb8] sm:$0xf]
      %s3782 = scalar_lea.vmem %s3, 12
      %v3783 = vld [vmem:[%s3782] sm:$0x3]
      %v3816 = vunpack.c.l.b16 %v3750
      %v3817 = vunpack.c.l.b16 %v3751
      %v3818 = vunpack.c.l.b16 %v3752
      %v3819 = vunpack.c.l.b16 %v3753
      %v3820 = vunpack.c.l.b16 %v3754
      %v3821 = vunpack.c.l.b16 %v3755
      %v3822 = vunpack.c.l.b16 %v3756
      %v3823 = vunpack.c.l.b16 %v3757
      %v3824 = vunpack.c.l.b16 %v3758
      %v3825 = vunpack.c.l.b16 %v3759
      %v3826 = vunpack.c.l.b16 %v3760
      %v3827 = vunpack.c.l.b16 %v3761
      %v3828 = vunpack.c.l.b16 %v3762
      %v3829 = vunpack.c.l.b16 %v3763
      %v3830 = vunpack.c.l.b16 %v3764
      %v3831 = vunpack.c.l.b16 %v3765
      %v3832 = vunpack.c.l.b16 %v3766
      %v3833 = vunpack.c.l.b16 %v3767
      %v3834 = vunpack.c.l.b16 %v3768
      %v3835 = vunpack.c.l.b16 %v3769
      %v3836 = vunpack.c.l.b16 %v3770
      %v3837 = vunpack.c.l.b16 %v3771
      %v3838 = vunpack.c.l.b16 %v3772
      %v3839 = vunpack.c.l.b16 %v3773
      %v3840 = vunpack.c.l.b16 %v3774
      %v3841 = vunpack.c.l.b16 %v3775
      %v3842 = vunpack.c.l.b16 %v3776
      %v3843 = vunpack.c.l.b16 %v3777
      %v3844 = vunpack.c.l.b16 %v3778
      %v3845 = vunpack.c.l.b16 %v3779
      %v3846 = vunpack.c.l.b16 %v3780
      %v3847 = vunpack.c.l.b16 %v3781
      %v3848 = vpack.c.b16 %v3817, %v3816
      %v3849 = vpack.c.b16 %v3819, %v3818
      %v3850 = vpack.c.b16 %v3821, %v3820
      %v3851 = vpack.c.b16 %v3823, %v3822
      %v3852 = vpack.c.b16 %v3825, %v3824
      %v3853 = vpack.c.b16 %v3827, %v3826
      %v3854 = vpack.c.b16 %v3829, %v3828
      %v3855 = vpack.c.b16 %v3831, %v3830
      %v3856 = vpack.c.b16 %v3833, %v3832
      %v3857 = vpack.c.b16 %v3835, %v3834
      %v3858 = vpack.c.b16 %v3837, %v3836
      %v3859 = vpack.c.b16 %v3839, %v3838
      %v3860 = vpack.c.b16 %v3841, %v3840
      %v3861 = vpack.c.b16 %v3843, %v3842
      %v3862 = vpack.c.b16 %v3845, %v3844
      %v3863 = vpack.c.b16 %v3847, %v3846
      %v3865 = vsel %vm1664, %v3848, 0
      %v3868 = vsel %vm1664, %v3849, 0
      %v3871 = vsel %vm1664, %v3850, 0
      %v3874 = vsel %vm1664, %v3851, 0
      %v3877 = vsel %vm1664, %v3852, 0
      %v3880 = vsel %vm1664, %v3853, 0
      %v3883 = vsel %vm1664, %v3854, 0
      %v3886 = vsel %vm1664, %v3855, 0
      %v3889 = vsel %vm1664, %v3856, 0
      %v3892 = vsel %vm1664, %v3857, 0
      %v3895 = vsel %vm1664, %v3858, 0
      %v3898 = vsel %vm1664, %v3859, 0
      %v3901 = vsel %vm1664, %v3860, 0
      %v3904 = vsel %vm1664, %v3861, 0
      %v3907 = vsel %vm1664, %v3862, 0
      %v3910 = vsel %vm1664, %v3863, 0
      %v3913 = vsel %vm1713, %v3783, 0
      %3915 = vmatpush.bf16.msra.mxu0 0
      %3916 = vmatpush.bf16.msra.mxu0 0
      %3917 = vmatpush.bf16.msra.mxu0 0
      %3918 = vmatpush.bf16.msra.mxu0 0
      %3919 = vmatpush.bf16.msra.mxu0 0
      %3920 = vmatpush.bf16.msra.mxu0 0
      %3921 = vmatpush.bf16.msra.mxu0 0
      %3922 = vmatpush.bf16.msra.mxu0 %v3913
      %3923 = vmatmul.bf16.gmra.mxu0 %v3865
      %v3924 = vpop.f32.mrf.mxu0
      %v3925 = vadd.f32 0.0, %v3924
      %v3926 = vpop.f32.mrf.mxu0
      %v3927 = vadd.f32 0.0, %v3926
      %3928 = vmatmul.bf16.gmra.mxu0 %v3868
      %v3929 = vpop.f32.mrf.mxu0
      %v3930 = vadd.f32 0.0, %v3929
      %v3931 = vpop.f32.mrf.mxu0
      %v3932 = vadd.f32 0.0, %v3931
      %3933 = vmatmul.bf16.gmra.mxu0 %v3871
      %v3934 = vpop.f32.mrf.mxu0
      %v3935 = vadd.f32 0.0, %v3934
      %v3936 = vpop.f32.mrf.mxu0
      %v3937 = vadd.f32 0.0, %v3936
      %3938 = vmatmul.bf16.gmra.mxu0 %v3874
      %v3939 = vpop.f32.mrf.mxu0
      %v3940 = vadd.f32 0.0, %v3939
      %v3941 = vpop.f32.mrf.mxu0
      %v3942 = vadd.f32 0.0, %v3941
      %3943 = vmatmul.bf16.gmra.mxu0 %v3877
      %v3944 = vpop.f32.mrf.mxu0
      %v3945 = vadd.f32 0.0, %v3944
      %v3946 = vpop.f32.mrf.mxu0
      %v3947 = vadd.f32 0.0, %v3946
      %3948 = vmatmul.bf16.gmra.mxu0 %v3880
      %v3949 = vpop.f32.mrf.mxu0
      %v3950 = vadd.f32 0.0, %v3949
      %v3951 = vpop.f32.mrf.mxu0
      %v3952 = vadd.f32 0.0, %v3951
      %3953 = vmatmul.bf16.gmra.mxu0 %v3883
      %v3954 = vpop.f32.mrf.mxu0
      %v3955 = vadd.f32 0.0, %v3954
      %v3956 = vpop.f32.mrf.mxu0
      %v3957 = vadd.f32 0.0, %v3956
      %3958 = vmatmul.bf16.gmra.mxu0 %v3886
      %v3959 = vpop.f32.mrf.mxu0
      %v3960 = vadd.f32 0.0, %v3959
      %v3961 = vpop.f32.mrf.mxu0
      %v3962 = vadd.f32 0.0, %v3961
      %3963 = vmatmul.bf16.gmra.mxu0 %v3889
      %v3964 = vpop.f32.mrf.mxu0
      %v3965 = vadd.f32 0.0, %v3964
      %v3966 = vpop.f32.mrf.mxu0
      %v3967 = vadd.f32 0.0, %v3966
      %3968 = vmatmul.bf16.gmra.mxu0 %v3892
      %v3969 = vpop.f32.mrf.mxu0
      %v3970 = vadd.f32 0.0, %v3969
      %v3971 = vpop.f32.mrf.mxu0
      %v3972 = vadd.f32 0.0, %v3971
      %3973 = vmatmul.bf16.gmra.mxu0 %v3895
      %v3974 = vpop.f32.mrf.mxu0
      %v3975 = vadd.f32 0.0, %v3974
      %v3976 = vpop.f32.mrf.mxu0
      %v3977 = vadd.f32 0.0, %v3976
      %3978 = vmatmul.bf16.gmra.mxu0 %v3898
      %v3979 = vpop.f32.mrf.mxu0
      %v3980 = vadd.f32 0.0, %v3979
      %v3981 = vpop.f32.mrf.mxu0
      %v3982 = vadd.f32 0.0, %v3981
      %3983 = vmatmul.bf16.gmra.mxu0 %v3901
      %v3984 = vpop.f32.mrf.mxu0
      %v3985 = vadd.f32 0.0, %v3984
      %v3986 = vpop.f32.mrf.mxu0
      %v3987 = vadd.f32 0.0, %v3986
      %3988 = vmatmul.bf16.gmra.mxu0 %v3904
      %v3989 = vpop.f32.mrf.mxu0
      %v3990 = vadd.f32 0.0, %v3989
      %v3991 = vpop.f32.mrf.mxu0
      %v3992 = vadd.f32 0.0, %v3991
      %3993 = vmatmul.bf16.gmra.mxu0 %v3907
      %v3994 = vpop.f32.mrf.mxu0
      %v3995 = vadd.f32 0.0, %v3994
      %v3996 = vpop.f32.mrf.mxu0
      %v3997 = vadd.f32 0.0, %v3996
      %3998 = vmatmul.bf16.gmra.mxu0 %v3910
      %v3999 = vpop.f32.mrf.mxu0
      %v4000 = vadd.f32 0.0, %v3999
      %v4001 = vpop.f32.mrf.mxu0
      %v4002 = vadd.f32 0.0, %v4001
      %4003 = vdwg.mxu0
      %v4004 = vadd.f32 %v3717, %v3925
      %v4005 = vadd.f32 %v3718, %v3927
      %v4006 = vadd.f32 %v3719, %v3930
      %v4007 = vadd.f32 %v3720, %v3932
      %v4008 = vadd.f32 %v3721, %v3935
      %v4009 = vadd.f32 %v3722, %v3937
      %v4010 = vadd.f32 %v3723, %v3940
      %v4011 = vadd.f32 %v3724, %v3942
      %v4012 = vadd.f32 %v3725, %v3945
      %v4013 = vadd.f32 %v3726, %v3947
      %v4014 = vadd.f32 %v3727, %v3950
      %v4015 = vadd.f32 %v3728, %v3952
      %v4016 = vadd.f32 %v3729, %v3955
      %v4017 = vadd.f32 %v3730, %v3957
      %v4018 = vadd.f32 %v3731, %v3960
      %v4019 = vadd.f32 %v3732, %v3962
      %v4020 = vadd.f32 %v3733, %v3965
      %v4021 = vadd.f32 %v3734, %v3967
      %v4022 = vadd.f32 %v3735, %v3970
      %v4023 = vadd.f32 %v3736, %v3972
      %v4024 = vadd.f32 %v3737, %v3975
      %v4025 = vadd.f32 %v3738, %v3977
      %v4026 = vadd.f32 %v3739, %v3980
      %v4027 = vadd.f32 %v3740, %v3982
      %v4028 = vadd.f32 %v3741, %v3985
      %v4029 = vadd.f32 %v3742, %v3987
      %v4030 = vadd.f32 %v3743, %v3990
      %v4031 = vadd.f32 %v3744, %v3992
      %v4032 = vadd.f32 %v3745, %v3995
      %v4033 = vadd.f32 %v3746, %v3997
      %v4034 = vadd.f32 %v3747, %v4000
      %v4035 = vadd.f32 %v3748, %v4002
      %v4036 = vld [vmem:[%s3749] sm:$0xf]
      %v4037 = vld [vmem:[%s3749 + $0x4] sm:$0xf]
      %v4038 = vld [vmem:[%s3749 + $0x8] sm:$0x1]
      %v4039 = vld [vmem:[%s3749 + $0xc] sm:$0xf]
      %v4040 = vld [vmem:[%s3749 + $0x10] sm:$0xf]
      %v4041 = vld [vmem:[%s3749 + $0x14] sm:$0x1]
      %v4042 = vld [vmem:[%s3749 + $0x18] sm:$0xf]
      %v4043 = vld [vmem:[%s3749 + $0x1c] sm:$0xf]
      %v4044 = vld [vmem:[%s3749 + $0x20] sm:$0x1]
      %v4045 = vld [vmem:[%s3749 + $0x24] sm:$0xf]
      %v4046 = vld [vmem:[%s3749 + $0x28] sm:$0xf]
      %v4047 = vld [vmem:[%s3749 + $0x2c] sm:$0x1]
      %v4048 = vld [vmem:[%s3749 + $0x30] sm:$0xf]
      %v4049 = vld [vmem:[%s3749 + $0x34] sm:$0xf]
      %v4050 = vld [vmem:[%s3749 + $0x38] sm:$0x1]
      %v4051 = vld [vmem:[%s3749 + $0x3c] sm:$0xf]
      %v4052 = vld [vmem:[%s3749 + $0x40] sm:$0xf]
      %v4053 = vld [vmem:[%s3749 + $0x44] sm:$0x1]
      %v4054 = vld [vmem:[%s3749 + $0x48] sm:$0xf]
      %v4055 = vld [vmem:[%s3749 + $0x4c] sm:$0xf]
      %v4056 = vld [vmem:[%s3749 + $0x50] sm:$0x1]
      %v4057 = vld [vmem:[%s3749 + $0x54] sm:$0xf]
      %v4058 = vld [vmem:[%s3749 + $0x58] sm:$0xf]
      %v4059 = vld [vmem:[%s3749 + $0x5c] sm:$0x1]
      %v4060 = vld [vmem:[%s3749 + $0x60] sm:$0xf]
      %v4061 = vld [vmem:[%s3749 + $0x64] sm:$0xf]
      %v4062 = vld [vmem:[%s3749 + $0x68] sm:$0x1]
      %v4063 = vld [vmem:[%s3749 + $0x6c] sm:$0xf]
      %v4064 = vld [vmem:[%s3749 + $0x70] sm:$0xf]
      %v4065 = vld [vmem:[%s3749 + $0x74] sm:$0x1]
      %v4066 = vld [vmem:[%s3749 + $0x78] sm:$0xf]
      %v4067 = vld [vmem:[%s3749 + $0x7c] sm:$0xf]
      %v4068 = vld [vmem:[%s3749 + $0x80] sm:$0x1]
      %v4069 = vld [vmem:[%s3749 + $0x84] sm:$0xf]
      %v4070 = vld [vmem:[%s3749 + $0x88] sm:$0xf]
      %v4071 = vld [vmem:[%s3749 + $0x8c] sm:$0x1]
      %v4072 = vld [vmem:[%s3749 + $0x90] sm:$0xf]
      %v4073 = vld [vmem:[%s3749 + $0x94] sm:$0xf]
      %v4074 = vld [vmem:[%s3749 + $0x98] sm:$0x1]
      %v4075 = vld [vmem:[%s3749 + $0x9c] sm:$0xf]
      %v4076 = vld [vmem:[%s3749 + $0xa0] sm:$0xf]
      %v4077 = vld [vmem:[%s3749 + $0xa4] sm:$0x1]
      %v4078 = vld [vmem:[%s3749 + $0xa8] sm:$0xf]
      %v4079 = vld [vmem:[%s3749 + $0xac] sm:$0xf]
      %v4080 = vld [vmem:[%s3749 + $0xb0] sm:$0x1]
      %v4081 = vld [vmem:[%s3749 + $0xb4] sm:$0xf]
      %v4082 = vld [vmem:[%s3749 + $0xb8] sm:$0xf]
      %v4083 = vld [vmem:[%s3749 + $0xbc] sm:$0x1]
      %v4085 = vshrl.u32 %v4036, 16
      %v4087 = vrot.slane %v4085, 4
      %v4088 = vshll.u32 %v4036, 16
      %v4090 = vrot.slane %v4088, 5
      %v4091 = vor.u32 %v4087, %v4090
      %v4092 = vrot.slane %v4091, 4
      %v4094 = vshll.u32 %v4037, 16
      %v4096 = vrot.slane %v4094, 5
      %v4097 = vsel %vm1229, %v4092, %v4096
      %v4098 = vshrl.u32 %v4037, 16
      %v4100 = vrot.slane %v4098, 4
      %v4101 = vor.u32 %v4100, %v4096
      %v4102 = vrot.slane %v4101, 4
      %v4104 = vshll.u32 %v4038, 16
      %v4106 = vrot.slane %v4104, 5
      %v4107 = vsel %vm1229, %v4102, %v4106
      %v4109 = vshrl.u32 %v4039, 16
      %v4111 = vrot.slane %v4109, 4
      %v4112 = vshll.u32 %v4039, 16
      %v4114 = vrot.slane %v4112, 5
      %v4115 = vor.u32 %v4111, %v4114
      %v4116 = vrot.slane %v4115, 4
      %v4118 = vshll.u32 %v4040, 16
      %v4120 = vrot.slane %v4118, 5
      %v4121 = vsel %vm1229, %v4116, %v4120
      %v4122 = vshrl.u32 %v4040, 16
      %v4124 = vrot.slane %v4122, 4
      %v4125 = vor.u32 %v4124, %v4120
      %v4126 = vrot.slane %v4125, 4
      %v4128 = vshll.u32 %v4041, 16
      %v4130 = vrot.slane %v4128, 5
      %v4131 = vsel %vm1229, %v4126, %v4130
      %v4133 = vshrl.u32 %v4042, 16
      %v4135 = vrot.slane %v4133, 4
      %v4136 = vshll.u32 %v4042, 16
      %v4138 = vrot.slane %v4136, 5
      %v4139 = vor.u32 %v4135, %v4138
      %v4140 = vrot.slane %v4139, 4
      %v4142 = vshll.u32 %v4043, 16
      %v4144 = vrot.slane %v4142, 5
      %v4145 = vsel %vm1229, %v4140, %v4144
      %v4146 = vshrl.u32 %v4043, 16
      %v4148 = vrot.slane %v4146, 4
      %v4149 = vor.u32 %v4148, %v4144
      %v4150 = vrot.slane %v4149, 4
      %v4152 = vshll.u32 %v4044, 16
      %v4154 = vrot.slane %v4152, 5
      %v4155 = vsel %vm1229, %v4150, %v4154
      %v4157 = vshrl.u32 %v4045, 16
      %v4159 = vrot.slane %v4157, 4
      %v4160 = vshll.u32 %v4045, 16
      %v4162 = vrot.slane %v4160, 5
      %v4163 = vor.u32 %v4159, %v4162
      %v4164 = vrot.slane %v4163, 4
      %v4166 = vshll.u32 %v4046, 16
      %v4168 = vrot.slane %v4166, 5
      %v4169 = vsel %vm1229, %v4164, %v4168
      %v4170 = vshrl.u32 %v4046, 16
      %v4172 = vrot.slane %v4170, 4
      %v4173 = vor.u32 %v4172, %v4168
      %v4174 = vrot.slane %v4173, 4
      %v4176 = vshll.u32 %v4047, 16
      %v4178 = vrot.slane %v4176, 5
      %v4179 = vsel %vm1229, %v4174, %v4178
      %v4181 = vshrl.u32 %v4048, 16
      %v4183 = vrot.slane %v4181, 4
      %v4184 = vshll.u32 %v4048, 16
      %v4186 = vrot.slane %v4184, 5
      %v4187 = vor.u32 %v4183, %v4186
      %v4188 = vrot.slane %v4187, 4
      %v4190 = vshll.u32 %v4049, 16
      %v4192 = vrot.slane %v4190, 5
      %v4193 = vsel %vm1229, %v4188, %v4192
      %v4194 = vshrl.u32 %v4049, 16
      %v4196 = vrot.slane %v4194, 4
      %v4197 = vor.u32 %v4196, %v4192
      %v4198 = vrot.slane %v4197, 4
      %v4200 = vshll.u32 %v4050, 16
      %v4202 = vrot.slane %v4200, 5
      %v4203 = vsel %vm1229, %v4198, %v4202
      %v4205 = vshrl.u32 %v4051, 16
      %v4207 = vrot.slane %v4205, 4
      %v4208 = vshll.u32 %v4051, 16
      %v4210 = vrot.slane %v4208, 5
      %v4211 = vor.u32 %v4207, %v4210
      %v4212 = vrot.slane %v4211, 4
      %v4214 = vshll.u32 %v4052, 16
      %v4216 = vrot.slane %v4214, 5
      %v4217 = vsel %vm1229, %v4212, %v4216
      %v4218 = vshrl.u32 %v4052, 16
      %v4220 = vrot.slane %v4218, 4
      %v4221 = vor.u32 %v4220, %v4216
      %v4222 = vrot.slane %v4221, 4
      %v4224 = vshll.u32 %v4053, 16
      %v4226 = vrot.slane %v4224, 5
      %v4227 = vsel %vm1229, %v4222, %v4226
      %v4229 = vshrl.u32 %v4054, 16
      %v4231 = vrot.slane %v4229, 4
      %v4232 = vshll.u32 %v4054, 16
      %v4234 = vrot.slane %v4232, 5
      %v4235 = vor.u32 %v4231, %v4234
      %v4236 = vrot.slane %v4235, 4
      %v4238 = vshll.u32 %v4055, 16
      %v4240 = vrot.slane %v4238, 5
      %v4241 = vsel %vm1229, %v4236, %v4240
      %v4242 = vshrl.u32 %v4055, 16
      %v4244 = vrot.slane %v4242, 4
      %v4245 = vor.u32 %v4244, %v4240
      %v4246 = vrot.slane %v4245, 4
      %v4248 = vshll.u32 %v4056, 16
      %v4250 = vrot.slane %v4248, 5
      %v4251 = vsel %vm1229, %v4246, %v4250
      %v4253 = vshrl.u32 %v4057, 16
      %v4255 = vrot.slane %v4253, 4
      %v4256 = vshll.u32 %v4057, 16
      %v4258 = vrot.slane %v4256, 5
      %v4259 = vor.u32 %v4255, %v4258
      %v4260 = vrot.slane %v4259, 4
      %v4262 = vshll.u32 %v4058, 16
      %v4264 = vrot.slane %v4262, 5
      %v4265 = vsel %vm1229, %v4260, %v4264
      %v4266 = vshrl.u32 %v4058, 16
      %v4268 = vrot.slane %v4266, 4
      %v4269 = vor.u32 %v4268, %v4264
      %v4270 = vrot.slane %v4269, 4
      %v4272 = vshll.u32 %v4059, 16
      %v4274 = vrot.slane %v4272, 5
      %v4275 = vsel %vm1229, %v4270, %v4274
      %v4277 = vshrl.u32 %v4060, 16
      %v4279 = vrot.slane %v4277, 4
      %v4280 = vshll.u32 %v4060, 16
      %v4282 = vrot.slane %v4280, 5
      %v4283 = vor.u32 %v4279, %v4282
      %v4284 = vrot.slane %v4283, 4
      %v4286 = vshll.u32 %v4061, 16
      %v4288 = vrot.slane %v4286, 5
      %v4289 = vsel %vm1229, %v4284, %v4288
      %v4290 = vshrl.u32 %v4061, 16
      %v4292 = vrot.slane %v4290, 4
      %v4293 = vor.u32 %v4292, %v4288
      %v4294 = vrot.slane %v4293, 4
      %v4296 = vshll.u32 %v4062, 16
      %v4298 = vrot.slane %v4296, 5
      %v4299 = vsel %vm1229, %v4294, %v4298
      %v4301 = vshrl.u32 %v4063, 16
      %v4303 = vrot.slane %v4301, 4
      %v4304 = vshll.u32 %v4063, 16
      %v4306 = vrot.slane %v4304, 5
      %v4307 = vor.u32 %v4303, %v4306
      %v4308 = vrot.slane %v4307, 4
      %v4310 = vshll.u32 %v4064, 16
      %v4312 = vrot.slane %v4310, 5
      %v4313 = vsel %vm1229, %v4308, %v4312
      %v4314 = vshrl.u32 %v4064, 16
      %v4316 = vrot.slane %v4314, 4
      %v4317 = vor.u32 %v4316, %v4312
      %v4318 = vrot.slane %v4317, 4
      %v4320 = vshll.u32 %v4065, 16
      %v4322 = vrot.slane %v4320, 5
      %v4323 = vsel %vm1229, %v4318, %v4322
      %v4325 = vshrl.u32 %v4066, 16
      %v4327 = vrot.slane %v4325, 4
      %v4328 = vshll.u32 %v4066, 16
      %v4330 = vrot.slane %v4328, 5
      %v4331 = vor.u32 %v4327, %v4330
      %v4332 = vrot.slane %v4331, 4
      %v4334 = vshll.u32 %v4067, 16
      %v4336 = vrot.slane %v4334, 5
      %v4337 = vsel %vm1229, %v4332, %v4336
      %v4338 = vshrl.u32 %v4067, 16
      %v4340 = vrot.slane %v4338, 4
      %v4341 = vor.u32 %v4340, %v4336
      %v4342 = vrot.slane %v4341, 4
      %v4344 = vshll.u32 %v4068, 16
      %v4346 = vrot.slane %v4344, 5
      %v4347 = vsel %vm1229, %v4342, %v4346
      %v4349 = vshrl.u32 %v4069, 16
      %v4351 = vrot.slane %v4349, 4
      %v4352 = vshll.u32 %v4069, 16
      %v4354 = vrot.slane %v4352, 5
      %v4355 = vor.u32 %v4351, %v4354
      %v4356 = vrot.slane %v4355, 4
      %v4358 = vshll.u32 %v4070, 16
      %v4360 = vrot.slane %v4358, 5
      %v4361 = vsel %vm1229, %v4356, %v4360
      %v4362 = vshrl.u32 %v4070, 16
      %v4364 = vrot.slane %v4362, 4
      %v4365 = vor.u32 %v4364, %v4360
      %v4366 = vrot.slane %v4365, 4
      %v4368 = vshll.u32 %v4071, 16
      %v4370 = vrot.slane %v4368, 5
      %v4371 = vsel %vm1229, %v4366, %v4370
      %v4373 = vshrl.u32 %v4072, 16
      %v4375 = vrot.slane %v4373, 4
      %v4376 = vshll.u32 %v4072, 16
      %v4378 = vrot.slane %v4376, 5
      %v4379 = vor.u32 %v4375, %v4378
      %v4380 = vrot.slane %v4379, 4
      %v4382 = vshll.u32 %v4073, 16
      %v4384 = vrot.slane %v4382, 5
      %v4385 = vsel %vm1229, %v4380, %v4384
      %v4386 = vshrl.u32 %v4073, 16
      %v4388 = vrot.slane %v4386, 4
      %v4389 = vor.u32 %v4388, %v4384
      %v4390 = vrot.slane %v4389, 4
      %v4392 = vshll.u32 %v4074, 16
      %v4394 = vrot.slane %v4392, 5
      %v4395 = vsel %vm1229, %v4390, %v4394
      %v4397 = vshrl.u32 %v4075, 16
      %v4399 = vrot.slane %v4397, 4
      %v4400 = vshll.u32 %v4075, 16
      %v4402 = vrot.slane %v4400, 5
      %v4403 = vor.u32 %v4399, %v4402
      %v4404 = vrot.slane %v4403, 4
      %v4406 = vshll.u32 %v4076, 16
      %v4408 = vrot.slane %v4406, 5
      %v4409 = vsel %vm1229, %v4404, %v4408
      %v4410 = vshrl.u32 %v4076, 16
      %v4412 = vrot.slane %v4410, 4
      %v4413 = vor.u32 %v4412, %v4408
      %v4414 = vrot.slane %v4413, 4
      %v4416 = vshll.u32 %v4077, 16
      %v4418 = vrot.slane %v4416, 5
      %v4419 = vsel %vm1229, %v4414, %v4418
      %v4421 = vshrl.u32 %v4078, 16
      %v4423 = vrot.slane %v4421, 4
      %v4424 = vshll.u32 %v4078, 16
      %v4426 = vrot.slane %v4424, 5
      %v4427 = vor.u32 %v4423, %v4426
      %v4428 = vrot.slane %v4427, 4
      %v4430 = vshll.u32 %v4079, 16
      %v4432 = vrot.slane %v4430, 5
      %v4433 = vsel %vm1229, %v4428, %v4432
      %v4434 = vshrl.u32 %v4079, 16
      %v4436 = vrot.slane %v4434, 4
      %v4437 = vor.u32 %v4436, %v4432
      %v4438 = vrot.slane %v4437, 4
      %v4440 = vshll.u32 %v4080, 16
      %v4442 = vrot.slane %v4440, 5
      %v4443 = vsel %vm1229, %v4438, %v4442
      %v4445 = vshrl.u32 %v4081, 16
      %v4447 = vrot.slane %v4445, 4
      %v4448 = vshll.u32 %v4081, 16
      %v4450 = vrot.slane %v4448, 5
      %v4451 = vor.u32 %v4447, %v4450
      %v4452 = vrot.slane %v4451, 4
      %v4454 = vshll.u32 %v4082, 16
      %v4456 = vrot.slane %v4454, 5
      %v4457 = vsel %vm1229, %v4452, %v4456
      %v4458 = vshrl.u32 %v4082, 16
      %v4460 = vrot.slane %v4458, 4
      %v4461 = vor.u32 %v4460, %v4456
      %v4462 = vrot.slane %v4461, 4
      %v4464 = vshll.u32 %v4083, 16
      %v4466 = vrot.slane %v4464, 5
      %v4467 = vsel %vm1229, %v4462, %v4466
      %s4468 = scalar_lea.vmem %s3, 14
      %v4469 = vld [vmem:[%s4468] sm:$0x3]
      %v4470 = vunpack.c.l.b16 %v4097
      %v4471 = vunpack.c.l.b16 %v4107
      %v4472 = vunpack.c.l.b16 %v4121
      %v4473 = vunpack.c.l.b16 %v4131
      %v4474 = vunpack.c.l.b16 %v4145
      %v4475 = vunpack.c.l.b16 %v4155
      %v4476 = vunpack.c.l.b16 %v4169
      %v4477 = vunpack.c.l.b16 %v4179
      %v4478 = vunpack.c.l.b16 %v4193
      %v4479 = vunpack.c.l.b16 %v4203
      %v4480 = vunpack.c.l.b16 %v4217
      %v4481 = vunpack.c.l.b16 %v4227
      %v4482 = vunpack.c.l.b16 %v4241
      %v4483 = vunpack.c.l.b16 %v4251
      %v4484 = vunpack.c.l.b16 %v4265
      %v4485 = vunpack.c.l.b16 %v4275
      %v4486 = vunpack.c.l.b16 %v4289
      %v4487 = vunpack.c.l.b16 %v4299
      %v4488 = vunpack.c.l.b16 %v4313
      %v4489 = vunpack.c.l.b16 %v4323
      %v4490 = vunpack.c.l.b16 %v4337
      %v4491 = vunpack.c.l.b16 %v4347
      %v4492 = vunpack.c.l.b16 %v4361
      %v4493 = vunpack.c.l.b16 %v4371
      %v4494 = vunpack.c.l.b16 %v4385
      %v4495 = vunpack.c.l.b16 %v4395
      %v4496 = vunpack.c.l.b16 %v4409
      %v4497 = vunpack.c.l.b16 %v4419
      %v4498 = vunpack.c.l.b16 %v4433
      %v4499 = vunpack.c.l.b16 %v4443
      %v4500 = vunpack.c.l.b16 %v4457
      %v4501 = vunpack.c.l.b16 %v4467
      %v4502 = vpack.c.b16 %v4471, %v4470
      %v4503 = vpack.c.b16 %v4473, %v4472
      %v4504 = vpack.c.b16 %v4475, %v4474
      %v4505 = vpack.c.b16 %v4477, %v4476
      %v4506 = vpack.c.b16 %v4479, %v4478
      %v4507 = vpack.c.b16 %v4481, %v4480
      %v4508 = vpack.c.b16 %v4483, %v4482
      %v4509 = vpack.c.b16 %v4485, %v4484
      %v4510 = vpack.c.b16 %v4487, %v4486
      %v4511 = vpack.c.b16 %v4489, %v4488
      %v4512 = vpack.c.b16 %v4491, %v4490
      %v4513 = vpack.c.b16 %v4493, %v4492
      %v4514 = vpack.c.b16 %v4495, %v4494
      %v4515 = vpack.c.b16 %v4497, %v4496
      %v4516 = vpack.c.b16 %v4499, %v4498
      %v4517 = vpack.c.b16 %v4501, %v4500
      %v4519 = vsel %vm1664, %v4502, 0
      %v4522 = vsel %vm1664, %v4503, 0
      %v4525 = vsel %vm1664, %v4504, 0
      %v4528 = vsel %vm1664, %v4505, 0
      %v4531 = vsel %vm1664, %v4506, 0
      %v4534 = vsel %vm1664, %v4507, 0
      %v4537 = vsel %vm1664, %v4508, 0
      %v4540 = vsel %vm1664, %v4509, 0
      %v4543 = vsel %vm1664, %v4510, 0
      %v4546 = vsel %vm1664, %v4511, 0
      %v4549 = vsel %vm1664, %v4512, 0
      %v4552 = vsel %vm1664, %v4513, 0
      %v4555 = vsel %vm1664, %v4514, 0
      %v4558 = vsel %vm1664, %v4515, 0
      %v4561 = vsel %vm1664, %v4516, 0
      %v4564 = vsel %vm1664, %v4517, 0
      %v4567 = vsel %vm1713, %v4469, 0
      %4569 = vmatpush.bf16.msra.mxu0 0
      %4570 = vmatpush.bf16.msra.mxu0 0
      %4571 = vmatpush.bf16.msra.mxu0 0
      %4572 = vmatpush.bf16.msra.mxu0 0
      %4573 = vmatpush.bf16.msra.mxu0 0
      %4574 = vmatpush.bf16.msra.mxu0 0
      %4575 = vmatpush.bf16.msra.mxu0 0
      %4576 = vmatpush.bf16.msra.mxu0 %v4567
      %4577 = vmatmul.bf16.gmra.mxu0 %v4519
      %v4578 = vpop.f32.mrf.mxu0
      %v4579 = vadd.f32 0.0, %v4578
      %v4580 = vpop.f32.mrf.mxu0
      %v4581 = vadd.f32 0.0, %v4580
      %4582 = vmatmul.bf16.gmra.mxu0 %v4522
      %v4583 = vpop.f32.mrf.mxu0
      %v4584 = vadd.f32 0.0, %v4583
      %v4585 = vpop.f32.mrf.mxu0
      %v4586 = vadd.f32 0.0, %v4585
      %4587 = vmatmul.bf16.gmra.mxu0 %v4525
      %v4588 = vpop.f32.mrf.mxu0
      %v4589 = vadd.f32 0.0, %v4588
      %v4590 = vpop.f32.mrf.mxu0
      %v4591 = vadd.f32 0.0, %v4590
      %4592 = vmatmul.bf16.gmra.mxu0 %v4528
      %v4593 = vpop.f32.mrf.mxu0
      %v4594 = vadd.f32 0.0, %v4593
      %v4595 = vpop.f32.mrf.mxu0
      %v4596 = vadd.f32 0.0, %v4595
      %4597 = vmatmul.bf16.gmra.mxu0 %v4531
      %v4598 = vpop.f32.mrf.mxu0
      %v4599 = vadd.f32 0.0, %v4598
      %v4600 = vpop.f32.mrf.mxu0
      %v4601 = vadd.f32 0.0, %v4600
      %4602 = vmatmul.bf16.gmra.mxu0 %v4534
      %v4603 = vpop.f32.mrf.mxu0
      %v4604 = vadd.f32 0.0, %v4603
      %v4605 = vpop.f32.mrf.mxu0
      %v4606 = vadd.f32 0.0, %v4605
      %4607 = vmatmul.bf16.gmra.mxu0 %v4537
      %v4608 = vpop.f32.mrf.mxu0
      %v4609 = vadd.f32 0.0, %v4608
      %v4610 = vpop.f32.mrf.mxu0
      %v4611 = vadd.f32 0.0, %v4610
      %4612 = vmatmul.bf16.gmra.mxu0 %v4540
      %v4613 = vpop.f32.mrf.mxu0
      %v4614 = vadd.f32 0.0, %v4613
      %v4615 = vpop.f32.mrf.mxu0
      %v4616 = vadd.f32 0.0, %v4615
      %4617 = vmatmul.bf16.gmra.mxu0 %v4543
      %v4618 = vpop.f32.mrf.mxu0
      %v4619 = vadd.f32 0.0, %v4618
      %v4620 = vpop.f32.mrf.mxu0
      %v4621 = vadd.f32 0.0, %v4620
      %4622 = vmatmul.bf16.gmra.mxu0 %v4546
      %v4623 = vpop.f32.mrf.mxu0
      %v4624 = vadd.f32 0.0, %v4623
      %v4625 = vpop.f32.mrf.mxu0
      %v4626 = vadd.f32 0.0, %v4625
      %4627 = vmatmul.bf16.gmra.mxu0 %v4549
      %v4628 = vpop.f32.mrf.mxu0
      %v4629 = vadd.f32 0.0, %v4628
      %v4630 = vpop.f32.mrf.mxu0
      %v4631 = vadd.f32 0.0, %v4630
      %4632 = vmatmul.bf16.gmra.mxu0 %v4552
      %v4633 = vpop.f32.mrf.mxu0
      %v4634 = vadd.f32 0.0, %v4633
      %v4635 = vpop.f32.mrf.mxu0
      %v4636 = vadd.f32 0.0, %v4635
      %4637 = vmatmul.bf16.gmra.mxu0 %v4555
      %v4638 = vpop.f32.mrf.mxu0
      %v4639 = vadd.f32 0.0, %v4638
      %v4640 = vpop.f32.mrf.mxu0
      %v4641 = vadd.f32 0.0, %v4640
      %4642 = vmatmul.bf16.gmra.mxu0 %v4558
      %v4643 = vpop.f32.mrf.mxu0
      %v4644 = vadd.f32 0.0, %v4643
      %v4645 = vpop.f32.mrf.mxu0
      %v4646 = vadd.f32 0.0, %v4645
      %4647 = vmatmul.bf16.gmra.mxu0 %v4561
      %v4648 = vpop.f32.mrf.mxu0
      %v4649 = vadd.f32 0.0, %v4648
      %v4650 = vpop.f32.mrf.mxu0
      %v4651 = vadd.f32 0.0, %v4650
      %4652 = vmatmul.bf16.gmra.mxu0 %v4564
      %v4653 = vpop.f32.mrf.mxu0
      %v4654 = vadd.f32 0.0, %v4653
      %v4655 = vpop.f32.mrf.mxu0
      %v4656 = vadd.f32 0.0, %v4655
      %4657 = vdwg.mxu0
      %v4658 = vadd.f32 %v4004, %v4579
      %v4659 = vadd.f32 %v4005, %v4581
      %v4660 = vadd.f32 %v4006, %v4584
      %v4661 = vadd.f32 %v4007, %v4586
      %v4662 = vadd.f32 %v4008, %v4589
      %v4663 = vadd.f32 %v4009, %v4591
      %v4664 = vadd.f32 %v4010, %v4594
      %v4665 = vadd.f32 %v4011, %v4596
      %v4666 = vadd.f32 %v4012, %v4599
      %v4667 = vadd.f32 %v4013, %v4601
      %v4668 = vadd.f32 %v4014, %v4604
      %v4669 = vadd.f32 %v4015, %v4606
      %v4670 = vadd.f32 %v4016, %v4609
      %v4671 = vadd.f32 %v4017, %v4611
      %v4672 = vadd.f32 %v4018, %v4614
      %v4673 = vadd.f32 %v4019, %v4616
      %v4674 = vadd.f32 %v4020, %v4619
      %v4675 = vadd.f32 %v4021, %v4621
      %v4676 = vadd.f32 %v4022, %v4624
      %v4677 = vadd.f32 %v4023, %v4626
      %v4678 = vadd.f32 %v4024, %v4629
      %v4679 = vadd.f32 %v4025, %v4631
      %v4680 = vadd.f32 %v4026, %v4634
      %v4681 = vadd.f32 %v4027, %v4636
      %v4682 = vadd.f32 %v4028, %v4639
      %v4683 = vadd.f32 %v4029, %v4641
      %v4684 = vadd.f32 %v4030, %v4644
      %v4685 = vadd.f32 %v4031, %v4646
      %v4686 = vadd.f32 %v4032, %v4649
      %v4687 = vadd.f32 %v4033, %v4651
      %v4688 = vadd.f32 %v4034, %v4654
      %v4689 = vadd.f32 %v4035, %v4656
      %v4690 = vld [vmem:[%s3749] sm:$0xe]
      %v4691 = vld [vmem:[%s3749 + $0xc] sm:$0xe]
      %v4692 = vld [vmem:[%s3749 + $0x18] sm:$0xe]
      %v4693 = vld [vmem:[%s3749 + $0x24] sm:$0xe]
      %v4694 = vld [vmem:[%s3749 + $0x30] sm:$0xe]
      %v4695 = vld [vmem:[%s3749 + $0x3c] sm:$0xe]
      %v4696 = vld [vmem:[%s3749 + $0x48] sm:$0xe]
      %v4697 = vld [vmem:[%s3749 + $0x54] sm:$0xe]
      %v4698 = vld [vmem:[%s3749 + $0x60] sm:$0xe]
      %v4699 = vld [vmem:[%s3749 + $0x6c] sm:$0xe]
      %v4700 = vld [vmem:[%s3749 + $0x78] sm:$0xe]
      %v4701 = vld [vmem:[%s3749 + $0x84] sm:$0xe]
      %v4702 = vld [vmem:[%s3749 + $0x90] sm:$0xe]
      %v4703 = vld [vmem:[%s3749 + $0x9c] sm:$0xe]
      %v4704 = vld [vmem:[%s3749 + $0xa8] sm:$0xe]
      %v4705 = vld [vmem:[%s3749 + $0xb4] sm:$0xe]
      %v4754 = vrot.slane %v4690, 5
      %v4755 = vrot.slane %v4754, 4
      %v4756 = vrot.slane %v4037, 5
      %v4757 = vsel %vm2076, %v4755, %v4756
      %v4758 = vrot.slane %v4756, 4
      %v4759 = vrot.slane %v4038, 5
      %v4760 = vsel %vm2076, %v4758, %v4759
      %v4761 = vrot.slane %v4691, 5
      %v4762 = vrot.slane %v4761, 4
      %v4763 = vrot.slane %v4040, 5
      %v4764 = vsel %vm2076, %v4762, %v4763
      %v4765 = vrot.slane %v4763, 4
      %v4766 = vrot.slane %v4041, 5
      %v4767 = vsel %vm2076, %v4765, %v4766
      %v4768 = vrot.slane %v4692, 5
      %v4769 = vrot.slane %v4768, 4
      %v4770 = vrot.slane %v4043, 5
      %v4771 = vsel %vm2076, %v4769, %v4770
      %v4772 = vrot.slane %v4770, 4
      %v4773 = vrot.slane %v4044, 5
      %v4774 = vsel %vm2076, %v4772, %v4773
      %v4775 = vrot.slane %v4693, 5
      %v4776 = vrot.slane %v4775, 4
      %v4777 = vrot.slane %v4046, 5
      %v4778 = vsel %vm2076, %v4776, %v4777
      %v4779 = vrot.slane %v4777, 4
      %v4780 = vrot.slane %v4047, 5
      %v4781 = vsel %vm2076, %v4779, %v4780
      %v4782 = vrot.slane %v4694, 5
      %v4783 = vrot.slane %v4782, 4
      %v4784 = vrot.slane %v4049, 5
      %v4785 = vsel %vm2076, %v4783, %v4784
      %v4786 = vrot.slane %v4784, 4
      %v4787 = vrot.slane %v4050, 5
      %v4788 = vsel %vm2076, %v4786, %v4787
      %v4789 = vrot.slane %v4695, 5
      %v4790 = vrot.slane %v4789, 4
      %v4791 = vrot.slane %v4052, 5
      %v4792 = vsel %vm2076, %v4790, %v4791
      %v4793 = vrot.slane %v4791, 4
      %v4794 = vrot.slane %v4053, 5
      %v4795 = vsel %vm2076, %v4793, %v4794
      %v4796 = vrot.slane %v4696, 5
      %v4797 = vrot.slane %v4796, 4
      %v4798 = vrot.slane %v4055, 5
      %v4799 = vsel %vm2076, %v4797, %v4798
      %v4800 = vrot.slane %v4798, 4
      %v4801 = vrot.slane %v4056, 5
      %v4802 = vsel %vm2076, %v4800, %v4801
      %v4803 = vrot.slane %v4697, 5
      %v4804 = vrot.slane %v4803, 4
      %v4805 = vrot.slane %v4058, 5
      %v4806 = vsel %vm2076, %v4804, %v4805
      %v4807 = vrot.slane %v4805, 4
      %v4808 = vrot.slane %v4059, 5
      %v4809 = vsel %vm2076, %v4807, %v4808
      %v4810 = vrot.slane %v4698, 5
      %v4811 = vrot.slane %v4810, 4
      %v4812 = vrot.slane %v4061, 5
      %v4813 = vsel %vm2076, %v4811, %v4812
      %v4814 = vrot.slane %v4812, 4
      %v4815 = vrot.slane %v4062, 5
      %v4816 = vsel %vm2076, %v4814, %v4815
      %v4817 = vrot.slane %v4699, 5
      %v4818 = vrot.slane %v4817, 4
      %v4819 = vrot.slane %v4064, 5
      %v4820 = vsel %vm2076, %v4818, %v4819
      %v4821 = vrot.slane %v4819, 4
      %v4822 = vrot.slane %v4065, 5
      %v4823 = vsel %vm2076, %v4821, %v4822
      %v4824 = vrot.slane %v4700, 5
      %v4825 = vrot.slane %v4824, 4
      %v4826 = vrot.slane %v4067, 5
      %v4827 = vsel %vm2076, %v4825, %v4826
      %v4828 = vrot.slane %v4826, 4
      %v4829 = vrot.slane %v4068, 5
      %v4830 = vsel %vm2076, %v4828, %v4829
      %v4831 = vrot.slane %v4701, 5
      %v4832 = vrot.slane %v4831, 4
      %v4833 = vrot.slane %v4070, 5
      %v4834 = vsel %vm2076, %v4832, %v4833
      %v4835 = vrot.slane %v4833, 4
      %v4836 = vrot.slane %v4071, 5
      %v4837 = vsel %vm2076, %v4835, %v4836
      %v4838 = vrot.slane %v4702, 5
      %v4839 = vrot.slane %v4838, 4
      %v4840 = vrot.slane %v4073, 5
      %v4841 = vsel %vm2076, %v4839, %v4840
      %v4842 = vrot.slane %v4840, 4
      %v4843 = vrot.slane %v4074, 5
      %v4844 = vsel %vm2076, %v4842, %v4843
      %v4845 = vrot.slane %v4703, 5
      %v4846 = vrot.slane %v4845, 4
      %v4847 = vrot.slane %v4076, 5
      %v4848 = vsel %vm2076, %v4846, %v4847
      %v4849 = vrot.slane %v4847, 4
      %v4850 = vrot.slane %v4077, 5
      %v4851 = vsel %vm2076, %v4849, %v4850
      %v4852 = vrot.slane %v4704, 5
      %v4853 = vrot.slane %v4852, 4
      %v4854 = vrot.slane %v4079, 5
      %v4855 = vsel %vm2076, %v4853, %v4854
      %v4856 = vrot.slane %v4854, 4
      %v4857 = vrot.slane %v4080, 5
      %v4858 = vsel %vm2076, %v4856, %v4857
      %v4859 = vrot.slane %v4705, 5
      %v4860 = vrot.slane %v4859, 4
      %v4861 = vrot.slane %v4082, 5
      %v4862 = vsel %vm2076, %v4860, %v4861
      %v4863 = vrot.slane %v4861, 4
      %v4864 = vrot.slane %v4083, 5
      %v4865 = vsel %vm2076, %v4863, %v4864
      %s4866 = scalar_lea.vmem %s3, 16
      %v4867 = vld [vmem:[%s4866] sm:$0x3]
      %v4868 = vunpack.c.l.b16 %v4757
      %v4869 = vunpack.c.l.b16 %v4760
      %v4870 = vunpack.c.l.b16 %v4764
      %v4871 = vunpack.c.l.b16 %v4767
      %v4872 = vunpack.c.l.b16 %v4771
      %v4873 = vunpack.c.l.b16 %v4774
      %v4874 = vunpack.c.l.b16 %v4778
      %v4875 = vunpack.c.l.b16 %v4781
      %v4876 = vunpack.c.l.b16 %v4785
      %v4877 = vunpack.c.l.b16 %v4788
      %v4878 = vunpack.c.l.b16 %v4792
      %v4879 = vunpack.c.l.b16 %v4795
      %v4880 = vunpack.c.l.b16 %v4799
      %v4881 = vunpack.c.l.b16 %v4802
      %v4882 = vunpack.c.l.b16 %v4806
      %v4883 = vunpack.c.l.b16 %v4809
      %v4884 = vunpack.c.l.b16 %v4813
      %v4885 = vunpack.c.l.b16 %v4816
      %v4886 = vunpack.c.l.b16 %v4820
      %v4887 = vunpack.c.l.b16 %v4823
      %v4888 = vunpack.c.l.b16 %v4827
      %v4889 = vunpack.c.l.b16 %v4830
      %v4890 = vunpack.c.l.b16 %v4834
      %v4891 = vunpack.c.l.b16 %v4837
      %v4892 = vunpack.c.l.b16 %v4841
      %v4893 = vunpack.c.l.b16 %v4844
      %v4894 = vunpack.c.l.b16 %v4848
      %v4895 = vunpack.c.l.b16 %v4851
      %v4896 = vunpack.c.l.b16 %v4855
      %v4897 = vunpack.c.l.b16 %v4858
      %v4898 = vunpack.c.l.b16 %v4862
      %v4899 = vunpack.c.l.b16 %v4865
      %v4900 = vpack.c.b16 %v4869, %v4868
      %v4901 = vpack.c.b16 %v4871, %v4870
      %v4902 = vpack.c.b16 %v4873, %v4872
      %v4903 = vpack.c.b16 %v4875, %v4874
      %v4904 = vpack.c.b16 %v4877, %v4876
      %v4905 = vpack.c.b16 %v4879, %v4878
      %v4906 = vpack.c.b16 %v4881, %v4880
      %v4907 = vpack.c.b16 %v4883, %v4882
      %v4908 = vpack.c.b16 %v4885, %v4884
      %v4909 = vpack.c.b16 %v4887, %v4886
      %v4910 = vpack.c.b16 %v4889, %v4888
      %v4911 = vpack.c.b16 %v4891, %v4890
      %v4912 = vpack.c.b16 %v4893, %v4892
      %v4913 = vpack.c.b16 %v4895, %v4894
      %v4914 = vpack.c.b16 %v4897, %v4896
      %v4915 = vpack.c.b16 %v4899, %v4898
      %v4917 = vsel %vm1664, %v4900, 0
      %v4920 = vsel %vm1664, %v4901, 0
      %v4923 = vsel %vm1664, %v4902, 0
      %v4926 = vsel %vm1664, %v4903, 0
      %v4929 = vsel %vm1664, %v4904, 0
      %v4932 = vsel %vm1664, %v4905, 0
      %v4935 = vsel %vm1664, %v4906, 0
      %v4938 = vsel %vm1664, %v4907, 0
      %v4941 = vsel %vm1664, %v4908, 0
      %v4944 = vsel %vm1664, %v4909, 0
      %v4947 = vsel %vm1664, %v4910, 0
      %v4950 = vsel %vm1664, %v4911, 0
      %v4953 = vsel %vm1664, %v4912, 0
      %v4956 = vsel %vm1664, %v4913, 0
      %v4959 = vsel %vm1664, %v4914, 0
      %v4962 = vsel %vm1664, %v4915, 0
      %v4965 = vsel %vm1713, %v4867, 0
      %4967 = vmatpush.bf16.msra.mxu0 0
      %4968 = vmatpush.bf16.msra.mxu0 0
      %4969 = vmatpush.bf16.msra.mxu0 0
      %4970 = vmatpush.bf16.msra.mxu0 0
      %4971 = vmatpush.bf16.msra.mxu0 0
      %4972 = vmatpush.bf16.msra.mxu0 0
      %4973 = vmatpush.bf16.msra.mxu0 0
      %4974 = vmatpush.bf16.msra.mxu0 %v4965
      %4975 = vmatmul.bf16.gmra.mxu0 %v4917
      %v4976 = vpop.f32.mrf.mxu0
      %v4977 = vadd.f32 0.0, %v4976
      %v4978 = vpop.f32.mrf.mxu0
      %v4979 = vadd.f32 0.0, %v4978
      %4980 = vmatmul.bf16.gmra.mxu0 %v4920
      %v4981 = vpop.f32.mrf.mxu0
      %v4982 = vadd.f32 0.0, %v4981
      %v4983 = vpop.f32.mrf.mxu0
      %v4984 = vadd.f32 0.0, %v4983
      %4985 = vmatmul.bf16.gmra.mxu0 %v4923
      %v4986 = vpop.f32.mrf.mxu0
      %v4987 = vadd.f32 0.0, %v4986
      %v4988 = vpop.f32.mrf.mxu0
      %v4989 = vadd.f32 0.0, %v4988
      %4990 = vmatmul.bf16.gmra.mxu0 %v4926
      %v4991 = vpop.f32.mrf.mxu0
      %v4992 = vadd.f32 0.0, %v4991
      %v4993 = vpop.f32.mrf.mxu0
      %v4994 = vadd.f32 0.0, %v4993
      %4995 = vmatmul.bf16.gmra.mxu0 %v4929
      %v4996 = vpop.f32.mrf.mxu0
      %v4997 = vadd.f32 0.0, %v4996
      %v4998 = vpop.f32.mrf.mxu0
      %v4999 = vadd.f32 0.0, %v4998
      %5000 = vmatmul.bf16.gmra.mxu0 %v4932
      %v5001 = vpop.f32.mrf.mxu0
      %v5002 = vadd.f32 0.0, %v5001
      %v5003 = vpop.f32.mrf.mxu0
      %v5004 = vadd.f32 0.0, %v5003
      %5005 = vmatmul.bf16.gmra.mxu0 %v4935
      %v5006 = vpop.f32.mrf.mxu0
      %v5007 = vadd.f32 0.0, %v5006
      %v5008 = vpop.f32.mrf.mxu0
      %v5009 = vadd.f32 0.0, %v5008
      %5010 = vmatmul.bf16.gmra.mxu0 %v4938
      %v5011 = vpop.f32.mrf.mxu0
      %v5012 = vadd.f32 0.0, %v5011
      %v5013 = vpop.f32.mrf.mxu0
      %v5014 = vadd.f32 0.0, %v5013
      %5015 = vmatmul.bf16.gmra.mxu0 %v4941
      %v5016 = vpop.f32.mrf.mxu0
      %v5017 = vadd.f32 0.0, %v5016
      %v5018 = vpop.f32.mrf.mxu0
      %v5019 = vadd.f32 0.0, %v5018
      %5020 = vmatmul.bf16.gmra.mxu0 %v4944
      %v5021 = vpop.f32.mrf.mxu0
      %v5022 = vadd.f32 0.0, %v5021
      %v5023 = vpop.f32.mrf.mxu0
      %v5024 = vadd.f32 0.0, %v5023
      %5025 = vmatmul.bf16.gmra.mxu0 %v4947
      %v5026 = vpop.f32.mrf.mxu0
      %v5027 = vadd.f32 0.0, %v5026
      %v5028 = vpop.f32.mrf.mxu0
      %v5029 = vadd.f32 0.0, %v5028
      %5030 = vmatmul.bf16.gmra.mxu0 %v4950
      %v5031 = vpop.f32.mrf.mxu0
      %v5032 = vadd.f32 0.0, %v5031
      %v5033 = vpop.f32.mrf.mxu0
      %v5034 = vadd.f32 0.0, %v5033
      %5035 = vmatmul.bf16.gmra.mxu0 %v4953
      %v5036 = vpop.f32.mrf.mxu0
      %v5037 = vadd.f32 0.0, %v5036
      %v5038 = vpop.f32.mrf.mxu0
      %v5039 = vadd.f32 0.0, %v5038
      %5040 = vmatmul.bf16.gmra.mxu0 %v4956
      %v5041 = vpop.f32.mrf.mxu0
      %v5042 = vadd.f32 0.0, %v5041
      %v5043 = vpop.f32.mrf.mxu0
      %v5044 = vadd.f32 0.0, %v5043
      %5045 = vmatmul.bf16.gmra.mxu0 %v4959
      %v5046 = vpop.f32.mrf.mxu0
      %v5047 = vadd.f32 0.0, %v5046
      %v5048 = vpop.f32.mrf.mxu0
      %v5049 = vadd.f32 0.0, %v5048
      %5050 = vmatmul.bf16.gmra.mxu0 %v4962
      %v5051 = vpop.f32.mrf.mxu0
      %v5052 = vadd.f32 0.0, %v5051
      %v5053 = vpop.f32.mrf.mxu0
      %v5054 = vadd.f32 0.0, %v5053
      %5055 = vdwg.mxu0
      %v5056 = vadd.f32 %v4658, %v4977
      %v5057 = vadd.f32 %v4659, %v4979
      %v5058 = vadd.f32 %v4660, %v4982
      %v5059 = vadd.f32 %v4661, %v4984
      %v5060 = vadd.f32 %v4662, %v4987
      %v5061 = vadd.f32 %v4663, %v4989
      %v5062 = vadd.f32 %v4664, %v4992
      %v5063 = vadd.f32 %v4665, %v4994
      %v5064 = vadd.f32 %v4666, %v4997
      %v5065 = vadd.f32 %v4667, %v4999
      %v5066 = vadd.f32 %v4668, %v5002
      %v5067 = vadd.f32 %v4669, %v5004
      %v5068 = vadd.f32 %v4670, %v5007
      %v5069 = vadd.f32 %v4671, %v5009
      %v5070 = vadd.f32 %v4672, %v5012
      %v5071 = vadd.f32 %v4673, %v5014
      %v5072 = vadd.f32 %v4674, %v5017
      %v5073 = vadd.f32 %v4675, %v5019
      %v5074 = vadd.f32 %v4676, %v5022
      %v5075 = vadd.f32 %v4677, %v5024
      %v5076 = vadd.f32 %v4678, %v5027
      %v5077 = vadd.f32 %v4679, %v5029
      %v5078 = vadd.f32 %v4680, %v5032
      %v5079 = vadd.f32 %v4681, %v5034
      %v5080 = vadd.f32 %v4682, %v5037
      %v5081 = vadd.f32 %v4683, %v5039
      %v5082 = vadd.f32 %v4684, %v5042
      %v5083 = vadd.f32 %v4685, %v5044
      %v5084 = vadd.f32 %v4686, %v5047
      %v5085 = vadd.f32 %v4687, %v5049
      %v5086 = vadd.f32 %v4688, %v5052
      %v5087 = vadd.f32 %v4689, %v5054
      %v5088 = vsel %vm1664, %v5056, 0.0
      %v5089 = vsel %vm1664, %v5057, 0.0
      %v5090 = vadd.f32 %v5088, %v5089
      %v5091 = vsel %vm1664, %v5058, 0.0
      %v5092 = vadd.f32 %v5090, %v5091
      %v5093 = vsel %vm1664, %v5059, 0.0
      %v5094 = vadd.f32 %v5092, %v5093
      %v5095 = vsel %vm1664, %v5060, 0.0
      %v5096 = vadd.f32 %v5094, %v5095
      %v5097 = vsel %vm1664, %v5061, 0.0
      %v5098 = vadd.f32 %v5096, %v5097
      %v5099 = vsel %vm1664, %v5062, 0.0
      %v5100 = vadd.f32 %v5098, %v5099
      %v5101 = vsel %vm1664, %v5063, 0.0
      %v5102 = vadd.f32 %v5100, %v5101
      %v5103 = vsel %vm1664, %v5064, 0.0
      %v5104 = vadd.f32 %v5102, %v5103
      %v5105 = vsel %vm1664, %v5065, 0.0
      %v5106 = vadd.f32 %v5104, %v5105
      %v5107 = vsel %vm1664, %v5066, 0.0
      %v5108 = vadd.f32 %v5106, %v5107
      %v5109 = vsel %vm1664, %v5067, 0.0
      %v5110 = vadd.f32 %v5108, %v5109
      %v5111 = vsel %vm1664, %v5068, 0.0
      %v5112 = vadd.f32 %v5110, %v5111
      %v5113 = vsel %vm1664, %v5069, 0.0
      %v5114 = vadd.f32 %v5112, %v5113
      %v5115 = vsel %vm1664, %v5070, 0.0
      %v5116 = vadd.f32 %v5114, %v5115
      %v5117 = vsel %vm1664, %v5071, 0.0
      %v5118 = vadd.f32 %v5116, %v5117
      %v5119 = vsel %vm1664, %v5072, 0.0
      %v5120 = vadd.f32 %v5118, %v5119
      %v5121 = vsel %vm1664, %v5073, 0.0
      %v5122 = vadd.f32 %v5120, %v5121
      %v5123 = vsel %vm1664, %v5074, 0.0
      %v5124 = vadd.f32 %v5122, %v5123
      %v5125 = vsel %vm1664, %v5075, 0.0
      %v5126 = vadd.f32 %v5124, %v5125
      %v5127 = vsel %vm1664, %v5076, 0.0
      %v5128 = vadd.f32 %v5126, %v5127
      %v5129 = vsel %vm1664, %v5077, 0.0
      %v5130 = vadd.f32 %v5128, %v5129
      %v5131 = vsel %vm1664, %v5078, 0.0
      %v5132 = vadd.f32 %v5130, %v5131
      %v5133 = vsel %vm1664, %v5079, 0.0
      %v5134 = vadd.f32 %v5132, %v5133
      %v5135 = vsel %vm1664, %v5080, 0.0
      %v5136 = vadd.f32 %v5134, %v5135
      %v5137 = vsel %vm1664, %v5081, 0.0
      %v5138 = vadd.f32 %v5136, %v5137
      %v5139 = vsel %vm1664, %v5082, 0.0
      %v5140 = vadd.f32 %v5138, %v5139
      %v5141 = vsel %vm1664, %v5083, 0.0
      %v5142 = vadd.f32 %v5140, %v5141
      %v5143 = vsel %vm1664, %v5084, 0.0
      %v5144 = vadd.f32 %v5142, %v5143
      %v5145 = vsel %vm1664, %v5085, 0.0
      %v5146 = vadd.f32 %v5144, %v5145
      %v5147 = vsel %vm1664, %v5086, 0.0
      %v5148 = vadd.f32 %v5146, %v5147
      %v5149 = vsel %vm1664, %v5087, 0.0
      %v5150 = vadd.f32 %v5148, %v5149
      %v5151 = vrot.slane %v5150, 4
      %v5152 = vadd.f32 %v5150, %v5151
      %v5153 = vrot.slane %v5152, 2
      %v5154 = vadd.f32 %v5152, %v5153
      %v5155 = vrot.slane %v5154, 1
      %v5156 = vadd.f32 %v5154, %v5155
      %v5157 = vmul.f32 %v5156, 0.00390625
      %v5158 = vsub.f32 %v5056, %v5157
      %v5159 = vsub.f32 %v5057, %v5157
      %v5160 = vsub.f32 %v5058, %v5157
      %v5161 = vsub.f32 %v5059, %v5157
      %v5162 = vsub.f32 %v5060, %v5157
      %v5163 = vsub.f32 %v5061, %v5157
      %v5164 = vsub.f32 %v5062, %v5157
      %v5165 = vsub.f32 %v5063, %v5157
      %v5166 = vsub.f32 %v5064, %v5157
      %v5167 = vsub.f32 %v5065, %v5157
      %v5168 = vsub.f32 %v5066, %v5157
      %v5169 = vsub.f32 %v5067, %v5157
      %v5170 = vsub.f32 %v5068, %v5157
      %v5171 = vsub.f32 %v5069, %v5157
      %v5172 = vsub.f32 %v5070, %v5157
      %v5173 = vsub.f32 %v5071, %v5157
      %v5174 = vsub.f32 %v5072, %v5157
      %v5175 = vsub.f32 %v5073, %v5157
      %v5176 = vsub.f32 %v5074, %v5157
      %v5177 = vsub.f32 %v5075, %v5157
      %v5178 = vsub.f32 %v5076, %v5157
      %v5179 = vsub.f32 %v5077, %v5157
      %v5180 = vsub.f32 %v5078, %v5157
      %v5181 = vsub.f32 %v5079, %v5157
      %v5182 = vsub.f32 %v5080, %v5157
      %v5183 = vsub.f32 %v5081, %v5157
      %v5184 = vsub.f32 %v5082, %v5157
      %v5185 = vsub.f32 %v5083, %v5157
      %v5186 = vsub.f32 %v5084, %v5157
      %v5187 = vsub.f32 %v5085, %v5157
      %v5188 = vsub.f32 %v5086, %v5157
      %v5189 = vsub.f32 %v5087, %v5157
      %v5190 = vmul.f32 %v5158, %v5158
      %v5191 = vmul.f32 %v5159, %v5159
      %v5192 = vmul.f32 %v5160, %v5160
      %v5193 = vmul.f32 %v5161, %v5161
      %v5194 = vmul.f32 %v5162, %v5162
      %v5195 = vmul.f32 %v5163, %v5163
      %v5196 = vmul.f32 %v5164, %v5164
      %v5197 = vmul.f32 %v5165, %v5165
      %v5198 = vmul.f32 %v5166, %v5166
      %v5199 = vmul.f32 %v5167, %v5167
      %v5200 = vmul.f32 %v5168, %v5168
      %v5201 = vmul.f32 %v5169, %v5169
      %v5202 = vmul.f32 %v5170, %v5170
      %v5203 = vmul.f32 %v5171, %v5171
      %v5204 = vmul.f32 %v5172, %v5172
      %v5205 = vmul.f32 %v5173, %v5173
      %v5206 = vmul.f32 %v5174, %v5174
      %v5207 = vmul.f32 %v5175, %v5175
      %v5208 = vmul.f32 %v5176, %v5176
      %v5209 = vmul.f32 %v5177, %v5177
      %v5210 = vmul.f32 %v5178, %v5178
      %v5211 = vmul.f32 %v5179, %v5179
      %v5212 = vmul.f32 %v5180, %v5180
      %v5213 = vmul.f32 %v5181, %v5181
      %v5214 = vmul.f32 %v5182, %v5182
      %v5215 = vmul.f32 %v5183, %v5183
      %v5216 = vmul.f32 %v5184, %v5184
      %v5217 = vmul.f32 %v5185, %v5185
      %v5218 = vmul.f32 %v5186, %v5186
      %v5219 = vmul.f32 %v5187, %v5187
      %v5220 = vmul.f32 %v5188, %v5188
      %v5221 = vmul.f32 %v5189, %v5189
      %v5222 = vsel %vm1664, %v5190, 0.0
      %v5223 = vsel %vm1664, %v5191, 0.0
      %v5224 = vadd.f32 %v5222, %v5223
      %v5225 = vsel %vm1664, %v5192, 0.0
      %v5226 = vadd.f32 %v5224, %v5225
      %v5227 = vsel %vm1664, %v5193, 0.0
      %v5228 = vadd.f32 %v5226, %v5227
      %v5229 = vsel %vm1664, %v5194, 0.0
      %v5230 = vadd.f32 %v5228, %v5229
      %v5231 = vsel %vm1664, %v5195, 0.0
      %v5232 = vadd.f32 %v5230, %v5231
      %v5233 = vsel %vm1664, %v5196, 0.0
      %v5234 = vadd.f32 %v5232, %v5233
      %v5235 = vsel %vm1664, %v5197, 0.0
      %v5236 = vadd.f32 %v5234, %v5235
      %v5237 = vsel %vm1664, %v5198, 0.0
      %v5238 = vadd.f32 %v5236, %v5237
      %v5239 = vsel %vm1664, %v5199, 0.0
      %v5240 = vadd.f32 %v5238, %v5239
      %v5241 = vsel %vm1664, %v5200, 0.0
      %v5242 = vadd.f32 %v5240, %v5241
      %v5243 = vsel %vm1664, %v5201, 0.0
      %v5244 = vadd.f32 %v5242, %v5243
      %v5245 = vsel %vm1664, %v5202, 0.0
      %v5246 = vadd.f32 %v5244, %v5245
      %v5247 = vsel %vm1664, %v5203, 0.0
      %v5248 = vadd.f32 %v5246, %v5247
      %v5249 = vsel %vm1664, %v5204, 0.0
      %v5250 = vadd.f32 %v5248, %v5249
      %v5251 = vsel %vm1664, %v5205, 0.0
      %v5252 = vadd.f32 %v5250, %v5251
      %v5253 = vsel %vm1664, %v5206, 0.0
      %v5254 = vadd.f32 %v5252, %v5253
      %v5255 = vsel %vm1664, %v5207, 0.0
      %v5256 = vadd.f32 %v5254, %v5255
      %v5257 = vsel %vm1664, %v5208, 0.0
      %v5258 = vadd.f32 %v5256, %v5257
      %v5259 = vsel %vm1664, %v5209, 0.0
      %v5260 = vadd.f32 %v5258, %v5259
      %v5261 = vsel %vm1664, %v5210, 0.0
      %v5262 = vadd.f32 %v5260, %v5261
      %v5263 = vsel %vm1664, %v5211, 0.0
      %v5264 = vadd.f32 %v5262, %v5263
      %v5265 = vsel %vm1664, %v5212, 0.0
      %v5266 = vadd.f32 %v5264, %v5265
      %v5267 = vsel %vm1664, %v5213, 0.0
      %v5268 = vadd.f32 %v5266, %v5267
      %v5269 = vsel %vm1664, %v5214, 0.0
      %v5270 = vadd.f32 %v5268, %v5269
      %v5271 = vsel %vm1664, %v5215, 0.0
      %v5272 = vadd.f32 %v5270, %v5271
      %v5273 = vsel %vm1664, %v5216, 0.0
      %v5274 = vadd.f32 %v5272, %v5273
      %v5275 = vsel %vm1664, %v5217, 0.0
      %v5276 = vadd.f32 %v5274, %v5275
      %v5277 = vsel %vm1664, %v5218, 0.0
      %v5278 = vadd.f32 %v5276, %v5277
      %v5279 = vsel %vm1664, %v5219, 0.0
      %v5280 = vadd.f32 %v5278, %v5279
      %v5281 = vsel %vm1664, %v5220, 0.0
      %v5282 = vadd.f32 %v5280, %v5281
      %v5283 = vsel %vm1664, %v5221, 0.0
      %v5284 = vadd.f32 %v5282, %v5283
      %v5285 = vrot.slane %v5284, 4
      %v5286 = vadd.f32 %v5284, %v5285
      %v5287 = vrot.slane %v5286, 2
      %v5288 = vadd.f32 %v5286, %v5287
      %v5289 = vrot.slane %v5288, 1
      %v5290 = vadd.f32 %v5288, %v5289
      %v5291 = vadd.f32 %v5157, %v396
      %v5292 = vmul.f32 %v5290, 0.003921569
      %vm5293 = vcmask 24576
      %v5294 = vsel %vm5293, %v5291, 0.0
      %5295 = vadd.xlane.f32.xlu0 %v5294
      %v5296 = vpop.xlane.xlu0 %5295
      %v5297 = vrot.slane %v5296, 4
      %v5298 = vadd.f32 %v5296, %v5297
      %v5299 = vrot.slane %v5298, 2
      %v5300 = vadd.f32 %v5298, %v5299
      %v5301 = vrot.slane %v5300, 1
      %v5302 = vadd.f32 %v5300, %v5301
      %s5303 = vtos %v5302
      %v5304 = vstv %s5303
      %v5305 = vmul.f32 %v5304, 0.25
      %v5306 = vsub.f32 %v5291, %v5305
      %v5307 = vsel %vm5293, %v5290, 0.0
      %5308 = vadd.xlane.f32.xlu0 %v5307
      %v5309 = vpop.xlane.xlu0 %5308
      %v5310 = vrot.slane %v5309, 4
      %v5311 = vadd.f32 %v5309, %v5310
      %v5312 = vrot.slane %v5311, 2
      %v5313 = vadd.f32 %v5311, %v5312
      %v5314 = vrot.slane %v5313, 1
      %v5315 = vadd.f32 %v5313, %v5314
      %s5316 = vtos %v5315
      %v5317 = vstv %s5316
      %v5318 = vmul.f32 %v5306, %v5306
      %v5319 = vsel %vm5293, %v5318, 0.0
      %5320 = vadd.xlane.f32.xlu0 %v5319
      %v5321 = vpop.xlane.xlu0 %5320
      %v5322 = vrot.slane %v5321, 4
      %v5323 = vadd.f32 %v5321, %v5322
      %v5324 = vrot.slane %v5323, 2
      %v5325 = vadd.f32 %v5323, %v5324
      %v5326 = vrot.slane %v5325, 1
      %v5327 = vadd.f32 %v5325, %v5326
      %s5328 = vtos %v5327
      %v5329 = vstv %s5328
      %v5330 = vmul.f32 %v5329, 256.0
      %v5331 = vadd.f32 %v5317, %v5330
      %v5332 = vmul.f32 %v5331, 0.0009775171
      %v5333 = vadd.f32 %v5292, 1e-05
      %v5334 = vrsqrt.pop %v5333
      %v5335 = vmul.f32 %v5334, %v5333
      %v5336 = vmul.f32 %v5335, %v5334
      %v5337 = vmul.f32 0.5, %v5336
      %v5338 = vsub.f32 1.5, %v5337
      %v5339 = vmul.f32 %v5334, %v5338
      %vm5340 = vweird.f32 %v5333
      %vm5341 = vweird.f32 %v5334
      %vm5342 = vmor %vm5340, %vm5341
      %v5343 = vsel %vm5342, %v5334, %v5339
      %v5344 = vadd.f32 %v5332, 1e-05
      %v5345 = vrsqrt.pop %v5344
      %v5346 = vmul.f32 %v5345, %v5344
      %v5347 = vmul.f32 %v5346, %v5345
      %v5348 = vmul.f32 0.5, %v5347
      %v5349 = vsub.f32 1.5, %v5348
      %v5350 = vmul.f32 %v5345, %v5349
      %vm5351 = vweird.f32 %v5344
      %vm5352 = vweird.f32 %v5345
      %vm5353 = vmor %vm5351, %vm5352
      %v5354 = vsel %vm5353, %v5345, %v5350
      %v5355 = vsub.f32 1.0, %v398
      %v5356 = vmul.f32 %v398, %v5343
      %v5357 = vmul.f32 %v5355, %v5354
      %v5358 = vadd.f32 %v5356, %v5357
      %v5359 = vmul.f32 %v394, %v5358
      %v5360 = vmul.f32 %v398, %v5291
      %v5361 = vmul.f32 %v5360, %v5343
      %v5362 = vmul.f32 %v5355, %v5305
      %v5363 = vmul.f32 %v5362, %v5354
      %v5364 = vadd.f32 %v5361, %v5363
      %v5365 = vmul.f32 %v394, %v5364
      %v5366 = vsub.f32 %v395, %v5365
      %v5367 = vmul.f32 %v5359, %v396
      %v5368 = vadd.f32 %v5366, %v5367
      %v5370 = vperm.slane %v5359, 0
      %v5372 = vmul.f32 %v5056, %v5370
      %v5373 = vmul.f32 %v5057, %v5370
      %v5374 = vmul.f32 %v5058, %v5370
      %v5375 = vmul.f32 %v5059, %v5370
      %v5376 = vmul.f32 %v5060, %v5370
      %v5377 = vmul.f32 %v5061, %v5370
      %v5378 = vmul.f32 %v5062, %v5370
      %v5379 = vmul.f32 %v5063, %v5370
      %v5380 = vmul.f32 %v5064, %v5370
      %v5381 = vmul.f32 %v5065, %v5370
      %v5382 = vmul.f32 %v5066, %v5370
      %v5383 = vmul.f32 %v5067, %v5370
      %v5384 = vmul.f32 %v5068, %v5370
      %v5385 = vmul.f32 %v5069, %v5370
      %v5386 = vmul.f32 %v5070, %v5370
      %v5387 = vmul.f32 %v5071, %v5370
      %v5388 = vmul.f32 %v5072, %v5370
      %v5389 = vmul.f32 %v5073, %v5370
      %v5390 = vmul.f32 %v5074, %v5370
      %v5391 = vmul.f32 %v5075, %v5370
      %v5392 = vmul.f32 %v5076, %v5370
      %v5393 = vmul.f32 %v5077, %v5370
      %v5394 = vmul.f32 %v5078, %v5370
      %v5395 = vmul.f32 %v5079, %v5370
      %v5396 = vmul.f32 %v5080, %v5370
      %v5397 = vmul.f32 %v5081, %v5370
      %v5398 = vmul.f32 %v5082, %v5370
      %v5399 = vmul.f32 %v5083, %v5370
      %v5400 = vmul.f32 %v5084, %v5370
      %v5401 = vmul.f32 %v5085, %v5370
      %v5402 = vmul.f32 %v5086, %v5370
      %v5403 = vmul.f32 %v5087, %v5370
      %v5405 = vperm.slane %v5368, 0
      %v5407 = vadd.f32 %v5372, %v5405
      %v5408 = vadd.f32 %v5373, %v5405
      %v5409 = vadd.f32 %v5374, %v5405
      %v5410 = vadd.f32 %v5375, %v5405
      %v5411 = vadd.f32 %v5376, %v5405
      %v5412 = vadd.f32 %v5377, %v5405
      %v5413 = vadd.f32 %v5378, %v5405
      %v5414 = vadd.f32 %v5379, %v5405
      %v5415 = vadd.f32 %v5380, %v5405
      %v5416 = vadd.f32 %v5381, %v5405
      %v5417 = vadd.f32 %v5382, %v5405
      %v5418 = vadd.f32 %v5383, %v5405
      %v5419 = vadd.f32 %v5384, %v5405
      %v5420 = vadd.f32 %v5385, %v5405
      %v5421 = vadd.f32 %v5386, %v5405
      %v5422 = vadd.f32 %v5387, %v5405
      %v5423 = vadd.f32 %v5388, %v5405
      %v5424 = vadd.f32 %v5389, %v5405
      %v5425 = vadd.f32 %v5390, %v5405
      %v5426 = vadd.f32 %v5391, %v5405
      %v5427 = vadd.f32 %v5392, %v5405
      %v5428 = vadd.f32 %v5393, %v5405
      %v5429 = vadd.f32 %v5394, %v5405
      %v5430 = vadd.f32 %v5395, %v5405
      %v5431 = vadd.f32 %v5396, %v5405
      %v5432 = vadd.f32 %v5397, %v5405
      %v5433 = vadd.f32 %v5398, %v5405
      %v5434 = vadd.f32 %v5399, %v5405
      %v5435 = vadd.f32 %v5400, %v5405
      %v5436 = vadd.f32 %v5401, %v5405
      %v5437 = vadd.f32 %v5402, %v5405
      %v5438 = vadd.f32 %v5403, %v5405
      %v5439 = vmax.f32 %v5407, 0.0
      %v5440 = vmax.f32 %v5408, 0.0
      %v5441 = vmax.f32 %v5409, 0.0
      %v5442 = vmax.f32 %v5410, 0.0
      %v5443 = vmax.f32 %v5411, 0.0
      %v5444 = vmax.f32 %v5412, 0.0
      %v5445 = vmax.f32 %v5413, 0.0
      %v5446 = vmax.f32 %v5414, 0.0
      %v5447 = vmax.f32 %v5415, 0.0
      %v5448 = vmax.f32 %v5416, 0.0
      %v5449 = vmax.f32 %v5417, 0.0
      %v5450 = vmax.f32 %v5418, 0.0
      %v5451 = vmax.f32 %v5419, 0.0
      %v5452 = vmax.f32 %v5420, 0.0
      %v5453 = vmax.f32 %v5421, 0.0
      %v5454 = vmax.f32 %v5422, 0.0
      %v5455 = vmax.f32 %v5423, 0.0
      %v5456 = vmax.f32 %v5424, 0.0
      %v5457 = vmax.f32 %v5425, 0.0
      %v5458 = vmax.f32 %v5426, 0.0
      %v5459 = vmax.f32 %v5427, 0.0
      %v5460 = vmax.f32 %v5428, 0.0
      %v5461 = vmax.f32 %v5429, 0.0
      %v5462 = vmax.f32 %v5430, 0.0
      %v5463 = vmax.f32 %v5431, 0.0
      %v5464 = vmax.f32 %v5432, 0.0
      %v5465 = vmax.f32 %v5433, 0.0
      %v5466 = vmax.f32 %v5434, 0.0
      %v5467 = vmax.f32 %v5435, 0.0
      %v5468 = vmax.f32 %v5436, 0.0
      %v5469 = vmax.f32 %v5437, 0.0
      %v5470 = vmax.f32 %v5438, 0.0
      %v5471 = vpack.c.bf16 %v5439, %v5439
      %v5472 = vpack.c.bf16 %v5440, %v5440
      %v5473 = vpack.c.bf16 %v5441, %v5441
      %v5474 = vpack.c.bf16 %v5442, %v5442
      %v5475 = vpack.c.bf16 %v5443, %v5443
      %v5476 = vpack.c.bf16 %v5444, %v5444
      %v5477 = vpack.c.bf16 %v5445, %v5445
      %v5478 = vpack.c.bf16 %v5446, %v5446
      %v5479 = vpack.c.bf16 %v5447, %v5447
      %v5480 = vpack.c.bf16 %v5448, %v5448
      %v5481 = vpack.c.bf16 %v5449, %v5449
      %v5482 = vpack.c.bf16 %v5450, %v5450
      %v5483 = vpack.c.bf16 %v5451, %v5451
      %v5484 = vpack.c.bf16 %v5452, %v5452
      %v5485 = vpack.c.bf16 %v5453, %v5453
      %v5486 = vpack.c.bf16 %v5454, %v5454
      %v5487 = vpack.c.bf16 %v5455, %v5455
      %v5488 = vpack.c.bf16 %v5456, %v5456
      %v5489 = vpack.c.bf16 %v5457, %v5457
      %v5490 = vpack.c.bf16 %v5458, %v5458
      %v5491 = vpack.c.bf16 %v5459, %v5459
      %v5492 = vpack.c.bf16 %v5460, %v5460
      %v5493 = vpack.c.bf16 %v5461, %v5461
      %v5494 = vpack.c.bf16 %v5462, %v5462
      %v5495 = vpack.c.bf16 %v5463, %v5463
      %v5496 = vpack.c.bf16 %v5464, %v5464
      %v5497 = vpack.c.bf16 %v5465, %v5465
      %v5498 = vpack.c.bf16 %v5466, %v5466
      %v5499 = vpack.c.bf16 %v5467, %v5467
      %v5500 = vpack.c.bf16 %v5468, %v5468
      %v5501 = vpack.c.bf16 %v5469, %v5469
      %v5502 = vpack.c.bf16 %v5470, %v5470
      %v5504 = vshrl.u32 %v5471, 16
      %v5506 = vrot.slane %v5504, 7
      %v5507 = vshll.u32 %v5471, 16
      %v5509 = vor.u32 %v5506, %v5507
      %v5510 = vrot.slane %v5506, 4
      %v5512 = vshrl.u32 %v5472, 16
      %v5514 = vrot.slane %v5512, 7
      %v5515 = vshll.u32 %v5472, 16
      %v5517 = vor.u32 %v5514, %v5515
      %v5518 = vsel %vm434, %v5510, %v5517
      %v5519 = vrot.slane %v5514, 4
      %v5521 = vshrl.u32 %v5473, 16
      %v5523 = vrot.slane %v5521, 7
      %v5524 = vshll.u32 %v5473, 16
      %v5526 = vor.u32 %v5523, %v5524
      %v5527 = vrot.slane %v5523, 4
      %v5529 = vshrl.u32 %v5474, 16
      %v5531 = vrot.slane %v5529, 7
      %v5532 = vshll.u32 %v5474, 16
      %v5534 = vor.u32 %v5531, %v5532
      %v5535 = vsel %vm434, %v5527, %v5534
      %v5536 = vrot.slane %v5531, 4
      %v5538 = vshrl.u32 %v5475, 16
      %v5540 = vrot.slane %v5538, 7
      %v5541 = vshll.u32 %v5475, 16
      %v5543 = vor.u32 %v5540, %v5541
      %v5544 = vrot.slane %v5540, 4
      %v5546 = vshrl.u32 %v5476, 16
      %v5548 = vrot.slane %v5546, 7
      %v5549 = vshll.u32 %v5476, 16
      %v5551 = vor.u32 %v5548, %v5549
      %v5552 = vsel %vm434, %v5544, %v5551
      %v5553 = vrot.slane %v5548, 4
      %v5555 = vshrl.u32 %v5477, 16
      %v5557 = vrot.slane %v5555, 7
      %v5558 = vshll.u32 %v5477, 16
      %v5560 = vor.u32 %v5557, %v5558
      %v5561 = vrot.slane %v5557, 4
      %v5563 = vshrl.u32 %v5478, 16
      %v5565 = vrot.slane %v5563, 7
      %v5566 = vshll.u32 %v5478, 16
      %v5568 = vor.u32 %v5565, %v5566
      %v5569 = vsel %vm434, %v5561, %v5568
      %v5570 = vrot.slane %v5565, 4
      %v5572 = vshrl.u32 %v5479, 16
      %v5574 = vrot.slane %v5572, 7
      %v5575 = vshll.u32 %v5479, 16
      %v5577 = vor.u32 %v5574, %v5575
      %v5578 = vrot.slane %v5574, 4
      %v5580 = vshrl.u32 %v5480, 16
      %v5582 = vrot.slane %v5580, 7
      %v5583 = vshll.u32 %v5480, 16
      %v5585 = vor.u32 %v5582, %v5583
      %v5586 = vsel %vm434, %v5578, %v5585
      %v5587 = vrot.slane %v5582, 4
      %v5589 = vshrl.u32 %v5481, 16
      %v5591 = vrot.slane %v5589, 7
      %v5592 = vshll.u32 %v5481, 16
      %v5594 = vor.u32 %v5591, %v5592
      %v5595 = vrot.slane %v5591, 4
      %v5597 = vshrl.u32 %v5482, 16
      %v5599 = vrot.slane %v5597, 7
      %v5600 = vshll.u32 %v5482, 16
      %v5602 = vor.u32 %v5599, %v5600
      %v5603 = vsel %vm434, %v5595, %v5602
      %v5604 = vrot.slane %v5599, 4
      %v5606 = vshrl.u32 %v5483, 16
      %v5608 = vrot.slane %v5606, 7
      %v5609 = vshll.u32 %v5483, 16
      %v5611 = vor.u32 %v5608, %v5609
      %v5612 = vrot.slane %v5608, 4
      %v5614 = vshrl.u32 %v5484, 16
      %v5616 = vrot.slane %v5614, 7
      %v5617 = vshll.u32 %v5484, 16
      %v5619 = vor.u32 %v5616, %v5617
      %v5620 = vsel %vm434, %v5612, %v5619
      %v5621 = vrot.slane %v5616, 4
      %v5623 = vshrl.u32 %v5485, 16
      %v5625 = vrot.slane %v5623, 7
      %v5626 = vshll.u32 %v5485, 16
      %v5628 = vor.u32 %v5625, %v5626
      %v5629 = vrot.slane %v5625, 4
      %v5631 = vshrl.u32 %v5486, 16
      %v5633 = vrot.slane %v5631, 7
      %v5634 = vshll.u32 %v5486, 16
      %v5636 = vor.u32 %v5633, %v5634
      %v5637 = vsel %vm434, %v5629, %v5636
      %v5638 = vrot.slane %v5633, 4
      %v5640 = vshrl.u32 %v5487, 16
      %v5642 = vrot.slane %v5640, 7
      %v5643 = vshll.u32 %v5487, 16
      %v5645 = vor.u32 %v5642, %v5643
      %v5646 = vrot.slane %v5642, 4
      %v5648 = vshrl.u32 %v5488, 16
      %v5650 = vrot.slane %v5648, 7
      %v5651 = vshll.u32 %v5488, 16
      %v5653 = vor.u32 %v5650, %v5651
      %v5654 = vsel %vm434, %v5646, %v5653
      %v5655 = vrot.slane %v5650, 4
      %v5657 = vshrl.u32 %v5489, 16
      %v5659 = vrot.slane %v5657, 7
      %v5660 = vshll.u32 %v5489, 16
      %v5662 = vor.u32 %v5659, %v5660
      %v5663 = vrot.slane %v5659, 4
      %v5665 = vshrl.u32 %v5490, 16
      %v5667 = vrot.slane %v5665, 7
      %v5668 = vshll.u32 %v5490, 16
      %v5670 = vor.u32 %v5667, %v5668
      %v5671 = vsel %vm434, %v5663, %v5670
      %v5672 = vrot.slane %v5667, 4
      %v5674 = vshrl.u32 %v5491, 16
      %v5676 = vrot.slane %v5674, 7
      %v5677 = vshll.u32 %v5491, 16
      %v5679 = vor.u32 %v5676, %v5677
      %v5680 = vrot.slane %v5676, 4
      %v5682 = vshrl.u32 %v5492, 16
      %v5684 = vrot.slane %v5682, 7
      %v5685 = vshll.u32 %v5492, 16
      %v5687 = vor.u32 %v5684, %v5685
      %v5688 = vsel %vm434, %v5680, %v5687
      %v5689 = vrot.slane %v5684, 4
      %v5691 = vshrl.u32 %v5493, 16
      %v5693 = vrot.slane %v5691, 7
      %v5694 = vshll.u32 %v5493, 16
      %v5696 = vor.u32 %v5693, %v5694
      %v5697 = vrot.slane %v5693, 4
      %v5699 = vshrl.u32 %v5494, 16
      %v5701 = vrot.slane %v5699, 7
      %v5702 = vshll.u32 %v5494, 16
      %v5704 = vor.u32 %v5701, %v5702
      %v5705 = vsel %vm434, %v5697, %v5704
      %v5706 = vrot.slane %v5701, 4
      %v5708 = vshrl.u32 %v5495, 16
      %v5710 = vrot.slane %v5708, 7
      %v5711 = vshll.u32 %v5495, 16
      %v5713 = vor.u32 %v5710, %v5711
      %v5714 = vrot.slane %v5710, 4
      %v5716 = vshrl.u32 %v5496, 16
      %v5718 = vrot.slane %v5716, 7
      %v5719 = vshll.u32 %v5496, 16
      %v5721 = vor.u32 %v5718, %v5719
      %v5722 = vsel %vm434, %v5714, %v5721
      %v5723 = vrot.slane %v5718, 4
      %v5725 = vshrl.u32 %v5497, 16
      %v5727 = vrot.slane %v5725, 7
      %v5728 = vshll.u32 %v5497, 16
      %v5730 = vor.u32 %v5727, %v5728
      %v5731 = vrot.slane %v5727, 4
      %v5733 = vshrl.u32 %v5498, 16
      %v5735 = vrot.slane %v5733, 7
      %v5736 = vshll.u32 %v5498, 16
      %v5738 = vor.u32 %v5735, %v5736
      %v5739 = vsel %vm434, %v5731, %v5738
      %v5740 = vrot.slane %v5735, 4
      %v5742 = vshrl.u32 %v5499, 16
      %v5744 = vrot.slane %v5742, 7
      %v5745 = vshll.u32 %v5499, 16
      %v5747 = vor.u32 %v5744, %v5745
      %v5748 = vrot.slane %v5744, 4
      %v5750 = vshrl.u32 %v5500, 16
      %v5752 = vrot.slane %v5750, 7
      %v5753 = vshll.u32 %v5500, 16
      %v5755 = vor.u32 %v5752, %v5753
      %v5756 = vsel %vm434, %v5748, %v5755
      %v5757 = vrot.slane %v5752, 4
      %v5759 = vshrl.u32 %v5501, 16
      %v5761 = vrot.slane %v5759, 7
      %v5762 = vshll.u32 %v5501, 16
      %v5764 = vor.u32 %v5761, %v5762
      %v5765 = vrot.slane %v5761, 4
      %v5767 = vshrl.u32 %v5502, 16
      %v5769 = vrot.slane %v5767, 7
      %v5770 = vshll.u32 %v5502, 16
      %v5772 = vor.u32 %v5769, %v5770
      %v5773 = vsel %vm434, %v5765, %v5772
      %v5774 = vrot.slane %v5769, 4
      %v5823 = vsel %vm758, %v5509, %v2697
      %5824 = vst [vmem:[%s755] sm:$0xf] %v5823
      %5825 = vst.msk [vmem:[%s755 + $0x4] sm:$0xf] %vm762, %v5518
      %v5826 = vld [vmem:[%s755 + $0x8] sm:$0x1]
      %v5827 = vsel %vm765, %v5519, %v5826
      %5828 = vst [vmem:[%s755 + $0x8] sm:$0x1] %v5827
      %v5829 = vld [vmem:[%s755 + $0xc] sm:$0xf]
      %v5830 = vsel %vm758, %v5526, %v5829
      %5831 = vst [vmem:[%s755 + $0xc] sm:$0xf] %v5830
      %5832 = vst.msk [vmem:[%s755 + $0x10] sm:$0xf] %vm762, %v5535
      %v5833 = vld [vmem:[%s755 + $0x14] sm:$0x1]
      %v5834 = vsel %vm765, %v5536, %v5833
      %5835 = vst [vmem:[%s755 + $0x14] sm:$0x1] %v5834
      %v5836 = vld [vmem:[%s755 + $0x18] sm:$0xf]
      %v5837 = vsel %vm758, %v5543, %v5836
      %5838 = vst [vmem:[%s755 + $0x18] sm:$0xf] %v5837
      %5839 = vst.msk [vmem:[%s755 + $0x1c] sm:$0xf] %vm762, %v5552
      %v5840 = vld [vmem:[%s755 + $0x20] sm:$0x1]
      %v5841 = vsel %vm765, %v5553, %v5840
      %5842 = vst [vmem:[%s755 + $0x20] sm:$0x1] %v5841
      %v5843 = vld [vmem:[%s755 + $0x24] sm:$0xf]
      %v5844 = vsel %vm758, %v5560, %v5843
      %5845 = vst [vmem:[%s755 + $0x24] sm:$0xf] %v5844
      %5846 = vst.msk [vmem:[%s755 + $0x28] sm:$0xf] %vm762, %v5569
      %v5847 = vld [vmem:[%s755 + $0x2c] sm:$0x1]
      %v5848 = vsel %vm765, %v5570, %v5847
      %5849 = vst [vmem:[%s755 + $0x2c] sm:$0x1] %v5848
      %v5850 = vld [vmem:[%s755 + $0x30] sm:$0xf]
      %v5851 = vsel %vm758, %v5577, %v5850
      %5852 = vst [vmem:[%s755 + $0x30] sm:$0xf] %v5851
      %5853 = vst.msk [vmem:[%s755 + $0x34] sm:$0xf] %vm762, %v5586
      %v5854 = vld [vmem:[%s755 + $0x38] sm:$0x1]
      %v5855 = vsel %vm765, %v5587, %v5854
      %5856 = vst [vmem:[%s755 + $0x38] sm:$0x1] %v5855
      %v5857 = vld [vmem:[%s755 + $0x3c] sm:$0xf]
      %v5858 = vsel %vm758, %v5594, %v5857
      %5859 = vst [vmem:[%s755 + $0x3c] sm:$0xf] %v5858
      %5860 = vst.msk [vmem:[%s755 + $0x40] sm:$0xf] %vm762, %v5603
      %v5861 = vld [vmem:[%s755 + $0x44] sm:$0x1]
      %v5862 = vsel %vm765, %v5604, %v5861
      %5863 = vst [vmem:[%s755 + $0x44] sm:$0x1] %v5862
      %v5864 = vld [vmem:[%s755 + $0x48] sm:$0xf]
      %v5865 = vsel %vm758, %v5611, %v5864
      %5866 = vst [vmem:[%s755 + $0x48] sm:$0xf] %v5865
      %5867 = vst.msk [vmem:[%s755 + $0x4c] sm:$0xf] %vm762, %v5620
      %v5868 = vld [vmem:[%s755 + $0x50] sm:$0x1]
      %v5869 = vsel %vm765, %v5621, %v5868
      %5870 = vst [vmem:[%s755 + $0x50] sm:$0x1] %v5869
      %v5871 = vld [vmem:[%s755 + $0x54] sm:$0xf]
      %v5872 = vsel %vm758, %v5628, %v5871
      %5873 = vst [vmem:[%s755 + $0x54] sm:$0xf] %v5872
      %5874 = vst.msk [vmem:[%s755 + $0x58] sm:$0xf] %vm762, %v5637
      %v5875 = vld [vmem:[%s755 + $0x5c] sm:$0x1]
      %v5876 = vsel %vm765, %v5638, %v5875
      %5877 = vst [vmem:[%s755 + $0x5c] sm:$0x1] %v5876
      %v5878 = vld [vmem:[%s755 + $0x60] sm:$0xf]
      %v5879 = vsel %vm758, %v5645, %v5878
      %5880 = vst [vmem:[%s755 + $0x60] sm:$0xf] %v5879
      %5881 = vst.msk [vmem:[%s755 + $0x64] sm:$0xf] %vm762, %v5654
      %v5882 = vld [vmem:[%s755 + $0x68] sm:$0x1]
      %v5883 = vsel %vm765, %v5655, %v5882
      %5884 = vst [vmem:[%s755 + $0x68] sm:$0x1] %v5883
      %v5885 = vld [vmem:[%s755 + $0x6c] sm:$0xf]
      %v5886 = vsel %vm758, %v5662, %v5885
      %5887 = vst [vmem:[%s755 + $0x6c] sm:$0xf] %v5886
      %5888 = vst.msk [vmem:[%s755 + $0x70] sm:$0xf] %vm762, %v5671
      %v5889 = vld [vmem:[%s755 + $0x74] sm:$0x1]
      %v5890 = vsel %vm765, %v5672, %v5889
      %5891 = vst [vmem:[%s755 + $0x74] sm:$0x1] %v5890
      %v5892 = vld [vmem:[%s755 + $0x78] sm:$0xf]
      %v5893 = vsel %vm758, %v5679, %v5892
      %5894 = vst [vmem:[%s755 + $0x78] sm:$0xf] %v5893
      %5895 = vst.msk [vmem:[%s755 + $0x7c] sm:$0xf] %vm762, %v5688
      %v5896 = vld [vmem:[%s755 + $0x80] sm:$0x1]
      %v5897 = vsel %vm765, %v5689, %v5896
      %5898 = vst [vmem:[%s755 + $0x80] sm:$0x1] %v5897
      %v5899 = vld [vmem:[%s755 + $0x84] sm:$0xf]
      %v5900 = vsel %vm758, %v5696, %v5899
      %5901 = vst [vmem:[%s755 + $0x84] sm:$0xf] %v5900
      %5902 = vst.msk [vmem:[%s755 + $0x88] sm:$0xf] %vm762, %v5705
      %v5903 = vld [vmem:[%s755 + $0x8c] sm:$0x1]
      %v5904 = vsel %vm765, %v5706, %v5903
      %5905 = vst [vmem:[%s755 + $0x8c] sm:$0x1] %v5904
      %v5906 = vld [vmem:[%s755 + $0x90] sm:$0xf]
      %v5907 = vsel %vm758, %v5713, %v5906
      %5908 = vst [vmem:[%s755 + $0x90] sm:$0xf] %v5907
      %5909 = vst.msk [vmem:[%s755 + $0x94] sm:$0xf] %vm762, %v5722
      %v5910 = vld [vmem:[%s755 + $0x98] sm:$0x1]
      %v5911 = vsel %vm765, %v5723, %v5910
      %5912 = vst [vmem:[%s755 + $0x98] sm:$0x1] %v5911
      %v5913 = vld [vmem:[%s755 + $0x9c] sm:$0xf]
      %v5914 = vsel %vm758, %v5730, %v5913
      %5915 = vst [vmem:[%s755 + $0x9c] sm:$0xf] %v5914
      %5916 = vst.msk [vmem:[%s755 + $0xa0] sm:$0xf] %vm762, %v5739
      %v5917 = vld [vmem:[%s755 + $0xa4] sm:$0x1]
      %v5918 = vsel %vm765, %v5740, %v5917
      %5919 = vst [vmem:[%s755 + $0xa4] sm:$0x1] %v5918
      %v5920 = vld [vmem:[%s755 + $0xa8] sm:$0xf]
      %v5921 = vsel %vm758, %v5747, %v5920
      %5922 = vst [vmem:[%s755 + $0xa8] sm:$0xf] %v5921
      %5923 = vst.msk [vmem:[%s755 + $0xac] sm:$0xf] %vm762, %v5756
      %v5924 = vld [vmem:[%s755 + $0xb0] sm:$0x1]
      %v5925 = vsel %vm765, %v5757, %v5924
      %5926 = vst [vmem:[%s755 + $0xb0] sm:$0x1] %v5925
      %v5927 = vld [vmem:[%s755 + $0xb4] sm:$0xf]
      %v5928 = vsel %vm758, %v5764, %v5927
      %5929 = vst [vmem:[%s755 + $0xb4] sm:$0xf] %v5928
      %5930 = vst.msk [vmem:[%s755 + $0xb8] sm:$0xf] %vm762, %v5773
      %v5931 = vld [vmem:[%s755 + $0xbc] sm:$0x1]
      %v5932 = vsel %vm765, %v5774, %v5931
      %5933 = vst [vmem:[%s755 + $0xbc] sm:$0x1] %v5932
      %v5934 = vld [vmem:[#allocation2] sm:$0xf]
      %v5935 = vsel %vm758, %v5526, %v5934
      %5936 = vst [vmem:[#allocation2] sm:$0xf] %v5935
      %5937 = vst.msk [vmem:[#allocation2 + $0x4] sm:$0xf] %vm762, %v5535
      %v5938 = vld [vmem:[#allocation2 + $0x8] sm:$0x1]
      %v5939 = vsel %vm765, %v5536, %v5938
      %5940 = vst [vmem:[#allocation2 + $0x8] sm:$0x1] %v5939
      %v5941 = vld [vmem:[%s881] sm:$0xf]
      %v5942 = vsel %vm758, %v5747, %v5941
      %5943 = vst [vmem:[%s881] sm:$0xf] %v5942
      %5944 = vst.msk [vmem:[%s881 + $0x4] sm:$0xf] %vm762, %v5756
      %v5945 = vld [vmem:[%s881 + $0x8] sm:$0x1]
      %v5946 = vsel %vm765, %v5757, %v5945
      %5947 = vst [vmem:[%s881 + $0x8] sm:$0x1] %v5946
      %v5948 = vld [vmem:[#allocation2] sm:$0x2]
      %v5949 = vld [vmem:[#allocation2 + $0xc] sm:$0x2]
      %v5950 = vld [vmem:[#allocation2 + $0x18] sm:$0x2]
      %v5951 = vld [vmem:[#allocation2 + $0x24] sm:$0x2]
      %v5952 = vld [vmem:[#allocation2 + $0x30] sm:$0x2]
      %v5953 = vld [vmem:[#allocation2 + $0x3c] sm:$0x2]
      %v5954 = vld [vmem:[#allocation2 + $0x48] sm:$0x2]
      %v5955 = vld [vmem:[#allocation2 + $0x54] sm:$0x2]
      %v5956 = vld [vmem:[#allocation2 + $0x60] sm:$0x2]
      %v5957 = vld [vmem:[#allocation2 + $0x6c] sm:$0x2]
      %v5958 = vld [vmem:[#allocation2 + $0x78] sm:$0x2]
      %v5959 = vld [vmem:[#allocation2 + $0x84] sm:$0x2]
      %v5960 = vld [vmem:[#allocation2 + $0x90] sm:$0x2]
      %v5961 = vld [vmem:[#allocation2 + $0x9c] sm:$0x2]
      %v5962 = vld [vmem:[#allocation2 + $0xa8] sm:$0x2]
      %v5963 = vld [vmem:[#allocation2 + $0xb4] sm:$0x2]
      %v5964 = vld [vmem:[#allocation2 + $0xc0] sm:$0x2]
      %v5965 = vld [vmem:[#allocation2 + $0xcc] sm:$0x2]
      %v5984 = vrot.slane %v5948, 5
      %v5985 = vrot.slane %v5984, 4
      %v5986 = vrot.slane %v5949, 5
      %v5987 = vrot.slane %v5986, 4
      %v5988 = vrot.slane %v5950, 5
      %v5989 = vrot.slane %v5988, 4
      %v5990 = vrot.slane %v5951, 5
      %v5991 = vrot.slane %v5990, 4
      %v5992 = vrot.slane %v5952, 5
      %v5993 = vrot.slane %v5992, 4
      %v5994 = vrot.slane %v5953, 5
      %v5995 = vrot.slane %v5994, 4
      %v5996 = vrot.slane %v5954, 5
      %v5997 = vrot.slane %v5996, 4
      %v5998 = vrot.slane %v5955, 5
      %v5999 = vrot.slane %v5998, 4
      %v6000 = vrot.slane %v5956, 5
      %v6001 = vrot.slane %v6000, 4
      %v6002 = vrot.slane %v5957, 5
      %v6003 = vrot.slane %v6002, 4
      %v6004 = vrot.slane %v5958, 5
      %v6005 = vrot.slane %v6004, 4
      %v6006 = vrot.slane %v5959, 5
      %v6007 = vrot.slane %v6006, 4
      %v6008 = vrot.slane %v5960, 5
      %v6009 = vrot.slane %v6008, 4
      %v6010 = vrot.slane %v5961, 5
      %v6011 = vrot.slane %v6010, 4
      %v6012 = vrot.slane %v5962, 5
      %v6013 = vrot.slane %v6012, 4
      %v6014 = vrot.slane %v5963, 5
      %v6015 = vrot.slane %v6014, 4
      %v6016 = vrot.slane %v5964, 5
      %v6017 = vrot.slane %v6016, 4
      %v6018 = vrot.slane %v5965, 5
      %v6019 = vrot.slane %v6018, 4
      %v6038 = vld [vmem:[#allocation2] sm:$0x1]
      %v6039 = vsel %vm765, %v5985, %v6038
      %6040 = vst [vmem:[#allocation2] sm:$0x1] %v6039
      %v6041 = vld [vmem:[#allocation2 + $0xc] sm:$0x1]
      %v6042 = vsel %vm765, %v5987, %v6041
      %6043 = vst [vmem:[#allocation2 + $0xc] sm:$0x1] %v6042
      %v6044 = vld [vmem:[#allocation2 + $0x18] sm:$0x1]
      %v6045 = vsel %vm765, %v5989, %v6044
      %6046 = vst [vmem:[#allocation2 + $0x18] sm:$0x1] %v6045
      %v6047 = vld [vmem:[#allocation2 + $0x24] sm:$0x1]
      %v6048 = vsel %vm765, %v5991, %v6047
      %6049 = vst [vmem:[#allocation2 + $0x24] sm:$0x1] %v6048
      %v6050 = vld [vmem:[#allocation2 + $0x30] sm:$0x1]
      %v6051 = vsel %vm765, %v5993, %v6050
      %6052 = vst [vmem:[#allocation2 + $0x30] sm:$0x1] %v6051
      %v6053 = vld [vmem:[#allocation2 + $0x3c] sm:$0x1]
      %v6054 = vsel %vm765, %v5995, %v6053
      %6055 = vst [vmem:[#allocation2 + $0x3c] sm:$0x1] %v6054
      %v6056 = vld [vmem:[#allocation2 + $0x48] sm:$0x1]
      %v6057 = vsel %vm765, %v5997, %v6056
      %6058 = vst [vmem:[#allocation2 + $0x48] sm:$0x1] %v6057
      %v6059 = vld [vmem:[#allocation2 + $0x54] sm:$0x1]
      %v6060 = vsel %vm765, %v5999, %v6059
      %6061 = vst [vmem:[#allocation2 + $0x54] sm:$0x1] %v6060
      %v6062 = vld [vmem:[#allocation2 + $0x60] sm:$0x1]
      %v6063 = vsel %vm765, %v6001, %v6062
      %6064 = vst [vmem:[#allocation2 + $0x60] sm:$0x1] %v6063
      %v6065 = vld [vmem:[#allocation2 + $0x6c] sm:$0x1]
      %v6066 = vsel %vm765, %v6003, %v6065
      %6067 = vst [vmem:[#allocation2 + $0x6c] sm:$0x1] %v6066
      %v6068 = vld [vmem:[#allocation2 + $0x78] sm:$0x1]
      %v6069 = vsel %vm765, %v6005, %v6068
      %6070 = vst [vmem:[#allocation2 + $0x78] sm:$0x1] %v6069
      %v6071 = vld [vmem:[#allocation2 + $0x84] sm:$0x1]
      %v6072 = vsel %vm765, %v6007, %v6071
      %6073 = vst [vmem:[#allocation2 + $0x84] sm:$0x1] %v6072
      %v6074 = vld [vmem:[#allocation2 + $0x90] sm:$0x1]
      %v6075 = vsel %vm765, %v6009, %v6074
      %6076 = vst [vmem:[#allocation2 + $0x90] sm:$0x1] %v6075
      %v6077 = vld [vmem:[#allocation2 + $0x9c] sm:$0x1]
      %v6078 = vsel %vm765, %v6011, %v6077
      %6079 = vst [vmem:[#allocation2 + $0x9c] sm:$0x1] %v6078
      %v6080 = vld [vmem:[#allocation2 + $0xa8] sm:$0x1]
      %v6081 = vsel %vm765, %v6013, %v6080
      %6082 = vst [vmem:[#allocation2 + $0xa8] sm:$0x1] %v6081
      %v6083 = vld [vmem:[#allocation2 + $0xb4] sm:$0x1]
      %v6084 = vsel %vm765, %v6015, %v6083
      %6085 = vst [vmem:[#allocation2 + $0xb4] sm:$0x1] %v6084
      %v6086 = vld [vmem:[#allocation2 + $0xc0] sm:$0x1]
      %v6087 = vsel %vm765, %v6017, %v6086
      %6088 = vst [vmem:[#allocation2 + $0xc0] sm:$0x1] %v6087
      %v6089 = vld [vmem:[#allocation2 + $0xcc] sm:$0x1]
      %v6090 = vsel %vm765, %v6019, %v6089
      %6091 = vst [vmem:[#allocation2 + $0xcc] sm:$0x1] %v6090
      %v6092 = vld [vmem:[#allocation2 + $0x4] sm:$0x8]
      %v6093 = vld [vmem:[#allocation2 + $0x10] sm:$0x8]
      %v6094 = vld [vmem:[#allocation2 + $0x1c] sm:$0x8]
      %v6095 = vld [vmem:[#allocation2 + $0x28] sm:$0x8]
      %v6096 = vld [vmem:[#allocation2 + $0x34] sm:$0x8]
      %v6097 = vld [vmem:[#allocation2 + $0x40] sm:$0x8]
      %v6098 = vld [vmem:[#allocation2 + $0x4c] sm:$0x8]
      %v6099 = vld [vmem:[#allocation2 + $0x58] sm:$0x8]
      %v6100 = vld [vmem:[#allocation2 + $0x64] sm:$0x8]
      %v6101 = vld [vmem:[#allocation2 + $0x70] sm:$0x8]
      %v6102 = vld [vmem:[#allocation2 + $0x7c] sm:$0x8]
      %v6103 = vld [vmem:[#allocation2 + $0x88] sm:$0x8]
      %v6104 = vld [vmem:[#allocation2 + $0x94] sm:$0x8]
      %v6105 = vld [vmem:[#allocation2 + $0xa0] sm:$0x8]
      %v6106 = vld [vmem:[#allocation2 + $0xac] sm:$0x8]
      %v6107 = vld [vmem:[#allocation2 + $0xb8] sm:$0x8]
      %v6108 = vld [vmem:[#allocation2 + $0xc4] sm:$0x8]
      %v6109 = vld [vmem:[#allocation2 + $0xd0] sm:$0x8]
      %v6128 = vrot.slane %v6092, 7
      %v6129 = vrot.slane %v6128, 4
      %v6130 = vrot.slane %v6093, 7
      %v6131 = vrot.slane %v6130, 4
      %v6132 = vrot.slane %v6094, 7
      %v6133 = vrot.slane %v6132, 4
      %v6134 = vrot.slane %v6095, 7
      %v6135 = vrot.slane %v6134, 4
      %v6136 = vrot.slane %v6096, 7
      %v6137 = vrot.slane %v6136, 4
      %v6138 = vrot.slane %v6097, 7
      %v6139 = vrot.slane %v6138, 4
      %v6140 = vrot.slane %v6098, 7
      %v6141 = vrot.slane %v6140, 4
      %v6142 = vrot.slane %v6099, 7
      %v6143 = vrot.slane %v6142, 4
      %v6144 = vrot.slane %v6100, 7
      %v6145 = vrot.slane %v6144, 4
      %v6146 = vrot.slane %v6101, 7
      %v6147 = vrot.slane %v6146, 4
      %v6148 = vrot.slane %v6102, 7
      %v6149 = vrot.slane %v6148, 4
      %v6150 = vrot.slane %v6103, 7
      %v6151 = vrot.slane %v6150, 4
      %v6152 = vrot.slane %v6104, 7
      %v6153 = vrot.slane %v6152, 4
      %v6154 = vrot.slane %v6105, 7
      %v6155 = vrot.slane %v6154, 4
      %v6156 = vrot.slane %v6106, 7
      %v6157 = vrot.slane %v6156, 4
      %v6158 = vrot.slane %v6107, 7
      %v6159 = vrot.slane %v6158, 4
      %v6160 = vrot.slane %v6108, 7
      %v6161 = vrot.slane %v6160, 4
      %v6162 = vrot.slane %v6109, 7
      %v6163 = vrot.slane %v6162, 4
      %v6182 = vld [vmem:[#allocation2 + $0x8] sm:$0x1]
      %v6183 = vsel %vm1123, %v6129, %v6182
      %6184 = vst [vmem:[#allocation2 + $0x8] sm:$0x1] %v6183
      %v6185 = vld [vmem:[#allocation2 + $0x14] sm:$0x1]
      %v6186 = vsel %vm1123, %v6131, %v6185
      %6187 = vst [vmem:[#allocation2 + $0x14] sm:$0x1] %v6186
      %v6188 = vld [vmem:[#allocation2 + $0x20] sm:$0x1]
      %v6189 = vsel %vm1123, %v6133, %v6188
      %6190 = vst [vmem:[#allocation2 + $0x20] sm:$0x1] %v6189
      %v6191 = vld [vmem:[#allocation2 + $0x2c] sm:$0x1]
      %v6192 = vsel %vm1123, %v6135, %v6191
      %6193 = vst [vmem:[#allocation2 + $0x2c] sm:$0x1] %v6192
      %v6194 = vld [vmem:[#allocation2 + $0x38] sm:$0x1]
      %v6195 = vsel %vm1123, %v6137, %v6194
      %6196 = vst [vmem:[#allocation2 + $0x38] sm:$0x1] %v6195
      %v6197 = vld [vmem:[#allocation2 + $0x44] sm:$0x1]
      %v6198 = vsel %vm1123, %v6139, %v6197
      %6199 = vst [vmem:[#allocation2 + $0x44] sm:$0x1] %v6198
      %v6200 = vld [vmem:[#allocation2 + $0x50] sm:$0x1]
      %v6201 = vsel %vm1123, %v6141, %v6200
      %6202 = vst [vmem:[#allocation2 + $0x50] sm:$0x1] %v6201
      %v6203 = vld [vmem:[#allocation2 + $0x5c] sm:$0x1]
      %v6204 = vsel %vm1123, %v6143, %v6203
      %6205 = vst [vmem:[#allocation2 + $0x5c] sm:$0x1] %v6204
      %v6206 = vld [vmem:[#allocation2 + $0x68] sm:$0x1]
      %v6207 = vsel %vm1123, %v6145, %v6206
      %6208 = vst [vmem:[#allocation2 + $0x68] sm:$0x1] %v6207
      %v6209 = vld [vmem:[#allocation2 + $0x74] sm:$0x1]
      %v6210 = vsel %vm1123, %v6147, %v6209
      %6211 = vst [vmem:[#allocation2 + $0x74] sm:$0x1] %v6210
      %v6212 = vld [vmem:[#allocation2 + $0x80] sm:$0x1]
      %v6213 = vsel %vm1123, %v6149, %v6212
      %6214 = vst [vmem:[#allocation2 + $0x80] sm:$0x1] %v6213
      %v6215 = vld [vmem:[#allocation2 + $0x8c] sm:$0x1]
      %v6216 = vsel %vm1123, %v6151, %v6215
      %6217 = vst [vmem:[#allocation2 + $0x8c] sm:$0x1] %v6216
      %v6218 = vld [vmem:[#allocation2 + $0x98] sm:$0x1]
      %v6219 = vsel %vm1123, %v6153, %v6218
      %6220 = vst [vmem:[#allocation2 + $0x98] sm:$0x1] %v6219
      %v6221 = vld [vmem:[#allocation2 + $0xa4] sm:$0x1]
      %v6222 = vsel %vm1123, %v6155, %v6221
      %6223 = vst [vmem:[#allocation2 + $0xa4] sm:$0x1] %v6222
      %v6224 = vld [vmem:[#allocation2 + $0xb0] sm:$0x1]
      %v6225 = vsel %vm1123, %v6157, %v6224
      %6226 = vst [vmem:[#allocation2 + $0xb0] sm:$0x1] %v6225
      %v6227 = vld [vmem:[#allocation2 + $0xbc] sm:$0x1]
      %v6228 = vsel %vm1123, %v6159, %v6227
      %6229 = vst [vmem:[#allocation2 + $0xbc] sm:$0x1] %v6228
      %v6230 = vld [vmem:[#allocation2 + $0xc8] sm:$0x1]
      %v6231 = vsel %vm1123, %v6161, %v6230
      %6232 = vst [vmem:[#allocation2 + $0xc8] sm:$0x1] %v6231
      %v6233 = vld [vmem:[#allocation2 + $0xd4] sm:$0x1]
      %v6234 = vsel %vm1123, %v6163, %v6233
      %6235 = vst [vmem:[#allocation2 + $0xd4] sm:$0x1] %v6234
      %v6236 = vld [vmem:[#allocation2] sm:$0xf]
      %v6237 = vld [vmem:[#allocation2 + $0x4] sm:$0xf]
      %v6238 = vld [vmem:[#allocation2 + $0xc] sm:$0xf]
      %v6239 = vld [vmem:[#allocation2 + $0x10] sm:$0xf]
      %v6240 = vld [vmem:[#allocation2 + $0x18] sm:$0xf]
      %v6241 = vld [vmem:[#allocation2 + $0x1c] sm:$0xf]
      %v6242 = vld [vmem:[#allocation2 + $0x24] sm:$0xf]
      %v6243 = vld [vmem:[#allocation2 + $0x28] sm:$0xf]
      %v6244 = vld [vmem:[#allocation2 + $0x30] sm:$0xf]
      %v6245 = vld [vmem:[#allocation2 + $0x34] sm:$0xf]
      %v6246 = vld [vmem:[#allocation2 + $0x3c] sm:$0xf]
      %v6247 = vld [vmem:[#allocation2 + $0x40] sm:$0xf]
      %v6248 = vld [vmem:[#allocation2 + $0x48] sm:$0xf]
      %v6249 = vld [vmem:[#allocation2 + $0x4c] sm:$0xf]
      %v6250 = vld [vmem:[#allocation2 + $0x54] sm:$0xf]
      %v6251 = vld [vmem:[#allocation2 + $0x58] sm:$0xf]
      %v6252 = vld [vmem:[#allocation2 + $0x60] sm:$0xf]
      %v6253 = vld [vmem:[#allocation2 + $0x64] sm:$0xf]
      %v6254 = vld [vmem:[#allocation2 + $0x6c] sm:$0xf]
      %v6255 = vld [vmem:[#allocation2 + $0x70] sm:$0xf]
      %v6256 = vld [vmem:[#allocation2 + $0x78] sm:$0xf]
      %v6257 = vld [vmem:[#allocation2 + $0x7c] sm:$0xf]
      %v6258 = vld [vmem:[#allocation2 + $0x84] sm:$0xf]
      %v6259 = vld [vmem:[#allocation2 + $0x88] sm:$0xf]
      %v6260 = vld [vmem:[#allocation2 + $0x90] sm:$0xf]
      %v6261 = vld [vmem:[#allocation2 + $0x94] sm:$0xf]
      %v6262 = vld [vmem:[#allocation2 + $0x9c] sm:$0xf]
      %v6263 = vld [vmem:[#allocation2 + $0xa0] sm:$0xf]
      %v6264 = vld [vmem:[#allocation2 + $0xa8] sm:$0xf]
      %v6265 = vld [vmem:[#allocation2 + $0xac] sm:$0xf]
      %v6266 = vld [vmem:[#allocation2 + $0xb4] sm:$0xf]
      %v6267 = vld [vmem:[#allocation2 + $0xb8] sm:$0xf]
      %v6268 = vld [vmem:[%s6] sm:$0x3]
      %v6269 = vld [vmem:[#allocation2 + $0x8] sm:$0x1]
      %v6270 = vld [vmem:[#allocation2 + $0x14] sm:$0x1]
      %v6271 = vld [vmem:[#allocation2 + $0x20] sm:$0x1]
      %v6272 = vld [vmem:[#allocation2 + $0x2c] sm:$0x1]
      %v6273 = vld [vmem:[#allocation2 + $0x38] sm:$0x1]
      %v6274 = vld [vmem:[#allocation2 + $0x44] sm:$0x1]
      %v6275 = vld [vmem:[#allocation2 + $0x50] sm:$0x1]
      %v6276 = vld [vmem:[#allocation2 + $0x5c] sm:$0x1]
      %v6277 = vld [vmem:[#allocation2 + $0x68] sm:$0x1]
      %v6278 = vld [vmem:[#allocation2 + $0x74] sm:$0x1]
      %v6279 = vld [vmem:[#allocation2 + $0x80] sm:$0x1]
      %v6280 = vld [vmem:[#allocation2 + $0x8c] sm:$0x1]
      %v6281 = vld [vmem:[#allocation2 + $0x98] sm:$0x1]
      %v6282 = vld [vmem:[#allocation2 + $0xa4] sm:$0x1]
      %v6283 = vld [vmem:[#allocation2 + $0xb0] sm:$0x1]
      %v6284 = vld [vmem:[#allocation2 + $0xbc] sm:$0x1]
      %v6286 = vshrl.u32 %v6236, 16
      %v6288 = vrot.slane %v6286, 4
      %v6289 = vshll.u32 %v6236, 16
      %v6291 = vrot.slane %v6289, 5
      %v6292 = vor.u32 %v6288, %v6291
      %v6293 = vrot.slane %v6292, 4
      %v6295 = vshll.u32 %v6237, 16
      %v6297 = vrot.slane %v6295, 5
      %v6298 = vsel %vm1229, %v6293, %v6297
      %v6299 = vshrl.u32 %v6237, 16
      %v6301 = vrot.slane %v6299, 4
      %v6302 = vor.u32 %v6301, %v6297
      %v6303 = vrot.slane %v6302, 4
      %v6305 = vshll.u32 %v6269, 16
      %v6307 = vrot.slane %v6305, 5
      %v6308 = vsel %vm1229, %v6303, %v6307
      %v6310 = vshrl.u32 %v6238, 16
      %v6312 = vrot.slane %v6310, 4
      %v6313 = vshll.u32 %v6238, 16
      %v6315 = vrot.slane %v6313, 5
      %v6316 = vor.u32 %v6312, %v6315
      %v6317 = vrot.slane %v6316, 4
      %v6319 = vshll.u32 %v6239, 16
      %v6321 = vrot.slane %v6319, 5
      %v6322 = vsel %vm1229, %v6317, %v6321
      %v6323 = vshrl.u32 %v6239, 16
      %v6325 = vrot.slane %v6323, 4
      %v6326 = vor.u32 %v6325, %v6321
      %v6327 = vrot.slane %v6326, 4
      %v6329 = vshll.u32 %v6270, 16
      %v6331 = vrot.slane %v6329, 5
      %v6332 = vsel %vm1229, %v6327, %v6331
      %v6334 = vshrl.u32 %v6240, 16
      %v6336 = vrot.slane %v6334, 4
      %v6337 = vshll.u32 %v6240, 16
      %v6339 = vrot.slane %v6337, 5
      %v6340 = vor.u32 %v6336, %v6339
      %v6341 = vrot.slane %v6340, 4
      %v6343 = vshll.u32 %v6241, 16
      %v6345 = vrot.slane %v6343, 5
      %v6346 = vsel %vm1229, %v6341, %v6345
      %v6347 = vshrl.u32 %v6241, 16
      %v6349 = vrot.slane %v6347, 4
      %v6350 = vor.u32 %v6349, %v6345
      %v6351 = vrot.slane %v6350, 4
      %v6353 = vshll.u32 %v6271, 16
      %v6355 = vrot.slane %v6353, 5
      %v6356 = vsel %vm1229, %v6351, %v6355
      %v6358 = vshrl.u32 %v6242, 16
      %v6360 = vrot.slane %v6358, 4
      %v6361 = vshll.u32 %v6242, 16
      %v6363 = vrot.slane %v6361, 5
      %v6364 = vor.u32 %v6360, %v6363
      %v6365 = vrot.slane %v6364, 4
      %v6367 = vshll.u32 %v6243, 16
      %v6369 = vrot.slane %v6367, 5
      %v6370 = vsel %vm1229, %v6365, %v6369
      %v6371 = vshrl.u32 %v6243, 16
      %v6373 = vrot.slane %v6371, 4
      %v6374 = vor.u32 %v6373, %v6369
      %v6375 = vrot.slane %v6374, 4
      %v6377 = vshll.u32 %v6272, 16
      %v6379 = vrot.slane %v6377, 5
      %v6380 = vsel %vm1229, %v6375, %v6379
      %v6382 = vshrl.u32 %v6244, 16
      %v6384 = vrot.slane %v6382, 4
      %v6385 = vshll.u32 %v6244, 16
      %v6387 = vrot.slane %v6385, 5
      %v6388 = vor.u32 %v6384, %v6387
      %v6389 = vrot.slane %v6388, 4
      %v6391 = vshll.u32 %v6245, 16
      %v6393 = vrot.slane %v6391, 5
      %v6394 = vsel %vm1229, %v6389, %v6393
      %v6395 = vshrl.u32 %v6245, 16
      %v6397 = vrot.slane %v6395, 4
      %v6398 = vor.u32 %v6397, %v6393
      %v6399 = vrot.slane %v6398, 4
      %v6401 = vshll.u32 %v6273, 16
      %v6403 = vrot.slane %v6401, 5
      %v6404 = vsel %vm1229, %v6399, %v6403
      %v6406 = vshrl.u32 %v6246, 16
      %v6408 = vrot.slane %v6406, 4
      %v6409 = vshll.u32 %v6246, 16
      %v6411 = vrot.slane %v6409, 5
      %v6412 = vor.u32 %v6408, %v6411
      %v6413 = vrot.slane %v6412, 4
      %v6415 = vshll.u32 %v6247, 16
      %v6417 = vrot.slane %v6415, 5
      %v6418 = vsel %vm1229, %v6413, %v6417
      %v6419 = vshrl.u32 %v6247, 16
      %v6421 = vrot.slane %v6419, 4
      %v6422 = vor.u32 %v6421, %v6417
      %v6423 = vrot.slane %v6422, 4
      %v6425 = vshll.u32 %v6274, 16
      %v6427 = vrot.slane %v6425, 5
      %v6428 = vsel %vm1229, %v6423, %v6427
      %v6430 = vshrl.u32 %v6248, 16
      %v6432 = vrot.slane %v6430, 4
      %v6433 = vshll.u32 %v6248, 16
      %v6435 = vrot.slane %v6433, 5
      %v6436 = vor.u32 %v6432, %v6435
      %v6437 = vrot.slane %v6436, 4
      %v6439 = vshll.u32 %v6249, 16
      %v6441 = vrot.slane %v6439, 5
      %v6442 = vsel %vm1229, %v6437, %v6441
      %v6443 = vshrl.u32 %v6249, 16
      %v6445 = vrot.slane %v6443, 4
      %v6446 = vor.u32 %v6445, %v6441
      %v6447 = vrot.slane %v6446, 4
      %v6449 = vshll.u32 %v6275, 16
      %v6451 = vrot.slane %v6449, 5
      %v6452 = vsel %vm1229, %v6447, %v6451
      %v6454 = vshrl.u32 %v6250, 16
      %v6456 = vrot.slane %v6454, 4
      %v6457 = vshll.u32 %v6250, 16
      %v6459 = vrot.slane %v6457, 5
      %v6460 = vor.u32 %v6456, %v6459
      %v6461 = vrot.slane %v6460, 4
      %v6463 = vshll.u32 %v6251, 16
      %v6465 = vrot.slane %v6463, 5
      %v6466 = vsel %vm1229, %v6461, %v6465
      %v6467 = vshrl.u32 %v6251, 16
      %v6469 = vrot.slane %v6467, 4
      %v6470 = vor.u32 %v6469, %v6465
      %v6471 = vrot.slane %v6470, 4
      %v6473 = vshll.u32 %v6276, 16
      %v6475 = vrot.slane %v6473, 5
      %v6476 = vsel %vm1229, %v6471, %v6475
      %v6478 = vshrl.u32 %v6252, 16
      %v6480 = vrot.slane %v6478, 4
      %v6481 = vshll.u32 %v6252, 16
      %v6483 = vrot.slane %v6481, 5
      %v6484 = vor.u32 %v6480, %v6483
      %v6485 = vrot.slane %v6484, 4
      %v6487 = vshll.u32 %v6253, 16
      %v6489 = vrot.slane %v6487, 5
      %v6490 = vsel %vm1229, %v6485, %v6489
      %v6491 = vshrl.u32 %v6253, 16
      %v6493 = vrot.slane %v6491, 4
      %v6494 = vor.u32 %v6493, %v6489
      %v6495 = vrot.slane %v6494, 4
      %v6497 = vshll.u32 %v6277, 16
      %v6499 = vrot.slane %v6497, 5
      %v6500 = vsel %vm1229, %v6495, %v6499
      %v6502 = vshrl.u32 %v6254, 16
      %v6504 = vrot.slane %v6502, 4
      %v6505 = vshll.u32 %v6254, 16
      %v6507 = vrot.slane %v6505, 5
      %v6508 = vor.u32 %v6504, %v6507
      %v6509 = vrot.slane %v6508, 4
      %v6511 = vshll.u32 %v6255, 16
      %v6513 = vrot.slane %v6511, 5
      %v6514 = vsel %vm1229, %v6509, %v6513
      %v6515 = vshrl.u32 %v6255, 16
      %v6517 = vrot.slane %v6515, 4
      %v6518 = vor.u32 %v6517, %v6513
      %v6519 = vrot.slane %v6518, 4
      %v6521 = vshll.u32 %v6278, 16
      %v6523 = vrot.slane %v6521, 5
      %v6524 = vsel %vm1229, %v6519, %v6523
      %v6526 = vshrl.u32 %v6256, 16
      %v6528 = vrot.slane %v6526, 4
      %v6529 = vshll.u32 %v6256, 16
      %v6531 = vrot.slane %v6529, 5
      %v6532 = vor.u32 %v6528, %v6531
      %v6533 = vrot.slane %v6532, 4
      %v6535 = vshll.u32 %v6257, 16
      %v6537 = vrot.slane %v6535, 5
      %v6538 = vsel %vm1229, %v6533, %v6537
      %v6539 = vshrl.u32 %v6257, 16
      %v6541 = vrot.slane %v6539, 4
      %v6542 = vor.u32 %v6541, %v6537
      %v6543 = vrot.slane %v6542, 4
      %v6545 = vshll.u32 %v6279, 16
      %v6547 = vrot.slane %v6545, 5
      %v6548 = vsel %vm1229, %v6543, %v6547
      %v6550 = vshrl.u32 %v6258, 16
      %v6552 = vrot.slane %v6550, 4
      %v6553 = vshll.u32 %v6258, 16
      %v6555 = vrot.slane %v6553, 5
      %v6556 = vor.u32 %v6552, %v6555
      %v6557 = vrot.slane %v6556, 4
      %v6559 = vshll.u32 %v6259, 16
      %v6561 = vrot.slane %v6559, 5
      %v6562 = vsel %vm1229, %v6557, %v6561
      %v6563 = vshrl.u32 %v6259, 16
      %v6565 = vrot.slane %v6563, 4
      %v6566 = vor.u32 %v6565, %v6561
      %v6567 = vrot.slane %v6566, 4
      %v6569 = vshll.u32 %v6280, 16
      %v6571 = vrot.slane %v6569, 5
      %v6572 = vsel %vm1229, %v6567, %v6571
      %v6574 = vshrl.u32 %v6260, 16
      %v6576 = vrot.slane %v6574, 4
      %v6577 = vshll.u32 %v6260, 16
      %v6579 = vrot.slane %v6577, 5
      %v6580 = vor.u32 %v6576, %v6579
      %v6581 = vrot.slane %v6580, 4
      %v6583 = vshll.u32 %v6261, 16
      %v6585 = vrot.slane %v6583, 5
      %v6586 = vsel %vm1229, %v6581, %v6585
      %v6587 = vshrl.u32 %v6261, 16
      %v6589 = vrot.slane %v6587, 4
      %v6590 = vor.u32 %v6589, %v6585
      %v6591 = vrot.slane %v6590, 4
      %v6593 = vshll.u32 %v6281, 16
      %v6595 = vrot.slane %v6593, 5
      %v6596 = vsel %vm1229, %v6591, %v6595
      %v6598 = vshrl.u32 %v6262, 16
      %v6600 = vrot.slane %v6598, 4
      %v6601 = vshll.u32 %v6262, 16
      %v6603 = vrot.slane %v6601, 5
      %v6604 = vor.u32 %v6600, %v6603
      %v6605 = vrot.slane %v6604, 4
      %v6607 = vshll.u32 %v6263, 16
      %v6609 = vrot.slane %v6607, 5
      %v6610 = vsel %vm1229, %v6605, %v6609
      %v6611 = vshrl.u32 %v6263, 16
      %v6613 = vrot.slane %v6611, 4
      %v6614 = vor.u32 %v6613, %v6609
      %v6615 = vrot.slane %v6614, 4
      %v6617 = vshll.u32 %v6282, 16
      %v6619 = vrot.slane %v6617, 5
      %v6620 = vsel %vm1229, %v6615, %v6619
      %v6622 = vshrl.u32 %v6264, 16
      %v6624 = vrot.slane %v6622, 4
      %v6625 = vshll.u32 %v6264, 16
      %v6627 = vrot.slane %v6625, 5
      %v6628 = vor.u32 %v6624, %v6627
      %v6629 = vrot.slane %v6628, 4
      %v6631 = vshll.u32 %v6265, 16
      %v6633 = vrot.slane %v6631, 5
      %v6634 = vsel %vm1229, %v6629, %v6633
      %v6635 = vshrl.u32 %v6265, 16
      %v6637 = vrot.slane %v6635, 4
      %v6638 = vor.u32 %v6637, %v6633
      %v6639 = vrot.slane %v6638, 4
      %v6641 = vshll.u32 %v6283, 16
      %v6643 = vrot.slane %v6641, 5
      %v6644 = vsel %vm1229, %v6639, %v6643
      %v6646 = vshrl.u32 %v6266, 16
      %v6648 = vrot.slane %v6646, 4
      %v6649 = vshll.u32 %v6266, 16
      %v6651 = vrot.slane %v6649, 5
      %v6652 = vor.u32 %v6648, %v6651
      %v6653 = vrot.slane %v6652, 4
      %v6655 = vshll.u32 %v6267, 16
      %v6657 = vrot.slane %v6655, 5
      %v6658 = vsel %vm1229, %v6653, %v6657
      %v6659 = vshrl.u32 %v6267, 16
      %v6661 = vrot.slane %v6659, 4
      %v6662 = vor.u32 %v6661, %v6657
      %v6663 = vrot.slane %v6662, 4
      %v6665 = vshll.u32 %v6284, 16
      %v6667 = vrot.slane %v6665, 5
      %v6668 = vsel %vm1229, %v6663, %v6667
      %s6669 = scalar_lea.vmem %s6, 2
      %v6670 = vld [vmem:[%s6669] sm:$0x3]
      %v6671 = vunpack.c.l.b16 %v6298
      %v6672 = vunpack.c.l.b16 %v6308
      %v6673 = vunpack.c.l.b16 %v6322
      %v6674 = vunpack.c.l.b16 %v6332
      %v6675 = vunpack.c.l.b16 %v6346
      %v6676 = vunpack.c.l.b16 %v6356
      %v6677 = vunpack.c.l.b16 %v6370
      %v6678 = vunpack.c.l.b16 %v6380
      %v6679 = vunpack.c.l.b16 %v6394
      %v6680 = vunpack.c.l.b16 %v6404
      %v6681 = vunpack.c.l.b16 %v6418
      %v6682 = vunpack.c.l.b16 %v6428
      %v6683 = vunpack.c.l.b16 %v6442
      %v6684 = vunpack.c.l.b16 %v6452
      %v6685 = vunpack.c.l.b16 %v6466
      %v6686 = vunpack.c.l.b16 %v6476
      %v6687 = vunpack.c.l.b16 %v6490
      %v6688 = vunpack.c.l.b16 %v6500
      %v6689 = vunpack.c.l.b16 %v6514
      %v6690 = vunpack.c.l.b16 %v6524
      %v6691 = vunpack.c.l.b16 %v6538
      %v6692 = vunpack.c.l.b16 %v6548
      %v6693 = vunpack.c.l.b16 %v6562
      %v6694 = vunpack.c.l.b16 %v6572
      %v6695 = vunpack.c.l.b16 %v6586
      %v6696 = vunpack.c.l.b16 %v6596
      %v6697 = vunpack.c.l.b16 %v6610
      %v6698 = vunpack.c.l.b16 %v6620
      %v6699 = vunpack.c.l.b16 %v6634
      %v6700 = vunpack.c.l.b16 %v6644
      %v6701 = vunpack.c.l.b16 %v6658
      %v6702 = vunpack.c.l.b16 %v6668
      %v6703 = vpack.c.b16 %v6672, %v6671
      %v6704 = vpack.c.b16 %v6674, %v6673
      %v6705 = vpack.c.b16 %v6676, %v6675
      %v6706 = vpack.c.b16 %v6678, %v6677
      %v6707 = vpack.c.b16 %v6680, %v6679
      %v6708 = vpack.c.b16 %v6682, %v6681
      %v6709 = vpack.c.b16 %v6684, %v6683
      %v6710 = vpack.c.b16 %v6686, %v6685
      %v6711 = vpack.c.b16 %v6688, %v6687
      %v6712 = vpack.c.b16 %v6690, %v6689
      %v6713 = vpack.c.b16 %v6692, %v6691
      %v6714 = vpack.c.b16 %v6694, %v6693
      %v6715 = vpack.c.b16 %v6696, %v6695
      %v6716 = vpack.c.b16 %v6698, %v6697
      %v6717 = vpack.c.b16 %v6700, %v6699
      %v6718 = vpack.c.b16 %v6702, %v6701
      %v6720 = vsel %vm1664, %v6703, 0
      %v6723 = vsel %vm1664, %v6704, 0
      %v6726 = vsel %vm1664, %v6705, 0
      %v6729 = vsel %vm1664, %v6706, 0
      %v6732 = vsel %vm1664, %v6707, 0
      %v6735 = vsel %vm1664, %v6708, 0
      %v6738 = vsel %vm1664, %v6709, 0
      %v6741 = vsel %vm1664, %v6710, 0
      %v6744 = vsel %vm1664, %v6711, 0
      %v6747 = vsel %vm1664, %v6712, 0
      %v6750 = vsel %vm1664, %v6713, 0
      %v6753 = vsel %vm1664, %v6714, 0
      %v6756 = vsel %vm1664, %v6715, 0
      %v6759 = vsel %vm1664, %v6716, 0
      %v6762 = vsel %vm1664, %v6717, 0
      %v6765 = vsel %vm1664, %v6718, 0
      %v6768 = vsel %vm1713, %v6670, 0
      %6770 = vmatpush.bf16.msra.mxu0 0
      %6771 = vmatpush.bf16.msra.mxu0 0
      %6772 = vmatpush.bf16.msra.mxu0 0
      %6773 = vmatpush.bf16.msra.mxu0 0
      %6774 = vmatpush.bf16.msra.mxu0 0
      %6775 = vmatpush.bf16.msra.mxu0 0
      %6776 = vmatpush.bf16.msra.mxu0 0
      %6777 = vmatpush.bf16.msra.mxu0 %v6768
      %6778 = vmatmul.bf16.gmra.mxu0 %v6720
      %v6779 = vpop.f32.mrf.mxu0
      %v6780 = vadd.f32 0.0, %v6779
      %v6781 = vpop.f32.mrf.mxu0
      %v6782 = vadd.f32 0.0, %v6781
      %6783 = vmatmul.bf16.gmra.mxu0 %v6723
      %v6784 = vpop.f32.mrf.mxu0
      %v6785 = vadd.f32 0.0, %v6784
      %v6786 = vpop.f32.mrf.mxu0
      %v6787 = vadd.f32 0.0, %v6786
      %6788 = vmatmul.bf16.gmra.mxu0 %v6726
      %v6789 = vpop.f32.mrf.mxu0
      %v6790 = vadd.f32 0.0, %v6789
      %v6791 = vpop.f32.mrf.mxu0
      %v6792 = vadd.f32 0.0, %v6791
      %6793 = vmatmul.bf16.gmra.mxu0 %v6729
      %v6794 = vpop.f32.mrf.mxu0
      %v6795 = vadd.f32 0.0, %v6794
      %v6796 = vpop.f32.mrf.mxu0
      %v6797 = vadd.f32 0.0, %v6796
      %6798 = vmatmul.bf16.gmra.mxu0 %v6732
      %v6799 = vpop.f32.mrf.mxu0
      %v6800 = vadd.f32 0.0, %v6799
      %v6801 = vpop.f32.mrf.mxu0
      %v6802 = vadd.f32 0.0, %v6801
      %6803 = vmatmul.bf16.gmra.mxu0 %v6735
      %v6804 = vpop.f32.mrf.mxu0
      %v6805 = vadd.f32 0.0, %v6804
      %v6806 = vpop.f32.mrf.mxu0
      %v6807 = vadd.f32 0.0, %v6806
      %6808 = vmatmul.bf16.gmra.mxu0 %v6738
      %v6809 = vpop.f32.mrf.mxu0
      %v6810 = vadd.f32 0.0, %v6809
      %v6811 = vpop.f32.mrf.mxu0
      %v6812 = vadd.f32 0.0, %v6811
      %6813 = vmatmul.bf16.gmra.mxu0 %v6741
      %v6814 = vpop.f32.mrf.mxu0
      %v6815 = vadd.f32 0.0, %v6814
      %v6816 = vpop.f32.mrf.mxu0
      %v6817 = vadd.f32 0.0, %v6816
      %6818 = vmatmul.bf16.gmra.mxu0 %v6744
      %v6819 = vpop.f32.mrf.mxu0
      %v6820 = vadd.f32 0.0, %v6819
      %v6821 = vpop.f32.mrf.mxu0
      %v6822 = vadd.f32 0.0, %v6821
      %6823 = vmatmul.bf16.gmra.mxu0 %v6747
      %v6824 = vpop.f32.mrf.mxu0
      %v6825 = vadd.f32 0.0, %v6824
      %v6826 = vpop.f32.mrf.mxu0
      %v6827 = vadd.f32 0.0, %v6826
      %6828 = vmatmul.bf16.gmra.mxu0 %v6750
      %v6829 = vpop.f32.mrf.mxu0
      %v6830 = vadd.f32 0.0, %v6829
      %v6831 = vpop.f32.mrf.mxu0
      %v6832 = vadd.f32 0.0, %v6831
      %6833 = vmatmul.bf16.gmra.mxu0 %v6753
      %v6834 = vpop.f32.mrf.mxu0
      %v6835 = vadd.f32 0.0, %v6834
      %v6836 = vpop.f32.mrf.mxu0
      %v6837 = vadd.f32 0.0, %v6836
      %6838 = vmatmul.bf16.gmra.mxu0 %v6756
      %v6839 = vpop.f32.mrf.mxu0
      %v6840 = vadd.f32 0.0, %v6839
      %v6841 = vpop.f32.mrf.mxu0
      %v6842 = vadd.f32 0.0, %v6841
      %6843 = vmatmul.bf16.gmra.mxu0 %v6759
      %v6844 = vpop.f32.mrf.mxu0
      %v6845 = vadd.f32 0.0, %v6844
      %v6846 = vpop.f32.mrf.mxu0
      %v6847 = vadd.f32 0.0, %v6846
      %6848 = vmatmul.bf16.gmra.mxu0 %v6762
      %v6849 = vpop.f32.mrf.mxu0
      %v6850 = vadd.f32 0.0, %v6849
      %v6851 = vpop.f32.mrf.mxu0
      %v6852 = vadd.f32 0.0, %v6851
      %6853 = vmatmul.bf16.gmra.mxu0 %v6765
      %v6854 = vpop.f32.mrf.mxu0
      %v6855 = vadd.f32 0.0, %v6854
      %v6856 = vpop.f32.mrf.mxu0
      %v6857 = vadd.f32 0.0, %v6856
      %6858 = vdwg.mxu0
      %v6891 = vunpack.c.l.b16 %v6236
      %v6892 = vunpack.c.l.b16 %v6237
      %v6893 = vunpack.c.l.b16 %v6238
      %v6894 = vunpack.c.l.b16 %v6239
      %v6895 = vunpack.c.l.b16 %v6240
      %v6896 = vunpack.c.l.b16 %v6241
      %v6897 = vunpack.c.l.b16 %v6242
      %v6898 = vunpack.c.l.b16 %v6243
      %v6899 = vunpack.c.l.b16 %v6244
      %v6900 = vunpack.c.l.b16 %v6245
      %v6901 = vunpack.c.l.b16 %v6246
      %v6902 = vunpack.c.l.b16 %v6247
      %v6903 = vunpack.c.l.b16 %v6248
      %v6904 = vunpack.c.l.b16 %v6249
      %v6905 = vunpack.c.l.b16 %v6250
      %v6906 = vunpack.c.l.b16 %v6251
      %v6907 = vunpack.c.l.b16 %v6252
      %v6908 = vunpack.c.l.b16 %v6253
      %v6909 = vunpack.c.l.b16 %v6254
      %v6910 = vunpack.c.l.b16 %v6255
      %v6911 = vunpack.c.l.b16 %v6256
      %v6912 = vunpack.c.l.b16 %v6257
      %v6913 = vunpack.c.l.b16 %v6258
      %v6914 = vunpack.c.l.b16 %v6259
      %v6915 = vunpack.c.l.b16 %v6260
      %v6916 = vunpack.c.l.b16 %v6261
      %v6917 = vunpack.c.l.b16 %v6262
      %v6918 = vunpack.c.l.b16 %v6263
      %v6919 = vunpack.c.l.b16 %v6264
      %v6920 = vunpack.c.l.b16 %v6265
      %v6921 = vunpack.c.l.b16 %v6266
      %v6922 = vunpack.c.l.b16 %v6267
      %v6923 = vpack.c.b16 %v6892, %v6891
      %v6924 = vpack.c.b16 %v6894, %v6893
      %v6925 = vpack.c.b16 %v6896, %v6895
      %v6926 = vpack.c.b16 %v6898, %v6897
      %v6927 = vpack.c.b16 %v6900, %v6899
      %v6928 = vpack.c.b16 %v6902, %v6901
      %v6929 = vpack.c.b16 %v6904, %v6903
      %v6930 = vpack.c.b16 %v6906, %v6905
      %v6931 = vpack.c.b16 %v6908, %v6907
      %v6932 = vpack.c.b16 %v6910, %v6909
      %v6933 = vpack.c.b16 %v6912, %v6911
      %v6934 = vpack.c.b16 %v6914, %v6913
      %v6935 = vpack.c.b16 %v6916, %v6915
      %v6936 = vpack.c.b16 %v6918, %v6917
      %v6937 = vpack.c.b16 %v6920, %v6919
      %v6938 = vpack.c.b16 %v6922, %v6921
      %v6940 = vsel %vm1664, %v6923, 0
      %v6943 = vsel %vm1664, %v6924, 0
      %v6946 = vsel %vm1664, %v6925, 0
      %v6949 = vsel %vm1664, %v6926, 0
      %v6952 = vsel %vm1664, %v6927, 0
      %v6955 = vsel %vm1664, %v6928, 0
      %v6958 = vsel %vm1664, %v6929, 0
      %v6961 = vsel %vm1664, %v6930, 0
      %v6964 = vsel %vm1664, %v6931, 0
      %v6967 = vsel %vm1664, %v6932, 0
      %v6970 = vsel %vm1664, %v6933, 0
      %v6973 = vsel %vm1664, %v6934, 0
      %v6976 = vsel %vm1664, %v6935, 0
      %v6979 = vsel %vm1664, %v6936, 0
      %v6982 = vsel %vm1664, %v6937, 0
      %v6985 = vsel %vm1664, %v6938, 0
      %v6988 = vsel %vm1713, %v6268, 0
      %6990 = vmatpush.bf16.msra.mxu0 0
      %6991 = vmatpush.bf16.msra.mxu0 0
      %6992 = vmatpush.bf16.msra.mxu0 0
      %6993 = vmatpush.bf16.msra.mxu0 0
      %6994 = vmatpush.bf16.msra.mxu0 0
      %6995 = vmatpush.bf16.msra.mxu0 0
      %6996 = vmatpush.bf16.msra.mxu0 0
      %6997 = vmatpush.bf16.msra.mxu0 %v6988
      %6998 = vmatmul.bf16.gmra.mxu0 %v6940
      %v6999 = vpop.f32.mrf.mxu0
      %v7000 = vadd.f32 %v6780, %v6999
      %v7001 = vpop.f32.mrf.mxu0
      %v7002 = vadd.f32 %v6782, %v7001
      %7003 = vmatmul.bf16.gmra.mxu0 %v6943
      %v7004 = vpop.f32.mrf.mxu0
      %v7005 = vadd.f32 %v6785, %v7004
      %v7006 = vpop.f32.mrf.mxu0
      %v7007 = vadd.f32 %v6787, %v7006
      %7008 = vmatmul.bf16.gmra.mxu0 %v6946
      %v7009 = vpop.f32.mrf.mxu0
      %v7010 = vadd.f32 %v6790, %v7009
      %v7011 = vpop.f32.mrf.mxu0
      %v7012 = vadd.f32 %v6792, %v7011
      %7013 = vmatmul.bf16.gmra.mxu0 %v6949
      %v7014 = vpop.f32.mrf.mxu0
      %v7015 = vadd.f32 %v6795, %v7014
      %v7016 = vpop.f32.mrf.mxu0
      %v7017 = vadd.f32 %v6797, %v7016
      %7018 = vmatmul.bf16.gmra.mxu0 %v6952
      %v7019 = vpop.f32.mrf.mxu0
      %v7020 = vadd.f32 %v6800, %v7019
      %v7021 = vpop.f32.mrf.mxu0
      %v7022 = vadd.f32 %v6802, %v7021
      %7023 = vmatmul.bf16.gmra.mxu0 %v6955
      %v7024 = vpop.f32.mrf.mxu0
      %v7025 = vadd.f32 %v6805, %v7024
      %v7026 = vpop.f32.mrf.mxu0
      %v7027 = vadd.f32 %v6807, %v7026
      %7028 = vmatmul.bf16.gmra.mxu0 %v6958
      %v7029 = vpop.f32.mrf.mxu0
      %v7030 = vadd.f32 %v6810, %v7029
      %v7031 = vpop.f32.mrf.mxu0
      %v7032 = vadd.f32 %v6812, %v7031
      %7033 = vmatmul.bf16.gmra.mxu0 %v6961
      %v7034 = vpop.f32.mrf.mxu0
      %v7035 = vadd.f32 %v6815, %v7034
      %v7036 = vpop.f32.mrf.mxu0
      %v7037 = vadd.f32 %v6817, %v7036
      %7038 = vmatmul.bf16.gmra.mxu0 %v6964
      %v7039 = vpop.f32.mrf.mxu0
      %v7040 = vadd.f32 %v6820, %v7039
      %v7041 = vpop.f32.mrf.mxu0
      %v7042 = vadd.f32 %v6822, %v7041
      %7043 = vmatmul.bf16.gmra.mxu0 %v6967
      %v7044 = vpop.f32.mrf.mxu0
      %v7045 = vadd.f32 %v6825, %v7044
      %v7046 = vpop.f32.mrf.mxu0
      %v7047 = vadd.f32 %v6827, %v7046
      %7048 = vmatmul.bf16.gmra.mxu0 %v6970
      %v7049 = vpop.f32.mrf.mxu0
      %v7050 = vadd.f32 %v6830, %v7049
      %v7051 = vpop.f32.mrf.mxu0
      %v7052 = vadd.f32 %v6832, %v7051
      %7053 = vmatmul.bf16.gmra.mxu0 %v6973
      %v7054 = vpop.f32.mrf.mxu0
      %v7055 = vadd.f32 %v6835, %v7054
      %v7056 = vpop.f32.mrf.mxu0
      %v7057 = vadd.f32 %v6837, %v7056
      %7058 = vmatmul.bf16.gmra.mxu0 %v6976
      %v7059 = vpop.f32.mrf.mxu0
      %v7060 = vadd.f32 %v6840, %v7059
      %v7061 = vpop.f32.mrf.mxu0
      %v7062 = vadd.f32 %v6842, %v7061
      %7063 = vmatmul.bf16.gmra.mxu0 %v6979
      %v7064 = vpop.f32.mrf.mxu0
      %v7065 = vadd.f32 %v6845, %v7064
      %v7066 = vpop.f32.mrf.mxu0
      %v7067 = vadd.f32 %v6847, %v7066
      %7068 = vmatmul.bf16.gmra.mxu0 %v6982
      %v7069 = vpop.f32.mrf.mxu0
      %v7070 = vadd.f32 %v6850, %v7069
      %v7071 = vpop.f32.mrf.mxu0
      %v7072 = vadd.f32 %v6852, %v7071
      %7073 = vmatmul.bf16.gmra.mxu0 %v6985
      %v7074 = vpop.f32.mrf.mxu0
      %v7075 = vadd.f32 %v6855, %v7074
      %v7076 = vpop.f32.mrf.mxu0
      %v7077 = vadd.f32 %v6857, %v7076
      %7078 = vdwg.mxu0
      %v7079 = vld [vmem:[#allocation2] sm:$0xe]
      %v7080 = vld [vmem:[#allocation2 + $0xc] sm:$0xe]
      %v7081 = vld [vmem:[#allocation2 + $0x18] sm:$0xe]
      %v7082 = vld [vmem:[#allocation2 + $0x24] sm:$0xe]
      %v7083 = vld [vmem:[#allocation2 + $0x30] sm:$0xe]
      %v7084 = vld [vmem:[#allocation2 + $0x3c] sm:$0xe]
      %v7085 = vld [vmem:[#allocation2 + $0x48] sm:$0xe]
      %v7086 = vld [vmem:[#allocation2 + $0x54] sm:$0xe]
      %v7087 = vld [vmem:[#allocation2 + $0x60] sm:$0xe]
      %v7088 = vld [vmem:[#allocation2 + $0x6c] sm:$0xe]
      %v7089 = vld [vmem:[#allocation2 + $0x78] sm:$0xe]
      %v7090 = vld [vmem:[#allocation2 + $0x84] sm:$0xe]
      %v7091 = vld [vmem:[#allocation2 + $0x90] sm:$0xe]
      %v7092 = vld [vmem:[#allocation2 + $0x9c] sm:$0xe]
      %v7093 = vld [vmem:[#allocation2 + $0xa8] sm:$0xe]
      %v7094 = vld [vmem:[#allocation2 + $0xb4] sm:$0xe]
      %v7127 = vrot.slane %v7079, 5
      %v7128 = vrot.slane %v7127, 4
      %v7129 = vrot.slane %v6237, 5
      %v7130 = vsel %vm2076, %v7128, %v7129
      %v7131 = vrot.slane %v7129, 4
      %v7132 = vrot.slane %v6269, 5
      %v7133 = vsel %vm2076, %v7131, %v7132
      %v7134 = vrot.slane %v7080, 5
      %v7135 = vrot.slane %v7134, 4
      %v7136 = vrot.slane %v6239, 5
      %v7137 = vsel %vm2076, %v7135, %v7136
      %v7138 = vrot.slane %v7136, 4
      %v7139 = vrot.slane %v6270, 5
      %v7140 = vsel %vm2076, %v7138, %v7139
      %v7141 = vrot.slane %v7081, 5
      %v7142 = vrot.slane %v7141, 4
      %v7143 = vrot.slane %v6241, 5
      %v7144 = vsel %vm2076, %v7142, %v7143
      %v7145 = vrot.slane %v7143, 4
      %v7146 = vrot.slane %v6271, 5
      %v7147 = vsel %vm2076, %v7145, %v7146
      %v7148 = vrot.slane %v7082, 5
      %v7149 = vrot.slane %v7148, 4
      %v7150 = vrot.slane %v6243, 5
      %v7151 = vsel %vm2076, %v7149, %v7150
      %v7152 = vrot.slane %v7150, 4
      %v7153 = vrot.slane %v6272, 5
      %v7154 = vsel %vm2076, %v7152, %v7153
      %v7155 = vrot.slane %v7083, 5
      %v7156 = vrot.slane %v7155, 4
      %v7157 = vrot.slane %v6245, 5
      %v7158 = vsel %vm2076, %v7156, %v7157
      %v7159 = vrot.slane %v7157, 4
      %v7160 = vrot.slane %v6273, 5
      %v7161 = vsel %vm2076, %v7159, %v7160
      %v7162 = vrot.slane %v7084, 5
      %v7163 = vrot.slane %v7162, 4
      %v7164 = vrot.slane %v6247, 5
      %v7165 = vsel %vm2076, %v7163, %v7164
      %v7166 = vrot.slane %v7164, 4
      %v7167 = vrot.slane %v6274, 5
      %v7168 = vsel %vm2076, %v7166, %v7167
      %v7169 = vrot.slane %v7085, 5
      %v7170 = vrot.slane %v7169, 4
      %v7171 = vrot.slane %v6249, 5
      %v7172 = vsel %vm2076, %v7170, %v7171
      %v7173 = vrot.slane %v7171, 4
      %v7174 = vrot.slane %v6275, 5
      %v7175 = vsel %vm2076, %v7173, %v7174
      %v7176 = vrot.slane %v7086, 5
      %v7177 = vrot.slane %v7176, 4
      %v7178 = vrot.slane %v6251, 5
      %v7179 = vsel %vm2076, %v7177, %v7178
      %v7180 = vrot.slane %v7178, 4
      %v7181 = vrot.slane %v6276, 5
      %v7182 = vsel %vm2076, %v7180, %v7181
      %v7183 = vrot.slane %v7087, 5
      %v7184 = vrot.slane %v7183, 4
      %v7185 = vrot.slane %v6253, 5
      %v7186 = vsel %vm2076, %v7184, %v7185
      %v7187 = vrot.slane %v7185, 4
      %v7188 = vrot.slane %v6277, 5
      %v7189 = vsel %vm2076, %v7187, %v7188
      %v7190 = vrot.slane %v7088, 5
      %v7191 = vrot.slane %v7190, 4
      %v7192 = vrot.slane %v6255, 5
      %v7193 = vsel %vm2076, %v7191, %v7192
      %v7194 = vrot.slane %v7192, 4
      %v7195 = vrot.slane %v6278, 5
      %v7196 = vsel %vm2076, %v7194, %v7195
      %v7197 = vrot.slane %v7089, 5
      %v7198 = vrot.slane %v7197, 4
      %v7199 = vrot.slane %v6257, 5
      %v7200 = vsel %vm2076, %v7198, %v7199
      %v7201 = vrot.slane %v7199, 4
      %v7202 = vrot.slane %v6279, 5
      %v7203 = vsel %vm2076, %v7201, %v7202
      %v7204 = vrot.slane %v7090, 5
      %v7205 = vrot.slane %v7204, 4
      %v7206 = vrot.slane %v6259, 5
      %v7207 = vsel %vm2076, %v7205, %v7206
      %v7208 = vrot.slane %v7206, 4
      %v7209 = vrot.slane %v6280, 5
      %v7210 = vsel %vm2076, %v7208, %v7209
      %v7211 = vrot.slane %v7091, 5
      %v7212 = vrot.slane %v7211, 4
      %v7213 = vrot.slane %v6261, 5
      %v7214 = vsel %vm2076, %v7212, %v7213
      %v7215 = vrot.slane %v7213, 4
      %v7216 = vrot.slane %v6281, 5
      %v7217 = vsel %vm2076, %v7215, %v7216
      %v7218 = vrot.slane %v7092, 5
      %v7219 = vrot.slane %v7218, 4
      %v7220 = vrot.slane %v6263, 5
      %v7221 = vsel %vm2076, %v7219, %v7220
      %v7222 = vrot.slane %v7220, 4
      %v7223 = vrot.slane %v6282, 5
      %v7224 = vsel %vm2076, %v7222, %v7223
      %v7225 = vrot.slane %v7093, 5
      %v7226 = vrot.slane %v7225, 4
      %v7227 = vrot.slane %v6265, 5
      %v7228 = vsel %vm2076, %v7226, %v7227
      %v7229 = vrot.slane %v7227, 4
      %v7230 = vrot.slane %v6283, 5
      %v7231 = vsel %vm2076, %v7229, %v7230
      %v7232 = vrot.slane %v7094, 5
      %v7233 = vrot.slane %v7232, 4
      %v7234 = vrot.slane %v6267, 5
      %v7235 = vsel %vm2076, %v7233, %v7234
      %v7236 = vrot.slane %v7234, 4
      %v7237 = vrot.slane %v6284, 5
      %v7238 = vsel %vm2076, %v7236, %v7237
      %s7239 = scalar_lea.vmem %s6, 4
      %v7240 = vld [vmem:[%s7239] sm:$0x3]
      %v7241 = vunpack.c.l.b16 %v7130
      %v7242 = vunpack.c.l.b16 %v7133
      %v7243 = vunpack.c.l.b16 %v7137
      %v7244 = vunpack.c.l.b16 %v7140
      %v7245 = vunpack.c.l.b16 %v7144
      %v7246 = vunpack.c.l.b16 %v7147
      %v7247 = vunpack.c.l.b16 %v7151
      %v7248 = vunpack.c.l.b16 %v7154
      %v7249 = vunpack.c.l.b16 %v7158
      %v7250 = vunpack.c.l.b16 %v7161
      %v7251 = vunpack.c.l.b16 %v7165
      %v7252 = vunpack.c.l.b16 %v7168
      %v7253 = vunpack.c.l.b16 %v7172
      %v7254 = vunpack.c.l.b16 %v7175
      %v7255 = vunpack.c.l.b16 %v7179
      %v7256 = vunpack.c.l.b16 %v7182
      %v7257 = vunpack.c.l.b16 %v7186
      %v7258 = vunpack.c.l.b16 %v7189
      %v7259 = vunpack.c.l.b16 %v7193
      %v7260 = vunpack.c.l.b16 %v7196
      %v7261 = vunpack.c.l.b16 %v7200
      %v7262 = vunpack.c.l.b16 %v7203
      %v7263 = vunpack.c.l.b16 %v7207
      %v7264 = vunpack.c.l.b16 %v7210
      %v7265 = vunpack.c.l.b16 %v7214
      %v7266 = vunpack.c.l.b16 %v7217
      %v7267 = vunpack.c.l.b16 %v7221
      %v7268 = vunpack.c.l.b16 %v7224
      %v7269 = vunpack.c.l.b16 %v7228
      %v7270 = vunpack.c.l.b16 %v7231
      %v7271 = vunpack.c.l.b16 %v7235
      %v7272 = vunpack.c.l.b16 %v7238
      %v7273 = vpack.c.b16 %v7242, %v7241
      %v7274 = vpack.c.b16 %v7244, %v7243
      %v7275 = vpack.c.b16 %v7246, %v7245
      %v7276 = vpack.c.b16 %v7248, %v7247
      %v7277 = vpack.c.b16 %v7250, %v7249
      %v7278 = vpack.c.b16 %v7252, %v7251
      %v7279 = vpack.c.b16 %v7254, %v7253
      %v7280 = vpack.c.b16 %v7256, %v7255
      %v7281 = vpack.c.b16 %v7258, %v7257
      %v7282 = vpack.c.b16 %v7260, %v7259
      %v7283 = vpack.c.b16 %v7262, %v7261
      %v7284 = vpack.c.b16 %v7264, %v7263
      %v7285 = vpack.c.b16 %v7266, %v7265
      %v7286 = vpack.c.b16 %v7268, %v7267
      %v7287 = vpack.c.b16 %v7270, %v7269
      %v7288 = vpack.c.b16 %v7272, %v7271
      %v7290 = vsel %vm1664, %v7273, 0
      %v7293 = vsel %vm1664, %v7274, 0
      %v7296 = vsel %vm1664, %v7275, 0
      %v7299 = vsel %vm1664, %v7276, 0
      %v7302 = vsel %vm1664, %v7277, 0
      %v7305 = vsel %vm1664, %v7278, 0
      %v7308 = vsel %vm1664, %v7279, 0
      %v7311 = vsel %vm1664, %v7280, 0
      %v7314 = vsel %vm1664, %v7281, 0
      %v7317 = vsel %vm1664, %v7282, 0
      %v7320 = vsel %vm1664, %v7283, 0
      %v7323 = vsel %vm1664, %v7284, 0
      %v7326 = vsel %vm1664, %v7285, 0
      %v7329 = vsel %vm1664, %v7286, 0
      %v7332 = vsel %vm1664, %v7287, 0
      %v7335 = vsel %vm1664, %v7288, 0
      %v7338 = vsel %vm1713, %v7240, 0
      %7340 = vmatpush.bf16.msra.mxu0 0
      %7341 = vmatpush.bf16.msra.mxu0 0
      %7342 = vmatpush.bf16.msra.mxu0 0
      %7343 = vmatpush.bf16.msra.mxu0 0
      %7344 = vmatpush.bf16.msra.mxu0 0
      %7345 = vmatpush.bf16.msra.mxu0 0
      %7346 = vmatpush.bf16.msra.mxu0 0
      %7347 = vmatpush.bf16.msra.mxu0 %v7338
      %7348 = vmatmul.bf16.gmra.mxu0 %v7290
      %v7349 = vpop.f32.mrf.mxu0
      %v7350 = vadd.f32 0.0, %v7349
      %v7351 = vpop.f32.mrf.mxu0
      %v7352 = vadd.f32 0.0, %v7351
      %7353 = vmatmul.bf16.gmra.mxu0 %v7293
      %v7354 = vpop.f32.mrf.mxu0
      %v7355 = vadd.f32 0.0, %v7354
      %v7356 = vpop.f32.mrf.mxu0
      %v7357 = vadd.f32 0.0, %v7356
      %7358 = vmatmul.bf16.gmra.mxu0 %v7296
      %v7359 = vpop.f32.mrf.mxu0
      %v7360 = vadd.f32 0.0, %v7359
      %v7361 = vpop.f32.mrf.mxu0
      %v7362 = vadd.f32 0.0, %v7361
      %7363 = vmatmul.bf16.gmra.mxu0 %v7299
      %v7364 = vpop.f32.mrf.mxu0
      %v7365 = vadd.f32 0.0, %v7364
      %v7366 = vpop.f32.mrf.mxu0
      %v7367 = vadd.f32 0.0, %v7366
      %7368 = vmatmul.bf16.gmra.mxu0 %v7302
      %v7369 = vpop.f32.mrf.mxu0
      %v7370 = vadd.f32 0.0, %v7369
      %v7371 = vpop.f32.mrf.mxu0
      %v7372 = vadd.f32 0.0, %v7371
      %7373 = vmatmul.bf16.gmra.mxu0 %v7305
      %v7374 = vpop.f32.mrf.mxu0
      %v7375 = vadd.f32 0.0, %v7374
      %v7376 = vpop.f32.mrf.mxu0
      %v7377 = vadd.f32 0.0, %v7376
      %7378 = vmatmul.bf16.gmra.mxu0 %v7308
      %v7379 = vpop.f32.mrf.mxu0
      %v7380 = vadd.f32 0.0, %v7379
      %v7381 = vpop.f32.mrf.mxu0
      %v7382 = vadd.f32 0.0, %v7381
      %7383 = vmatmul.bf16.gmra.mxu0 %v7311
      %v7384 = vpop.f32.mrf.mxu0
      %v7385 = vadd.f32 0.0, %v7384
      %v7386 = vpop.f32.mrf.mxu0
      %v7387 = vadd.f32 0.0, %v7386
      %7388 = vmatmul.bf16.gmra.mxu0 %v7314
      %v7389 = vpop.f32.mrf.mxu0
      %v7390 = vadd.f32 0.0, %v7389
      %v7391 = vpop.f32.mrf.mxu0
      %v7392 = vadd.f32 0.0, %v7391
      %7393 = vmatmul.bf16.gmra.mxu0 %v7317
      %v7394 = vpop.f32.mrf.mxu0
      %v7395 = vadd.f32 0.0, %v7394
      %v7396 = vpop.f32.mrf.mxu0
      %v7397 = vadd.f32 0.0, %v7396
      %7398 = vmatmul.bf16.gmra.mxu0 %v7320
      %v7399 = vpop.f32.mrf.mxu0
      %v7400 = vadd.f32 0.0, %v7399
      %v7401 = vpop.f32.mrf.mxu0
      %v7402 = vadd.f32 0.0, %v7401
      %7403 = vmatmul.bf16.gmra.mxu0 %v7323
      %v7404 = vpop.f32.mrf.mxu0
      %v7405 = vadd.f32 0.0, %v7404
      %v7406 = vpop.f32.mrf.mxu0
      %v7407 = vadd.f32 0.0, %v7406
      %7408 = vmatmul.bf16.gmra.mxu0 %v7326
      %v7409 = vpop.f32.mrf.mxu0
      %v7410 = vadd.f32 0.0, %v7409
      %v7411 = vpop.f32.mrf.mxu0
      %v7412 = vadd.f32 0.0, %v7411
      %7413 = vmatmul.bf16.gmra.mxu0 %v7329
      %v7414 = vpop.f32.mrf.mxu0
      %v7415 = vadd.f32 0.0, %v7414
      %v7416 = vpop.f32.mrf.mxu0
      %v7417 = vadd.f32 0.0, %v7416
      %7418 = vmatmul.bf16.gmra.mxu0 %v7332
      %v7419 = vpop.f32.mrf.mxu0
      %v7420 = vadd.f32 0.0, %v7419
      %v7421 = vpop.f32.mrf.mxu0
      %v7422 = vadd.f32 0.0, %v7421
      %7423 = vmatmul.bf16.gmra.mxu0 %v7335
      %v7424 = vpop.f32.mrf.mxu0
      %v7425 = vadd.f32 0.0, %v7424
      %v7426 = vpop.f32.mrf.mxu0
      %v7427 = vadd.f32 0.0, %v7426
      %7428 = vdwg.mxu0
      %v7429 = vadd.f32 %v7000, %v7350
      %v7430 = vadd.f32 %v7002, %v7352
      %v7431 = vadd.f32 %v7005, %v7355
      %v7432 = vadd.f32 %v7007, %v7357
      %v7433 = vadd.f32 %v7010, %v7360
      %v7434 = vadd.f32 %v7012, %v7362
      %v7435 = vadd.f32 %v7015, %v7365
      %v7436 = vadd.f32 %v7017, %v7367
      %v7437 = vadd.f32 %v7020, %v7370
      %v7438 = vadd.f32 %v7022, %v7372
      %v7439 = vadd.f32 %v7025, %v7375
      %v7440 = vadd.f32 %v7027, %v7377
      %v7441 = vadd.f32 %v7030, %v7380
      %v7442 = vadd.f32 %v7032, %v7382
      %v7443 = vadd.f32 %v7035, %v7385
      %v7444 = vadd.f32 %v7037, %v7387
      %v7445 = vadd.f32 %v7040, %v7390
      %v7446 = vadd.f32 %v7042, %v7392
      %v7447 = vadd.f32 %v7045, %v7395
      %v7448 = vadd.f32 %v7047, %v7397
      %v7449 = vadd.f32 %v7050, %v7400
      %v7450 = vadd.f32 %v7052, %v7402
      %v7451 = vadd.f32 %v7055, %v7405
      %v7452 = vadd.f32 %v7057, %v7407
      %v7453 = vadd.f32 %v7060, %v7410
      %v7454 = vadd.f32 %v7062, %v7412
      %v7455 = vadd.f32 %v7065, %v7415
      %v7456 = vadd.f32 %v7067, %v7417
      %v7457 = vadd.f32 %v7070, %v7420
      %v7458 = vadd.f32 %v7072, %v7422
      %v7459 = vadd.f32 %v7075, %v7425
      %v7460 = vadd.f32 %v7077, %v7427
      %v7461 = vld [vmem:[%s755] sm:$0xf]
      %v7462 = vld [vmem:[%s755 + $0x4] sm:$0xf]
      %v7463 = vld [vmem:[%s755 + $0xc] sm:$0xf]
      %v7464 = vld [vmem:[%s755 + $0x10] sm:$0xf]
      %v7465 = vld [vmem:[%s755 + $0x18] sm:$0xf]
      %v7466 = vld [vmem:[%s755 + $0x1c] sm:$0xf]
      %v7467 = vld [vmem:[%s755 + $0x24] sm:$0xf]
      %v7468 = vld [vmem:[%s755 + $0x28] sm:$0xf]
      %v7469 = vld [vmem:[%s755 + $0x30] sm:$0xf]
      %v7470 = vld [vmem:[%s755 + $0x34] sm:$0xf]
      %v7471 = vld [vmem:[%s755 + $0x3c] sm:$0xf]
      %v7472 = vld [vmem:[%s755 + $0x40] sm:$0xf]
      %v7473 = vld [vmem:[%s755 + $0x48] sm:$0xf]
      %v7474 = vld [vmem:[%s755 + $0x4c] sm:$0xf]
      %v7475 = vld [vmem:[%s755 + $0x54] sm:$0xf]
      %v7476 = vld [vmem:[%s755 + $0x58] sm:$0xf]
      %v7477 = vld [vmem:[%s755 + $0x60] sm:$0xf]
      %v7478 = vld [vmem:[%s755 + $0x64] sm:$0xf]
      %v7479 = vld [vmem:[%s755 + $0x6c] sm:$0xf]
      %v7480 = vld [vmem:[%s755 + $0x70] sm:$0xf]
      %v7481 = vld [vmem:[%s755 + $0x78] sm:$0xf]
      %v7482 = vld [vmem:[%s755 + $0x7c] sm:$0xf]
      %v7483 = vld [vmem:[%s755 + $0x84] sm:$0xf]
      %v7484 = vld [vmem:[%s755 + $0x88] sm:$0xf]
      %v7485 = vld [vmem:[%s755 + $0x90] sm:$0xf]
      %v7486 = vld [vmem:[%s755 + $0x94] sm:$0xf]
      %v7487 = vld [vmem:[%s755 + $0x9c] sm:$0xf]
      %v7488 = vld [vmem:[%s755 + $0xa0] sm:$0xf]
      %v7489 = vld [vmem:[%s755 + $0xa8] sm:$0xf]
      %v7490 = vld [vmem:[%s755 + $0xac] sm:$0xf]
      %v7491 = vld [vmem:[%s755 + $0xb4] sm:$0xf]
      %v7492 = vld [vmem:[%s755 + $0xb8] sm:$0xf]
      %s7493 = scalar_lea.vmem %s6, 6
      %v7494 = vld [vmem:[%s7493] sm:$0x3]
      %v7527 = vunpack.c.l.b16 %v7461
      %v7528 = vunpack.c.l.b16 %v7462
      %v7529 = vunpack.c.l.b16 %v7463
      %v7530 = vunpack.c.l.b16 %v7464
      %v7531 = vunpack.c.l.b16 %v7465
      %v7532 = vunpack.c.l.b16 %v7466
      %v7533 = vunpack.c.l.b16 %v7467
      %v7534 = vunpack.c.l.b16 %v7468
      %v7535 = vunpack.c.l.b16 %v7469
      %v7536 = vunpack.c.l.b16 %v7470
      %v7537 = vunpack.c.l.b16 %v7471
      %v7538 = vunpack.c.l.b16 %v7472
      %v7539 = vunpack.c.l.b16 %v7473
      %v7540 = vunpack.c.l.b16 %v7474
      %v7541 = vunpack.c.l.b16 %v7475
      %v7542 = vunpack.c.l.b16 %v7476
      %v7543 = vunpack.c.l.b16 %v7477
      %v7544 = vunpack.c.l.b16 %v7478
      %v7545 = vunpack.c.l.b16 %v7479
      %v7546 = vunpack.c.l.b16 %v7480
      %v7547 = vunpack.c.l.b16 %v7481
      %v7548 = vunpack.c.l.b16 %v7482
      %v7549 = vunpack.c.l.b16 %v7483
      %v7550 = vunpack.c.l.b16 %v7484
      %v7551 = vunpack.c.l.b16 %v7485
      %v7552 = vunpack.c.l.b16 %v7486
      %v7553 = vunpack.c.l.b16 %v7487
      %v7554 = vunpack.c.l.b16 %v7488
      %v7555 = vunpack.c.l.b16 %v7489
      %v7556 = vunpack.c.l.b16 %v7490
      %v7557 = vunpack.c.l.b16 %v7491
      %v7558 = vunpack.c.l.b16 %v7492
      %v7559 = vpack.c.b16 %v7528, %v7527
      %v7560 = vpack.c.b16 %v7530, %v7529
      %v7561 = vpack.c.b16 %v7532, %v7531
      %v7562 = vpack.c.b16 %v7534, %v7533
      %v7563 = vpack.c.b16 %v7536, %v7535
      %v7564 = vpack.c.b16 %v7538, %v7537
      %v7565 = vpack.c.b16 %v7540, %v7539
      %v7566 = vpack.c.b16 %v7542, %v7541
      %v7567 = vpack.c.b16 %v7544, %v7543
      %v7568 = vpack.c.b16 %v7546, %v7545
      %v7569 = vpack.c.b16 %v7548, %v7547
      %v7570 = vpack.c.b16 %v7550, %v7549
      %v7571 = vpack.c.b16 %v7552, %v7551
      %v7572 = vpack.c.b16 %v7554, %v7553
      %v7573 = vpack.c.b16 %v7556, %v7555
      %v7574 = vpack.c.b16 %v7558, %v7557
      %v7576 = vsel %vm1664, %v7559, 0
      %v7579 = vsel %vm1664, %v7560, 0
      %v7582 = vsel %vm1664, %v7561, 0
      %v7585 = vsel %vm1664, %v7562, 0
      %v7588 = vsel %vm1664, %v7563, 0
      %v7591 = vsel %vm1664, %v7564, 0
      %v7594 = vsel %vm1664, %v7565, 0
      %v7597 = vsel %vm1664, %v7566, 0
      %v7600 = vsel %vm1664, %v7567, 0
      %v7603 = vsel %vm1664, %v7568, 0
      %v7606 = vsel %vm1664, %v7569, 0
      %v7609 = vsel %vm1664, %v7570, 0
      %v7612 = vsel %vm1664, %v7571, 0
      %v7615 = vsel %vm1664, %v7572, 0
      %v7618 = vsel %vm1664, %v7573, 0
      %v7621 = vsel %vm1664, %v7574, 0
      %v7624 = vsel %vm1713, %v7494, 0
      %7626 = vmatpush.bf16.msra.mxu0 0
      %7627 = vmatpush.bf16.msra.mxu0 0
      %7628 = vmatpush.bf16.msra.mxu0 0
      %7629 = vmatpush.bf16.msra.mxu0 0
      %7630 = vmatpush.bf16.msra.mxu0 0
      %7631 = vmatpush.bf16.msra.mxu0 0
      %7632 = vmatpush.bf16.msra.mxu0 0
      %7633 = vmatpush.bf16.msra.mxu0 %v7624
      %7634 = vmatmul.bf16.gmra.mxu0 %v7576
      %v7635 = vpop.f32.mrf.mxu0
      %v7636 = vadd.f32 0.0, %v7635
      %v7637 = vpop.f32.mrf.mxu0
      %v7638 = vadd.f32 0.0, %v7637
      %7639 = vmatmul.bf16.gmra.mxu0 %v7579
      %v7640 = vpop.f32.mrf.mxu0
      %v7641 = vadd.f32 0.0, %v7640
      %v7642 = vpop.f32.mrf.mxu0
      %v7643 = vadd.f32 0.0, %v7642
      %7644 = vmatmul.bf16.gmra.mxu0 %v7582
      %v7645 = vpop.f32.mrf.mxu0
      %v7646 = vadd.f32 0.0, %v7645
      %v7647 = vpop.f32.mrf.mxu0
      %v7648 = vadd.f32 0.0, %v7647
      %7649 = vmatmul.bf16.gmra.mxu0 %v7585
      %v7650 = vpop.f32.mrf.mxu0
      %v7651 = vadd.f32 0.0, %v7650
      %v7652 = vpop.f32.mrf.mxu0
      %v7653 = vadd.f32 0.0, %v7652
      %7654 = vmatmul.bf16.gmra.mxu0 %v7588
      %v7655 = vpop.f32.mrf.mxu0
      %v7656 = vadd.f32 0.0, %v7655
      %v7657 = vpop.f32.mrf.mxu0
      %v7658 = vadd.f32 0.0, %v7657
      %7659 = vmatmul.bf16.gmra.mxu0 %v7591
      %v7660 = vpop.f32.mrf.mxu0
      %v7661 = vadd.f32 0.0, %v7660
      %v7662 = vpop.f32.mrf.mxu0
      %v7663 = vadd.f32 0.0, %v7662
      %7664 = vmatmul.bf16.gmra.mxu0 %v7594
      %v7665 = vpop.f32.mrf.mxu0
      %v7666 = vadd.f32 0.0, %v7665
      %v7667 = vpop.f32.mrf.mxu0
      %v7668 = vadd.f32 0.0, %v7667
      %7669 = vmatmul.bf16.gmra.mxu0 %v7597
      %v7670 = vpop.f32.mrf.mxu0
      %v7671 = vadd.f32 0.0, %v7670
      %v7672 = vpop.f32.mrf.mxu0
      %v7673 = vadd.f32 0.0, %v7672
      %7674 = vmatmul.bf16.gmra.mxu0 %v7600
      %v7675 = vpop.f32.mrf.mxu0
      %v7676 = vadd.f32 0.0, %v7675
      %v7677 = vpop.f32.mrf.mxu0
      %v7678 = vadd.f32 0.0, %v7677
      %7679 = vmatmul.bf16.gmra.mxu0 %v7603
      %v7680 = vpop.f32.mrf.mxu0
      %v7681 = vadd.f32 0.0, %v7680
      %v7682 = vpop.f32.mrf.mxu0
      %v7683 = vadd.f32 0.0, %v7682
      %7684 = vmatmul.bf16.gmra.mxu0 %v7606
      %v7685 = vpop.f32.mrf.mxu0
      %v7686 = vadd.f32 0.0, %v7685
      %v7687 = vpop.f32.mrf.mxu0
      %v7688 = vadd.f32 0.0, %v7687
      %7689 = vmatmul.bf16.gmra.mxu0 %v7609
      %v7690 = vpop.f32.mrf.mxu0
      %v7691 = vadd.f32 0.0, %v7690
      %v7692 = vpop.f32.mrf.mxu0
      %v7693 = vadd.f32 0.0, %v7692
      %7694 = vmatmul.bf16.gmra.mxu0 %v7612
      %v7695 = vpop.f32.mrf.mxu0
      %v7696 = vadd.f32 0.0, %v7695
      %v7697 = vpop.f32.mrf.mxu0
      %v7698 = vadd.f32 0.0, %v7697
      %7699 = vmatmul.bf16.gmra.mxu0 %v7615
      %v7700 = vpop.f32.mrf.mxu0
      %v7701 = vadd.f32 0.0, %v7700
      %v7702 = vpop.f32.mrf.mxu0
      %v7703 = vadd.f32 0.0, %v7702
      %7704 = vmatmul.bf16.gmra.mxu0 %v7618
      %v7705 = vpop.f32.mrf.mxu0
      %v7706 = vadd.f32 0.0, %v7705
      %v7707 = vpop.f32.mrf.mxu0
      %v7708 = vadd.f32 0.0, %v7707
      %7709 = vmatmul.bf16.gmra.mxu0 %v7621
      %v7710 = vpop.f32.mrf.mxu0
      %v7711 = vadd.f32 0.0, %v7710
      %v7712 = vpop.f32.mrf.mxu0
      %v7713 = vadd.f32 0.0, %v7712
      %7714 = vdwg.mxu0
      %v7715 = vadd.f32 %v7429, %v7636
      %v7716 = vadd.f32 %v7430, %v7638
      %v7717 = vadd.f32 %v7431, %v7641
      %v7718 = vadd.f32 %v7432, %v7643
      %v7719 = vadd.f32 %v7433, %v7646
      %v7720 = vadd.f32 %v7434, %v7648
      %v7721 = vadd.f32 %v7435, %v7651
      %v7722 = vadd.f32 %v7436, %v7653
      %v7723 = vadd.f32 %v7437, %v7656
      %v7724 = vadd.f32 %v7438, %v7658
      %v7725 = vadd.f32 %v7439, %v7661
      %v7726 = vadd.f32 %v7440, %v7663
      %v7727 = vadd.f32 %v7441, %v7666
      %v7728 = vadd.f32 %v7442, %v7668
      %v7729 = vadd.f32 %v7443, %v7671
      %v7730 = vadd.f32 %v7444, %v7673
      %v7731 = vadd.f32 %v7445, %v7676
      %v7732 = vadd.f32 %v7446, %v7678
      %v7733 = vadd.f32 %v7447, %v7681
      %v7734 = vadd.f32 %v7448, %v7683
      %v7735 = vadd.f32 %v7449, %v7686
      %v7736 = vadd.f32 %v7450, %v7688
      %v7737 = vadd.f32 %v7451, %v7691
      %v7738 = vadd.f32 %v7452, %v7693
      %v7739 = vadd.f32 %v7453, %v7696
      %v7740 = vadd.f32 %v7454, %v7698
      %v7741 = vadd.f32 %v7455, %v7701
      %v7742 = vadd.f32 %v7456, %v7703
      %v7743 = vadd.f32 %v7457, %v7706
      %v7744 = vadd.f32 %v7458, %v7708
      %v7745 = vadd.f32 %v7459, %v7711
      %v7746 = vadd.f32 %v7460, %v7713
      %v7747 = vld [vmem:[%s755] sm:$0xf]
      %v7748 = vld [vmem:[%s755 + $0x4] sm:$0xf]
      %v7749 = vld [vmem:[%s755 + $0x8] sm:$0x1]
      %v7750 = vld [vmem:[%s755 + $0xc] sm:$0xf]
      %v7751 = vld [vmem:[%s755 + $0x10] sm:$0xf]
      %v7752 = vld [vmem:[%s755 + $0x14] sm:$0x1]
      %v7753 = vld [vmem:[%s755 + $0x18] sm:$0xf]
      %v7754 = vld [vmem:[%s755 + $0x1c] sm:$0xf]
      %v7755 = vld [vmem:[%s755 + $0x20] sm:$0x1]
      %v7756 = vld [vmem:[%s755 + $0x24] sm:$0xf]
      %v7757 = vld [vmem:[%s755 + $0x28] sm:$0xf]
      %v7758 = vld [vmem:[%s755 + $0x2c] sm:$0x1]
      %v7759 = vld [vmem:[%s755 + $0x30] sm:$0xf]
      %v7760 = vld [vmem:[%s755 + $0x34] sm:$0xf]
      %v7761 = vld [vmem:[%s755 + $0x38] sm:$0x1]
      %v7762 = vld [vmem:[%s755 + $0x3c] sm:$0xf]
      %v7763 = vld [vmem:[%s755 + $0x40] sm:$0xf]
      %v7764 = vld [vmem:[%s755 + $0x44] sm:$0x1]
      %v7765 = vld [vmem:[%s755 + $0x48] sm:$0xf]
      %v7766 = vld [vmem:[%s755 + $0x4c] sm:$0xf]
      %v7767 = vld [vmem:[%s755 + $0x50] sm:$0x1]
      %v7768 = vld [vmem:[%s755 + $0x54] sm:$0xf]
      %v7769 = vld [vmem:[%s755 + $0x58] sm:$0xf]
      %v7770 = vld [vmem:[%s755 + $0x5c] sm:$0x1]
      %v7771 = vld [vmem:[%s755 + $0x60] sm:$0xf]
      %v7772 = vld [vmem:[%s755 + $0x64] sm:$0xf]
      %v7773 = vld [vmem:[%s755 + $0x68] sm:$0x1]
      %v7774 = vld [vmem:[%s755 + $0x6c] sm:$0xf]
      %v7775 = vld [vmem:[%s755 + $0x70] sm:$0xf]
      %v7776 = vld [vmem:[%s755 + $0x74] sm:$0x1]
      %v7777 = vld [vmem:[%s755 + $0x78] sm:$0xf]
      %v7778 = vld [vmem:[%s755 + $0x7c] sm:$0xf]
      %v7779 = vld [vmem:[%s755 + $0x80] sm:$0x1]
      %v7780 = vld [vmem:[%s755 + $0x84] sm:$0xf]
      %v7781 = vld [vmem:[%s755 + $0x88] sm:$0xf]
      %v7782 = vld [vmem:[%s755 + $0x8c] sm:$0x1]
      %v7783 = vld [vmem:[%s755 + $0x90] sm:$0xf]
      %v7784 = vld [vmem:[%s755 + $0x94] sm:$0xf]
      %v7785 = vld [vmem:[%s755 + $0x98] sm:$0x1]
      %v7786 = vld [vmem:[%s755 + $0x9c] sm:$0xf]
      %v7787 = vld [vmem:[%s755 + $0xa0] sm:$0xf]
      %v7788 = vld [vmem:[%s755 + $0xa4] sm:$0x1]
      %v7789 = vld [vmem:[%s755 + $0xa8] sm:$0xf]
      %v7790 = vld [vmem:[%s755 + $0xac] sm:$0xf]
      %v7791 = vld [vmem:[%s755 + $0xb0] sm:$0x1]
      %v7792 = vld [vmem:[%s755 + $0xb4] sm:$0xf]
      %v7793 = vld [vmem:[%s755 + $0xb8] sm:$0xf]
      %v7794 = vld [vmem:[%s755 + $0xbc] sm:$0x1]
      %v7796 = vshrl.u32 %v7747, 16
      %v7798 = vrot.slane %v7796, 4
      %v7799 = vshll.u32 %v7747, 16
      %v7801 = vrot.slane %v7799, 5
      %v7802 = vor.u32 %v7798, %v7801
      %v7803 = vrot.slane %v7802, 4
      %v7805 = vshll.u32 %v7748, 16
      %v7807 = vrot.slane %v7805, 5
      %v7808 = vsel %vm1229, %v7803, %v7807
      %v7809 = vshrl.u32 %v7748, 16
      %v7811 = vrot.slane %v7809, 4
      %v7812 = vor.u32 %v7811, %v7807
      %v7813 = vrot.slane %v7812, 4
      %v7815 = vshll.u32 %v7749, 16
      %v7817 = vrot.slane %v7815, 5
      %v7818 = vsel %vm1229, %v7813, %v7817
      %v7820 = vshrl.u32 %v7750, 16
      %v7822 = vrot.slane %v7820, 4
      %v7823 = vshll.u32 %v7750, 16
      %v7825 = vrot.slane %v7823, 5
      %v7826 = vor.u32 %v7822, %v7825
      %v7827 = vrot.slane %v7826, 4
      %v7829 = vshll.u32 %v7751, 16
      %v7831 = vrot.slane %v7829, 5
      %v7832 = vsel %vm1229, %v7827, %v7831
      %v7833 = vshrl.u32 %v7751, 16
      %v7835 = vrot.slane %v7833, 4
      %v7836 = vor.u32 %v7835, %v7831
      %v7837 = vrot.slane %v7836, 4
      %v7839 = vshll.u32 %v7752, 16
      %v7841 = vrot.slane %v7839, 5
      %v7842 = vsel %vm1229, %v7837, %v7841
      %v7844 = vshrl.u32 %v7753, 16
      %v7846 = vrot.slane %v7844, 4
      %v7847 = vshll.u32 %v7753, 16
      %v7849 = vrot.slane %v7847, 5
      %v7850 = vor.u32 %v7846, %v7849
      %v7851 = vrot.slane %v7850, 4
      %v7853 = vshll.u32 %v7754, 16
      %v7855 = vrot.slane %v7853, 5
      %v7856 = vsel %vm1229, %v7851, %v7855
      %v7857 = vshrl.u32 %v7754, 16
      %v7859 = vrot.slane %v7857, 4
      %v7860 = vor.u32 %v7859, %v7855
      %v7861 = vrot.slane %v7860, 4
      %v7863 = vshll.u32 %v7755, 16
      %v7865 = vrot.slane %v7863, 5
      %v7866 = vsel %vm1229, %v7861, %v7865
      %v7868 = vshrl.u32 %v7756, 16
      %v7870 = vrot.slane %v7868, 4
      %v7871 = vshll.u32 %v7756, 16
      %v7873 = vrot.slane %v7871, 5
      %v7874 = vor.u32 %v7870, %v7873
      %v7875 = vrot.slane %v7874, 4
      %v7877 = vshll.u32 %v7757, 16
      %v7879 = vrot.slane %v7877, 5
      %v7880 = vsel %vm1229, %v7875, %v7879
      %v7881 = vshrl.u32 %v7757, 16
      %v7883 = vrot.slane %v7881, 4
      %v7884 = vor.u32 %v7883, %v7879
      %v7885 = vrot.slane %v7884, 4
      %v7887 = vshll.u32 %v7758, 16
      %v7889 = vrot.slane %v7887, 5
      %v7890 = vsel %vm1229, %v7885, %v7889
      %v7892 = vshrl.u32 %v7759, 16
      %v7894 = vrot.slane %v7892, 4
      %v7895 = vshll.u32 %v7759, 16
      %v7897 = vrot.slane %v7895, 5
      %v7898 = vor.u32 %v7894, %v7897
      %v7899 = vrot.slane %v7898, 4
      %v7901 = vshll.u32 %v7760, 16
      %v7903 = vrot.slane %v7901, 5
      %v7904 = vsel %vm1229, %v7899, %v7903
      %v7905 = vshrl.u32 %v7760, 16
      %v7907 = vrot.slane %v7905, 4
      %v7908 = vor.u32 %v7907, %v7903
      %v7909 = vrot.slane %v7908, 4
      %v7911 = vshll.u32 %v7761, 16
      %v7913 = vrot.slane %v7911, 5
      %v7914 = vsel %vm1229, %v7909, %v7913
      %v7916 = vshrl.u32 %v7762, 16
      %v7918 = vrot.slane %v7916, 4
      %v7919 = vshll.u32 %v7762, 16
      %v7921 = vrot.slane %v7919, 5
      %v7922 = vor.u32 %v7918, %v7921
      %v7923 = vrot.slane %v7922, 4
      %v7925 = vshll.u32 %v7763, 16
      %v7927 = vrot.slane %v7925, 5
      %v7928 = vsel %vm1229, %v7923, %v7927
      %v7929 = vshrl.u32 %v7763, 16
      %v7931 = vrot.slane %v7929, 4
      %v7932 = vor.u32 %v7931, %v7927
      %v7933 = vrot.slane %v7932, 4
      %v7935 = vshll.u32 %v7764, 16
      %v7937 = vrot.slane %v7935, 5
      %v7938 = vsel %vm1229, %v7933, %v7937
      %v7940 = vshrl.u32 %v7765, 16
      %v7942 = vrot.slane %v7940, 4
      %v7943 = vshll.u32 %v7765, 16
      %v7945 = vrot.slane %v7943, 5
      %v7946 = vor.u32 %v7942, %v7945
      %v7947 = vrot.slane %v7946, 4
      %v7949 = vshll.u32 %v7766, 16
      %v7951 = vrot.slane %v7949, 5
      %v7952 = vsel %vm1229, %v7947, %v7951
      %v7953 = vshrl.u32 %v7766, 16
      %v7955 = vrot.slane %v7953, 4
      %v7956 = vor.u32 %v7955, %v7951
      %v7957 = vrot.slane %v7956, 4
      %v7959 = vshll.u32 %v7767, 16
      %v7961 = vrot.slane %v7959, 5
      %v7962 = vsel %vm1229, %v7957, %v7961
      %v7964 = vshrl.u32 %v7768, 16
      %v7966 = vrot.slane %v7964, 4
      %v7967 = vshll.u32 %v7768, 16
      %v7969 = vrot.slane %v7967, 5
      %v7970 = vor.u32 %v7966, %v7969
      %v7971 = vrot.slane %v7970, 4
      %v7973 = vshll.u32 %v7769, 16
      %v7975 = vrot.slane %v7973, 5
      %v7976 = vsel %vm1229, %v7971, %v7975
      %v7977 = vshrl.u32 %v7769, 16
      %v7979 = vrot.slane %v7977, 4
      %v7980 = vor.u32 %v7979, %v7975
      %v7981 = vrot.slane %v7980, 4
      %v7983 = vshll.u32 %v7770, 16
      %v7985 = vrot.slane %v7983, 5
      %v7986 = vsel %vm1229, %v7981, %v7985
      %v7988 = vshrl.u32 %v7771, 16
      %v7990 = vrot.slane %v7988, 4
      %v7991 = vshll.u32 %v7771, 16
      %v7993 = vrot.slane %v7991, 5
      %v7994 = vor.u32 %v7990, %v7993
      %v7995 = vrot.slane %v7994, 4
      %v7997 = vshll.u32 %v7772, 16
      %v7999 = vrot.slane %v7997, 5
      %v8000 = vsel %vm1229, %v7995, %v7999
      %v8001 = vshrl.u32 %v7772, 16
      %v8003 = vrot.slane %v8001, 4
      %v8004 = vor.u32 %v8003, %v7999
      %v8005 = vrot.slane %v8004, 4
      %v8007 = vshll.u32 %v7773, 16
      %v8009 = vrot.slane %v8007, 5
      %v8010 = vsel %vm1229, %v8005, %v8009
      %v8012 = vshrl.u32 %v7774, 16
      %v8014 = vrot.slane %v8012, 4
      %v8015 = vshll.u32 %v7774, 16
      %v8017 = vrot.slane %v8015, 5
      %v8018 = vor.u32 %v8014, %v8017
      %v8019 = vrot.slane %v8018, 4
      %v8021 = vshll.u32 %v7775, 16
      %v8023 = vrot.slane %v8021, 5
      %v8024 = vsel %vm1229, %v8019, %v8023
      %v8025 = vshrl.u32 %v7775, 16
      %v8027 = vrot.slane %v8025, 4
      %v8028 = vor.u32 %v8027, %v8023
      %v8029 = vrot.slane %v8028, 4
      %v8031 = vshll.u32 %v7776, 16
      %v8033 = vrot.slane %v8031, 5
      %v8034 = vsel %vm1229, %v8029, %v8033
      %v8036 = vshrl.u32 %v7777, 16
      %v8038 = vrot.slane %v8036, 4
      %v8039 = vshll.u32 %v7777, 16
      %v8041 = vrot.slane %v8039, 5
      %v8042 = vor.u32 %v8038, %v8041
      %v8043 = vrot.slane %v8042, 4
      %v8045 = vshll.u32 %v7778, 16
      %v8047 = vrot.slane %v8045, 5
      %v8048 = vsel %vm1229, %v8043, %v8047
      %v8049 = vshrl.u32 %v7778, 16
      %v8051 = vrot.slane %v8049, 4
      %v8052 = vor.u32 %v8051, %v8047
      %v8053 = vrot.slane %v8052, 4
      %v8055 = vshll.u32 %v7779, 16
      %v8057 = vrot.slane %v8055, 5
      %v8058 = vsel %vm1229, %v8053, %v8057
      %v8060 = vshrl.u32 %v7780, 16
      %v8062 = vrot.slane %v8060, 4
      %v8063 = vshll.u32 %v7780, 16
      %v8065 = vrot.slane %v8063, 5
      %v8066 = vor.u32 %v8062, %v8065
      %v8067 = vrot.slane %v8066, 4
      %v8069 = vshll.u32 %v7781, 16
      %v8071 = vrot.slane %v8069, 5
      %v8072 = vsel %vm1229, %v8067, %v8071
      %v8073 = vshrl.u32 %v7781, 16
      %v8075 = vrot.slane %v8073, 4
      %v8076 = vor.u32 %v8075, %v8071
      %v8077 = vrot.slane %v8076, 4
      %v8079 = vshll.u32 %v7782, 16
      %v8081 = vrot.slane %v8079, 5
      %v8082 = vsel %vm1229, %v8077, %v8081
      %v8084 = vshrl.u32 %v7783, 16
      %v8086 = vrot.slane %v8084, 4
      %v8087 = vshll.u32 %v7783, 16
      %v8089 = vrot.slane %v8087, 5
      %v8090 = vor.u32 %v8086, %v8089
      %v8091 = vrot.slane %v8090, 4
      %v8093 = vshll.u32 %v7784, 16
      %v8095 = vrot.slane %v8093, 5
      %v8096 = vsel %vm1229, %v8091, %v8095
      %v8097 = vshrl.u32 %v7784, 16
      %v8099 = vrot.slane %v8097, 4
      %v8100 = vor.u32 %v8099, %v8095
      %v8101 = vrot.slane %v8100, 4
      %v8103 = vshll.u32 %v7785, 16
      %v8105 = vrot.slane %v8103, 5
      %v8106 = vsel %vm1229, %v8101, %v8105
      %v8108 = vshrl.u32 %v7786, 16
      %v8110 = vrot.slane %v8108, 4
      %v8111 = vshll.u32 %v7786, 16
      %v8113 = vrot.slane %v8111, 5
      %v8114 = vor.u32 %v8110, %v8113
      %v8115 = vrot.slane %v8114, 4
      %v8117 = vshll.u32 %v7787, 16
      %v8119 = vrot.slane %v8117, 5
      %v8120 = vsel %vm1229, %v8115, %v8119
      %v8121 = vshrl.u32 %v7787, 16
      %v8123 = vrot.slane %v8121, 4
      %v8124 = vor.u32 %v8123, %v8119
      %v8125 = vrot.slane %v8124, 4
      %v8127 = vshll.u32 %v7788, 16
      %v8129 = vrot.slane %v8127, 5
      %v8130 = vsel %vm1229, %v8125, %v8129
      %v8132 = vshrl.u32 %v7789, 16
      %v8134 = vrot.slane %v8132, 4
      %v8135 = vshll.u32 %v7789, 16
      %v8137 = vrot.slane %v8135, 5
      %v8138 = vor.u32 %v8134, %v8137
      %v8139 = vrot.slane %v8138, 4
      %v8141 = vshll.u32 %v7790, 16
      %v8143 = vrot.slane %v8141, 5
      %v8144 = vsel %vm1229, %v8139, %v8143
      %v8145 = vshrl.u32 %v7790, 16
      %v8147 = vrot.slane %v8145, 4
      %v8148 = vor.u32 %v8147, %v8143
      %v8149 = vrot.slane %v8148, 4
      %v8151 = vshll.u32 %v7791, 16
      %v8153 = vrot.slane %v8151, 5
      %v8154 = vsel %vm1229, %v8149, %v8153
      %v8156 = vshrl.u32 %v7792, 16
      %v8158 = vrot.slane %v8156, 4
      %v8159 = vshll.u32 %v7792, 16
      %v8161 = vrot.slane %v8159, 5
      %v8162 = vor.u32 %v8158, %v8161
      %v8163 = vrot.slane %v8162, 4
      %v8165 = vshll.u32 %v7793, 16
      %v8167 = vrot.slane %v8165, 5
      %v8168 = vsel %vm1229, %v8163, %v8167
      %v8169 = vshrl.u32 %v7793, 16
      %v8171 = vrot.slane %v8169, 4
      %v8172 = vor.u32 %v8171, %v8167
      %v8173 = vrot.slane %v8172, 4
      %v8175 = vshll.u32 %v7794, 16
      %v8177 = vrot.slane %v8175, 5
      %v8178 = vsel %vm1229, %v8173, %v8177
      %s8179 = scalar_lea.vmem %s6, 8
      %v8180 = vld [vmem:[%s8179] sm:$0x3]
      %v8181 = vunpack.c.l.b16 %v7808
      %v8182 = vunpack.c.l.b16 %v7818
      %v8183 = vunpack.c.l.b16 %v7832
      %v8184 = vunpack.c.l.b16 %v7842
      %v8185 = vunpack.c.l.b16 %v7856
      %v8186 = vunpack.c.l.b16 %v7866
      %v8187 = vunpack.c.l.b16 %v7880
      %v8188 = vunpack.c.l.b16 %v7890
      %v8189 = vunpack.c.l.b16 %v7904
      %v8190 = vunpack.c.l.b16 %v7914
      %v8191 = vunpack.c.l.b16 %v7928
      %v8192 = vunpack.c.l.b16 %v7938
      %v8193 = vunpack.c.l.b16 %v7952
      %v8194 = vunpack.c.l.b16 %v7962
      %v8195 = vunpack.c.l.b16 %v7976
      %v8196 = vunpack.c.l.b16 %v7986
      %v8197 = vunpack.c.l.b16 %v8000
      %v8198 = vunpack.c.l.b16 %v8010
      %v8199 = vunpack.c.l.b16 %v8024
      %v8200 = vunpack.c.l.b16 %v8034
      %v8201 = vunpack.c.l.b16 %v8048
      %v8202 = vunpack.c.l.b16 %v8058
      %v8203 = vunpack.c.l.b16 %v8072
      %v8204 = vunpack.c.l.b16 %v8082
      %v8205 = vunpack.c.l.b16 %v8096
      %v8206 = vunpack.c.l.b16 %v8106
      %v8207 = vunpack.c.l.b16 %v8120
      %v8208 = vunpack.c.l.b16 %v8130
      %v8209 = vunpack.c.l.b16 %v8144
      %v8210 = vunpack.c.l.b16 %v8154
      %v8211 = vunpack.c.l.b16 %v8168
      %v8212 = vunpack.c.l.b16 %v8178
      %v8213 = vpack.c.b16 %v8182, %v8181
      %v8214 = vpack.c.b16 %v8184, %v8183
      %v8215 = vpack.c.b16 %v8186, %v8185
      %v8216 = vpack.c.b16 %v8188, %v8187
      %v8217 = vpack.c.b16 %v8190, %v8189
      %v8218 = vpack.c.b16 %v8192, %v8191
      %v8219 = vpack.c.b16 %v8194, %v8193
      %v8220 = vpack.c.b16 %v8196, %v8195
      %v8221 = vpack.c.b16 %v8198, %v8197
      %v8222 = vpack.c.b16 %v8200, %v8199
      %v8223 = vpack.c.b16 %v8202, %v8201
      %v8224 = vpack.c.b16 %v8204, %v8203
      %v8225 = vpack.c.b16 %v8206, %v8205
      %v8226 = vpack.c.b16 %v8208, %v8207
      %v8227 = vpack.c.b16 %v8210, %v8209
      %v8228 = vpack.c.b16 %v8212, %v8211
      %v8230 = vsel %vm1664, %v8213, 0
      %v8233 = vsel %vm1664, %v8214, 0
      %v8236 = vsel %vm1664, %v8215, 0
      %v8239 = vsel %vm1664, %v8216, 0
      %v8242 = vsel %vm1664, %v8217, 0
      %v8245 = vsel %vm1664, %v8218, 0
      %v8248 = vsel %vm1664, %v8219, 0
      %v8251 = vsel %vm1664, %v8220, 0
      %v8254 = vsel %vm1664, %v8221, 0
      %v8257 = vsel %vm1664, %v8222, 0
      %v8260 = vsel %vm1664, %v8223, 0
      %v8263 = vsel %vm1664, %v8224, 0
      %v8266 = vsel %vm1664, %v8225, 0
      %v8269 = vsel %vm1664, %v8226, 0
      %v8272 = vsel %vm1664, %v8227, 0
      %v8275 = vsel %vm1664, %v8228, 0
      %v8278 = vsel %vm1713, %v8180, 0
      %8280 = vmatpush.bf16.msra.mxu0 0
      %8281 = vmatpush.bf16.msra.mxu0 0
      %8282 = vmatpush.bf16.msra.mxu0 0
      %8283 = vmatpush.bf16.msra.mxu0 0
      %8284 = vmatpush.bf16.msra.mxu0 0
      %8285 = vmatpush.bf16.msra.mxu0 0
      %8286 = vmatpush.bf16.msra.mxu0 0
      %8287 = vmatpush.bf16.msra.mxu0 %v8278
      %8288 = vmatmul.bf16.gmra.mxu0 %v8230
      %v8289 = vpop.f32.mrf.mxu0
      %v8290 = vadd.f32 0.0, %v8289
      %v8291 = vpop.f32.mrf.mxu0
      %v8292 = vadd.f32 0.0, %v8291
      %8293 = vmatmul.bf16.gmra.mxu0 %v8233
      %v8294 = vpop.f32.mrf.mxu0
      %v8295 = vadd.f32 0.0, %v8294
      %v8296 = vpop.f32.mrf.mxu0
      %v8297 = vadd.f32 0.0, %v8296
      %8298 = vmatmul.bf16.gmra.mxu0 %v8236
      %v8299 = vpop.f32.mrf.mxu0
      %v8300 = vadd.f32 0.0, %v8299
      %v8301 = vpop.f32.mrf.mxu0
      %v8302 = vadd.f32 0.0, %v8301
      %8303 = vmatmul.bf16.gmra.mxu0 %v8239
      %v8304 = vpop.f32.mrf.mxu0
      %v8305 = vadd.f32 0.0, %v8304
      %v8306 = vpop.f32.mrf.mxu0
      %v8307 = vadd.f32 0.0, %v8306
      %8308 = vmatmul.bf16.gmra.mxu0 %v8242
      %v8309 = vpop.f32.mrf.mxu0
      %v8310 = vadd.f32 0.0, %v8309
      %v8311 = vpop.f32.mrf.mxu0
      %v8312 = vadd.f32 0.0, %v8311
      %8313 = vmatmul.bf16.gmra.mxu0 %v8245
      %v8314 = vpop.f32.mrf.mxu0
      %v8315 = vadd.f32 0.0, %v8314
      %v8316 = vpop.f32.mrf.mxu0
      %v8317 = vadd.f32 0.0, %v8316
      %8318 = vmatmul.bf16.gmra.mxu0 %v8248
      %v8319 = vpop.f32.mrf.mxu0
      %v8320 = vadd.f32 0.0, %v8319
      %v8321 = vpop.f32.mrf.mxu0
      %v8322 = vadd.f32 0.0, %v8321
      %8323 = vmatmul.bf16.gmra.mxu0 %v8251
      %v8324 = vpop.f32.mrf.mxu0
      %v8325 = vadd.f32 0.0, %v8324
      %v8326 = vpop.f32.mrf.mxu0
      %v8327 = vadd.f32 0.0, %v8326
      %8328 = vmatmul.bf16.gmra.mxu0 %v8254
      %v8329 = vpop.f32.mrf.mxu0
      %v8330 = vadd.f32 0.0, %v8329
      %v8331 = vpop.f32.mrf.mxu0
      %v8332 = vadd.f32 0.0, %v8331
      %8333 = vmatmul.bf16.gmra.mxu0 %v8257
      %v8334 = vpop.f32.mrf.mxu0
      %v8335 = vadd.f32 0.0, %v8334
      %v8336 = vpop.f32.mrf.mxu0
      %v8337 = vadd.f32 0.0, %v8336
      %8338 = vmatmul.bf16.gmra.mxu0 %v8260
      %v8339 = vpop.f32.mrf.mxu0
      %v8340 = vadd.f32 0.0, %v8339
      %v8341 = vpop.f32.mrf.mxu0
      %v8342 = vadd.f32 0.0, %v8341
      %8343 = vmatmul.bf16.gmra.mxu0 %v8263
      %v8344 = vpop.f32.mrf.mxu0
      %v8345 = vadd.f32 0.0, %v8344
      %v8346 = vpop.f32.mrf.mxu0
      %v8347 = vadd.f32 0.0, %v8346
      %8348 = vmatmul.bf16.gmra.mxu0 %v8266
      %v8349 = vpop.f32.mrf.mxu0
      %v8350 = vadd.f32 0.0, %v8349
      %v8351 = vpop.f32.mrf.mxu0
      %v8352 = vadd.f32 0.0, %v8351
      %8353 = vmatmul.bf16.gmra.mxu0 %v8269
      %v8354 = vpop.f32.mrf.mxu0
      %v8355 = vadd.f32 0.0, %v8354
      %v8356 = vpop.f32.mrf.mxu0
      %v8357 = vadd.f32 0.0, %v8356
      %8358 = vmatmul.bf16.gmra.mxu0 %v8272
      %v8359 = vpop.f32.mrf.mxu0
      %v8360 = vadd.f32 0.0, %v8359
      %v8361 = vpop.f32.mrf.mxu0
      %v8362 = vadd.f32 0.0, %v8361
      %8363 = vmatmul.bf16.gmra.mxu0 %v8275
      %v8364 = vpop.f32.mrf.mxu0
      %v8365 = vadd.f32 0.0, %v8364
      %v8366 = vpop.f32.mrf.mxu0
      %v8367 = vadd.f32 0.0, %v8366
      %8368 = vdwg.mxu0
      %v8369 = vadd.f32 %v7715, %v8290
      %v8370 = vadd.f32 %v7716, %v8292
      %v8371 = vadd.f32 %v7717, %v8295
      %v8372 = vadd.f32 %v7718, %v8297
      %v8373 = vadd.f32 %v7719, %v8300
      %v8374 = vadd.f32 %v7720, %v8302
      %v8375 = vadd.f32 %v7721, %v8305
      %v8376 = vadd.f32 %v7722, %v8307
      %v8377 = vadd.f32 %v7723, %v8310
      %v8378 = vadd.f32 %v7724, %v8312
      %v8379 = vadd.f32 %v7725, %v8315
      %v8380 = vadd.f32 %v7726, %v8317
      %v8381 = vadd.f32 %v7727, %v8320
      %v8382 = vadd.f32 %v7728, %v8322
      %v8383 = vadd.f32 %v7729, %v8325
      %v8384 = vadd.f32 %v7730, %v8327
      %v8385 = vadd.f32 %v7731, %v8330
      %v8386 = vadd.f32 %v7732, %v8332
      %v8387 = vadd.f32 %v7733, %v8335
      %v8388 = vadd.f32 %v7734, %v8337
      %v8389 = vadd.f32 %v7735, %v8340
      %v8390 = vadd.f32 %v7736, %v8342
      %v8391 = vadd.f32 %v7737, %v8345
      %v8392 = vadd.f32 %v7738, %v8347
      %v8393 = vadd.f32 %v7739, %v8350
      %v8394 = vadd.f32 %v7740, %v8352
      %v8395 = vadd.f32 %v7741, %v8355
      %v8396 = vadd.f32 %v7742, %v8357
      %v8397 = vadd.f32 %v7743, %v8360
      %v8398 = vadd.f32 %v7744, %v8362
      %v8399 = vadd.f32 %v7745, %v8365
      %v8400 = vadd.f32 %v7746, %v8367
      %v8401 = vld [vmem:[%s755] sm:$0xe]
      %v8402 = vld [vmem:[%s755 + $0xc] sm:$0xe]
      %v8403 = vld [vmem:[%s755 + $0x18] sm:$0xe]
      %v8404 = vld [vmem:[%s755 + $0x24] sm:$0xe]
      %v8405 = vld [vmem:[%s755 + $0x30] sm:$0xe]
      %v8406 = vld [vmem:[%s755 + $0x3c] sm:$0xe]
      %v8407 = vld [vmem:[%s755 + $0x48] sm:$0xe]
      %v8408 = vld [vmem:[%s755 + $0x54] sm:$0xe]
      %v8409 = vld [vmem:[%s755 + $0x60] sm:$0xe]
      %v8410 = vld [vmem:[%s755 + $0x6c] sm:$0xe]
      %v8411 = vld [vmem:[%s755 + $0x78] sm:$0xe]
      %v8412 = vld [vmem:[%s755 + $0x84] sm:$0xe]
      %v8413 = vld [vmem:[%s755 + $0x90] sm:$0xe]
      %v8414 = vld [vmem:[%s755 + $0x9c] sm:$0xe]
      %v8415 = vld [vmem:[%s755 + $0xa8] sm:$0xe]
      %v8416 = vld [vmem:[%s755 + $0xb4] sm:$0xe]
      %v8465 = vrot.slane %v8401, 5
      %v8466 = vrot.slane %v8465, 4
      %v8467 = vrot.slane %v7748, 5
      %v8468 = vsel %vm2076, %v8466, %v8467
      %v8469 = vrot.slane %v8467, 4
      %v8470 = vrot.slane %v7749, 5
      %v8471 = vsel %vm2076, %v8469, %v8470
      %v8472 = vrot.slane %v8402, 5
      %v8473 = vrot.slane %v8472, 4
      %v8474 = vrot.slane %v7751, 5
      %v8475 = vsel %vm2076, %v8473, %v8474
      %v8476 = vrot.slane %v8474, 4
      %v8477 = vrot.slane %v7752, 5
      %v8478 = vsel %vm2076, %v8476, %v8477
      %v8479 = vrot.slane %v8403, 5
      %v8480 = vrot.slane %v8479, 4
      %v8481 = vrot.slane %v7754, 5
      %v8482 = vsel %vm2076, %v8480, %v8481
      %v8483 = vrot.slane %v8481, 4
      %v8484 = vrot.slane %v7755, 5
      %v8485 = vsel %vm2076, %v8483, %v8484
      %v8486 = vrot.slane %v8404, 5
      %v8487 = vrot.slane %v8486, 4
      %v8488 = vrot.slane %v7757, 5
      %v8489 = vsel %vm2076, %v8487, %v8488
      %v8490 = vrot.slane %v8488, 4
      %v8491 = vrot.slane %v7758, 5
      %v8492 = vsel %vm2076, %v8490, %v8491
      %v8493 = vrot.slane %v8405, 5
      %v8494 = vrot.slane %v8493, 4
      %v8495 = vrot.slane %v7760, 5
      %v8496 = vsel %vm2076, %v8494, %v8495
      %v8497 = vrot.slane %v8495, 4
      %v8498 = vrot.slane %v7761, 5
      %v8499 = vsel %vm2076, %v8497, %v8498
      %v8500 = vrot.slane %v8406, 5
      %v8501 = vrot.slane %v8500, 4
      %v8502 = vrot.slane %v7763, 5
      %v8503 = vsel %vm2076, %v8501, %v8502
      %v8504 = vrot.slane %v8502, 4
      %v8505 = vrot.slane %v7764, 5
      %v8506 = vsel %vm2076, %v8504, %v8505
      %v8507 = vrot.slane %v8407, 5
      %v8508 = vrot.slane %v8507, 4
      %v8509 = vrot.slane %v7766, 5
      %v8510 = vsel %vm2076, %v8508, %v8509
      %v8511 = vrot.slane %v8509, 4
      %v8512 = vrot.slane %v7767, 5
      %v8513 = vsel %vm2076, %v8511, %v8512
      %v8514 = vrot.slane %v8408, 5
      %v8515 = vrot.slane %v8514, 4
      %v8516 = vrot.slane %v7769, 5
      %v8517 = vsel %vm2076, %v8515, %v8516
      %v8518 = vrot.slane %v8516, 4
      %v8519 = vrot.slane %v7770, 5
      %v8520 = vsel %vm2076, %v8518, %v8519
      %v8521 = vrot.slane %v8409, 5
      %v8522 = vrot.slane %v8521, 4
      %v8523 = vrot.slane %v7772, 5
      %v8524 = vsel %vm2076, %v8522, %v8523
      %v8525 = vrot.slane %v8523, 4
      %v8526 = vrot.slane %v7773, 5
      %v8527 = vsel %vm2076, %v8525, %v8526
      %v8528 = vrot.slane %v8410, 5
      %v8529 = vrot.slane %v8528, 4
      %v8530 = vrot.slane %v7775, 5
      %v8531 = vsel %vm2076, %v8529, %v8530
      %v8532 = vrot.slane %v8530, 4
      %v8533 = vrot.slane %v7776, 5
      %v8534 = vsel %vm2076, %v8532, %v8533
      %v8535 = vrot.slane %v8411, 5
      %v8536 = vrot.slane %v8535, 4
      %v8537 = vrot.slane %v7778, 5
      %v8538 = vsel %vm2076, %v8536, %v8537
      %v8539 = vrot.slane %v8537, 4
      %v8540 = vrot.slane %v7779, 5
      %v8541 = vsel %vm2076, %v8539, %v8540
      %v8542 = vrot.slane %v8412, 5
      %v8543 = vrot.slane %v8542, 4
      %v8544 = vrot.slane %v7781, 5
      %v8545 = vsel %vm2076, %v8543, %v8544
      %v8546 = vrot.slane %v8544, 4
      %v8547 = vrot.slane %v7782, 5
      %v8548 = vsel %vm2076, %v8546, %v8547
      %v8549 = vrot.slane %v8413, 5
      %v8550 = vrot.slane %v8549, 4
      %v8551 = vrot.slane %v7784, 5
      %v8552 = vsel %vm2076, %v8550, %v8551
      %v8553 = vrot.slane %v8551, 4
      %v8554 = vrot.slane %v7785, 5
      %v8555 = vsel %vm2076, %v8553, %v8554
      %v8556 = vrot.slane %v8414, 5
      %v8557 = vrot.slane %v8556, 4
      %v8558 = vrot.slane %v7787, 5
      %v8559 = vsel %vm2076, %v8557, %v8558
      %v8560 = vrot.slane %v8558, 4
      %v8561 = vrot.slane %v7788, 5
      %v8562 = vsel %vm2076, %v8560, %v8561
      %v8563 = vrot.slane %v8415, 5
      %v8564 = vrot.slane %v8563, 4
      %v8565 = vrot.slane %v7790, 5
      %v8566 = vsel %vm2076, %v8564, %v8565
      %v8567 = vrot.slane %v8565, 4
      %v8568 = vrot.slane %v7791, 5
      %v8569 = vsel %vm2076, %v8567, %v8568
      %v8570 = vrot.slane %v8416, 5
      %v8571 = vrot.slane %v8570, 4
      %v8572 = vrot.slane %v7793, 5
      %v8573 = vsel %vm2076, %v8571, %v8572
      %v8574 = vrot.slane %v8572, 4
      %v8575 = vrot.slane %v7794, 5
      %v8576 = vsel %vm2076, %v8574, %v8575
      %s8577 = scalar_lea.vmem %s6, 10
      %v8578 = vld [vmem:[%s8577] sm:$0x3]
      %v8579 = vunpack.c.l.b16 %v8468
      %v8580 = vunpack.c.l.b16 %v8471
      %v8581 = vunpack.c.l.b16 %v8475
      %v8582 = vunpack.c.l.b16 %v8478
      %v8583 = vunpack.c.l.b16 %v8482
      %v8584 = vunpack.c.l.b16 %v8485
      %v8585 = vunpack.c.l.b16 %v8489
      %v8586 = vunpack.c.l.b16 %v8492
      %v8587 = vunpack.c.l.b16 %v8496
      %v8588 = vunpack.c.l.b16 %v8499
      %v8589 = vunpack.c.l.b16 %v8503
      %v8590 = vunpack.c.l.b16 %v8506
      %v8591 = vunpack.c.l.b16 %v8510
      %v8592 = vunpack.c.l.b16 %v8513
      %v8593 = vunpack.c.l.b16 %v8517
      %v8594 = vunpack.c.l.b16 %v8520
      %v8595 = vunpack.c.l.b16 %v8524
      %v8596 = vunpack.c.l.b16 %v8527
      %v8597 = vunpack.c.l.b16 %v8531
      %v8598 = vunpack.c.l.b16 %v8534
      %v8599 = vunpack.c.l.b16 %v8538
      %v8600 = vunpack.c.l.b16 %v8541
      %v8601 = vunpack.c.l.b16 %v8545
      %v8602 = vunpack.c.l.b16 %v8548
      %v8603 = vunpack.c.l.b16 %v8552
      %v8604 = vunpack.c.l.b16 %v8555
      %v8605 = vunpack.c.l.b16 %v8559
      %v8606 = vunpack.c.l.b16 %v8562
      %v8607 = vunpack.c.l.b16 %v8566
      %v8608 = vunpack.c.l.b16 %v8569
      %v8609 = vunpack.c.l.b16 %v8573
      %v8610 = vunpack.c.l.b16 %v8576
      %v8611 = vpack.c.b16 %v8580, %v8579
      %v8612 = vpack.c.b16 %v8582, %v8581
      %v8613 = vpack.c.b16 %v8584, %v8583
      %v8614 = vpack.c.b16 %v8586, %v8585
      %v8615 = vpack.c.b16 %v8588, %v8587
      %v8616 = vpack.c.b16 %v8590, %v8589
      %v8617 = vpack.c.b16 %v8592, %v8591
      %v8618 = vpack.c.b16 %v8594, %v8593
      %v8619 = vpack.c.b16 %v8596, %v8595
      %v8620 = vpack.c.b16 %v8598, %v8597
      %v8621 = vpack.c.b16 %v8600, %v8599
      %v8622 = vpack.c.b16 %v8602, %v8601
      %v8623 = vpack.c.b16 %v8604, %v8603
      %v8624 = vpack.c.b16 %v8606, %v8605
      %v8625 = vpack.c.b16 %v8608, %v8607
      %v8626 = vpack.c.b16 %v8610, %v8609
      %v8628 = vsel %vm1664, %v8611, 0
      %v8631 = vsel %vm1664, %v8612, 0
      %v8634 = vsel %vm1664, %v8613, 0
      %v8637 = vsel %vm1664, %v8614, 0
      %v8640 = vsel %vm1664, %v8615, 0
      %v8643 = vsel %vm1664, %v8616, 0
      %v8646 = vsel %vm1664, %v8617, 0
      %v8649 = vsel %vm1664, %v8618, 0
      %v8652 = vsel %vm1664, %v8619, 0
      %v8655 = vsel %vm1664, %v8620, 0
      %v8658 = vsel %vm1664, %v8621, 0
      %v8661 = vsel %vm1664, %v8622, 0
      %v8664 = vsel %vm1664, %v8623, 0
      %v8667 = vsel %vm1664, %v8624, 0
      %v8670 = vsel %vm1664, %v8625, 0
      %v8673 = vsel %vm1664, %v8626, 0
      %v8676 = vsel %vm1713, %v8578, 0
      %8678 = vmatpush.bf16.msra.mxu0 0
      %8679 = vmatpush.bf16.msra.mxu0 0
      %8680 = vmatpush.bf16.msra.mxu0 0
      %8681 = vmatpush.bf16.msra.mxu0 0
      %8682 = vmatpush.bf16.msra.mxu0 0
      %8683 = vmatpush.bf16.msra.mxu0 0
      %8684 = vmatpush.bf16.msra.mxu0 0
      %8685 = vmatpush.bf16.msra.mxu0 %v8676
      %8686 = vmatmul.bf16.gmra.mxu0 %v8628
      %v8687 = vpop.f32.mrf.mxu0
      %v8688 = vadd.f32 0.0, %v8687
      %v8689 = vpop.f32.mrf.mxu0
      %v8690 = vadd.f32 0.0, %v8689
      %8691 = vmatmul.bf16.gmra.mxu0 %v8631
      %v8692 = vpop.f32.mrf.mxu0
      %v8693 = vadd.f32 0.0, %v8692
      %v8694 = vpop.f32.mrf.mxu0
      %v8695 = vadd.f32 0.0, %v8694
      %8696 = vmatmul.bf16.gmra.mxu0 %v8634
      %v8697 = vpop.f32.mrf.mxu0
      %v8698 = vadd.f32 0.0, %v8697
      %v8699 = vpop.f32.mrf.mxu0
      %v8700 = vadd.f32 0.0, %v8699
      %8701 = vmatmul.bf16.gmra.mxu0 %v8637
      %v8702 = vpop.f32.mrf.mxu0
      %v8703 = vadd.f32 0.0, %v8702
      %v8704 = vpop.f32.mrf.mxu0
      %v8705 = vadd.f32 0.0, %v8704
      %8706 = vmatmul.bf16.gmra.mxu0 %v8640
      %v8707 = vpop.f32.mrf.mxu0
      %v8708 = vadd.f32 0.0, %v8707
      %v8709 = vpop.f32.mrf.mxu0
      %v8710 = vadd.f32 0.0, %v8709
      %8711 = vmatmul.bf16.gmra.mxu0 %v8643
      %v8712 = vpop.f32.mrf.mxu0
      %v8713 = vadd.f32 0.0, %v8712
      %v8714 = vpop.f32.mrf.mxu0
      %v8715 = vadd.f32 0.0, %v8714
      %8716 = vmatmul.bf16.gmra.mxu0 %v8646
      %v8717 = vpop.f32.mrf.mxu0
      %v8718 = vadd.f32 0.0, %v8717
      %v8719 = vpop.f32.mrf.mxu0
      %v8720 = vadd.f32 0.0, %v8719
      %8721 = vmatmul.bf16.gmra.mxu0 %v8649
      %v8722 = vpop.f32.mrf.mxu0
      %v8723 = vadd.f32 0.0, %v8722
      %v8724 = vpop.f32.mrf.mxu0
      %v8725 = vadd.f32 0.0, %v8724
      %8726 = vmatmul.bf16.gmra.mxu0 %v8652
      %v8727 = vpop.f32.mrf.mxu0
      %v8728 = vadd.f32 0.0, %v8727
      %v8729 = vpop.f32.mrf.mxu0
      %v8730 = vadd.f32 0.0, %v8729
      %8731 = vmatmul.bf16.gmra.mxu0 %v8655
      %v8732 = vpop.f32.mrf.mxu0
      %v8733 = vadd.f32 0.0, %v8732
      %v8734 = vpop.f32.mrf.mxu0
      %v8735 = vadd.f32 0.0, %v8734
      %8736 = vmatmul.bf16.gmra.mxu0 %v8658
      %v8737 = vpop.f32.mrf.mxu0
      %v8738 = vadd.f32 0.0, %v8737
      %v8739 = vpop.f32.mrf.mxu0
      %v8740 = vadd.f32 0.0, %v8739
      %8741 = vmatmul.bf16.gmra.mxu0 %v8661
      %v8742 = vpop.f32.mrf.mxu0
      %v8743 = vadd.f32 0.0, %v8742
      %v8744 = vpop.f32.mrf.mxu0
      %v8745 = vadd.f32 0.0, %v8744
      %8746 = vmatmul.bf16.gmra.mxu0 %v8664
      %v8747 = vpop.f32.mrf.mxu0
      %v8748 = vadd.f32 0.0, %v8747
      %v8749 = vpop.f32.mrf.mxu0
      %v8750 = vadd.f32 0.0, %v8749
      %8751 = vmatmul.bf16.gmra.mxu0 %v8667
      %v8752 = vpop.f32.mrf.mxu0
      %v8753 = vadd.f32 0.0, %v8752
      %v8754 = vpop.f32.mrf.mxu0
      %v8755 = vadd.f32 0.0, %v8754
      %8756 = vmatmul.bf16.gmra.mxu0 %v8670
      %v8757 = vpop.f32.mrf.mxu0
      %v8758 = vadd.f32 0.0, %v8757
      %v8759 = vpop.f32.mrf.mxu0
      %v8760 = vadd.f32 0.0, %v8759
      %8761 = vmatmul.bf16.gmra.mxu0 %v8673
      %v8762 = vpop.f32.mrf.mxu0
      %v8763 = vadd.f32 0.0, %v8762
      %v8764 = vpop.f32.mrf.mxu0
      %v8765 = vadd.f32 0.0, %v8764
      %8766 = vdwg.mxu0
      %v8767 = vadd.f32 %v8369, %v8688
      %v8768 = vadd.f32 %v8370, %v8690
      %v8769 = vadd.f32 %v8371, %v8693
      %v8770 = vadd.f32 %v8372, %v8695
      %v8771 = vadd.f32 %v8373, %v8698
      %v8772 = vadd.f32 %v8374, %v8700
      %v8773 = vadd.f32 %v8375, %v8703
      %v8774 = vadd.f32 %v8376, %v8705
      %v8775 = vadd.f32 %v8377, %v8708
      %v8776 = vadd.f32 %v8378, %v8710
      %v8777 = vadd.f32 %v8379, %v8713
      %v8778 = vadd.f32 %v8380, %v8715
      %v8779 = vadd.f32 %v8381, %v8718
      %v8780 = vadd.f32 %v8382, %v8720
      %v8781 = vadd.f32 %v8383, %v8723
      %v8782 = vadd.f32 %v8384, %v8725
      %v8783 = vadd.f32 %v8385, %v8728
      %v8784 = vadd.f32 %v8386, %v8730
      %v8785 = vadd.f32 %v8387, %v8733
      %v8786 = vadd.f32 %v8388, %v8735
      %v8787 = vadd.f32 %v8389, %v8738
      %v8788 = vadd.f32 %v8390, %v8740
      %v8789 = vadd.f32 %v8391, %v8743
      %v8790 = vadd.f32 %v8392, %v8745
      %v8791 = vadd.f32 %v8393, %v8748
      %v8792 = vadd.f32 %v8394, %v8750
      %v8793 = vadd.f32 %v8395, %v8753
      %v8794 = vadd.f32 %v8396, %v8755
      %v8795 = vadd.f32 %v8397, %v8758
      %v8796 = vadd.f32 %v8398, %v8760
      %v8797 = vadd.f32 %v8399, %v8763
      %v8798 = vadd.f32 %v8400, %v8765
      %v8799 = vld [vmem:[%s3749] sm:$0xf]
      %v8800 = vld [vmem:[%s3749 + $0x4] sm:$0xf]
      %v8801 = vld [vmem:[%s3749 + $0xc] sm:$0xf]
      %v8802 = vld [vmem:[%s3749 + $0x10] sm:$0xf]
      %v8803 = vld [vmem:[%s3749 + $0x18] sm:$0xf]
      %v8804 = vld [vmem:[%s3749 + $0x1c] sm:$0xf]
      %v8805 = vld [vmem:[%s3749 + $0x24] sm:$0xf]
      %v8806 = vld [vmem:[%s3749 + $0x28] sm:$0xf]
      %v8807 = vld [vmem:[%s3749 + $0x30] sm:$0xf]
      %v8808 = vld [vmem:[%s3749 + $0x34] sm:$0xf]
      %v8809 = vld [vmem:[%s3749 + $0x3c] sm:$0xf]
      %v8810 = vld [vmem:[%s3749 + $0x40] sm:$0xf]
      %v8811 = vld [vmem:[%s3749 + $0x48] sm:$0xf]
      %v8812 = vld [vmem:[%s3749 + $0x4c] sm:$0xf]
      %v8813 = vld [vmem:[%s3749 + $0x54] sm:$0xf]
      %v8814 = vld [vmem:[%s3749 + $0x58] sm:$0xf]
      %v8815 = vld [vmem:[%s3749 + $0x60] sm:$0xf]
      %v8816 = vld [vmem:[%s3749 + $0x64] sm:$0xf]
      %v8817 = vld [vmem:[%s3749 + $0x6c] sm:$0xf]
      %v8818 = vld [vmem:[%s3749 + $0x70] sm:$0xf]
      %v8819 = vld [vmem:[%s3749 + $0x78] sm:$0xf]
      %v8820 = vld [vmem:[%s3749 + $0x7c] sm:$0xf]
      %v8821 = vld [vmem:[%s3749 + $0x84] sm:$0xf]
      %v8822 = vld [vmem:[%s3749 + $0x88] sm:$0xf]
      %v8823 = vld [vmem:[%s3749 + $0x90] sm:$0xf]
      %v8824 = vld [vmem:[%s3749 + $0x94] sm:$0xf]
      %v8825 = vld [vmem:[%s3749 + $0x9c] sm:$0xf]
      %v8826 = vld [vmem:[%s3749 + $0xa0] sm:$0xf]
      %v8827 = vld [vmem:[%s3749 + $0xa8] sm:$0xf]
      %v8828 = vld [vmem:[%s3749 + $0xac] sm:$0xf]
      %v8829 = vld [vmem:[%s3749 + $0xb4] sm:$0xf]
      %v8830 = vld [vmem:[%s3749 + $0xb8] sm:$0xf]
      %s8831 = scalar_lea.vmem %s6, 12
      %v8832 = vld [vmem:[%s8831] sm:$0x3]
      %v8865 = vunpack.c.l.b16 %v8799
      %v8866 = vunpack.c.l.b16 %v8800
      %v8867 = vunpack.c.l.b16 %v8801
      %v8868 = vunpack.c.l.b16 %v8802
      %v8869 = vunpack.c.l.b16 %v8803
      %v8870 = vunpack.c.l.b16 %v8804
      %v8871 = vunpack.c.l.b16 %v8805
      %v8872 = vunpack.c.l.b16 %v8806
      %v8873 = vunpack.c.l.b16 %v8807
      %v8874 = vunpack.c.l.b16 %v8808
      %v8875 = vunpack.c.l.b16 %v8809
      %v8876 = vunpack.c.l.b16 %v8810
      %v8877 = vunpack.c.l.b16 %v8811
      %v8878 = vunpack.c.l.b16 %v8812
      %v8879 = vunpack.c.l.b16 %v8813
      %v8880 = vunpack.c.l.b16 %v8814
      %v8881 = vunpack.c.l.b16 %v8815
      %v8882 = vunpack.c.l.b16 %v8816
      %v8883 = vunpack.c.l.b16 %v8817
      %v8884 = vunpack.c.l.b16 %v8818
      %v8885 = vunpack.c.l.b16 %v8819
      %v8886 = vunpack.c.l.b16 %v8820
      %v8887 = vunpack.c.l.b16 %v8821
      %v8888 = vunpack.c.l.b16 %v8822
      %v8889 = vunpack.c.l.b16 %v8823
      %v8890 = vunpack.c.l.b16 %v8824
      %v8891 = vunpack.c.l.b16 %v8825
      %v8892 = vunpack.c.l.b16 %v8826
      %v8893 = vunpack.c.l.b16 %v8827
      %v8894 = vunpack.c.l.b16 %v8828
      %v8895 = vunpack.c.l.b16 %v8829
      %v8896 = vunpack.c.l.b16 %v8830
      %v8897 = vpack.c.b16 %v8866, %v8865
      %v8898 = vpack.c.b16 %v8868, %v8867
      %v8899 = vpack.c.b16 %v8870, %v8869
      %v8900 = vpack.c.b16 %v8872, %v8871
      %v8901 = vpack.c.b16 %v8874, %v8873
      %v8902 = vpack.c.b16 %v8876, %v8875
      %v8903 = vpack.c.b16 %v8878, %v8877
      %v8904 = vpack.c.b16 %v8880, %v8879
      %v8905 = vpack.c.b16 %v8882, %v8881
      %v8906 = vpack.c.b16 %v8884, %v8883
      %v8907 = vpack.c.b16 %v8886, %v8885
      %v8908 = vpack.c.b16 %v8888, %v8887
      %v8909 = vpack.c.b16 %v8890, %v8889
      %v8910 = vpack.c.b16 %v8892, %v8891
      %v8911 = vpack.c.b16 %v8894, %v8893
      %v8912 = vpack.c.b16 %v8896, %v8895
      %v8914 = vsel %vm1664, %v8897, 0
      %v8917 = vsel %vm1664, %v8898, 0
      %v8920 = vsel %vm1664, %v8899, 0
      %v8923 = vsel %vm1664, %v8900, 0
      %v8926 = vsel %vm1664, %v8901, 0
      %v8929 = vsel %vm1664, %v8902, 0
      %v8932 = vsel %vm1664, %v8903, 0
      %v8935 = vsel %vm1664, %v8904, 0
      %v8938 = vsel %vm1664, %v8905, 0
      %v8941 = vsel %vm1664, %v8906, 0
      %v8944 = vsel %vm1664, %v8907, 0
      %v8947 = vsel %vm1664, %v8908, 0
      %v8950 = vsel %vm1664, %v8909, 0
      %v8953 = vsel %vm1664, %v8910, 0
      %v8956 = vsel %vm1664, %v8911, 0
      %v8959 = vsel %vm1664, %v8912, 0
      %v8962 = vsel %vm1713, %v8832, 0
      %8964 = vmatpush.bf16.msra.mxu0 0
      %8965 = vmatpush.bf16.msra.mxu0 0
      %8966 = vmatpush.bf16.msra.mxu0 0
      %8967 = vmatpush.bf16.msra.mxu0 0
      %8968 = vmatpush.bf16.msra.mxu0 0
      %8969 = vmatpush.bf16.msra.mxu0 0
      %8970 = vmatpush.bf16.msra.mxu0 0
      %8971 = vmatpush.bf16.msra.mxu0 %v8962
      %8972 = vmatmul.bf16.gmra.mxu0 %v8914
      %v8973 = vpop.f32.mrf.mxu0
      %v8974 = vadd.f32 0.0, %v8973
      %v8975 = vpop.f32.mrf.mxu0
      %v8976 = vadd.f32 0.0, %v8975
      %8977 = vmatmul.bf16.gmra.mxu0 %v8917
      %v8978 = vpop.f32.mrf.mxu0
      %v8979 = vadd.f32 0.0, %v8978
      %v8980 = vpop.f32.mrf.mxu0
      %v8981 = vadd.f32 0.0, %v8980
      %8982 = vmatmul.bf16.gmra.mxu0 %v8920
      %v8983 = vpop.f32.mrf.mxu0
      %v8984 = vadd.f32 0.0, %v8983
      %v8985 = vpop.f32.mrf.mxu0
      %v8986 = vadd.f32 0.0, %v8985
      %8987 = vmatmul.bf16.gmra.mxu0 %v8923
      %v8988 = vpop.f32.mrf.mxu0
      %v8989 = vadd.f32 0.0, %v8988
      %v8990 = vpop.f32.mrf.mxu0
      %v8991 = vadd.f32 0.0, %v8990
      %8992 = vmatmul.bf16.gmra.mxu0 %v8926
      %v8993 = vpop.f32.mrf.mxu0
      %v8994 = vadd.f32 0.0, %v8993
      %v8995 = vpop.f32.mrf.mxu0
      %v8996 = vadd.f32 0.0, %v8995
      %8997 = vmatmul.bf16.gmra.mxu0 %v8929
      %v8998 = vpop.f32.mrf.mxu0
      %v8999 = vadd.f32 0.0, %v8998
      %v9000 = vpop.f32.mrf.mxu0
      %v9001 = vadd.f32 0.0, %v9000
      %9002 = vmatmul.bf16.gmra.mxu0 %v8932
      %v9003 = vpop.f32.mrf.mxu0
      %v9004 = vadd.f32 0.0, %v9003
      %v9005 = vpop.f32.mrf.mxu0
      %v9006 = vadd.f32 0.0, %v9005
      %9007 = vmatmul.bf16.gmra.mxu0 %v8935
      %v9008 = vpop.f32.mrf.mxu0
      %v9009 = vadd.f32 0.0, %v9008
      %v9010 = vpop.f32.mrf.mxu0
      %v9011 = vadd.f32 0.0, %v9010
      %9012 = vmatmul.bf16.gmra.mxu0 %v8938
      %v9013 = vpop.f32.mrf.mxu0
      %v9014 = vadd.f32 0.0, %v9013
      %v9015 = vpop.f32.mrf.mxu0
      %v9016 = vadd.f32 0.0, %v9015
      %9017 = vmatmul.bf16.gmra.mxu0 %v8941
      %v9018 = vpop.f32.mrf.mxu0
      %v9019 = vadd.f32 0.0, %v9018
      %v9020 = vpop.f32.mrf.mxu0
      %v9021 = vadd.f32 0.0, %v9020
      %9022 = vmatmul.bf16.gmra.mxu0 %v8944
      %v9023 = vpop.f32.mrf.mxu0
      %v9024 = vadd.f32 0.0, %v9023
      %v9025 = vpop.f32.mrf.mxu0
      %v9026 = vadd.f32 0.0, %v9025
      %9027 = vmatmul.bf16.gmra.mxu0 %v8947
      %v9028 = vpop.f32.mrf.mxu0
      %v9029 = vadd.f32 0.0, %v9028
      %v9030 = vpop.f32.mrf.mxu0
      %v9031 = vadd.f32 0.0, %v9030
      %9032 = vmatmul.bf16.gmra.mxu0 %v8950
      %v9033 = vpop.f32.mrf.mxu0
      %v9034 = vadd.f32 0.0, %v9033
      %v9035 = vpop.f32.mrf.mxu0
      %v9036 = vadd.f32 0.0, %v9035
      %9037 = vmatmul.bf16.gmra.mxu0 %v8953
      %v9038 = vpop.f32.mrf.mxu0
      %v9039 = vadd.f32 0.0, %v9038
      %v9040 = vpop.f32.mrf.mxu0
      %v9041 = vadd.f32 0.0, %v9040
      %9042 = vmatmul.bf16.gmra.mxu0 %v8956
      %v9043 = vpop.f32.mrf.mxu0
      %v9044 = vadd.f32 0.0, %v9043
      %v9045 = vpop.f32.mrf.mxu0
      %v9046 = vadd.f32 0.0, %v9045
      %9047 = vmatmul.bf16.gmra.mxu0 %v8959
      %v9048 = vpop.f32.mrf.mxu0
      %v9049 = vadd.f32 0.0, %v9048
      %v9050 = vpop.f32.mrf.mxu0
      %v9051 = vadd.f32 0.0, %v9050
      %9052 = vdwg.mxu0
      %v9053 = vadd.f32 %v8767, %v8974
      %v9054 = vadd.f32 %v8768, %v8976
      %v9055 = vadd.f32 %v8769, %v8979
      %v9056 = vadd.f32 %v8770, %v8981
      %v9057 = vadd.f32 %v8771, %v8984
      %v9058 = vadd.f32 %v8772, %v8986
      %v9059 = vadd.f32 %v8773, %v8989
      %v9060 = vadd.f32 %v8774, %v8991
      %v9061 = vadd.f32 %v8775, %v8994
      %v9062 = vadd.f32 %v8776, %v8996
      %v9063 = vadd.f32 %v8777, %v8999
      %v9064 = vadd.f32 %v8778, %v9001
      %v9065 = vadd.f32 %v8779, %v9004
      %v9066 = vadd.f32 %v8780, %v9006
      %v9067 = vadd.f32 %v8781, %v9009
      %v9068 = vadd.f32 %v8782, %v9011
      %v9069 = vadd.f32 %v8783, %v9014
      %v9070 = vadd.f32 %v8784, %v9016
      %v9071 = vadd.f32 %v8785, %v9019
      %v9072 = vadd.f32 %v8786, %v9021
      %v9073 = vadd.f32 %v8787, %v9024
      %v9074 = vadd.f32 %v8788, %v9026
      %v9075 = vadd.f32 %v8789, %v9029
      %v9076 = vadd.f32 %v8790, %v9031
      %v9077 = vadd.f32 %v8791, %v9034
      %v9078 = vadd.f32 %v8792, %v9036
      %v9079 = vadd.f32 %v8793, %v9039
      %v9080 = vadd.f32 %v8794, %v9041
      %v9081 = vadd.f32 %v8795, %v9044
      %v9082 = vadd.f32 %v8796, %v9046
      %v9083 = vadd.f32 %v8797, %v9049
      %v9084 = vadd.f32 %v8798, %v9051
      %v9085 = vld [vmem:[%s3749] sm:$0xf]
      %v9086 = vld [vmem:[%s3749 + $0x4] sm:$0xf]
      %v9087 = vld [vmem:[%s3749 + $0x8] sm:$0x1]
      %v9088 = vld [vmem:[%s3749 + $0xc] sm:$0xf]
      %v9089 = vld [vmem:[%s3749 + $0x10] sm:$0xf]
      %v9090 = vld [vmem:[%s3749 + $0x14] sm:$0x1]
      %v9091 = vld [vmem:[%s3749 + $0x18] sm:$0xf]
      %v9092 = vld [vmem:[%s3749 + $0x1c] sm:$0xf]
      %v9093 = vld [vmem:[%s3749 + $0x20] sm:$0x1]
      %v9094 = vld [vmem:[%s3749 + $0x24] sm:$0xf]
      %v9095 = vld [vmem:[%s3749 + $0x28] sm:$0xf]
      %v9096 = vld [vmem:[%s3749 + $0x2c] sm:$0x1]
      %v9097 = vld [vmem:[%s3749 + $0x30] sm:$0xf]
      %v9098 = vld [vmem:[%s3749 + $0x34] sm:$0xf]
      %v9099 = vld [vmem:[%s3749 + $0x38] sm:$0x1]
      %v9100 = vld [vmem:[%s3749 + $0x3c] sm:$0xf]
      %v9101 = vld [vmem:[%s3749 + $0x40] sm:$0xf]
      %v9102 = vld [vmem:[%s3749 + $0x44] sm:$0x1]
      %v9103 = vld [vmem:[%s3749 + $0x48] sm:$0xf]
      %v9104 = vld [vmem:[%s3749 + $0x4c] sm:$0xf]
      %v9105 = vld [vmem:[%s3749 + $0x50] sm:$0x1]
      %v9106 = vld [vmem:[%s3749 + $0x54] sm:$0xf]
      %v9107 = vld [vmem:[%s3749 + $0x58] sm:$0xf]
      %v9108 = vld [vmem:[%s3749 + $0x5c] sm:$0x1]
      %v9109 = vld [vmem:[%s3749 + $0x60] sm:$0xf]
      %v9110 = vld [vmem:[%s3749 + $0x64] sm:$0xf]
      %v9111 = vld [vmem:[%s3749 + $0x68] sm:$0x1]
      %v9112 = vld [vmem:[%s3749 + $0x6c] sm:$0xf]
      %v9113 = vld [vmem:[%s3749 + $0x70] sm:$0xf]
      %v9114 = vld [vmem:[%s3749 + $0x74] sm:$0x1]
      %v9115 = vld [vmem:[%s3749 + $0x78] sm:$0xf]
      %v9116 = vld [vmem:[%s3749 + $0x7c] sm:$0xf]
      %v9117 = vld [vmem:[%s3749 + $0x80] sm:$0x1]
      %v9118 = vld [vmem:[%s3749 + $0x84] sm:$0xf]
      %v9119 = vld [vmem:[%s3749 + $0x88] sm:$0xf]
      %v9120 = vld [vmem:[%s3749 + $0x8c] sm:$0x1]
      %v9121 = vld [vmem:[%s3749 + $0x90] sm:$0xf]
      %v9122 = vld [vmem:[%s3749 + $0x94] sm:$0xf]
      %v9123 = vld [vmem:[%s3749 + $0x98] sm:$0x1]
      %v9124 = vld [vmem:[%s3749 + $0x9c] sm:$0xf]
      %v9125 = vld [vmem:[%s3749 + $0xa0] sm:$0xf]
      %v9126 = vld [vmem:[%s3749 + $0xa4] sm:$0x1]
      %v9127 = vld [vmem:[%s3749 + $0xa8] sm:$0xf]
      %v9128 = vld [vmem:[%s3749 + $0xac] sm:$0xf]
      %v9129 = vld [vmem:[%s3749 + $0xb0] sm:$0x1]
      %v9130 = vld [vmem:[%s3749 + $0xb4] sm:$0xf]
      %v9131 = vld [vmem:[%s3749 + $0xb8] sm:$0xf]
      %v9132 = vld [vmem:[%s3749 + $0xbc] sm:$0x1]
      %v9134 = vshrl.u32 %v9085, 16
      %v9136 = vrot.slane %v9134, 4
      %v9137 = vshll.u32 %v9085, 16
      %v9139 = vrot.slane %v9137, 5
      %v9140 = vor.u32 %v9136, %v9139
      %v9141 = vrot.slane %v9140, 4
      %v9143 = vshll.u32 %v9086, 16
      %v9145 = vrot.slane %v9143, 5
      %v9146 = vsel %vm1229, %v9141, %v9145
      %v9147 = vshrl.u32 %v9086, 16
      %v9149 = vrot.slane %v9147, 4
      %v9150 = vor.u32 %v9149, %v9145
      %v9151 = vrot.slane %v9150, 4
      %v9153 = vshll.u32 %v9087, 16
      %v9155 = vrot.slane %v9153, 5
      %v9156 = vsel %vm1229, %v9151, %v9155
      %v9158 = vshrl.u32 %v9088, 16
      %v9160 = vrot.slane %v9158, 4
      %v9161 = vshll.u32 %v9088, 16
      %v9163 = vrot.slane %v9161, 5
      %v9164 = vor.u32 %v9160, %v9163
      %v9165 = vrot.slane %v9164, 4
      %v9167 = vshll.u32 %v9089, 16
      %v9169 = vrot.slane %v9167, 5
      %v9170 = vsel %vm1229, %v9165, %v9169
      %v9171 = vshrl.u32 %v9089, 16
      %v9173 = vrot.slane %v9171, 4
      %v9174 = vor.u32 %v9173, %v9169
      %v9175 = vrot.slane %v9174, 4
      %v9177 = vshll.u32 %v9090, 16
      %v9179 = vrot.slane %v9177, 5
      %v9180 = vsel %vm1229, %v9175, %v9179
      %v9182 = vshrl.u32 %v9091, 16
      %v9184 = vrot.slane %v9182, 4
      %v9185 = vshll.u32 %v9091, 16
      %v9187 = vrot.slane %v9185, 5
      %v9188 = vor.u32 %v9184, %v9187
      %v9189 = vrot.slane %v9188, 4
      %v9191 = vshll.u32 %v9092, 16
      %v9193 = vrot.slane %v9191, 5
      %v9194 = vsel %vm1229, %v9189, %v9193
      %v9195 = vshrl.u32 %v9092, 16
      %v9197 = vrot.slane %v9195, 4
      %v9198 = vor.u32 %v9197, %v9193
      %v9199 = vrot.slane %v9198, 4
      %v9201 = vshll.u32 %v9093, 16
      %v9203 = vrot.slane %v9201, 5
      %v9204 = vsel %vm1229, %v9199, %v9203
      %v9206 = vshrl.u32 %v9094, 16
      %v9208 = vrot.slane %v9206, 4
      %v9209 = vshll.u32 %v9094, 16
      %v9211 = vrot.slane %v9209, 5
      %v9212 = vor.u32 %v9208, %v9211
      %v9213 = vrot.slane %v9212, 4
      %v9215 = vshll.u32 %v9095, 16
      %v9217 = vrot.slane %v9215, 5
      %v9218 = vsel %vm1229, %v9213, %v9217
      %v9219 = vshrl.u32 %v9095, 16
      %v9221 = vrot.slane %v9219, 4
      %v9222 = vor.u32 %v9221, %v9217
      %v9223 = vrot.slane %v9222, 4
      %v9225 = vshll.u32 %v9096, 16
      %v9227 = vrot.slane %v9225, 5
      %v9228 = vsel %vm1229, %v9223, %v9227
      %v9230 = vshrl.u32 %v9097, 16
      %v9232 = vrot.slane %v9230, 4
      %v9233 = vshll.u32 %v9097, 16
      %v9235 = vrot.slane %v9233, 5
      %v9236 = vor.u32 %v9232, %v9235
      %v9237 = vrot.slane %v9236, 4
      %v9239 = vshll.u32 %v9098, 16
      %v9241 = vrot.slane %v9239, 5
      %v9242 = vsel %vm1229, %v9237, %v9241
      %v9243 = vshrl.u32 %v9098, 16
      %v9245 = vrot.slane %v9243, 4
      %v9246 = vor.u32 %v9245, %v9241
      %v9247 = vrot.slane %v9246, 4
      %v9249 = vshll.u32 %v9099, 16
      %v9251 = vrot.slane %v9249, 5
      %v9252 = vsel %vm1229, %v9247, %v9251
      %v9254 = vshrl.u32 %v9100, 16
      %v9256 = vrot.slane %v9254, 4
      %v9257 = vshll.u32 %v9100, 16
      %v9259 = vrot.slane %v9257, 5
      %v9260 = vor.u32 %v9256, %v9259
      %v9261 = vrot.slane %v9260, 4
      %v9263 = vshll.u32 %v9101, 16
      %v9265 = vrot.slane %v9263, 5
      %v9266 = vsel %vm1229, %v9261, %v9265
      %v9267 = vshrl.u32 %v9101, 16
      %v9269 = vrot.slane %v9267, 4
      %v9270 = vor.u32 %v9269, %v9265
      %v9271 = vrot.slane %v9270, 4
      %v9273 = vshll.u32 %v9102, 16
      %v9275 = vrot.slane %v9273, 5
      %v9276 = vsel %vm1229, %v9271, %v9275
      %v9278 = vshrl.u32 %v9103, 16
      %v9280 = vrot.slane %v9278, 4
      %v9281 = vshll.u32 %v9103, 16
      %v9283 = vrot.slane %v9281, 5
      %v9284 = vor.u32 %v9280, %v9283
      %v9285 = vrot.slane %v9284, 4
      %v9287 = vshll.u32 %v9104, 16
      %v9289 = vrot.slane %v9287, 5
      %v9290 = vsel %vm1229, %v9285, %v9289
      %v9291 = vshrl.u32 %v9104, 16
      %v9293 = vrot.slane %v9291, 4
      %v9294 = vor.u32 %v9293, %v9289
      %v9295 = vrot.slane %v9294, 4
      %v9297 = vshll.u32 %v9105, 16
      %v9299 = vrot.slane %v9297, 5
      %v9300 = vsel %vm1229, %v9295, %v9299
      %v9302 = vshrl.u32 %v9106, 16
      %v9304 = vrot.slane %v9302, 4
      %v9305 = vshll.u32 %v9106, 16
      %v9307 = vrot.slane %v9305, 5
      %v9308 = vor.u32 %v9304, %v9307
      %v9309 = vrot.slane %v9308, 4
      %v9311 = vshll.u32 %v9107, 16
      %v9313 = vrot.slane %v9311, 5
      %v9314 = vsel %vm1229, %v9309, %v9313
      %v9315 = vshrl.u32 %v9107, 16
      %v9317 = vrot.slane %v9315, 4
      %v9318 = vor.u32 %v9317, %v9313
      %v9319 = vrot.slane %v9318, 4
      %v9321 = vshll.u32 %v9108, 16
      %v9323 = vrot.slane %v9321, 5
      %v9324 = vsel %vm1229, %v9319, %v9323
      %v9326 = vshrl.u32 %v9109, 16
      %v9328 = vrot.slane %v9326, 4
      %v9329 = vshll.u32 %v9109, 16
      %v9331 = vrot.slane %v9329, 5
      %v9332 = vor.u32 %v9328, %v9331
      %v9333 = vrot.slane %v9332, 4
      %v9335 = vshll.u32 %v9110, 16
      %v9337 = vrot.slane %v9335, 5
      %v9338 = vsel %vm1229, %v9333, %v9337
      %v9339 = vshrl.u32 %v9110, 16
      %v9341 = vrot.slane %v9339, 4
      %v9342 = vor.u32 %v9341, %v9337
      %v9343 = vrot.slane %v9342, 4
      %v9345 = vshll.u32 %v9111, 16
      %v9347 = vrot.slane %v9345, 5
      %v9348 = vsel %vm1229, %v9343, %v9347
      %v9350 = vshrl.u32 %v9112, 16
      %v9352 = vrot.slane %v9350, 4
      %v9353 = vshll.u32 %v9112, 16
      %v9355 = vrot.slane %v9353, 5
      %v9356 = vor.u32 %v9352, %v9355
      %v9357 = vrot.slane %v9356, 4
      %v9359 = vshll.u32 %v9113, 16
      %v9361 = vrot.slane %v9359, 5
      %v9362 = vsel %vm1229, %v9357, %v9361
      %v9363 = vshrl.u32 %v9113, 16
      %v9365 = vrot.slane %v9363, 4
      %v9366 = vor.u32 %v9365, %v9361
      %v9367 = vrot.slane %v9366, 4
      %v9369 = vshll.u32 %v9114, 16
      %v9371 = vrot.slane %v9369, 5
      %v9372 = vsel %vm1229, %v9367, %v9371
      %v9374 = vshrl.u32 %v9115, 16
      %v9376 = vrot.slane %v9374, 4
      %v9377 = vshll.u32 %v9115, 16
      %v9379 = vrot.slane %v9377, 5
      %v9380 = vor.u32 %v9376, %v9379
      %v9381 = vrot.slane %v9380, 4
      %v9383 = vshll.u32 %v9116, 16
      %v9385 = vrot.slane %v9383, 5
      %v9386 = vsel %vm1229, %v9381, %v9385
      %v9387 = vshrl.u32 %v9116, 16
      %v9389 = vrot.slane %v9387, 4
      %v9390 = vor.u32 %v9389, %v9385
      %v9391 = vrot.slane %v9390, 4
      %v9393 = vshll.u32 %v9117, 16
      %v9395 = vrot.slane %v9393, 5
      %v9396 = vsel %vm1229, %v9391, %v9395
      %v9398 = vshrl.u32 %v9118, 16
      %v9400 = vrot.slane %v9398, 4
      %v9401 = vshll.u32 %v9118, 16
      %v9403 = vrot.slane %v9401, 5
      %v9404 = vor.u32 %v9400, %v9403
      %v9405 = vrot.slane %v9404, 4
      %v9407 = vshll.u32 %v9119, 16
      %v9409 = vrot.slane %v9407, 5
      %v9410 = vsel %vm1229, %v9405, %v9409
      %v9411 = vshrl.u32 %v9119, 16
      %v9413 = vrot.slane %v9411, 4
      %v9414 = vor.u32 %v9413, %v9409
      %v9415 = vrot.slane %v9414, 4
      %v9417 = vshll.u32 %v9120, 16
      %v9419 = vrot.slane %v9417, 5
      %v9420 = vsel %vm1229, %v9415, %v9419
      %v9422 = vshrl.u32 %v9121, 16
      %v9424 = vrot.slane %v9422, 4
      %v9425 = vshll.u32 %v9121, 16
      %v9427 = vrot.slane %v9425, 5
      %v9428 = vor.u32 %v9424, %v9427
      %v9429 = vrot.slane %v9428, 4
      %v9431 = vshll.u32 %v9122, 16
      %v9433 = vrot.slane %v9431, 5
      %v9434 = vsel %vm1229, %v9429, %v9433
      %v9435 = vshrl.u32 %v9122, 16
      %v9437 = vrot.slane %v9435, 4
      %v9438 = vor.u32 %v9437, %v9433
      %v9439 = vrot.slane %v9438, 4
      %v9441 = vshll.u32 %v9123, 16
      %v9443 = vrot.slane %v9441, 5
      %v9444 = vsel %vm1229, %v9439, %v9443
      %v9446 = vshrl.u32 %v9124, 16
      %v9448 = vrot.slane %v9446, 4
      %v9449 = vshll.u32 %v9124, 16
      %v9451 = vrot.slane %v9449, 5
      %v9452 = vor.u32 %v9448, %v9451
      %v9453 = vrot.slane %v9452, 4
      %v9455 = vshll.u32 %v9125, 16
      %v9457 = vrot.slane %v9455, 5
      %v9458 = vsel %vm1229, %v9453, %v9457
      %v9459 = vshrl.u32 %v9125, 16
      %v9461 = vrot.slane %v9459, 4
      %v9462 = vor.u32 %v9461, %v9457
      %v9463 = vrot.slane %v9462, 4
      %v9465 = vshll.u32 %v9126, 16
      %v9467 = vrot.slane %v9465, 5
      %v9468 = vsel %vm1229, %v9463, %v9467
      %v9470 = vshrl.u32 %v9127, 16
      %v9472 = vrot.slane %v9470, 4
      %v9473 = vshll.u32 %v9127, 16
      %v9475 = vrot.slane %v9473, 5
      %v9476 = vor.u32 %v9472, %v9475
      %v9477 = vrot.slane %v9476, 4
      %v9479 = vshll.u32 %v9128, 16
      %v9481 = vrot.slane %v9479, 5
      %v9482 = vsel %vm1229, %v9477, %v9481
      %v9483 = vshrl.u32 %v9128, 16
      %v9485 = vrot.slane %v9483, 4
      %v9486 = vor.u32 %v9485, %v9481
      %v9487 = vrot.slane %v9486, 4
      %v9489 = vshll.u32 %v9129, 16
      %v9491 = vrot.slane %v9489, 5
      %v9492 = vsel %vm1229, %v9487, %v9491
      %v9494 = vshrl.u32 %v9130, 16
      %v9496 = vrot.slane %v9494, 4
      %v9497 = vshll.u32 %v9130, 16
      %v9499 = vrot.slane %v9497, 5
      %v9500 = vor.u32 %v9496, %v9499
      %v9501 = vrot.slane %v9500, 4
      %v9503 = vshll.u32 %v9131, 16
      %v9505 = vrot.slane %v9503, 5
      %v9506 = vsel %vm1229, %v9501, %v9505
      %v9507 = vshrl.u32 %v9131, 16
      %v9509 = vrot.slane %v9507, 4
      %v9510 = vor.u32 %v9509, %v9505
      %v9511 = vrot.slane %v9510, 4
      %v9513 = vshll.u32 %v9132, 16
      %v9515 = vrot.slane %v9513, 5
      %v9516 = vsel %vm1229, %v9511, %v9515
      %s9517 = scalar_lea.vmem %s6, 14
      %v9518 = vld [vmem:[%s9517] sm:$0x3]
      %v9519 = vunpack.c.l.b16 %v9146
      %v9520 = vunpack.c.l.b16 %v9156
      %v9521 = vunpack.c.l.b16 %v9170
      %v9522 = vunpack.c.l.b16 %v9180
      %v9523 = vunpack.c.l.b16 %v9194
      %v9524 = vunpack.c.l.b16 %v9204
      %v9525 = vunpack.c.l.b16 %v9218
      %v9526 = vunpack.c.l.b16 %v9228
      %v9527 = vunpack.c.l.b16 %v9242
      %v9528 = vunpack.c.l.b16 %v9252
      %v9529 = vunpack.c.l.b16 %v9266
      %v9530 = vunpack.c.l.b16 %v9276
      %v9531 = vunpack.c.l.b16 %v9290
      %v9532 = vunpack.c.l.b16 %v9300
      %v9533 = vunpack.c.l.b16 %v9314
      %v9534 = vunpack.c.l.b16 %v9324
      %v9535 = vunpack.c.l.b16 %v9338
      %v9536 = vunpack.c.l.b16 %v9348
      %v9537 = vunpack.c.l.b16 %v9362
      %v9538 = vunpack.c.l.b16 %v9372
      %v9539 = vunpack.c.l.b16 %v9386
      %v9540 = vunpack.c.l.b16 %v9396
      %v9541 = vunpack.c.l.b16 %v9410
      %v9542 = vunpack.c.l.b16 %v9420
      %v9543 = vunpack.c.l.b16 %v9434
      %v9544 = vunpack.c.l.b16 %v9444
      %v9545 = vunpack.c.l.b16 %v9458
      %v9546 = vunpack.c.l.b16 %v9468
      %v9547 = vunpack.c.l.b16 %v9482
      %v9548 = vunpack.c.l.b16 %v9492
      %v9549 = vunpack.c.l.b16 %v9506
      %v9550 = vunpack.c.l.b16 %v9516
      %v9551 = vpack.c.b16 %v9520, %v9519
      %v9552 = vpack.c.b16 %v9522, %v9521
      %v9553 = vpack.c.b16 %v9524, %v9523
      %v9554 = vpack.c.b16 %v9526, %v9525
      %v9555 = vpack.c.b16 %v9528, %v9527
      %v9556 = vpack.c.b16 %v9530, %v9529
      %v9557 = vpack.c.b16 %v9532, %v9531
      %v9558 = vpack.c.b16 %v9534, %v9533
      %v9559 = vpack.c.b16 %v9536, %v9535
      %v9560 = vpack.c.b16 %v9538, %v9537
      %v9561 = vpack.c.b16 %v9540, %v9539
      %v9562 = vpack.c.b16 %v9542, %v9541
      %v9563 = vpack.c.b16 %v9544, %v9543
      %v9564 = vpack.c.b16 %v9546, %v9545
      %v9565 = vpack.c.b16 %v9548, %v9547
      %v9566 = vpack.c.b16 %v9550, %v9549
      %v9568 = vsel %vm1664, %v9551, 0
      %v9571 = vsel %vm1664, %v9552, 0
      %v9574 = vsel %vm1664, %v9553, 0
      %v9577 = vsel %vm1664, %v9554, 0
      %v9580 = vsel %vm1664, %v9555, 0
      %v9583 = vsel %vm1664, %v9556, 0
      %v9586 = vsel %vm1664, %v9557, 0
      %v9589 = vsel %vm1664, %v9558, 0
      %v9592 = vsel %vm1664, %v9559, 0
      %v9595 = vsel %vm1664, %v9560, 0
      %v9598 = vsel %vm1664, %v9561, 0
      %v9601 = vsel %vm1664, %v9562, 0
      %v9604 = vsel %vm1664, %v9563, 0
      %v9607 = vsel %vm1664, %v9564, 0
      %v9610 = vsel %vm1664, %v9565, 0
      %v9613 = vsel %vm1664, %v9566, 0
      %v9616 = vsel %vm1713, %v9518, 0
      %9618 = vmatpush.bf16.msra.mxu0 0
      %9619 = vmatpush.bf16.msra.mxu0 0
      %9620 = vmatpush.bf16.msra.mxu0 0
      %9621 = vmatpush.bf16.msra.mxu0 0
      %9622 = vmatpush.bf16.msra.mxu0 0
      %9623 = vmatpush.bf16.msra.mxu0 0
      %9624 = vmatpush.bf16.msra.mxu0 0
      %9625 = vmatpush.bf16.msra.mxu0 %v9616
      %9626 = vmatmul.bf16.gmra.mxu0 %v9568
      %v9627 = vpop.f32.mrf.mxu0
      %v9628 = vadd.f32 0.0, %v9627
      %v9629 = vpop.f32.mrf.mxu0
      %v9630 = vadd.f32 0.0, %v9629
      %9631 = vmatmul.bf16.gmra.mxu0 %v9571
      %v9632 = vpop.f32.mrf.mxu0
      %v9633 = vadd.f32 0.0, %v9632
      %v9634 = vpop.f32.mrf.mxu0
      %v9635 = vadd.f32 0.0, %v9634
      %9636 = vmatmul.bf16.gmra.mxu0 %v9574
      %v9637 = vpop.f32.mrf.mxu0
      %v9638 = vadd.f32 0.0, %v9637
      %v9639 = vpop.f32.mrf.mxu0
      %v9640 = vadd.f32 0.0, %v9639
      %9641 = vmatmul.bf16.gmra.mxu0 %v9577
      %v9642 = vpop.f32.mrf.mxu0
      %v9643 = vadd.f32 0.0, %v9642
      %v9644 = vpop.f32.mrf.mxu0
      %v9645 = vadd.f32 0.0, %v9644
      %9646 = vmatmul.bf16.gmra.mxu0 %v9580
      %v9647 = vpop.f32.mrf.mxu0
      %v9648 = vadd.f32 0.0, %v9647
      %v9649 = vpop.f32.mrf.mxu0
      %v9650 = vadd.f32 0.0, %v9649
      %9651 = vmatmul.bf16.gmra.mxu0 %v9583
      %v9652 = vpop.f32.mrf.mxu0
      %v9653 = vadd.f32 0.0, %v9652
      %v9654 = vpop.f32.mrf.mxu0
      %v9655 = vadd.f32 0.0, %v9654
      %9656 = vmatmul.bf16.gmra.mxu0 %v9586
      %v9657 = vpop.f32.mrf.mxu0
      %v9658 = vadd.f32 0.0, %v9657
      %v9659 = vpop.f32.mrf.mxu0
      %v9660 = vadd.f32 0.0, %v9659
      %9661 = vmatmul.bf16.gmra.mxu0 %v9589
      %v9662 = vpop.f32.mrf.mxu0
      %v9663 = vadd.f32 0.0, %v9662
      %v9664 = vpop.f32.mrf.mxu0
      %v9665 = vadd.f32 0.0, %v9664
      %9666 = vmatmul.bf16.gmra.mxu0 %v9592
      %v9667 = vpop.f32.mrf.mxu0
      %v9668 = vadd.f32 0.0, %v9667
      %v9669 = vpop.f32.mrf.mxu0
      %v9670 = vadd.f32 0.0, %v9669
      %9671 = vmatmul.bf16.gmra.mxu0 %v9595
      %v9672 = vpop.f32.mrf.mxu0
      %v9673 = vadd.f32 0.0, %v9672
      %v9674 = vpop.f32.mrf.mxu0
      %v9675 = vadd.f32 0.0, %v9674
      %9676 = vmatmul.bf16.gmra.mxu0 %v9598
      %v9677 = vpop.f32.mrf.mxu0
      %v9678 = vadd.f32 0.0, %v9677
      %v9679 = vpop.f32.mrf.mxu0
      %v9680 = vadd.f32 0.0, %v9679
      %9681 = vmatmul.bf16.gmra.mxu0 %v9601
      %v9682 = vpop.f32.mrf.mxu0
      %v9683 = vadd.f32 0.0, %v9682
      %v9684 = vpop.f32.mrf.mxu0
      %v9685 = vadd.f32 0.0, %v9684
      %9686 = vmatmul.bf16.gmra.mxu0 %v9604
      %v9687 = vpop.f32.mrf.mxu0
      %v9688 = vadd.f32 0.0, %v9687
      %v9689 = vpop.f32.mrf.mxu0
      %v9690 = vadd.f32 0.0, %v9689
      %9691 = vmatmul.bf16.gmra.mxu0 %v9607
      %v9692 = vpop.f32.mrf.mxu0
      %v9693 = vadd.f32 0.0, %v9692
      %v9694 = vpop.f32.mrf.mxu0
      %v9695 = vadd.f32 0.0, %v9694
      %9696 = vmatmul.bf16.gmra.mxu0 %v9610
      %v9697 = vpop.f32.mrf.mxu0
      %v9698 = vadd.f32 0.0, %v9697
      %v9699 = vpop.f32.mrf.mxu0
      %v9700 = vadd.f32 0.0, %v9699
      %9701 = vmatmul.bf16.gmra.mxu0 %v9613
      %v9702 = vpop.f32.mrf.mxu0
      %v9703 = vadd.f32 0.0, %v9702
      %v9704 = vpop.f32.mrf.mxu0
      %v9705 = vadd.f32 0.0, %v9704
      %9706 = vdwg.mxu0
      %v9707 = vadd.f32 %v9053, %v9628
      %v9708 = vadd.f32 %v9054, %v9630
      %v9709 = vadd.f32 %v9055, %v9633
      %v9710 = vadd.f32 %v9056, %v9635
      %v9711 = vadd.f32 %v9057, %v9638
      %v9712 = vadd.f32 %v9058, %v9640
      %v9713 = vadd.f32 %v9059, %v9643
      %v9714 = vadd.f32 %v9060, %v9645
      %v9715 = vadd.f32 %v9061, %v9648
      %v9716 = vadd.f32 %v9062, %v9650
      %v9717 = vadd.f32 %v9063, %v9653
      %v9718 = vadd.f32 %v9064, %v9655
      %v9719 = vadd.f32 %v9065, %v9658
      %v9720 = vadd.f32 %v9066, %v9660
      %v9721 = vadd.f32 %v9067, %v9663
      %v9722 = vadd.f32 %v9068, %v9665
      %v9723 = vadd.f32 %v9069, %v9668
      %v9724 = vadd.f32 %v9070, %v9670
      %v9725 = vadd.f32 %v9071, %v9673
      %v9726 = vadd.f32 %v9072, %v9675
      %v9727 = vadd.f32 %v9073, %v9678
      %v9728 = vadd.f32 %v9074, %v9680
      %v9729 = vadd.f32 %v9075, %v9683
      %v9730 = vadd.f32 %v9076, %v9685
      %v9731 = vadd.f32 %v9077, %v9688
      %v9732 = vadd.f32 %v9078, %v9690
      %v9733 = vadd.f32 %v9079, %v9693
      %v9734 = vadd.f32 %v9080, %v9695
      %v9735 = vadd.f32 %v9081, %v9698
      %v9736 = vadd.f32 %v9082, %v9700
      %v9737 = vadd.f32 %v9083, %v9703
      %v9738 = vadd.f32 %v9084, %v9705
      %v9739 = vld [vmem:[%s3749] sm:$0xe]
      %v9740 = vld [vmem:[%s3749 + $0xc] sm:$0xe]
      %v9741 = vld [vmem:[%s3749 + $0x18] sm:$0xe]
      %v9742 = vld [vmem:[%s3749 + $0x24] sm:$0xe]
      %v9743 = vld [vmem:[%s3749 + $0x30] sm:$0xe]
      %v9744 = vld [vmem:[%s3749 + $0x3c] sm:$0xe]
      %v9745 = vld [vmem:[%s3749 + $0x48] sm:$0xe]
      %v9746 = vld [vmem:[%s3749 + $0x54] sm:$0xe]
      %v9747 = vld [vmem:[%s3749 + $0x60] sm:$0xe]
      %v9748 = vld [vmem:[%s3749 + $0x6c] sm:$0xe]
      %v9749 = vld [vmem:[%s3749 + $0x78] sm:$0xe]
      %v9750 = vld [vmem:[%s3749 + $0x84] sm:$0xe]
      %v9751 = vld [vmem:[%s3749 + $0x90] sm:$0xe]
      %v9752 = vld [vmem:[%s3749 + $0x9c] sm:$0xe]
      %v9753 = vld [vmem:[%s3749 + $0xa8] sm:$0xe]
      %v9754 = vld [vmem:[%s3749 + $0xb4] sm:$0xe]
      %v9803 = vrot.slane %v9739, 5
      %v9804 = vrot.slane %v9803, 4
      %v9805 = vrot.slane %v9086, 5
      %v9806 = vsel %vm2076, %v9804, %v9805
      %v9807 = vrot.slane %v9805, 4
      %v9808 = vrot.slane %v9087, 5
      %v9809 = vsel %vm2076, %v9807, %v9808
      %v9810 = vrot.slane %v9740, 5
      %v9811 = vrot.slane %v9810, 4
      %v9812 = vrot.slane %v9089, 5
      %v9813 = vsel %vm2076, %v9811, %v9812
      %v9814 = vrot.slane %v9812, 4
      %v9815 = vrot.slane %v9090, 5
      %v9816 = vsel %vm2076, %v9814, %v9815
      %v9817 = vrot.slane %v9741, 5
      %v9818 = vrot.slane %v9817, 4
      %v9819 = vrot.slane %v9092, 5
      %v9820 = vsel %vm2076, %v9818, %v9819
      %v9821 = vrot.slane %v9819, 4
      %v9822 = vrot.slane %v9093, 5
      %v9823 = vsel %vm2076, %v9821, %v9822
      %v9824 = vrot.slane %v9742, 5
      %v9825 = vrot.slane %v9824, 4
      %v9826 = vrot.slane %v9095, 5
      %v9827 = vsel %vm2076, %v9825, %v9826
      %v9828 = vrot.slane %v9826, 4
      %v9829 = vrot.slane %v9096, 5
      %v9830 = vsel %vm2076, %v9828, %v9829
      %v9831 = vrot.slane %v9743, 5
      %v9832 = vrot.slane %v9831, 4
      %v9833 = vrot.slane %v9098, 5
      %v9834 = vsel %vm2076, %v9832, %v9833
      %v9835 = vrot.slane %v9833, 4
      %v9836 = vrot.slane %v9099, 5
      %v9837 = vsel %vm2076, %v9835, %v9836
      %v9838 = vrot.slane %v9744, 5
      %v9839 = vrot.slane %v9838, 4
      %v9840 = vrot.slane %v9101, 5
      %v9841 = vsel %vm2076, %v9839, %v9840
      %v9842 = vrot.slane %v9840, 4
      %v9843 = vrot.slane %v9102, 5
      %v9844 = vsel %vm2076, %v9842, %v9843
      %v9845 = vrot.slane %v9745, 5
      %v9846 = vrot.slane %v9845, 4
      %v9847 = vrot.slane %v9104, 5
      %v9848 = vsel %vm2076, %v9846, %v9847
      %v9849 = vrot.slane %v9847, 4
      %v9850 = vrot.slane %v9105, 5
      %v9851 = vsel %vm2076, %v9849, %v9850
      %v9852 = vrot.slane %v9746, 5
      %v9853 = vrot.slane %v9852, 4
      %v9854 = vrot.slane %v9107, 5
      %v9855 = vsel %vm2076, %v9853, %v9854
      %v9856 = vrot.slane %v9854, 4
      %v9857 = vrot.slane %v9108, 5
      %v9858 = vsel %vm2076, %v9856, %v9857
      %v9859 = vrot.slane %v9747, 5
      %v9860 = vrot.slane %v9859, 4
      %v9861 = vrot.slane %v9110, 5
      %v9862 = vsel %vm2076, %v9860, %v9861
      %v9863 = vrot.slane %v9861, 4
      %v9864 = vrot.slane %v9111, 5
      %v9865 = vsel %vm2076, %v9863, %v9864
      %v9866 = vrot.slane %v9748, 5
      %v9867 = vrot.slane %v9866, 4
      %v9868 = vrot.slane %v9113, 5
      %v9869 = vsel %vm2076, %v9867, %v9868
      %v9870 = vrot.slane %v9868, 4
      %v9871 = vrot.slane %v9114, 5
      %v9872 = vsel %vm2076, %v9870, %v9871
      %v9873 = vrot.slane %v9749, 5
      %v9874 = vrot.slane %v9873, 4
      %v9875 = vrot.slane %v9116, 5
      %v9876 = vsel %vm2076, %v9874, %v9875
      %v9877 = vrot.slane %v9875, 4
      %v9878 = vrot.slane %v9117, 5
      %v9879 = vsel %vm2076, %v9877, %v9878
      %v9880 = vrot.slane %v9750, 5
      %v9881 = vrot.slane %v9880, 4
      %v9882 = vrot.slane %v9119, 5
      %v9883 = vsel %vm2076, %v9881, %v9882
      %v9884 = vrot.slane %v9882, 4
      %v9885 = vrot.slane %v9120, 5
      %v9886 = vsel %vm2076, %v9884, %v9885
      %v9887 = vrot.slane %v9751, 5
      %v9888 = vrot.slane %v9887, 4
      %v9889 = vrot.slane %v9122, 5
      %v9890 = vsel %vm2076, %v9888, %v9889
      %v9891 = vrot.slane %v9889, 4
      %v9892 = vrot.slane %v9123, 5
      %v9893 = vsel %vm2076, %v9891, %v9892
      %v9894 = vrot.slane %v9752, 5
      %v9895 = vrot.slane %v9894, 4
      %v9896 = vrot.slane %v9125, 5
      %v9897 = vsel %vm2076, %v9895, %v9896
      %v9898 = vrot.slane %v9896, 4
      %v9899 = vrot.slane %v9126, 5
      %v9900 = vsel %vm2076, %v9898, %v9899
      %v9901 = vrot.slane %v9753, 5
      %v9902 = vrot.slane %v9901, 4
      %v9903 = vrot.slane %v9128, 5
      %v9904 = vsel %vm2076, %v9902, %v9903
      %v9905 = vrot.slane %v9903, 4
      %v9906 = vrot.slane %v9129, 5
      %v9907 = vsel %vm2076, %v9905, %v9906
      %v9908 = vrot.slane %v9754, 5
      %v9909 = vrot.slane %v9908, 4
      %v9910 = vrot.slane %v9131, 5
      %v9911 = vsel %vm2076, %v9909, %v9910
      %v9912 = vrot.slane %v9910, 4
      %v9913 = vrot.slane %v9132, 5
      %v9914 = vsel %vm2076, %v9912, %v9913
      %s9915 = scalar_lea.vmem %s6, 16
      %v9916 = vld [vmem:[%s9915] sm:$0x3]
      %v9917 = vunpack.c.l.b16 %v9806
      %v9918 = vunpack.c.l.b16 %v9809
      %v9919 = vunpack.c.l.b16 %v9813
      %v9920 = vunpack.c.l.b16 %v9816
      %v9921 = vunpack.c.l.b16 %v9820
      %v9922 = vunpack.c.l.b16 %v9823
      %v9923 = vunpack.c.l.b16 %v9827
      %v9924 = vunpack.c.l.b16 %v9830
      %v9925 = vunpack.c.l.b16 %v9834
      %v9926 = vunpack.c.l.b16 %v9837
      %v9927 = vunpack.c.l.b16 %v9841
      %v9928 = vunpack.c.l.b16 %v9844
      %v9929 = vunpack.c.l.b16 %v9848
      %v9930 = vunpack.c.l.b16 %v9851
      %v9931 = vunpack.c.l.b16 %v9855
      %v9932 = vunpack.c.l.b16 %v9858
      %v9933 = vunpack.c.l.b16 %v9862
      %v9934 = vunpack.c.l.b16 %v9865
      %v9935 = vunpack.c.l.b16 %v9869
      %v9936 = vunpack.c.l.b16 %v9872
      %v9937 = vunpack.c.l.b16 %v9876
      %v9938 = vunpack.c.l.b16 %v9879
      %v9939 = vunpack.c.l.b16 %v9883
      %v9940 = vunpack.c.l.b16 %v9886
      %v9941 = vunpack.c.l.b16 %v9890
      %v9942 = vunpack.c.l.b16 %v9893
      %v9943 = vunpack.c.l.b16 %v9897
      %v9944 = vunpack.c.l.b16 %v9900
      %v9945 = vunpack.c.l.b16 %v9904
      %v9946 = vunpack.c.l.b16 %v9907
      %v9947 = vunpack.c.l.b16 %v9911
      %v9948 = vunpack.c.l.b16 %v9914
      %v9949 = vpack.c.b16 %v9918, %v9917
      %v9950 = vpack.c.b16 %v9920, %v9919
      %v9951 = vpack.c.b16 %v9922, %v9921
      %v9952 = vpack.c.b16 %v9924, %v9923
      %v9953 = vpack.c.b16 %v9926, %v9925
      %v9954 = vpack.c.b16 %v9928, %v9927
      %v9955 = vpack.c.b16 %v9930, %v9929
      %v9956 = vpack.c.b16 %v9932, %v9931
      %v9957 = vpack.c.b16 %v9934, %v9933
      %v9958 = vpack.c.b16 %v9936, %v9935
      %v9959 = vpack.c.b16 %v9938, %v9937
      %v9960 = vpack.c.b16 %v9940, %v9939
      %v9961 = vpack.c.b16 %v9942, %v9941
      %v9962 = vpack.c.b16 %v9944, %v9943
      %v9963 = vpack.c.b16 %v9946, %v9945
      %v9964 = vpack.c.b16 %v9948, %v9947
      %v9966 = vsel %vm1664, %v9949, 0
      %v9969 = vsel %vm1664, %v9950, 0
      %v9972 = vsel %vm1664, %v9951, 0
      %v9975 = vsel %vm1664, %v9952, 0
      %v9978 = vsel %vm1664, %v9953, 0
      %v9981 = vsel %vm1664, %v9954, 0
      %v9984 = vsel %vm1664, %v9955, 0
      %v9987 = vsel %vm1664, %v9956, 0
      %v9990 = vsel %vm1664, %v9957, 0
      %v9993 = vsel %vm1664, %v9958, 0
      %v9996 = vsel %vm1664, %v9959, 0
      %v9999 = vsel %vm1664, %v9960, 0
      %v10002 = vsel %vm1664, %v9961, 0
      %v10005 = vsel %vm1664, %v9962, 0
      %v10008 = vsel %vm1664, %v9963, 0
      %v10011 = vsel %vm1664, %v9964, 0
      %v10014 = vsel %vm1713, %v9916, 0
      %10016 = vmatpush.bf16.msra.mxu0 0
      %10017 = vmatpush.bf16.msra.mxu0 0
      %10018 = vmatpush.bf16.msra.mxu0 0
      %10019 = vmatpush.bf16.msra.mxu0 0
      %10020 = vmatpush.bf16.msra.mxu0 0
      %10021 = vmatpush.bf16.msra.mxu0 0
      %10022 = vmatpush.bf16.msra.mxu0 0
      %10023 = vmatpush.bf16.msra.mxu0 %v10014
      %10024 = vmatmul.bf16.gmra.mxu0 %v9966
      %v10025 = vpop.f32.mrf.mxu0
      %v10026 = vadd.f32 0.0, %v10025
      %v10027 = vpop.f32.mrf.mxu0
      %v10028 = vadd.f32 0.0, %v10027
      %10029 = vmatmul.bf16.gmra.mxu0 %v9969
      %v10030 = vpop.f32.mrf.mxu0
      %v10031 = vadd.f32 0.0, %v10030
      %v10032 = vpop.f32.mrf.mxu0
      %v10033 = vadd.f32 0.0, %v10032
      %10034 = vmatmul.bf16.gmra.mxu0 %v9972
      %v10035 = vpop.f32.mrf.mxu0
      %v10036 = vadd.f32 0.0, %v10035
      %v10037 = vpop.f32.mrf.mxu0
      %v10038 = vadd.f32 0.0, %v10037
      %10039 = vmatmul.bf16.gmra.mxu0 %v9975
      %v10040 = vpop.f32.mrf.mxu0
      %v10041 = vadd.f32 0.0, %v10040
      %v10042 = vpop.f32.mrf.mxu0
      %v10043 = vadd.f32 0.0, %v10042
      %10044 = vmatmul.bf16.gmra.mxu0 %v9978
      %v10045 = vpop.f32.mrf.mxu0
      %v10046 = vadd.f32 0.0, %v10045
      %v10047 = vpop.f32.mrf.mxu0
      %v10048 = vadd.f32 0.0, %v10047
      %10049 = vmatmul.bf16.gmra.mxu0 %v9981
      %v10050 = vpop.f32.mrf.mxu0
      %v10051 = vadd.f32 0.0, %v10050
      %v10052 = vpop.f32.mrf.mxu0
      %v10053 = vadd.f32 0.0, %v10052
      %10054 = vmatmul.bf16.gmra.mxu0 %v9984
      %v10055 = vpop.f32.mrf.mxu0
      %v10056 = vadd.f32 0.0, %v10055
      %v10057 = vpop.f32.mrf.mxu0
      %v10058 = vadd.f32 0.0, %v10057
      %10059 = vmatmul.bf16.gmra.mxu0 %v9987
      %v10060 = vpop.f32.mrf.mxu0
      %v10061 = vadd.f32 0.0, %v10060
      %v10062 = vpop.f32.mrf.mxu0
      %v10063 = vadd.f32 0.0, %v10062
      %10064 = vmatmul.bf16.gmra.mxu0 %v9990
      %v10065 = vpop.f32.mrf.mxu0
      %v10066 = vadd.f32 0.0, %v10065
      %v10067 = vpop.f32.mrf.mxu0
      %v10068 = vadd.f32 0.0, %v10067
      %10069 = vmatmul.bf16.gmra.mxu0 %v9993
      %v10070 = vpop.f32.mrf.mxu0
      %v10071 = vadd.f32 0.0, %v10070
      %v10072 = vpop.f32.mrf.mxu0
      %v10073 = vadd.f32 0.0, %v10072
      %10074 = vmatmul.bf16.gmra.mxu0 %v9996
      %v10075 = vpop.f32.mrf.mxu0
      %v10076 = vadd.f32 0.0, %v10075
      %v10077 = vpop.f32.mrf.mxu0
      %v10078 = vadd.f32 0.0, %v10077
      %10079 = vmatmul.bf16.gmra.mxu0 %v9999
      %v10080 = vpop.f32.mrf.mxu0
      %v10081 = vadd.f32 0.0, %v10080
      %v10082 = vpop.f32.mrf.mxu0
      %v10083 = vadd.f32 0.0, %v10082
      %10084 = vmatmul.bf16.gmra.mxu0 %v10002
      %v10085 = vpop.f32.mrf.mxu0
      %v10086 = vadd.f32 0.0, %v10085
      %v10087 = vpop.f32.mrf.mxu0
      %v10088 = vadd.f32 0.0, %v10087
      %10089 = vmatmul.bf16.gmra.mxu0 %v10005
      %v10090 = vpop.f32.mrf.mxu0
      %v10091 = vadd.f32 0.0, %v10090
      %v10092 = vpop.f32.mrf.mxu0
      %v10093 = vadd.f32 0.0, %v10092
      %10094 = vmatmul.bf16.gmra.mxu0 %v10008
      %v10095 = vpop.f32.mrf.mxu0
      %v10096 = vadd.f32 0.0, %v10095
      %v10097 = vpop.f32.mrf.mxu0
      %v10098 = vadd.f32 0.0, %v10097
      %10099 = vmatmul.bf16.gmra.mxu0 %v10011
      %v10100 = vpop.f32.mrf.mxu0
      %v10101 = vadd.f32 0.0, %v10100
      %v10102 = vpop.f32.mrf.mxu0
      %v10103 = vadd.f32 0.0, %v10102
      %10104 = vdwg.mxu0
      %v10105 = vadd.f32 %v9707, %v10026
      %v10106 = vadd.f32 %v9708, %v10028
      %v10107 = vadd.f32 %v9709, %v10031
      %v10108 = vadd.f32 %v9710, %v10033
      %v10109 = vadd.f32 %v9711, %v10036
      %v10110 = vadd.f32 %v9712, %v10038
      %v10111 = vadd.f32 %v9713, %v10041
      %v10112 = vadd.f32 %v9714, %v10043
      %v10113 = vadd.f32 %v9715, %v10046
      %v10114 = vadd.f32 %v9716, %v10048
      %v10115 = vadd.f32 %v9717, %v10051
      %v10116 = vadd.f32 %v9718, %v10053
      %v10117 = vadd.f32 %v9719, %v10056
      %v10118 = vadd.f32 %v9720, %v10058
      %v10119 = vadd.f32 %v9721, %v10061
      %v10120 = vadd.f32 %v9722, %v10063
      %v10121 = vadd.f32 %v9723, %v10066
      %v10122 = vadd.f32 %v9724, %v10068
      %v10123 = vadd.f32 %v9725, %v10071
      %v10124 = vadd.f32 %v9726, %v10073
      %v10125 = vadd.f32 %v9727, %v10076
      %v10126 = vadd.f32 %v9728, %v10078
      %v10127 = vadd.f32 %v9729, %v10081
      %v10128 = vadd.f32 %v9730, %v10083
      %v10129 = vadd.f32 %v9731, %v10086
      %v10130 = vadd.f32 %v9732, %v10088
      %v10131 = vadd.f32 %v9733, %v10091
      %v10132 = vadd.f32 %v9734, %v10093
      %v10133 = vadd.f32 %v9735, %v10096
      %v10134 = vadd.f32 %v9736, %v10098
      %v10135 = vadd.f32 %v9737, %v10101
      %v10136 = vadd.f32 %v9738, %v10103
      %v10137 = vsel %vm1664, %v10105, 0.0
      %v10138 = vsel %vm1664, %v10106, 0.0
      %v10139 = vadd.f32 %v10137, %v10138
      %v10140 = vsel %vm1664, %v10107, 0.0
      %v10141 = vadd.f32 %v10139, %v10140
      %v10142 = vsel %vm1664, %v10108, 0.0
      %v10143 = vadd.f32 %v10141, %v10142
      %v10144 = vsel %vm1664, %v10109, 0.0
      %v10145 = vadd.f32 %v10143, %v10144
      %v10146 = vsel %vm1664, %v10110, 0.0
      %v10147 = vadd.f32 %v10145, %v10146
      %v10148 = vsel %vm1664, %v10111, 0.0
      %v10149 = vadd.f32 %v10147, %v10148
      %v10150 = vsel %vm1664, %v10112, 0.0
      %v10151 = vadd.f32 %v10149, %v10150
      %v10152 = vsel %vm1664, %v10113, 0.0
      %v10153 = vadd.f32 %v10151, %v10152
      %v10154 = vsel %vm1664, %v10114, 0.0
      %v10155 = vadd.f32 %v10153, %v10154
      %v10156 = vsel %vm1664, %v10115, 0.0
      %v10157 = vadd.f32 %v10155, %v10156
      %v10158 = vsel %vm1664, %v10116, 0.0
      %v10159 = vadd.f32 %v10157, %v10158
      %v10160 = vsel %vm1664, %v10117, 0.0
      %v10161 = vadd.f32 %v10159, %v10160
      %v10162 = vsel %vm1664, %v10118, 0.0
      %v10163 = vadd.f32 %v10161, %v10162
      %v10164 = vsel %vm1664, %v10119, 0.0
      %v10165 = vadd.f32 %v10163, %v10164
      %v10166 = vsel %vm1664, %v10120, 0.0
      %v10167 = vadd.f32 %v10165, %v10166
      %v10168 = vsel %vm1664, %v10121, 0.0
      %v10169 = vadd.f32 %v10167, %v10168
      %v10170 = vsel %vm1664, %v10122, 0.0
      %v10171 = vadd.f32 %v10169, %v10170
      %v10172 = vsel %vm1664, %v10123, 0.0
      %v10173 = vadd.f32 %v10171, %v10172
      %v10174 = vsel %vm1664, %v10124, 0.0
      %v10175 = vadd.f32 %v10173, %v10174
      %v10176 = vsel %vm1664, %v10125, 0.0
      %v10177 = vadd.f32 %v10175, %v10176
      %v10178 = vsel %vm1664, %v10126, 0.0
      %v10179 = vadd.f32 %v10177, %v10178
      %v10180 = vsel %vm1664, %v10127, 0.0
      %v10181 = vadd.f32 %v10179, %v10180
      %v10182 = vsel %vm1664, %v10128, 0.0
      %v10183 = vadd.f32 %v10181, %v10182
      %v10184 = vsel %vm1664, %v10129, 0.0
      %v10185 = vadd.f32 %v10183, %v10184
      %v10186 = vsel %vm1664, %v10130, 0.0
      %v10187 = vadd.f32 %v10185, %v10186
      %v10188 = vsel %vm1664, %v10131, 0.0
      %v10189 = vadd.f32 %v10187, %v10188
      %v10190 = vsel %vm1664, %v10132, 0.0
      %v10191 = vadd.f32 %v10189, %v10190
      %v10192 = vsel %vm1664, %v10133, 0.0
      %v10193 = vadd.f32 %v10191, %v10192
      %v10194 = vsel %vm1664, %v10134, 0.0
      %v10195 = vadd.f32 %v10193, %v10194
      %v10196 = vsel %vm1664, %v10135, 0.0
      %v10197 = vadd.f32 %v10195, %v10196
      %v10198 = vsel %vm1664, %v10136, 0.0
      %v10199 = vadd.f32 %v10197, %v10198
      %v10200 = vrot.slane %v10199, 4
      %v10201 = vadd.f32 %v10199, %v10200
      %v10202 = vrot.slane %v10201, 2
      %v10203 = vadd.f32 %v10201, %v10202
      %v10204 = vrot.slane %v10203, 1
      %v10205 = vadd.f32 %v10203, %v10204
      %v10206 = vmul.f32 %v10205, 0.00390625
      %v10207 = vsub.f32 %v10105, %v10206
      %v10208 = vsub.f32 %v10106, %v10206
      %v10209 = vsub.f32 %v10107, %v10206
      %v10210 = vsub.f32 %v10108, %v10206
      %v10211 = vsub.f32 %v10109, %v10206
      %v10212 = vsub.f32 %v10110, %v10206
      %v10213 = vsub.f32 %v10111, %v10206
      %v10214 = vsub.f32 %v10112, %v10206
      %v10215 = vsub.f32 %v10113, %v10206
      %v10216 = vsub.f32 %v10114, %v10206
      %v10217 = vsub.f32 %v10115, %v10206
      %v10218 = vsub.f32 %v10116, %v10206
      %v10219 = vsub.f32 %v10117, %v10206
      %v10220 = vsub.f32 %v10118, %v10206
      %v10221 = vsub.f32 %v10119, %v10206
      %v10222 = vsub.f32 %v10120, %v10206
      %v10223 = vsub.f32 %v10121, %v10206
      %v10224 = vsub.f32 %v10122, %v10206
      %v10225 = vsub.f32 %v10123, %v10206
      %v10226 = vsub.f32 %v10124, %v10206
      %v10227 = vsub.f32 %v10125, %v10206
      %v10228 = vsub.f32 %v10126, %v10206
      %v10229 = vsub.f32 %v10127, %v10206
      %v10230 = vsub.f32 %v10128, %v10206
      %v10231 = vsub.f32 %v10129, %v10206
      %v10232 = vsub.f32 %v10130, %v10206
      %v10233 = vsub.f32 %v10131, %v10206
      %v10234 = vsub.f32 %v10132, %v10206
      %v10235 = vsub.f32 %v10133, %v10206
      %v10236 = vsub.f32 %v10134, %v10206
      %v10237 = vsub.f32 %v10135, %v10206
      %v10238 = vsub.f32 %v10136, %v10206
      %v10239 = vmul.f32 %v10207, %v10207
      %v10240 = vmul.f32 %v10208, %v10208
      %v10241 = vmul.f32 %v10209, %v10209
      %v10242 = vmul.f32 %v10210, %v10210
      %v10243 = vmul.f32 %v10211, %v10211
      %v10244 = vmul.f32 %v10212, %v10212
      %v10245 = vmul.f32 %v10213, %v10213
      %v10246 = vmul.f32 %v10214, %v10214
      %v10247 = vmul.f32 %v10215, %v10215
      %v10248 = vmul.f32 %v10216, %v10216
      %v10249 = vmul.f32 %v10217, %v10217
      %v10250 = vmul.f32 %v10218, %v10218
      %v10251 = vmul.f32 %v10219, %v10219
      %v10252 = vmul.f32 %v10220, %v10220
      %v10253 = vmul.f32 %v10221, %v10221
      %v10254 = vmul.f32 %v10222, %v10222
      %v10255 = vmul.f32 %v10223, %v10223
      %v10256 = vmul.f32 %v10224, %v10224
      %v10257 = vmul.f32 %v10225, %v10225
      %v10258 = vmul.f32 %v10226, %v10226
      %v10259 = vmul.f32 %v10227, %v10227
      %v10260 = vmul.f32 %v10228, %v10228
      %v10261 = vmul.f32 %v10229, %v10229
      %v10262 = vmul.f32 %v10230, %v10230
      %v10263 = vmul.f32 %v10231, %v10231
      %v10264 = vmul.f32 %v10232, %v10232
      %v10265 = vmul.f32 %v10233, %v10233
      %v10266 = vmul.f32 %v10234, %v10234
      %v10267 = vmul.f32 %v10235, %v10235
      %v10268 = vmul.f32 %v10236, %v10236
      %v10269 = vmul.f32 %v10237, %v10237
      %v10270 = vmul.f32 %v10238, %v10238
      %v10271 = vsel %vm1664, %v10239, 0.0
      %v10272 = vsel %vm1664, %v10240, 0.0
      %v10273 = vadd.f32 %v10271, %v10272
      %v10274 = vsel %vm1664, %v10241, 0.0
      %v10275 = vadd.f32 %v10273, %v10274
      %v10276 = vsel %vm1664, %v10242, 0.0
      %v10277 = vadd.f32 %v10275, %v10276
      %v10278 = vsel %vm1664, %v10243, 0.0
      %v10279 = vadd.f32 %v10277, %v10278
      %v10280 = vsel %vm1664, %v10244, 0.0
      %v10281 = vadd.f32 %v10279, %v10280
      %v10282 = vsel %vm1664, %v10245, 0.0
      %v10283 = vadd.f32 %v10281, %v10282
      %v10284 = vsel %vm1664, %v10246, 0.0
      %v10285 = vadd.f32 %v10283, %v10284
      %v10286 = vsel %vm1664, %v10247, 0.0
      %v10287 = vadd.f32 %v10285, %v10286
      %v10288 = vsel %vm1664, %v10248, 0.0
      %v10289 = vadd.f32 %v10287, %v10288
      %v10290 = vsel %vm1664, %v10249, 0.0
      %v10291 = vadd.f32 %v10289, %v10290
      %v10292 = vsel %vm1664, %v10250, 0.0
      %v10293 = vadd.f32 %v10291, %v10292
      %v10294 = vsel %vm1664, %v10251, 0.0
      %v10295 = vadd.f32 %v10293, %v10294
      %v10296 = vsel %vm1664, %v10252, 0.0
      %v10297 = vadd.f32 %v10295, %v10296
      %v10298 = vsel %vm1664, %v10253, 0.0
      %v10299 = vadd.f32 %v10297, %v10298
      %v10300 = vsel %vm1664, %v10254, 0.0
      %v10301 = vadd.f32 %v10299, %v10300
      %v10302 = vsel %vm1664, %v10255, 0.0
      %v10303 = vadd.f32 %v10301, %v10302
      %v10304 = vsel %vm1664, %v10256, 0.0
      %v10305 = vadd.f32 %v10303, %v10304
      %v10306 = vsel %vm1664, %v10257, 0.0
      %v10307 = vadd.f32 %v10305, %v10306
      %v10308 = vsel %vm1664, %v10258, 0.0
      %v10309 = vadd.f32 %v10307, %v10308
      %v10310 = vsel %vm1664, %v10259, 0.0
      %v10311 = vadd.f32 %v10309, %v10310
      %v10312 = vsel %vm1664, %v10260, 0.0
      %v10313 = vadd.f32 %v10311, %v10312
      %v10314 = vsel %vm1664, %v10261, 0.0
      %v10315 = vadd.f32 %v10313, %v10314
      %v10316 = vsel %vm1664, %v10262, 0.0
      %v10317 = vadd.f32 %v10315, %v10316
      %v10318 = vsel %vm1664, %v10263, 0.0
      %v10319 = vadd.f32 %v10317, %v10318
      %v10320 = vsel %vm1664, %v10264, 0.0
      %v10321 = vadd.f32 %v10319, %v10320
      %v10322 = vsel %vm1664, %v10265, 0.0
      %v10323 = vadd.f32 %v10321, %v10322
      %v10324 = vsel %vm1664, %v10266, 0.0
      %v10325 = vadd.f32 %v10323, %v10324
      %v10326 = vsel %vm1664, %v10267, 0.0
      %v10327 = vadd.f32 %v10325, %v10326
      %v10328 = vsel %vm1664, %v10268, 0.0
      %v10329 = vadd.f32 %v10327, %v10328
      %v10330 = vsel %vm1664, %v10269, 0.0
      %v10331 = vadd.f32 %v10329, %v10330
      %v10332 = vsel %vm1664, %v10270, 0.0
      %v10333 = vadd.f32 %v10331, %v10332
      %v10334 = vrot.slane %v10333, 4
      %v10335 = vadd.f32 %v10333, %v10334
      %v10336 = vrot.slane %v10335, 2
      %v10337 = vadd.f32 %v10335, %v10336
      %v10338 = vrot.slane %v10337, 1
      %v10339 = vadd.f32 %v10337, %v10338
      %v10340 = vadd.f32 %v10206, %v397
      %v10341 = vmul.f32 %v10339, 0.003921569
      %v10342 = vsel %vm5293, %v10340, 0.0
      %10343 = vadd.xlane.f32.xlu0 %v10342
      %v10344 = vpop.xlane.xlu0 %10343
      %v10345 = vrot.slane %v10344, 4
      %v10346 = vadd.f32 %v10344, %v10345
      %v10347 = vrot.slane %v10346, 2
      %v10348 = vadd.f32 %v10346, %v10347
      %v10349 = vrot.slane %v10348, 1
      %v10350 = vadd.f32 %v10348, %v10349
      %s10351 = vtos %v10350
      %v10352 = vstv %s10351
      %v10353 = vmul.f32 %v10352, 0.25
      %v10354 = vsub.f32 %v10340, %v10353
      %v10355 = vsel %vm5293, %v10339, 0.0
      %10356 = vadd.xlane.f32.xlu0 %v10355
      %v10357 = vpop.xlane.xlu0 %10356
      %v10358 = vrot.slane %v10357, 4
      %v10359 = vadd.f32 %v10357, %v10358
      %v10360 = vrot.slane %v10359, 2
      %v10361 = vadd.f32 %v10359, %v10360
      %v10362 = vrot.slane %v10361, 1
      %v10363 = vadd.f32 %v10361, %v10362
      %s10364 = vtos %v10363
      %v10365 = vstv %s10364
      %v10366 = vmul.f32 %v10354, %v10354
      %v10367 = vsel %vm5293, %v10366, 0.0
      %10368 = vadd.xlane.f32.xlu0 %v10367
      %v10369 = vpop.xlane.xlu0 %10368
      %v10370 = vrot.slane %v10369, 4
      %v10371 = vadd.f32 %v10369, %v10370
      %v10372 = vrot.slane %v10371, 2
      %v10373 = vadd.f32 %v10371, %v10372
      %v10374 = vrot.slane %v10373, 1
      %v10375 = vadd.f32 %v10373, %v10374
      %s10376 = vtos %v10375
      %v10377 = vstv %s10376
      %v10378 = vmul.f32 %v10377, 256.0
      %v10379 = vadd.f32 %v10365, %v10378
      %v10380 = vmul.f32 %v10379, 0.0009775171
      %v10381 = vadd.f32 %v10341, 1e-05
      %v10382 = vrsqrt.pop %v10381
      %v10383 = vmul.f32 %v10382, %v10381
      %v10384 = vmul.f32 %v10383, %v10382
      %v10385 = vmul.f32 0.5, %v10384
      %v10386 = vsub.f32 1.5, %v10385
      %v10387 = vmul.f32 %v10382, %v10386
      %vm10388 = vweird.f32 %v10381
      %vm10389 = vweird.f32 %v10382
      %vm10390 = vmor %vm10388, %vm10389
      %v10391 = vsel %vm10390, %v10382, %v10387
      %v10392 = vadd.f32 %v10380, 1e-05
      %v10393 = vrsqrt.pop %v10392
      %v10394 = vmul.f32 %v10393, %v10392
      %v10395 = vmul.f32 %v10394, %v10393
      %v10396 = vmul.f32 0.5, %v10395
      %v10397 = vsub.f32 1.5, %v10396
      %v10398 = vmul.f32 %v10393, %v10397
      %vm10399 = vweird.f32 %v10392
      %vm10400 = vweird.f32 %v10393
      %vm10401 = vmor %vm10399, %vm10400
      %v10402 = vsel %vm10401, %v10393, %v10398
      %v10403 = vsub.f32 1.0, %v399
      %v10404 = vmul.f32 %v399, %v10391
      %v10405 = vmul.f32 %v10403, %v10402
      %v10406 = vadd.f32 %v10404, %v10405
      %v10407 = vmul.f32 %v394, %v10406
      %v10408 = vmul.f32 %v399, %v10340
      %v10409 = vmul.f32 %v10408, %v10391
      %v10410 = vmul.f32 %v10403, %v10353
      %v10411 = vmul.f32 %v10410, %v10402
      %v10412 = vadd.f32 %v10409, %v10411
      %v10413 = vmul.f32 %v394, %v10412
      %v10414 = vsub.f32 %v395, %v10413
      %v10415 = vmul.f32 %v10407, %v397
      %v10416 = vadd.f32 %v10414, %v10415
      %v10418 = vperm.slane %v10407, 0
      %v10420 = vmul.f32 %v10105, %v10418
      %v10421 = vmul.f32 %v10106, %v10418
      %v10422 = vmul.f32 %v10107, %v10418
      %v10423 = vmul.f32 %v10108, %v10418
      %v10424 = vmul.f32 %v10109, %v10418
      %v10425 = vmul.f32 %v10110, %v10418
      %v10426 = vmul.f32 %v10111, %v10418
      %v10427 = vmul.f32 %v10112, %v10418
      %v10428 = vmul.f32 %v10113, %v10418
      %v10429 = vmul.f32 %v10114, %v10418
      %v10430 = vmul.f32 %v10115, %v10418
      %v10431 = vmul.f32 %v10116, %v10418
      %v10432 = vmul.f32 %v10117, %v10418
      %v10433 = vmul.f32 %v10118, %v10418
      %v10434 = vmul.f32 %v10119, %v10418
      %v10435 = vmul.f32 %v10120, %v10418
      %v10436 = vmul.f32 %v10121, %v10418
      %v10437 = vmul.f32 %v10122, %v10418
      %v10438 = vmul.f32 %v10123, %v10418
      %v10439 = vmul.f32 %v10124, %v10418
      %v10440 = vmul.f32 %v10125, %v10418
      %v10441 = vmul.f32 %v10126, %v10418
      %v10442 = vmul.f32 %v10127, %v10418
      %v10443 = vmul.f32 %v10128, %v10418
      %v10444 = vmul.f32 %v10129, %v10418
      %v10445 = vmul.f32 %v10130, %v10418
      %v10446 = vmul.f32 %v10131, %v10418
      %v10447 = vmul.f32 %v10132, %v10418
      %v10448 = vmul.f32 %v10133, %v10418
      %v10449 = vmul.f32 %v10134, %v10418
      %v10450 = vmul.f32 %v10135, %v10418
      %v10451 = vmul.f32 %v10136, %v10418
      %v10453 = vperm.slane %v10416, 0
      %v10455 = vadd.f32 %v10420, %v10453
      %v10456 = vadd.f32 %v10421, %v10453
      %v10457 = vadd.f32 %v10422, %v10453
      %v10458 = vadd.f32 %v10423, %v10453
      %v10459 = vadd.f32 %v10424, %v10453
      %v10460 = vadd.f32 %v10425, %v10453
      %v10461 = vadd.f32 %v10426, %v10453
      %v10462 = vadd.f32 %v10427, %v10453
      %v10463 = vadd.f32 %v10428, %v10453
      %v10464 = vadd.f32 %v10429, %v10453
      %v10465 = vadd.f32 %v10430, %v10453
      %v10466 = vadd.f32 %v10431, %v10453
      %v10467 = vadd.f32 %v10432, %v10453
      %v10468 = vadd.f32 %v10433, %v10453
      %v10469 = vadd.f32 %v10434, %v10453
      %v10470 = vadd.f32 %v10435, %v10453
      %v10471 = vadd.f32 %v10436, %v10453
      %v10472 = vadd.f32 %v10437, %v10453
      %v10473 = vadd.f32 %v10438, %v10453
      %v10474 = vadd.f32 %v10439, %v10453
      %v10475 = vadd.f32 %v10440, %v10453
      %v10476 = vadd.f32 %v10441, %v10453
      %v10477 = vadd.f32 %v10442, %v10453
      %v10478 = vadd.f32 %v10443, %v10453
      %v10479 = vadd.f32 %v10444, %v10453
      %v10480 = vadd.f32 %v10445, %v10453
      %v10481 = vadd.f32 %v10446, %v10453
      %v10482 = vadd.f32 %v10447, %v10453
      %v10483 = vadd.f32 %v10448, %v10453
      %v10484 = vadd.f32 %v10449, %v10453
      %v10485 = vadd.f32 %v10450, %v10453
      %v10486 = vadd.f32 %v10451, %v10453
      %v10487 = vadd.f32 %v10455, %v362
      %v10488 = vadd.f32 %v10456, %v363
      %v10489 = vadd.f32 %v10457, %v364
      %v10490 = vadd.f32 %v10458, %v365
      %v10491 = vadd.f32 %v10459, %v366
      %v10492 = vadd.f32 %v10460, %v367
      %v10493 = vadd.f32 %v10461, %v368
      %v10494 = vadd.f32 %v10462, %v369
      %v10495 = vadd.f32 %v10463, %v370
      %v10496 = vadd.f32 %v10464, %v371
      %v10497 = vadd.f32 %v10465, %v372
      %v10498 = vadd.f32 %v10466, %v373
      %v10499 = vadd.f32 %v10467, %v374
      %v10500 = vadd.f32 %v10468, %v375
      %v10501 = vadd.f32 %v10469, %v376
      %v10502 = vadd.f32 %v10470, %v377
      %v10503 = vadd.f32 %v10471, %v378
      %v10504 = vadd.f32 %v10472, %v379
      %v10505 = vadd.f32 %v10473, %v380
      %v10506 = vadd.f32 %v10474, %v381
      %v10507 = vadd.f32 %v10475, %v382
      %v10508 = vadd.f32 %v10476, %v383
      %v10509 = vadd.f32 %v10477, %v384
      %v10510 = vadd.f32 %v10478, %v385
      %v10511 = vadd.f32 %v10479, %v386
      %v10512 = vadd.f32 %v10480, %v387
      %v10513 = vadd.f32 %v10481, %v388
      %v10514 = vadd.f32 %v10482, %v389
      %v10515 = vadd.f32 %v10483, %v390
      %v10516 = vadd.f32 %v10484, %v391
      %v10517 = vadd.f32 %v10485, %v392
      %v10518 = vadd.f32 %v10486, %v393
      %10519 = vst.msk [vmem:[%s360] sm:$0xff] %vm1664, %v10487
      %10520 = vst.msk [vmem:[%s360 + $0x8] sm:$0xff] %vm1664, %v10488
      %10521 = vst.msk [vmem:[%s360 + $0x10] sm:$0xff] %vm1664, %v10489
      %10522 = vst.msk [vmem:[%s360 + $0x18] sm:$0xff] %vm1664, %v10490
      %10523 = vst.msk [vmem:[%s360 + $0x20] sm:$0xff] %vm1664, %v10491
      %10524 = vst.msk [vmem:[%s360 + $0x28] sm:$0xff] %vm1664, %v10492
      %10525 = vst.msk [vmem:[%s360 + $0x30] sm:$0xff] %vm1664, %v10493
      %10526 = vst.msk [vmem:[%s360 + $0x38] sm:$0xff] %vm1664, %v10494
      %10527 = vst.msk [vmem:[%s360 + $0x40] sm:$0xff] %vm1664, %v10495
      %10528 = vst.msk [vmem:[%s360 + $0x48] sm:$0xff] %vm1664, %v10496
      %10529 = vst.msk [vmem:[%s360 + $0x50] sm:$0xff] %vm1664, %v10497
      %10530 = vst.msk [vmem:[%s360 + $0x58] sm:$0xff] %vm1664, %v10498
      %10531 = vst.msk [vmem:[%s360 + $0x60] sm:$0xff] %vm1664, %v10499
      %10532 = vst.msk [vmem:[%s360 + $0x68] sm:$0xff] %vm1664, %v10500
      %10533 = vst.msk [vmem:[%s360 + $0x70] sm:$0xff] %vm1664, %v10501
      %10534 = vst.msk [vmem:[%s360 + $0x78] sm:$0xff] %vm1664, %v10502
      %10535 = vst.msk [vmem:[%s360 + $0x80] sm:$0xff] %vm1664, %v10503
      %10536 = vst.msk [vmem:[%s360 + $0x88] sm:$0xff] %vm1664, %v10504
      %10537 = vst.msk [vmem:[%s360 + $0x90] sm:$0xff] %vm1664, %v10505
      %10538 = vst.msk [vmem:[%s360 + $0x98] sm:$0xff] %vm1664, %v10506
      %10539 = vst.msk [vmem:[%s360 + $0xa0] sm:$0xff] %vm1664, %v10507
      %10540 = vst.msk [vmem:[%s360 + $0xa8] sm:$0xff] %vm1664, %v10508
      %10541 = vst.msk [vmem:[%s360 + $0xb0] sm:$0xff] %vm1664, %v10509
      %10542 = vst.msk [vmem:[%s360 + $0xb8] sm:$0xff] %vm1664, %v10510
      %10543 = vst.msk [vmem:[%s360 + $0xc0] sm:$0xff] %vm1664, %v10511
      %10544 = vst.msk [vmem:[%s360 + $0xc8] sm:$0xff] %vm1664, %v10512
      %10545 = vst.msk [vmem:[%s360 + $0xd0] sm:$0xff] %vm1664, %v10513
      %10546 = vst.msk [vmem:[%s360 + $0xd8] sm:$0xff] %vm1664, %v10514
      %10547 = vst.msk [vmem:[%s360 + $0xe0] sm:$0xff] %vm1664, %v10515
      %10548 = vst.msk [vmem:[%s360 + $0xe8] sm:$0xff] %vm1664, %v10516
      %10549 = vst.msk [vmem:[%s360 + $0xf0] sm:$0xff] %vm1664, %v10517
      %10550 = vst.msk [vmem:[%s360 + $0xf8] sm:$0xff] %vm1664, %v10518
      %p10551 = scmp.lt.s32.totalorder %s20, 1
      %s10552 = scalar_select %p10551, %s20, 1
      %s10553 = smul.addr %s10552, 32
      %s10554 = smul.addr %s10553, 8
      %s10555 = scalar_lea.vmem %s9, %s10554
      // Predicated region
      $region57: #{tpu_custom_call.1} parent=55 // pred_check
        %p10556 = pneg %p242
      $region58: #{tpu_custom_call.1} parent=55 // pred_check_branch
        %10558 = sbr.rel (%p10556) target = $region60
      $region59: #{tpu_custom_call.1} parent=55 // pred_region
        _
      $region60: #{tpu_custom_call.1} parent=55 // pred_fallthru
        _
    $region56: #{tpu_custom_call.1} parent=5 // pred_fallthru
      _
    %p10559 = scmp.le.s32.totalorder 2, %s15
    // Predicated region
    $region61: #{tpu_custom_call.1} parent=5 // pred_check
      %p10560 = pneg %p10559
    $region62: #{tpu_custom_call.1} parent=5 // pred_check_branch
      %10562 = sbr.rel (%p10560) target = $region64
    $region63: #{tpu_custom_call.1} parent=5 // pred_region
      %s10563 = ssub.s32 %s15, 2
      // Predicated region
      $region65: #{tpu_custom_call.1} parent=63 // pred_check
        %p10564 = pneg %p248
      $region66: #{tpu_custom_call.1} parent=63 // pred_check_branch
        %10566 = sbr.rel (%p10564) target = $region68
      $region67: #{tpu_custom_call.1} parent=63 // pred_region
        %p10567 = scmp.lt.s32.totalorder %s21, 1
        %s10568 = scalar_select %p10567, %s21, 1
        %s10569 = smul.addr %s10568, 32
        %s10570 = smul.addr %s10569, 8
        %s10571 = scalar_lea.vmem %s9, %s10570
      $region68: #{tpu_custom_call.1} parent=63 // pred_fallthru
        _
    $region64: #{tpu_custom_call.1} parent=5 // pred_fallthru
      _
  $region6: #{tpu_custom_call.1} parent=0 // loop_footer
    %s19 = sadd.s32 1, %s15
  $region7: #{tpu_custom_call.1} parent=0 // loop_footer_branch
    %14 = sbr.rel target = $region3
  $region8: #{tpu_custom_call.1} parent=0 // loop_exit
    _

</llo_original>
